<compile_context>
chip_gen: v6e
topology: v6e:2x2x1
jax: 0.10.0
libtpu: 0.0.40
codegen_flags: <defaults>
</compile_context>

<pallas_src>
import math
from functools import partial

import jax
import jax.numpy as jnp
from jax.experimental import pallas as pl
from jax.experimental.pallas import tpu as pltpu

_MXU_DTYPE = jnp.bfloat16      # bf16 operands -> f32 accumulation on the MXU
_EPS = 1e-5


def _mm(a, b):
    """MXU matmul: bf16 operands, f32 accumulation."""
    return jnp.dot(a.astype(_MXU_DTYPE), b.astype(_MXU_DTYPE),
                   preferred_element_type=jnp.float32)


def _ln(x, g, b):
    """LayerNorm over the last dim (biased variance, torch default)."""
    mu = jnp.mean(x, axis=-1, keepdims=True)
    xc = x - mu
    var = jnp.mean(xc * xc, axis=-1, keepdims=True)
    return xc * jax.lax.rsqrt(var + _EPS) * g + b


# ----------------------------------------------------------------------------
# Single fused kernel: instance norm -> patch/pos embedding -> e_layers
# encoder layers -> final LayerNorm -> flatten -> classification head.
# Token rows are ordered series-major:  row = (b*C + c)*N + n.
# ----------------------------------------------------------------------------
def _model_kernel(x_ref, patch_ref, w_emb_ref, pos_ref,
                  wqkv_ref, bqkv_ref, wo_ref, bo_ref,
                  ln1g_ref, ln1b_ref, w1_ref, b1_ref, w2_ref, b2_ref,
                  ln2g_ref, ln2b_ref, ng_ref, nb_ref,
                  wp_ref, bp_ref,
                  o_ref,
                  qkv3_ref, attn_ref, flat_ref,
                  *, B, C, N, H, e_layers, act):
    BC = B * C                     # number of independent series
    T = BC * N                     # total tokens
    D = w_emb_ref.shape[1]
    Dh = D // H
    CN = C * N

    # ---- series (instance) normalization stats over the raw L samples ------
    xs = x_ref[...]                                        # (BC, L) raw series
    mu = jnp.mean(xs, axis=-1, keepdims=True)
    xc = xs - mu
    var = jnp.mean(xc * xc, axis=-1, keepdims=True)        # biased (unbiased=False)
    rsig = jax.lax.rsqrt(var + _EPS)                       # (BC, 1)

    # one-time tiny selector matrices: token -> its series / its patch index
    tf = jax.lax.broadcasted_iota(jnp.int32, (T, 1), 0).astype(jnp.float32)
    sf = jnp.floor(tf / N)                                 # series id of each token
    nf = tf - N * sf                                       # patch  id of each token
    ser_id = jax.lax.broadcasted_iota(jnp.int32, (1, BC), 1).astype(jnp.float32)
    pat_id = jax.lax.broadcasted_iota(jnp.int32, (1, N), 1).astype(jnp.float32)
    sel = jnp.where(sf == ser_id, 1.0, 0.0)                # (T, BC)
    selp = jnp.where(nf == pat_id, 1.0, 0.0)               # (T, N)

    mu_t = jnp.dot(sel, mu, preferred_element_type=jnp.float32)    # (T, 1)
    rs_t = jnp.dot(sel, rsig, preferred_element_type=jnp.float32)  # (T, 1)

    # ---- patch value embedding + positional embedding (one K=P matmul) -----
    pn = (patch_ref[...] - mu_t) * rs_t                    # normalized patches (T, P)
    h = (jnp.dot(pn, w_emb_ref[...], preferred_element_type=jnp.float32)
         + jnp.dot(selp, pos_ref[...], preferred_element_type=jnp.float32))
    # dropout -> identity (eval mode)

    # ---- encoder layers -----------------------------------------------------
    for l in range(e_layers):                              # static unroll
        # merged Q/K/V projection; 1/sqrt(Dh) already folded into Q weights
        qkv = _mm(h, wqkv_ref[l]) + bqkv_ref[l]            # (T, 3D) f32

        # regroup tokens into per-series blocks via cheap VMEM scratch stores
        for s in range(BC):
            qkv3_ref[s] = qkv[s * N:(s + 1) * N, :]
        qkv3 = qkv3_ref[...].astype(_MXU_DTYPE)            # (BC, N, 3D), one cast/layer

        # series-blocked multi-head attention (no mask, no dense (T,T) scores)
        for hh in range(H):
            q3 = qkv3[:, :, hh * Dh:(hh + 1) * Dh]
            k3 = qkv3[:, :, D + hh * Dh:D + (hh + 1) * Dh]
            v3 = qkv3[:, :, 2 * D + hh * Dh:2 * D + (hh + 1) * Dh]
            sc = jax.lax.dot_general(q3, k3, (((2,), (2,)), ((0,), (0,))),
                                     preferred_element_type=jnp.float32)   # (BC,N,N)
            sc = sc - jnp.max(sc, axis=-1, keepdims=True)
            pr = jnp.exp(sc)
            pr = pr * pl.reciprocal(jnp.sum(pr, axis=-1, keepdims=True), approx=True)
            oh = jax.lax.dot_general(pr.astype(_MXU_DTYPE), v3,
                                     (((2,), (1,)), ((0,), (0,))),
                                     preferred_element_type=jnp.float32)   # (BC,N,Dh)
            # write the head's output into its lane slice of the (T, D) buffer
            for s in range(BC):
                attn_ref[s * N:(s + 1) * N, hh * Dh:(hh + 1) * Dh] = oh[s]

        # single out-projection matmul per layer (K = D, not K = Dh)
        a = _mm(attn_ref[...], wo_ref[l]) + bo_ref[l]

        # residual + norm1, 1x1-conv FFN, residual + norm2 (all fused, f32 VPU)
        x1 = _ln(h + a, ln1g_ref[l], ln1b_ref[l])
        y = _mm(x1, w1_ref[l]) + b1_ref[l]
        if act == "relu":
            y = jnp.maximum(y, 0.0)
        else:
            y = jax.nn.gelu(y, approximate=True)           # tanh gelu -> EUP slot
        y = _mm(y, w2_ref[l]) + b2_ref[l]
        h = _ln(x1 + y, ln2g_ref[l], ln2b_ref[l])

    h = _ln(h, ng_ref[...], nb_ref[...])                   # encoder final LayerNorm

    # ---- fused classification head ------------------------------------------
    # flatten per batch element into (B, C*N*D) via static VMEM scratch stores
    # (head weight was permuted in the wrapper to match this token-major order)
    for b in range(B):
        for j in range(CN):
            flat_ref[b:b + 1, j * D:(j + 1) * D] = h[b * CN + j: b * CN + j + 1, :]
    logits = (jnp.dot(flat_ref[...], wp_ref[...], preferred_element_type=jnp.float32)
              + bp_ref[...])
    o_ref[...] = logits.astype(o_ref.dtype)                # (B, 128) lane-dense store


# ----------------------------------------------------------------------------
# Parameters (deterministic synthetic init, stacked per-layer weights)
# ----------------------------------------------------------------------------
def init_params(key, cfg):
    D, F, P = cfg["d_model"], cfg["d_ff"], cfg["patch_len"]
    L, S = cfg["seq_len"], cfg["stride"]
    C, E, K = cfg["enc_in"], cfg["e_layers"], cfg["num_class"]
    N = (L + S - P) // S + 1                 # patches from ReplicationPad + unfold
    head_nf = D * int((L - P) / S + 2)       # PyTorch Model.head_nf formula
    assert head_nf == D * N, "patch-count formulas disagree for this config"

    keys = jax.random.split(key, 8 * E + 8)
    it = iter(keys)

    def w(shape, scale=0.05):
        return scale * jax.random.normal(next(it), shape, jnp.float32)

    # fixed sinusoidal positional embedding (PatchTST PositionalEmbedding)
    pos = jnp.arange(N, dtype=jnp.float32)[:, None]
    div = jnp.exp(jnp.arange(0, D, 2, dtype=jnp.float32) * -(math.log(10000.0) / D))
    pe = jnp.zeros((N, D), jnp.float32)
    pe = pe.at[:, 0::2].set(jnp.sin(pos * div))
    pe = pe.at[:, 1::2].set(jnp.cos(pos * div))

    params = dict(
        w_emb=w((P, D)),                                   # Linear(patch_len, d_model, bias=False)
        pos_emb=pe,
        wqkv=w((E, D, 3 * D)), bqkv=w((E, 1, 3 * D)),      # merged Q/K/V projections
        wo=w((E, D, D)), bo=w((E, 1, D)),
        ln1_g=jnp.ones((E, 1, D), jnp.float32), ln1_b=jnp.zeros((E, 1, D), jnp.float32),
        w1=w((E, D, F)), b1=w((E, 1, F)),                  # Conv1d(d_model, d_ff, 1)
        w2=w((E, F, D)), b2=w((E, 1, D)),                  # Conv1d(d_ff, d_model, 1)
        ln2_g=jnp.ones((E, 1, D), jnp.float32), ln2_b=jnp.zeros((E, 1, D), jnp.float32),
        norm_g=jnp.ones((1, D), jnp.float32), norm_b=jnp.zeros((1, D), jnp.float32),
        wp=w((head_nf * C, K)), bp=w((K,)),
    )
    return params


# ----------------------------------------------------------------------------
# Pallas forward (matches Model.forward / Model.classification semantics)
# ----------------------------------------------------------------------------
def forward_pallas(params, x_enc, cfg):
    if cfg["seq_len_last"]:
        x_enc = jnp.transpose(x_enc, (0, 2, 1))
    B, L, C = x_enc.shape
    D, H = cfg["d_model"], cfg["n_heads"]
    P, S = cfg["patch_len"], cfg["stride"]
    K, E = cfg["num_class"], cfg["e_layers"]
    assert D % H == 0
    N = (L + S - P) // S + 1
    BC = B * C
    T = BC * N
    CND = C * N * D

    # ---- layout plumbing only (no model compute happens here) --------------
    # per-series rows + replication pad (pad-before-norm == pad-after-norm)
    x = jnp.transpose(x_enc, (0, 2, 1)).reshape(BC, L)                 # (BC, L)
    xp = jnp.concatenate([x, jnp.repeat(x[:, -1:], S, axis=1)], axis=1)
    # (T, P) patch slab, token row = series*N + patch  (series-major)
    patches = jnp.stack([xp[:, n * S:n * S + P] for n in range(N)], axis=1).reshape(T, P)

    # fold 1/sqrt(Dh) into the Q columns of the merged QKV weights (free here)
    scale = 1.0 / math.sqrt(D // H)
    qcol = jnp.concatenate([jnp.full((1, D), scale, jnp.float32),
                            jnp.ones((1, 2 * D), jnp.float32)], axis=1)
    wqkv = (params["wqkv"] * qcol).astype(_MXU_DTYPE)
    bqkv = params["bqkv"] * qcol
    # pre-cast MXU weight operands to bf16 (halves their DMA / VMEM footprint)
    wo = params["wo"].astype(_MXU_DTYPE)
    w1 = params["w1"].astype(_MXU_DTYPE)
    w2 = params["w2"].astype(_MXU_DTYPE)

    # permute head weight so the kernel's token-major flatten (c, n, d) matches
    # torch's (c, d, n) feature order; pad classes to a 128-lane dense store.
    KP = 128 * ((K + 127) // 128)
    wp = params["wp"].reshape(C, D, N, K).transpose(0, 2, 1, 3).reshape(CND, K)
    wp = jnp.pad(wp, ((0, 0), (0, KP - K)))
    bp = jnp.pad(params["bp"], (0, KP - K)).reshape(1, KP)

    out = pl.pallas_call(
        partial(_model_kernel, B=B, C=C, N=N, H=H, e_layers=E,
                act=cfg["activation"]),
        out_shape=jax.ShapeDtypeStruct((B, KP), jnp.float32),
        scratch_shapes=[
            pltpu.VMEM((BC, N, 3 * D), jnp.float32),   # per-series QKV blocks
            pltpu.VMEM((T, D), jnp.float32),           # per-head attention output slab
            pltpu.VMEM((B, CND), jnp.float32),         # flattened per-batch features
        ],
    )(x, patches, params["w_emb"], params["pos_emb"],
      wqkv, bqkv, wo, params["bo"],
      params["ln1_g"], params["ln1_b"],
      w1, params["b1"], w2, params["b2"],
      params["ln2_g"], params["ln2_b"],
      params["norm_g"], params["norm_b"],
      wp, bp)
    return out[:, :K]


# ----------------------------------------------------------------------------
# Pure-JAX (f32) reference mirroring the PyTorch Model — for validation only
# ----------------------------------------------------------------------------
def forward_ref(params, x_enc, cfg):
    if cfg["seq_len_last"]:
        x_enc = jnp.transpose(x_enc, (0, 2, 1))
    B, L, C = x_enc.shape
    D, H = cfg["d_model"], cfg["n_heads"]
    P, S = cfg["patch_len"], cfg["stride"]
    Dh = D // H
    N = (L + S - P) // S + 1

    def ln(x, g, b):
        mu = x.mean(-1, keepdims=True)
        var = ((x - mu) ** 2).mean(-1, keepdims=True)
        return (x - mu) / jnp.sqrt(var + _EPS) * g + b

    means = x_enc.mean(axis=1, keepdims=True)
    xz = x_enc - means
    stdev = jnp.sqrt(jnp.var(xz, axis=1, keepdims=True) + _EPS)
    xz = xz / stdev

    x = jnp.transpose(xz, (0, 2, 1)).reshape(B * C, L)
    xp = jnp.concatenate([x, jnp.repeat(x[:, -1:], S, axis=1)], axis=1)
    patches = jnp.stack([xp[:, i * S:i * S + P] for i in range(N)], axis=1)   # (BC, N, P)
    h = patches @ params["w_emb"] + params["pos_emb"][None]

    for l in range(cfg["e_layers"]):
        qkv = h @ params["wqkv"][l] + params["bqkv"][l, 0]
        q, k, v = qkv[..., :D], qkv[..., D:2 * D], qkv[..., 2 * D:]

        def split(t):
            return t.reshape(B * C, N, H, Dh).transpose(0, 2, 1, 3)

        s = jnp.einsum("bhld,bhsd->bhls", split(q), split(k)) / math.sqrt(Dh)
        p = jax.nn.softmax(s, axis=-1)
        o = jnp.einsum("bhls,bhsd->bhld", p, split(v))
        o = o.transpose(0, 2, 1, 3).reshape(B * C, N, D)
        a = o @ params["wo"][l] + params["bo"][l, 0]

        x1 = ln(h + a, params["ln1_g"][l, 0], params["ln1_b"][l, 0])
        y = x1 @ params["w1"][l] + params["b1"][l, 0]
        y = jnp.maximum(y, 0.0) if cfg["activation"] == "relu" else jax.nn.gelu(y, approximate=False)
        y = y @ params["w2"][l] + params["b2"][l, 0]
        h = ln(x1 + y, params["ln2_g"][l, 0], params["ln2_b"][l, 0])

    h = ln(h, params["norm_g"][0], params["norm_b"][0])
    enc = h.reshape(B, C, N, D).transpose(0, 1, 3, 2).reshape(B, -1)
    return enc @ params["wp"] + params["bp"]


# ----------------------------------------------------------------------------
if __name__ == "__main__":
    cfg = dict(
        enc_in=4, num_class=3, n_heads=4, e_layers=2, dropout=0.1,
        d_model=32, d_ff=64, activation="relu", output_attention=False,
        seq_len=32, patch_len=16, stride=8, seq_len_last=False,
    )
    key = jax.random.PRNGKey(0)
    params = init_params(key, cfg)

    x_key = jax.random.fold_in(key, 123)
    x_enc = jax.random.normal(x_key, (2, cfg["seq_len"], cfg["enc_in"]), jnp.float32)

    fwd = jax.jit(lambda p, x: forward_pallas(p, x, cfg))
    out = jax.block_until_ready(fwd(params, x_enc))

    ref = forward_ref(params, x_enc, cfg)
    assert out.shape == (2, cfg["num_class"])
    assert bool(jnp.all(jnp.isfinite(out)))
    assert bool(jnp.allclose(out, ref, atol=5e-2, rtol=5e-2)), \
        f"max abs err = {float(jnp.max(jnp.abs(out - ref)))}"

    print("KERNEL_OK")
</pallas_src>

<mosaic_0001>
module attributes {stable_mosaic.version = 11 : i64} {
  func.func @_model_kernel(%arg0: memref<8x32xf32, #tpu.memory_space<vmem>>, %arg1: memref<32x16xf32, #tpu.memory_space<vmem>>, %arg2: memref<16x32xf32, #tpu.memory_space<vmem>>, %arg3: memref<4x32xf32, #tpu.memory_space<vmem>>, %arg4: memref<2x32x96xbf16, #tpu.memory_space<vmem>>, %arg5: memref<2x1x96xf32, #tpu.memory_space<vmem>>, %arg6: memref<2x32x32xbf16, #tpu.memory_space<vmem>>, %arg7: memref<2x1x32xf32, #tpu.memory_space<vmem>>, %arg8: memref<2x1x32xf32, #tpu.memory_space<vmem>>, %arg9: memref<2x1x32xf32, #tpu.memory_space<vmem>>, %arg10: memref<2x32x64xbf16, #tpu.memory_space<vmem>>, %arg11: memref<2x1x64xf32, #tpu.memory_space<vmem>>, %arg12: memref<2x64x32xbf16, #tpu.memory_space<vmem>>, %arg13: memref<2x1x32xf32, #tpu.memory_space<vmem>>, %arg14: memref<2x1x32xf32, #tpu.memory_space<vmem>>, %arg15: memref<2x1x32xf32, #tpu.memory_space<vmem>>, %arg16: memref<1x32xf32, #tpu.memory_space<vmem>>, %arg17: memref<1x32xf32, #tpu.memory_space<vmem>>, %arg18: memref<512x128xf32, #tpu.memory_space<vmem>>, %arg19: memref<1x128xf32, #tpu.memory_space<vmem>>, %arg20: memref<2x128xf32, #tpu.memory_space<vmem>>, %arg21: memref<8x4x96xf32, #tpu.memory_space<vmem>>, %arg22: memref<32x32xf32, #tpu.memory_space<vmem>>, %arg23: memref<2x512xf32, #tpu.memory_space<vmem>>) attributes {dimension_semantics = [], scalar_prefetch = 0 : i64, scratch_operands = 3 : i64, tpu.core_type = #tpu.core_type<tc>} {
    %c0 = arith.constant 0 : index
    %c0_0 = arith.constant 0 : index
    %0 = vector.load %arg0[%c0, %c0_0] : memref<8x32xf32, #tpu.memory_space<vmem>>, vector<8x32xf32>
    %cst = arith.constant dense<0.000000e+00> : vector<8xf32>
    %1 = vector.multi_reduction <add>, %0, %cst [1] : vector<8x32xf32> to vector<8xf32>
    %2 = vector.shape_cast %1 : vector<8xf32> to vector<8x1xf32>
    %cst_1 = arith.constant 3.200000e+01 : f32
    %3 = vector.broadcast %cst_1 : f32 to vector<8x1xf32>
    %4 = arith.divf %2, %3 : vector<8x1xf32>
    %5 = vector.broadcast %4 : vector<8x1xf32> to vector<8x32xf32>
    %6 = arith.subf %0, %5 : vector<8x32xf32>
    %7 = arith.mulf %6, %6 : vector<8x32xf32>
    %cst_2 = arith.constant dense<0.000000e+00> : vector<8xf32>
    %8 = vector.multi_reduction <add>, %7, %cst_2 [1] : vector<8x32xf32> to vector<8xf32>
    %9 = vector.shape_cast %8 : vector<8xf32> to vector<8x1xf32>
    %cst_3 = arith.constant 3.200000e+01 : f32
    %10 = vector.broadcast %cst_3 : f32 to vector<8x1xf32>
    %11 = arith.divf %9, %10 : vector<8x1xf32>
    %cst_4 = arith.constant 9.99999974E-6 : f32
    %12 = vector.broadcast %cst_4 : f32 to vector<8x1xf32>
    %13 = arith.addf %11, %12 : vector<8x1xf32>
    %14 = math.rsqrt %13 : vector<8x1xf32>
    %15 = tpu.iota {dimensions = array<i32: 0>} : vector<32x1xi32>
    %16 = arith.sitofp %15 : vector<32x1xi32> to vector<32x1xf32>
    %cst_5 = arith.constant 4.000000e+00 : f32
    %17 = vector.broadcast %cst_5 : f32 to vector<32x1xf32>
    %18 = arith.divf %16, %17 : vector<32x1xf32>
    %19 = math.floor %18 : vector<32x1xf32>
    %cst_6 = arith.constant 4.000000e+00 : f32
    %20 = vector.broadcast %cst_6 : f32 to vector<32x1xf32>
    %21 = arith.mulf %20, %19 : vector<32x1xf32>
    %22 = arith.subf %16, %21 : vector<32x1xf32>
    %23 = tpu.iota {dimensions = array<i32: 1>} : vector<1x8xi32>
    %24 = arith.sitofp %23 : vector<1x8xi32> to vector<1x8xf32>
    %25 = tpu.iota {dimensions = array<i32: 1>} : vector<1x4xi32>
    %26 = arith.sitofp %25 : vector<1x4xi32> to vector<1x4xf32>
    %27 = vector.broadcast %19 : vector<32x1xf32> to vector<32x8xf32>
    %28 = vector.broadcast %24 : vector<1x8xf32> to vector<32x8xf32>
    %29 = arith.cmpf oeq, %27, %28 : vector<32x8xf32>
    %cst_7 = arith.constant 1.000000e+00 : f32
    %cst_8 = arith.constant 0.000000e+00 : f32
    %30 = vector.broadcast %cst_7 : f32 to vector<32x8xf32>
    %31 = vector.broadcast %cst_8 : f32 to vector<32x8xf32>
    %32 = arith.select %29, %30, %31 : vector<32x8xi1>, vector<32x8xf32>
    %33 = vector.broadcast %22 : vector<32x1xf32> to vector<32x4xf32>
    %34 = vector.broadcast %26 : vector<1x4xf32> to vector<32x4xf32>
    %35 = arith.cmpf oeq, %33, %34 : vector<32x4xf32>
    %cst_9 = arith.constant 1.000000e+00 : f32
    %cst_10 = arith.constant 0.000000e+00 : f32
    %36 = vector.broadcast %cst_9 : f32 to vector<32x4xf32>
    %37 = vector.broadcast %cst_10 : f32 to vector<32x4xf32>
    %38 = arith.select %35, %36, %37 : vector<32x4xi1>, vector<32x4xf32>
    %cst_11 = arith.constant dense<0.000000e+00> : vector<32x1xf32>
    %39 = tpu.matmul %32, %4, %cst_11 {dimension_numbers = #tpu.dot_dimension_numbers<[1], [0], [0], [1], [0, 0, 1, 1], [], []>} : vector<32x8xf32>, vector<8x1xf32>, vector<32x1xf32> -> vector<32x1xf32>
    %cst_12 = arith.constant dense<0.000000e+00> : vector<32x1xf32>
    %40 = tpu.matmul %32, %14, %cst_12 {dimension_numbers = #tpu.dot_dimension_numbers<[1], [0], [0], [1], [0, 0, 1, 1], [], []>} : vector<32x8xf32>, vector<8x1xf32>, vector<32x1xf32> -> vector<32x1xf32>
    %c0_13 = arith.constant 0 : index
    %c0_14 = arith.constant 0 : index
    %41 = vector.load %arg1[%c0_13, %c0_14] : memref<32x16xf32, #tpu.memory_space<vmem>>, vector<32x16xf32>
    %42 = vector.broadcast %39 : vector<32x1xf32> to vector<32x16xf32>
    %43 = arith.subf %41, %42 : vector<32x16xf32>
    %44 = vector.broadcast %40 : vector<32x1xf32> to vector<32x16xf32>
    %45 = arith.mulf %43, %44 : vector<32x16xf32>
    %c0_15 = arith.constant 0 : index
    %c0_16 = arith.constant 0 : index
    %46 = vector.load %arg2[%c0_15, %c0_16] : memref<16x32xf32, #tpu.memory_space<vmem>>, vector<16x32xf32>
    %cst_17 = arith.constant dense<0.000000e+00> : vector<32x32xf32>
    %47 = tpu.matmul %45, %46, %cst_17 {dimension_numbers = #tpu.dot_dimension_numbers<[1], [0], [0], [1], [0, 0, 1, 1], [], []>} : vector<32x16xf32>, vector<16x32xf32>, vector<32x32xf32> -> vector<32x32xf32>
    %c0_18 = arith.constant 0 : index
    %c0_19 = arith.constant 0 : index
    %48 = vector.load %arg3[%c0_18, %c0_19] : memref<4x32xf32, #tpu.memory_space<vmem>>, vector<4x32xf32>
    %cst_20 = arith.constant dense<0.000000e+00> : vector<32x32xf32>
    %49 = tpu.matmul %38, %48, %cst_20 {dimension_numbers = #tpu.dot_dimension_numbers<[1], [0], [0], [1], [0, 0, 1, 1], [], []>} : vector<32x4xf32>, vector<4x32xf32>, vector<32x32xf32> -> vector<32x32xf32>
    %50 = arith.addf %47, %49 : vector<32x32xf32>
    %c0_21 = arith.constant 0 : index
    %c0_22 = arith.constant 0 : index
    %c0_23 = arith.constant 0 : index
    %51 = vector.load %arg4[%c0_21, %c0_22, %c0_23] : memref<2x32x96xbf16, #tpu.memory_space<vmem>>, vector<1x32x96xbf16>
    %52 = vector.shape_cast %51 : vector<1x32x96xbf16> to vector<32x96xbf16>
    %53 = arith.truncf %50 : vector<32x32xf32> to vector<32x32xbf16>
    %cst_24 = arith.constant dense<0.000000e+00> : vector<32x96xf32>
    %54 = tpu.matmul %53, %52, %cst_24 {dimension_numbers = #tpu.dot_dimension_numbers<[1], [0], [0], [1], [0, 0, 1, 1], [], []>} : vector<32x32xbf16>, vector<32x96xbf16>, vector<32x96xf32> -> vector<32x96xf32>
    %c0_25 = arith.constant 0 : index
    %c0_26 = arith.constant 0 : index
    %c0_27 = arith.constant 0 : index
    %55 = vector.load %arg5[%c0_25, %c0_26, %c0_27] : memref<2x1x96xf32, #tpu.memory_space<vmem>>, vector<1x1x96xf32>
    %56 = vector.shape_cast %55 : vector<1x1x96xf32> to vector<1x96xf32>
    %57 = vector.broadcast %56 : vector<1x96xf32> to vector<32x96xf32>
    %58 = arith.addf %54, %57 : vector<32x96xf32>
    %59 = vector.extract_strided_slice %58 {offsets = [0, 0], sizes = [4, 96], strides = [1, 1]} : vector<32x96xf32> to vector<4x96xf32>
    %c0_28 = arith.constant 0 : index
    %c0_29 = arith.constant 0 : index
    %c0_30 = arith.constant 0 : index
    %60 = vector.load %arg21[%c0_28, %c0_29, %c0_30] : memref<8x4x96xf32, #tpu.memory_space<vmem>>, vector<1x4x96xf32>
    %61 = vector.shape_cast %60 : vector<1x4x96xf32> to vector<4x96xf32>
    %62 = vector.shape_cast %59 : vector<4x96xf32> to vector<1x4x96xf32>
    tpu.vector_store %arg21[%c0_28, %c0_29, %c0_30], %62 {strides = array<i32>} : memref<8x4x96xf32, #tpu.memory_space<vmem>>, vector<1x4x96xf32>,
    %63 = vector.extract_strided_slice %58 {offsets = [4, 0], sizes = [4, 96], strides = [1, 1]} : vector<32x96xf32> to vector<4x96xf32>
    %c1 = arith.constant 1 : index
    %c0_31 = arith.constant 0 : index
    %c0_32 = arith.constant 0 : index
    %64 = vector.load %arg21[%c1, %c0_31, %c0_32] : memref<8x4x96xf32, #tpu.memory_space<vmem>>, vector<1x4x96xf32>
    %65 = vector.shape_cast %64 : vector<1x4x96xf32> to vector<4x96xf32>
    %66 = vector.shape_cast %63 : vector<4x96xf32> to vector<1x4x96xf32>
    tpu.vector_store %arg21[%c1, %c0_31, %c0_32], %66 {strides = array<i32>} : memref<8x4x96xf32, #tpu.memory_space<vmem>>, vector<1x4x96xf32>,
    %67 = vector.extract_strided_slice %58 {offsets = [8, 0], sizes = [4, 96], strides = [1, 1]} : vector<32x96xf32> to vector<4x96xf32>
    %c2 = arith.constant 2 : index
    %c0_33 = arith.constant 0 : index
    %c0_34 = arith.constant 0 : index
    %68 = vector.load %arg21[%c2, %c0_33, %c0_34] : memref<8x4x96xf32, #tpu.memory_space<vmem>>, vector<1x4x96xf32>
    %69 = vector.shape_cast %68 : vector<1x4x96xf32> to vector<4x96xf32>
    %70 = vector.shape_cast %67 : vector<4x96xf32> to vector<1x4x96xf32>
    tpu.vector_store %arg21[%c2, %c0_33, %c0_34], %70 {strides = array<i32>} : memref<8x4x96xf32, #tpu.memory_space<vmem>>, vector<1x4x96xf32>,
    %71 = vector.extract_strided_slice %58 {offsets = [12, 0], sizes = [4, 96], strides = [1, 1]} : vector<32x96xf32> to vector<4x96xf32>
    %c3 = arith.constant 3 : index
    %c0_35 = arith.constant 0 : index
    %c0_36 = arith.constant 0 : index
    %72 = vector.load %arg21[%c3, %c0_35, %c0_36] : memref<8x4x96xf32, #tpu.memory_space<vmem>>, vector<1x4x96xf32>
    %73 = vector.shape_cast %72 : vector<1x4x96xf32> to vector<4x96xf32>
    %74 = vector.shape_cast %71 : vector<4x96xf32> to vector<1x4x96xf32>
    tpu.vector_store %arg21[%c3, %c0_35, %c0_36], %74 {strides = array<i32>} : memref<8x4x96xf32, #tpu.memory_space<vmem>>, vector<1x4x96xf32>,
    %75 = vector.extract_strided_slice %58 {offsets = [16, 0], sizes = [4, 96], strides = [1, 1]} : vector<32x96xf32> to vector<4x96xf32>
    %c4 = arith.constant 4 : index
    %c0_37 = arith.constant 0 : index
    %c0_38 = arith.constant 0 : index
    %76 = vector.load %arg21[%c4, %c0_37, %c0_38] : memref<8x4x96xf32, #tpu.memory_space<vmem>>, vector<1x4x96xf32>
    %77 = vector.shape_cast %76 : vector<1x4x96xf32> to vector<4x96xf32>
    %78 = vector.shape_cast %75 : vector<4x96xf32> to vector<1x4x96xf32>
    tpu.vector_store %arg21[%c4, %c0_37, %c0_38], %78 {strides = array<i32>} : memref<8x4x96xf32, #tpu.memory_space<vmem>>, vector<1x4x96xf32>,
    %79 = vector.extract_strided_slice %58 {offsets = [20, 0], sizes = [4, 96], strides = [1, 1]} : vector<32x96xf32> to vector<4x96xf32>
    %c5 = arith.constant 5 : index
    %c0_39 = arith.constant 0 : index
    %c0_40 = arith.constant 0 : index
    %80 = vector.load %arg21[%c5, %c0_39, %c0_40] : memref<8x4x96xf32, #tpu.memory_space<vmem>>, vector<1x4x96xf32>
    %81 = vector.shape_cast %80 : vector<1x4x96xf32> to vector<4x96xf32>
    %82 = vector.shape_cast %79 : vector<4x96xf32> to vector<1x4x96xf32>
    tpu.vector_store %arg21[%c5, %c0_39, %c0_40], %82 {strides = array<i32>} : memref<8x4x96xf32, #tpu.memory_space<vmem>>, vector<1x4x96xf32>,
    %83 = vector.extract_strided_slice %58 {offsets = [24, 0], sizes = [4, 96], strides = [1, 1]} : vector<32x96xf32> to vector<4x96xf32>
    %c6 = arith.constant 6 : index
    %c0_41 = arith.constant 0 : index
    %c0_42 = arith.constant 0 : index
    %84 = vector.load %arg21[%c6, %c0_41, %c0_42] : memref<8x4x96xf32, #tpu.memory_space<vmem>>, vector<1x4x96xf32>
    %85 = vector.shape_cast %84 : vector<1x4x96xf32> to vector<4x96xf32>
    %86 = vector.shape_cast %83 : vector<4x96xf32> to vector<1x4x96xf32>
    tpu.vector_store %arg21[%c6, %c0_41, %c0_42], %86 {strides = array<i32>} : memref<8x4x96xf32, #tpu.memory_space<vmem>>, vector<1x4x96xf32>,
    %87 = vector.extract_strided_slice %58 {offsets = [28, 0], sizes = [4, 96], strides = [1, 1]} : vector<32x96xf32> to vector<4x96xf32>
    %c7 = arith.constant 7 : index
    %c0_43 = arith.constant 0 : index
    %c0_44 = arith.constant 0 : index
    %88 = vector.load %arg21[%c7, %c0_43, %c0_44] : memref<8x4x96xf32, #tpu.memory_space<vmem>>, vector<1x4x96xf32>
    %89 = vector.shape_cast %88 : vector<1x4x96xf32> to vector<4x96xf32>
    %90 = vector.shape_cast %87 : vector<4x96xf32> to vector<1x4x96xf32>
    tpu.vector_store %arg21[%c7, %c0_43, %c0_44], %90 {strides = array<i32>} : memref<8x4x96xf32, #tpu.memory_space<vmem>>, vector<1x4x96xf32>,
    %c0_45 = arith.constant 0 : index
    %c0_46 = arith.constant 0 : index
    %c0_47 = arith.constant 0 : index
    %91 = vector.load %arg21[%c0_45, %c0_46, %c0_47] : memref<8x4x96xf32, #tpu.memory_space<vmem>>, vector<8x4x96xf32>
    %92 = arith.truncf %91 : vector<8x4x96xf32> to vector<8x4x96xbf16>
    %93 = vector.extract_strided_slice %92 {offsets = [0, 0, 0], sizes = [8, 4, 8], strides = [1, 1, 1]} : vector<8x4x96xbf16> to vector<8x4x8xbf16>
    %94 = vector.extract_strided_slice %92 {offsets = [0, 0, 32], sizes = [8, 4, 8], strides = [1, 1, 1]} : vector<8x4x96xbf16> to vector<8x4x8xbf16>
    %95 = vector.extract_strided_slice %92 {offsets = [0, 0, 64], sizes = [8, 4, 8], strides = [1, 1, 1]} : vector<8x4x96xbf16> to vector<8x4x8xbf16>
    %cst_48 = arith.constant dense<0.000000e+00> : vector<8x4x4xf32>
    %96 = tpu.matmul %93, %94, %cst_48 {dimension_numbers = #tpu.dot_dimension_numbers<[2], [2], [1], [1], [0, 0, 0, 1, 1, 1], [0], [0]>} : vector<8x4x8xbf16>, vector<8x4x8xbf16>, vector<8x4x4xf32> -> vector<8x4x4xf32>
    %cst_49 = arith.constant dense<0xFF800000> : vector<8x4xf32>
    %97 = vector.multi_reduction <maximumf>, %96, %cst_49 [2] : vector<8x4x4xf32> to vector<8x4xf32>
    %98 = vector.shape_cast %97 : vector<8x4xf32> to vector<8x4x1xf32>
    %99 = vector.broadcast %98 : vector<8x4x1xf32> to vector<8x4x4xf32>
    %100 = arith.subf %96, %99 : vector<8x4x4xf32>
    %101 = math.exp %100 : vector<8x4x4xf32>
    %cst_50 = arith.constant dense<0.000000e+00> : vector<8x4xf32>
    %102 = vector.multi_reduction <add>, %101, %cst_50 [2] : vector<8x4x4xf32> to vector<8x4xf32>
    %103 = vector.shape_cast %102 : vector<8x4xf32> to vector<8x4x1xf32>
    %104 = tpu.reciprocal %103 {approx = true} : vector<8x4x1xf32> -> vector<8x4x1xf32>
    %105 = vector.broadcast %104 : vector<8x4x1xf32> to vector<8x4x4xf32>
    %106 = arith.mulf %101, %105 : vector<8x4x4xf32>
    %107 = arith.truncf %106 : vector<8x4x4xf32> to vector<8x4x4xbf16>
    %cst_51 = arith.constant dense<0.000000e+00> : vector<8x4x8xf32>
    %108 = tpu.matmul %107, %95, %cst_51 {dimension_numbers = #tpu.dot_dimension_numbers<[2], [1], [1], [2], [0, 0, 0, 1, 1, 2], [0], [0]>} : vector<8x4x4xbf16>, vector<8x4x8xbf16>, vector<8x4x8xf32> -> vector<8x4x8xf32>
    %109 = vector.extract_strided_slice %108 {offsets = [0, 0, 0], sizes = [1, 4, 8], strides = [1, 1, 1]} : vector<8x4x8xf32> to vector<1x4x8xf32>
    %110 = vector.shape_cast %109 : vector<1x4x8xf32> to vector<4x8xf32>
    %c0_52 = arith.constant 0 : index
    %c0_53 = arith.constant 0 : index
    %111 = vector.load %arg22[%c0_52, %c0_53] : memref<32x32xf32, #tpu.memory_space<vmem>>, vector<4x8xf32>
    tpu.vector_store %arg22[%c0_52, %c0_53], %110 {strides = array<i32>} : memref<32x32xf32, #tpu.memory_space<vmem>>, vector<4x8xf32>,
    %112 = vector.extract_strided_slice %108 {offsets = [1, 0, 0], sizes = [1, 4, 8], strides = [1, 1, 1]} : vector<8x4x8xf32> to vector<1x4x8xf32>
    %113 = vector.shape_cast %112 : vector<1x4x8xf32> to vector<4x8xf32>
    %c4_54 = arith.constant 4 : index
    %c0_55 = arith.constant 0 : index
    %114 = vector.load %arg22[%c4_54, %c0_55] : memref<32x32xf32, #tpu.memory_space<vmem>>, vector<4x8xf32>
    tpu.vector_store %arg22[%c4_54, %c0_55], %113 {strides = array<i32>} : memref<32x32xf32, #tpu.memory_space<vmem>>, vector<4x8xf32>,
    %115 = vector.extract_strided_slice %108 {offsets = [2, 0, 0], sizes = [1, 4, 8], strides = [1, 1, 1]} : vector<8x4x8xf32> to vector<1x4x8xf32>
    %116 = vector.shape_cast %115 : vector<1x4x8xf32> to vector<4x8xf32>
    %c8 = arith.constant 8 : index
    %c0_56 = arith.constant 0 : index
    %117 = vector.load %arg22[%c8, %c0_56] : memref<32x32xf32, #tpu.memory_space<vmem>>, vector<4x8xf32>
    tpu.vector_store %arg22[%c8, %c0_56], %116 {strides = array<i32>} : memref<32x32xf32, #tpu.memory_space<vmem>>, vector<4x8xf32>,
    %118 = vector.extract_strided_slice %108 {offsets = [3, 0, 0], sizes = [1, 4, 8], strides = [1, 1, 1]} : vector<8x4x8xf32> to vector<1x4x8xf32>
    %119 = vector.shape_cast %118 : vector<1x4x8xf32> to vector<4x8xf32>
    %c12 = arith.constant 12 : index
    %c0_57 = arith.constant 0 : index
    %120 = vector.load %arg22[%c12, %c0_57] : memref<32x32xf32, #tpu.memory_space<vmem>>, vector<4x8xf32>
    tpu.vector_store %arg22[%c12, %c0_57], %119 {strides = array<i32>} : memref<32x32xf32, #tpu.memory_space<vmem>>, vector<4x8xf32>,
    %121 = vector.extract_strided_slice %108 {offsets = [4, 0, 0], sizes = [1, 4, 8], strides = [1, 1, 1]} : vector<8x4x8xf32> to vector<1x4x8xf32>
    %122 = vector.shape_cast %121 : vector<1x4x8xf32> to vector<4x8xf32>
    %c16 = arith.constant 16 : index
    %c0_58 = arith.constant 0 : index
    %123 = vector.load %arg22[%c16, %c0_58] : memref<32x32xf32, #tpu.memory_space<vmem>>, vector<4x8xf32>
    tpu.vector_store %arg22[%c16, %c0_58], %122 {strides = array<i32>} : memref<32x32xf32, #tpu.memory_space<vmem>>, vector<4x8xf32>,
    %124 = vector.extract_strided_slice %108 {offsets = [5, 0, 0], sizes = [1, 4, 8], strides = [1, 1, 1]} : vector<8x4x8xf32> to vector<1x4x8xf32>
    %125 = vector.shape_cast %124 : vector<1x4x8xf32> to vector<4x8xf32>
    %c20 = arith.constant 20 : index
    %c0_59 = arith.constant 0 : index
    %126 = vector.load %arg22[%c20, %c0_59] : memref<32x32xf32, #tpu.memory_space<vmem>>, vector<4x8xf32>
    tpu.vector_store %arg22[%c20, %c0_59], %125 {strides = array<i32>} : memref<32x32xf32, #tpu.memory_space<vmem>>, vector<4x8xf32>,
    %127 = vector.extract_strided_slice %108 {offsets = [6, 0, 0], sizes = [1, 4, 8], strides = [1, 1, 1]} : vector<8x4x8xf32> to vector<1x4x8xf32>
    %128 = vector.shape_cast %127 : vector<1x4x8xf32> to vector<4x8xf32>
    %c24 = arith.constant 24 : index
    %c0_60 = arith.constant 0 : index
    %129 = vector.load %arg22[%c24, %c0_60] : memref<32x32xf32, #tpu.memory_space<vmem>>, vector<4x8xf32>
    tpu.vector_store %arg22[%c24, %c0_60], %128 {strides = array<i32>} : memref<32x32xf32, #tpu.memory_space<vmem>>, vector<4x8xf32>,
    %130 = vector.extract_strided_slice %108 {offsets = [7, 0, 0], sizes = [1, 4, 8], strides = [1, 1, 1]} : vector<8x4x8xf32> to vector<1x4x8xf32>
    %131 = vector.shape_cast %130 : vector<1x4x8xf32> to vector<4x8xf32>
    %c28 = arith.constant 28 : index
    %c0_61 = arith.constant 0 : index
    %132 = vector.load %arg22[%c28, %c0_61] : memref<32x32xf32, #tpu.memory_space<vmem>>, vector<4x8xf32>
    tpu.vector_store %arg22[%c28, %c0_61], %131 {strides = array<i32>} : memref<32x32xf32, #tpu.memory_space<vmem>>, vector<4x8xf32>,
    %133 = vector.extract_strided_slice %92 {offsets = [0, 0, 8], sizes = [8, 4, 8], strides = [1, 1, 1]} : vector<8x4x96xbf16> to vector<8x4x8xbf16>
    %134 = vector.extract_strided_slice %92 {offsets = [0, 0, 40], sizes = [8, 4, 8], strides = [1, 1, 1]} : vector<8x4x96xbf16> to vector<8x4x8xbf16>
    %135 = vector.extract_strided_slice %92 {offsets = [0, 0, 72], sizes = [8, 4, 8], strides = [1, 1, 1]} : vector<8x4x96xbf16> to vector<8x4x8xbf16>
    %cst_62 = arith.constant dense<0.000000e+00> : vector<8x4x4xf32>
    %136 = tpu.matmul %133, %134, %cst_62 {dimension_numbers = #tpu.dot_dimension_numbers<[2], [2], [1], [1], [0, 0, 0, 1, 1, 1], [0], [0]>} : vector<8x4x8xbf16>, vector<8x4x8xbf16>, vector<8x4x4xf32> -> vector<8x4x4xf32>
    %cst_63 = arith.constant dense<0xFF800000> : vector<8x4xf32>
    %137 = vector.multi_reduction <maximumf>, %136, %cst_63 [2] : vector<8x4x4xf32> to vector<8x4xf32>
    %138 = vector.shape_cast %137 : vector<8x4xf32> to vector<8x4x1xf32>
    %139 = vector.broadcast %138 : vector<8x4x1xf32> to vector<8x4x4xf32>
    %140 = arith.subf %136, %139 : vector<8x4x4xf32>
    %141 = math.exp %140 : vector<8x4x4xf32>
    %cst_64 = arith.constant dense<0.000000e+00> : vector<8x4xf32>
    %142 = vector.multi_reduction <add>, %141, %cst_64 [2] : vector<8x4x4xf32> to vector<8x4xf32>
    %143 = vector.shape_cast %142 : vector<8x4xf32> to vector<8x4x1xf32>
    %144 = tpu.reciprocal %143 {approx = true} : vector<8x4x1xf32> -> vector<8x4x1xf32>
    %145 = vector.broadcast %144 : vector<8x4x1xf32> to vector<8x4x4xf32>
    %146 = arith.mulf %141, %145 : vector<8x4x4xf32>
    %147 = arith.truncf %146 : vector<8x4x4xf32> to vector<8x4x4xbf16>
    %cst_65 = arith.constant dense<0.000000e+00> : vector<8x4x8xf32>
    %148 = tpu.matmul %147, %135, %cst_65 {dimension_numbers = #tpu.dot_dimension_numbers<[2], [1], [1], [2], [0, 0, 0, 1, 1, 2], [0], [0]>} : vector<8x4x4xbf16>, vector<8x4x8xbf16>, vector<8x4x8xf32> -> vector<8x4x8xf32>
    %149 = vector.extract_strided_slice %148 {offsets = [0, 0, 0], sizes = [1, 4, 8], strides = [1, 1, 1]} : vector<8x4x8xf32> to vector<1x4x8xf32>
    %150 = vector.shape_cast %149 : vector<1x4x8xf32> to vector<4x8xf32>
    %c0_66 = arith.constant 0 : index
    %c8_67 = arith.constant 8 : index
    %151 = vector.load %arg22[%c0_66, %c8_67] : memref<32x32xf32, #tpu.memory_space<vmem>>, vector<4x8xf32>
    tpu.vector_store %arg22[%c0_66, %c8_67], %150 {strides = array<i32>} : memref<32x32xf32, #tpu.memory_space<vmem>>, vector<4x8xf32>,
    %152 = vector.extract_strided_slice %148 {offsets = [1, 0, 0], sizes = [1, 4, 8], strides = [1, 1, 1]} : vector<8x4x8xf32> to vector<1x4x8xf32>
    %153 = vector.shape_cast %152 : vector<1x4x8xf32> to vector<4x8xf32>
    %c4_68 = arith.constant 4 : index
    %c8_69 = arith.constant 8 : index
    %154 = vector.load %arg22[%c4_68, %c8_69] : memref<32x32xf32, #tpu.memory_space<vmem>>, vector<4x8xf32>
    tpu.vector_store %arg22[%c4_68, %c8_69], %153 {strides = array<i32>} : memref<32x32xf32, #tpu.memory_space<vmem>>, vector<4x8xf32>,
    %155 = vector.extract_strided_slice %148 {offsets = [2, 0, 0], sizes = [1, 4, 8], strides = [1, 1, 1]} : vector<8x4x8xf32> to vector<1x4x8xf32>
    %156 = vector.shape_cast %155 : vector<1x4x8xf32> to vector<4x8xf32>
    %c8_70 = arith.constant 8 : index
    %c8_71 = arith.constant 8 : index
    %157 = vector.load %arg22[%c8_70, %c8_71] : memref<32x32xf32, #tpu.memory_space<vmem>>, vector<4x8xf32>
    tpu.vector_store %arg22[%c8_70, %c8_71], %156 {strides = array<i32>} : memref<32x32xf32, #tpu.memory_space<vmem>>, vector<4x8xf32>,
    %158 = vector.extract_strided_slice %148 {offsets = [3, 0, 0], sizes = [1, 4, 8], strides = [1, 1, 1]} : vector<8x4x8xf32> to vector<1x4x8xf32>
    %159 = vector.shape_cast %158 : vector<1x4x8xf32> to vector<4x8xf32>
    %c12_72 = arith.constant 12 : index
    %c8_73 = arith.constant 8 : index
    %160 = vector.load %arg22[%c12_72, %c8_73] : memref<32x32xf32, #tpu.memory_space<vmem>>, vector<4x8xf32>
    tpu.vector_store %arg22[%c12_72, %c8_73], %159 {strides = array<i32>} : memref<32x32xf32, #tpu.memory_space<vmem>>, vector<4x8xf32>,
    %161 = vector.extract_strided_slice %148 {offsets = [4, 0, 0], sizes = [1, 4, 8], strides = [1, 1, 1]} : vector<8x4x8xf32> to vector<1x4x8xf32>
    %162 = vector.shape_cast %161 : vector<1x4x8xf32> to vector<4x8xf32>
    %c16_74 = arith.constant 16 : index
    %c8_75 = arith.constant 8 : index
    %163 = vector.load %arg22[%c16_74, %c8_75] : memref<32x32xf32, #tpu.memory_space<vmem>>, vector<4x8xf32>
    tpu.vector_store %arg22[%c16_74, %c8_75], %162 {strides = array<i32>} : memref<32x32xf32, #tpu.memory_space<vmem>>, vector<4x8xf32>,
    %164 = vector.extract_strided_slice %148 {offsets = [5, 0, 0], sizes = [1, 4, 8], strides = [1, 1, 1]} : vector<8x4x8xf32> to vector<1x4x8xf32>
    %165 = vector.shape_cast %164 : vector<1x4x8xf32> to vector<4x8xf32>
    %c20_76 = arith.constant 20 : index
    %c8_77 = arith.constant 8 : index
    %166 = vector.load %arg22[%c20_76, %c8_77] : memref<32x32xf32, #tpu.memory_space<vmem>>, vector<4x8xf32>
    tpu.vector_store %arg22[%c20_76, %c8_77], %165 {strides = array<i32>} : memref<32x32xf32, #tpu.memory_space<vmem>>, vector<4x8xf32>,
    %167 = vector.extract_strided_slice %148 {offsets = [6, 0, 0], sizes = [1, 4, 8], strides = [1, 1, 1]} : vector<8x4x8xf32> to vector<1x4x8xf32>
    %168 = vector.shape_cast %167 : vector<1x4x8xf32> to vector<4x8xf32>
    %c24_78 = arith.constant 24 : index
    %c8_79 = arith.constant 8 : index
    %169 = vector.load %arg22[%c24_78, %c8_79] : memref<32x32xf32, #tpu.memory_space<vmem>>, vector<4x8xf32>
    tpu.vector_store %arg22[%c24_78, %c8_79], %168 {strides = array<i32>} : memref<32x32xf32, #tpu.memory_space<vmem>>, vector<4x8xf32>,
    %170 = vector.extract_strided_slice %148 {offsets = [7, 0, 0], sizes = [1, 4, 8], strides = [1, 1, 1]} : vector<8x4x8xf32> to vector<1x4x8xf32>
    %171 = vector.shape_cast %170 : vector<1x4x8xf32> to vector<4x8xf32>
    %c28_80 = arith.constant 28 : index
    %c8_81 = arith.constant 8 : index
    %172 = vector.load %arg22[%c28_80, %c8_81] : memref<32x32xf32, #tpu.memory_space<vmem>>, vector<4x8xf32>
    tpu.vector_store %arg22[%c28_80, %c8_81], %171 {strides = array<i32>} : memref<32x32xf32, #tpu.memory_space<vmem>>, vector<4x8xf32>,
    %173 = vector.extract_strided_slice %92 {offsets = [0, 0, 16], sizes = [8, 4, 8], strides = [1, 1, 1]} : vector<8x4x96xbf16> to vector<8x4x8xbf16>
    %174 = vector.extract_strided_slice %92 {offsets = [0, 0, 48], sizes = [8, 4, 8], strides = [1, 1, 1]} : vector<8x4x96xbf16> to vector<8x4x8xbf16>
    %175 = vector.extract_strided_slice %92 {offsets = [0, 0, 80], sizes = [8, 4, 8], strides = [1, 1, 1]} : vector<8x4x96xbf16> to vector<8x4x8xbf16>
    %cst_82 = arith.constant dense<0.000000e+00> : vector<8x4x4xf32>
    %176 = tpu.matmul %173, %174, %cst_82 {dimension_numbers = #tpu.dot_dimension_numbers<[2], [2], [1], [1], [0, 0, 0, 1, 1, 1], [0], [0]>} : vector<8x4x8xbf16>, vector<8x4x8xbf16>, vector<8x4x4xf32> -> vector<8x4x4xf32>
    %cst_83 = arith.constant dense<0xFF800000> : vector<8x4xf32>
    %177 = vector.multi_reduction <maximumf>, %176, %cst_83 [2] : vector<8x4x4xf32> to vector<8x4xf32>
    %178 = vector.shape_cast %177 : vector<8x4xf32> to vector<8x4x1xf32>
    %179 = vector.broadcast %178 : vector<8x4x1xf32> to vector<8x4x4xf32>
    %180 = arith.subf %176, %179 : vector<8x4x4xf32>
    %181 = math.exp %180 : vector<8x4x4xf32>
    %cst_84 = arith.constant dense<0.000000e+00> : vector<8x4xf32>
    %182 = vector.multi_reduction <add>, %181, %cst_84 [2] : vector<8x4x4xf32> to vector<8x4xf32>
    %183 = vector.shape_cast %182 : vector<8x4xf32> to vector<8x4x1xf32>
    %184 = tpu.reciprocal %183 {approx = true} : vector<8x4x1xf32> -> vector<8x4x1xf32>
    %185 = vector.broadcast %184 : vector<8x4x1xf32> to vector<8x4x4xf32>
    %186 = arith.mulf %181, %185 : vector<8x4x4xf32>
    %187 = arith.truncf %186 : vector<8x4x4xf32> to vector<8x4x4xbf16>
    %cst_85 = arith.constant dense<0.000000e+00> : vector<8x4x8xf32>
    %188 = tpu.matmul %187, %175, %cst_85 {dimension_numbers = #tpu.dot_dimension_numbers<[2], [1], [1], [2], [0, 0, 0, 1, 1, 2], [0], [0]>} : vector<8x4x4xbf16>, vector<8x4x8xbf16>, vector<8x4x8xf32> -> vector<8x4x8xf32>
    %189 = vector.extract_strided_slice %188 {offsets = [0, 0, 0], sizes = [1, 4, 8], strides = [1, 1, 1]} : vector<8x4x8xf32> to vector<1x4x8xf32>
    %190 = vector.shape_cast %189 : vector<1x4x8xf32> to vector<4x8xf32>
    %c0_86 = arith.constant 0 : index
    %c16_87 = arith.constant 16 : index
    %191 = vector.load %arg22[%c0_86, %c16_87] : memref<32x32xf32, #tpu.memory_space<vmem>>, vector<4x8xf32>
    tpu.vector_store %arg22[%c0_86, %c16_87], %190 {strides = array<i32>} : memref<32x32xf32, #tpu.memory_space<vmem>>, vector<4x8xf32>,
    %192 = vector.extract_strided_slice %188 {offsets = [1, 0, 0], sizes = [1, 4, 8], strides = [1, 1, 1]} : vector<8x4x8xf32> to vector<1x4x8xf32>
    %193 = vector.shape_cast %192 : vector<1x4x8xf32> to vector<4x8xf32>
    %c4_88 = arith.constant 4 : index
    %c16_89 = arith.constant 16 : index
    %194 = vector.load %arg22[%c4_88, %c16_89] : memref<32x32xf32, #tpu.memory_space<vmem>>, vector<4x8xf32>
    tpu.vector_store %arg22[%c4_88, %c16_89], %193 {strides = array<i32>} : memref<32x32xf32, #tpu.memory_space<vmem>>, vector<4x8xf32>,
    %195 = vector.extract_strided_slice %188 {offsets = [2, 0, 0], sizes = [1, 4, 8], strides = [1, 1, 1]} : vector<8x4x8xf32> to vector<1x4x8xf32>
    %196 = vector.shape_cast %195 : vector<1x4x8xf32> to vector<4x8xf32>
    %c8_90 = arith.constant 8 : index
    %c16_91 = arith.constant 16 : index
    %197 = vector.load %arg22[%c8_90, %c16_91] : memref<32x32xf32, #tpu.memory_space<vmem>>, vector<4x8xf32>
    tpu.vector_store %arg22[%c8_90, %c16_91], %196 {strides = array<i32>} : memref<32x32xf32, #tpu.memory_space<vmem>>, vector<4x8xf32>,
    %198 = vector.extract_strided_slice %188 {offsets = [3, 0, 0], sizes = [1, 4, 8], strides = [1, 1, 1]} : vector<8x4x8xf32> to vector<1x4x8xf32>
    %199 = vector.shape_cast %198 : vector<1x4x8xf32> to vector<4x8xf32>
    %c12_92 = arith.constant 12 : index
    %c16_93 = arith.constant 16 : index
    %200 = vector.load %arg22[%c12_92, %c16_93] : memref<32x32xf32, #tpu.memory_space<vmem>>, vector<4x8xf32>
    tpu.vector_store %arg22[%c12_92, %c16_93], %199 {strides = array<i32>} : memref<32x32xf32, #tpu.memory_space<vmem>>, vector<4x8xf32>,
    %201 = vector.extract_strided_slice %188 {offsets = [4, 0, 0], sizes = [1, 4, 8], strides = [1, 1, 1]} : vector<8x4x8xf32> to vector<1x4x8xf32>
    %202 = vector.shape_cast %201 : vector<1x4x8xf32> to vector<4x8xf32>
    %c16_94 = arith.constant 16 : index
    %c16_95 = arith.constant 16 : index
    %203 = vector.load %arg22[%c16_94, %c16_95] : memref<32x32xf32, #tpu.memory_space<vmem>>, vector<4x8xf32>
    tpu.vector_store %arg22[%c16_94, %c16_95], %202 {strides = array<i32>} : memref<32x32xf32, #tpu.memory_space<vmem>>, vector<4x8xf32>,
    %204 = vector.extract_strided_slice %188 {offsets = [5, 0, 0], sizes = [1, 4, 8], strides = [1, 1, 1]} : vector<8x4x8xf32> to vector<1x4x8xf32>
    %205 = vector.shape_cast %204 : vector<1x4x8xf32> to vector<4x8xf32>
    %c20_96 = arith.constant 20 : index
    %c16_97 = arith.constant 16 : index
    %206 = vector.load %arg22[%c20_96, %c16_97] : memref<32x32xf32, #tpu.memory_space<vmem>>, vector<4x8xf32>
    tpu.vector_store %arg22[%c20_96, %c16_97], %205 {strides = array<i32>} : memref<32x32xf32, #tpu.memory_space<vmem>>, vector<4x8xf32>,
    %207 = vector.extract_strided_slice %188 {offsets = [6, 0, 0], sizes = [1, 4, 8], strides = [1, 1, 1]} : vector<8x4x8xf32> to vector<1x4x8xf32>
    %208 = vector.shape_cast %207 : vector<1x4x8xf32> to vector<4x8xf32>
    %c24_98 = arith.constant 24 : index
    %c16_99 = arith.constant 16 : index
    %209 = vector.load %arg22[%c24_98, %c16_99] : memref<32x32xf32, #tpu.memory_space<vmem>>, vector<4x8xf32>
    tpu.vector_store %arg22[%c24_98, %c16_99], %208 {strides = array<i32>} : memref<32x32xf32, #tpu.memory_space<vmem>>, vector<4x8xf32>,
    %210 = vector.extract_strided_slice %188 {offsets = [7, 0, 0], sizes = [1, 4, 8], strides = [1, 1, 1]} : vector<8x4x8xf32> to vector<1x4x8xf32>
    %211 = vector.shape_cast %210 : vector<1x4x8xf32> to vector<4x8xf32>
    %c28_100 = arith.constant 28 : index
    %c16_101 = arith.constant 16 : index
    %212 = vector.load %arg22[%c28_100, %c16_101] : memref<32x32xf32, #tpu.memory_space<vmem>>, vector<4x8xf32>
    tpu.vector_store %arg22[%c28_100, %c16_101], %211 {strides = array<i32>} : memref<32x32xf32, #tpu.memory_space<vmem>>, vector<4x8xf32>,
    %213 = vector.extract_strided_slice %92 {offsets = [0, 0, 24], sizes = [8, 4, 8], strides = [1, 1, 1]} : vector<8x4x96xbf16> to vector<8x4x8xbf16>
    %214 = vector.extract_strided_slice %92 {offsets = [0, 0, 56], sizes = [8, 4, 8], strides = [1, 1, 1]} : vector<8x4x96xbf16> to vector<8x4x8xbf16>
    %215 = vector.extract_strided_slice %92 {offsets = [0, 0, 88], sizes = [8, 4, 8], strides = [1, 1, 1]} : vector<8x4x96xbf16> to vector<8x4x8xbf16>
    %cst_102 = arith.constant dense<0.000000e+00> : vector<8x4x4xf32>
    %216 = tpu.matmul %213, %214, %cst_102 {dimension_numbers = #tpu.dot_dimension_numbers<[2], [2], [1], [1], [0, 0, 0, 1, 1, 1], [0], [0]>} : vector<8x4x8xbf16>, vector<8x4x8xbf16>, vector<8x4x4xf32> -> vector<8x4x4xf32>
    %cst_103 = arith.constant dense<0xFF800000> : vector<8x4xf32>
    %217 = vector.multi_reduction <maximumf>, %216, %cst_103 [2] : vector<8x4x4xf32> to vector<8x4xf32>
    %218 = vector.shape_cast %217 : vector<8x4xf32> to vector<8x4x1xf32>
    %219 = vector.broadcast %218 : vector<8x4x1xf32> to vector<8x4x4xf32>
    %220 = arith.subf %216, %219 : vector<8x4x4xf32>
    %221 = math.exp %220 : vector<8x4x4xf32>
    %cst_104 = arith.constant dense<0.000000e+00> : vector<8x4xf32>
    %222 = vector.multi_reduction <add>, %221, %cst_104 [2] : vector<8x4x4xf32> to vector<8x4xf32>
    %223 = vector.shape_cast %222 : vector<8x4xf32> to vector<8x4x1xf32>
    %224 = tpu.reciprocal %223 {approx = true} : vector<8x4x1xf32> -> vector<8x4x1xf32>
    %225 = vector.broadcast %224 : vector<8x4x1xf32> to vector<8x4x4xf32>
    %226 = arith.mulf %221, %225 : vector<8x4x4xf32>
    %227 = arith.truncf %226 : vector<8x4x4xf32> to vector<8x4x4xbf16>
    %cst_105 = arith.constant dense<0.000000e+00> : vector<8x4x8xf32>
    %228 = tpu.matmul %227, %215, %cst_105 {dimension_numbers = #tpu.dot_dimension_numbers<[2], [1], [1], [2], [0, 0, 0, 1, 1, 2], [0], [0]>} : vector<8x4x4xbf16>, vector<8x4x8xbf16>, vector<8x4x8xf32> -> vector<8x4x8xf32>
    %229 = vector.extract_strided_slice %228 {offsets = [0, 0, 0], sizes = [1, 4, 8], strides = [1, 1, 1]} : vector<8x4x8xf32> to vector<1x4x8xf32>
    %230 = vector.shape_cast %229 : vector<1x4x8xf32> to vector<4x8xf32>
    %c0_106 = arith.constant 0 : index
    %c24_107 = arith.constant 24 : index
    %231 = vector.load %arg22[%c0_106, %c24_107] : memref<32x32xf32, #tpu.memory_space<vmem>>, vector<4x8xf32>
    tpu.vector_store %arg22[%c0_106, %c24_107], %230 {strides = array<i32>} : memref<32x32xf32, #tpu.memory_space<vmem>>, vector<4x8xf32>,
    %232 = vector.extract_strided_slice %228 {offsets = [1, 0, 0], sizes = [1, 4, 8], strides = [1, 1, 1]} : vector<8x4x8xf32> to vector<1x4x8xf32>
    %233 = vector.shape_cast %232 : vector<1x4x8xf32> to vector<4x8xf32>
    %c4_108 = arith.constant 4 : index
    %c24_109 = arith.constant 24 : index
    %234 = vector.load %arg22[%c4_108, %c24_109] : memref<32x32xf32, #tpu.memory_space<vmem>>, vector<4x8xf32>
    tpu.vector_store %arg22[%c4_108, %c24_109], %233 {strides = array<i32>} : memref<32x32xf32, #tpu.memory_space<vmem>>, vector<4x8xf32>,
    %235 = vector.extract_strided_slice %228 {offsets = [2, 0, 0], sizes = [1, 4, 8], strides = [1, 1, 1]} : vector<8x4x8xf32> to vector<1x4x8xf32>
    %236 = vector.shape_cast %235 : vector<1x4x8xf32> to vector<4x8xf32>
    %c8_110 = arith.constant 8 : index
    %c24_111 = arith.constant 24 : index
    %237 = vector.load %arg22[%c8_110, %c24_111] : memref<32x32xf32, #tpu.memory_space<vmem>>, vector<4x8xf32>
    tpu.vector_store %arg22[%c8_110, %c24_111], %236 {strides = array<i32>} : memref<32x32xf32, #tpu.memory_space<vmem>>, vector<4x8xf32>,
    %238 = vector.extract_strided_slice %228 {offsets = [3, 0, 0], sizes = [1, 4, 8], strides = [1, 1, 1]} : vector<8x4x8xf32> to vector<1x4x8xf32>
    %239 = vector.shape_cast %238 : vector<1x4x8xf32> to vector<4x8xf32>
    %c12_112 = arith.constant 12 : index
    %c24_113 = arith.constant 24 : index
    %240 = vector.load %arg22[%c12_112, %c24_113] : memref<32x32xf32, #tpu.memory_space<vmem>>, vector<4x8xf32>
    tpu.vector_store %arg22[%c12_112, %c24_113], %239 {strides = array<i32>} : memref<32x32xf32, #tpu.memory_space<vmem>>, vector<4x8xf32>,
    %241 = vector.extract_strided_slice %228 {offsets = [4, 0, 0], sizes = [1, 4, 8], strides = [1, 1, 1]} : vector<8x4x8xf32> to vector<1x4x8xf32>
    %242 = vector.shape_cast %241 : vector<1x4x8xf32> to vector<4x8xf32>
    %c16_114 = arith.constant 16 : index
    %c24_115 = arith.constant 24 : index
    %243 = vector.load %arg22[%c16_114, %c24_115] : memref<32x32xf32, #tpu.memory_space<vmem>>, vector<4x8xf32>
    tpu.vector_store %arg22[%c16_114, %c24_115], %242 {strides = array<i32>} : memref<32x32xf32, #tpu.memory_space<vmem>>, vector<4x8xf32>,
    %244 = vector.extract_strided_slice %228 {offsets = [5, 0, 0], sizes = [1, 4, 8], strides = [1, 1, 1]} : vector<8x4x8xf32> to vector<1x4x8xf32>
    %245 = vector.shape_cast %244 : vector<1x4x8xf32> to vector<4x8xf32>
    %c20_116 = arith.constant 20 : index
    %c24_117 = arith.constant 24 : index
    %246 = vector.load %arg22[%c20_116, %c24_117] : memref<32x32xf32, #tpu.memory_space<vmem>>, vector<4x8xf32>
    tpu.vector_store %arg22[%c20_116, %c24_117], %245 {strides = array<i32>} : memref<32x32xf32, #tpu.memory_space<vmem>>, vector<4x8xf32>,
    %247 = vector.extract_strided_slice %228 {offsets = [6, 0, 0], sizes = [1, 4, 8], strides = [1, 1, 1]} : vector<8x4x8xf32> to vector<1x4x8xf32>
    %248 = vector.shape_cast %247 : vector<1x4x8xf32> to vector<4x8xf32>
    %c24_118 = arith.constant 24 : index
    %c24_119 = arith.constant 24 : index
    %249 = vector.load %arg22[%c24_118, %c24_119] : memref<32x32xf32, #tpu.memory_space<vmem>>, vector<4x8xf32>
    tpu.vector_store %arg22[%c24_118, %c24_119], %248 {strides = array<i32>} : memref<32x32xf32, #tpu.memory_space<vmem>>, vector<4x8xf32>,
    %250 = vector.extract_strided_slice %228 {offsets = [7, 0, 0], sizes = [1, 4, 8], strides = [1, 1, 1]} : vector<8x4x8xf32> to vector<1x4x8xf32>
    %251 = vector.shape_cast %250 : vector<1x4x8xf32> to vector<4x8xf32>
    %c28_120 = arith.constant 28 : index
    %c24_121 = arith.constant 24 : index
    %252 = vector.load %arg22[%c28_120, %c24_121] : memref<32x32xf32, #tpu.memory_space<vmem>>, vector<4x8xf32>
    tpu.vector_store %arg22[%c28_120, %c24_121], %251 {strides = array<i32>} : memref<32x32xf32, #tpu.memory_space<vmem>>, vector<4x8xf32>,
    %c0_122 = arith.constant 0 : index
    %c0_123 = arith.constant 0 : index
    %253 = vector.load %arg22[%c0_122, %c0_123] : memref<32x32xf32, #tpu.memory_space<vmem>>, vector<32x32xf32>
    %c0_124 = arith.constant 0 : index
    %c0_125 = arith.constant 0 : index
    %c0_126 = arith.constant 0 : index
    %254 = vector.load %arg6[%c0_124, %c0_125, %c0_126] : memref<2x32x32xbf16, #tpu.memory_space<vmem>>, vector<1x32x32xbf16>
    %255 = vector.shape_cast %254 : vector<1x32x32xbf16> to vector<32x32xbf16>
    %256 = arith.truncf %253 : vector<32x32xf32> to vector<32x32xbf16>
    %cst_127 = arith.constant dense<0.000000e+00> : vector<32x32xf32>
    %257 = tpu.matmul %256, %255, %cst_127 {dimension_numbers = #tpu.dot_dimension_numbers<[1], [0], [0], [1], [0, 0, 1, 1], [], []>} : vector<32x32xbf16>, vector<32x32xbf16>, vector<32x32xf32> -> vector<32x32xf32>
    %c0_128 = arith.constant 0 : index
    %c0_129 = arith.constant 0 : index
    %c0_130 = arith.constant 0 : index
    %258 = vector.load %arg7[%c0_128, %c0_129, %c0_130] : memref<2x1x32xf32, #tpu.memory_space<vmem>>, vector<1x1x32xf32>
    %259 = vector.shape_cast %258 : vector<1x1x32xf32> to vector<1x32xf32>
    %260 = vector.broadcast %259 : vector<1x32xf32> to vector<32x32xf32>
    %261 = arith.addf %257, %260 : vector<32x32xf32>
    %262 = arith.addf %50, %261 : vector<32x32xf32>
    %c0_131 = arith.constant 0 : index
    %c0_132 = arith.constant 0 : index
    %c0_133 = arith.constant 0 : index
    %263 = vector.load %arg8[%c0_131, %c0_132, %c0_133] : memref<2x1x32xf32, #tpu.memory_space<vmem>>, vector<1x1x32xf32>
    %264 = vector.shape_cast %263 : vector<1x1x32xf32> to vector<1x32xf32>
    %c0_134 = arith.constant 0 : index
    %c0_135 = arith.constant 0 : index
    %c0_136 = arith.constant 0 : index
    %265 = vector.load %arg9[%c0_134, %c0_135, %c0_136] : memref<2x1x32xf32, #tpu.memory_space<vmem>>, vector<1x1x32xf32>
    %266 = vector.shape_cast %265 : vector<1x1x32xf32> to vector<1x32xf32>
    %cst_137 = arith.constant dense<0.000000e+00> : vector<32xf32>
    %267 = vector.multi_reduction <add>, %262, %cst_137 [1] : vector<32x32xf32> to vector<32xf32>
    %268 = vector.shape_cast %267 : vector<32xf32> to vector<32x1xf32>
    %cst_138 = arith.constant 3.200000e+01 : f32
    %269 = vector.broadcast %cst_138 : f32 to vector<32x1xf32>
    %270 = arith.divf %268, %269 : vector<32x1xf32>
    %271 = vector.broadcast %270 : vector<32x1xf32> to vector<32x32xf32>
    %272 = arith.subf %262, %271 : vector<32x32xf32>
    %273 = arith.mulf %272, %272 : vector<32x32xf32>
    %cst_139 = arith.constant dense<0.000000e+00> : vector<32xf32>
    %274 = vector.multi_reduction <add>, %273, %cst_139 [1] : vector<32x32xf32> to vector<32xf32>
    %275 = vector.shape_cast %274 : vector<32xf32> to vector<32x1xf32>
    %cst_140 = arith.constant 3.200000e+01 : f32
    %276 = vector.broadcast %cst_140 : f32 to vector<32x1xf32>
    %277 = arith.divf %275, %276 : vector<32x1xf32>
    %cst_141 = arith.constant 9.99999974E-6 : f32
    %278 = vector.broadcast %cst_141 : f32 to vector<32x1xf32>
    %279 = arith.addf %277, %278 : vector<32x1xf32>
    %280 = math.rsqrt %279 : vector<32x1xf32>
    %281 = vector.broadcast %280 : vector<32x1xf32> to vector<32x32xf32>
    %282 = arith.mulf %272, %281 : vector<32x32xf32>
    %283 = vector.broadcast %264 : vector<1x32xf32> to vector<32x32xf32>
    %284 = arith.mulf %282, %283 : vector<32x32xf32>
    %285 = vector.broadcast %266 : vector<1x32xf32> to vector<32x32xf32>
    %286 = arith.addf %284, %285 : vector<32x32xf32>
    %c0_142 = arith.constant 0 : index
    %c0_143 = arith.constant 0 : index
    %c0_144 = arith.constant 0 : index
    %287 = vector.load %arg10[%c0_142, %c0_143, %c0_144] : memref<2x32x64xbf16, #tpu.memory_space<vmem>>, vector<1x32x64xbf16>
    %288 = vector.shape_cast %287 : vector<1x32x64xbf16> to vector<32x64xbf16>
    %289 = arith.truncf %286 : vector<32x32xf32> to vector<32x32xbf16>
    %cst_145 = arith.constant dense<0.000000e+00> : vector<32x64xf32>
    %290 = tpu.matmul %289, %288, %cst_145 {dimension_numbers = #tpu.dot_dimension_numbers<[1], [0], [0], [1], [0, 0, 1, 1], [], []>} : vector<32x32xbf16>, vector<32x64xbf16>, vector<32x64xf32> -> vector<32x64xf32>
    %c0_146 = arith.constant 0 : index
    %c0_147 = arith.constant 0 : index
    %c0_148 = arith.constant 0 : index
    %291 = vector.load %arg11[%c0_146, %c0_147, %c0_148] : memref<2x1x64xf32, #tpu.memory_space<vmem>>, vector<1x1x64xf32>
    %292 = vector.shape_cast %291 : vector<1x1x64xf32> to vector<1x64xf32>
    %293 = vector.broadcast %292 : vector<1x64xf32> to vector<32x64xf32>
    %294 = arith.addf %290, %293 : vector<32x64xf32>
    %cst_149 = arith.constant 0.000000e+00 : f32
    %295 = vector.broadcast %cst_149 : f32 to vector<32x64xf32>
    %296 = arith.maximumf %294, %295 : vector<32x64xf32>
    %c0_150 = arith.constant 0 : index
    %c0_151 = arith.constant 0 : index
    %c0_152 = arith.constant 0 : index
    %297 = vector.load %arg12[%c0_150, %c0_151, %c0_152] : memref<2x64x32xbf16, #tpu.memory_space<vmem>>, vector<1x64x32xbf16>
    %298 = vector.shape_cast %297 : vector<1x64x32xbf16> to vector<64x32xbf16>
    %299 = arith.truncf %296 : vector<32x64xf32> to vector<32x64xbf16>
    %cst_153 = arith.constant dense<0.000000e+00> : vector<32x32xf32>
    %300 = tpu.matmul %299, %298, %cst_153 {dimension_numbers = #tpu.dot_dimension_numbers<[1], [0], [0], [1], [0, 0, 1, 1], [], []>} : vector<32x64xbf16>, vector<64x32xbf16>, vector<32x32xf32> -> vector<32x32xf32>
    %c0_154 = arith.constant 0 : index
    %c0_155 = arith.constant 0 : index
    %c0_156 = arith.constant 0 : index
    %301 = vector.load %arg13[%c0_154, %c0_155, %c0_156] : memref<2x1x32xf32, #tpu.memory_space<vmem>>, vector<1x1x32xf32>
    %302 = vector.shape_cast %301 : vector<1x1x32xf32> to vector<1x32xf32>
    %303 = vector.broadcast %302 : vector<1x32xf32> to vector<32x32xf32>
    %304 = arith.addf %300, %303 : vector<32x32xf32>
    %305 = arith.addf %286, %304 : vector<32x32xf32>
    %c0_157 = arith.constant 0 : index
    %c0_158 = arith.constant 0 : index
    %c0_159 = arith.constant 0 : index
    %306 = vector.load %arg14[%c0_157, %c0_158, %c0_159] : memref<2x1x32xf32, #tpu.memory_space<vmem>>, vector<1x1x32xf32>
    %307 = vector.shape_cast %306 : vector<1x1x32xf32> to vector<1x32xf32>
    %c0_160 = arith.constant 0 : index
    %c0_161 = arith.constant 0 : index
    %c0_162 = arith.constant 0 : index
    %308 = vector.load %arg15[%c0_160, %c0_161, %c0_162] : memref<2x1x32xf32, #tpu.memory_space<vmem>>, vector<1x1x32xf32>
    %309 = vector.shape_cast %308 : vector<1x1x32xf32> to vector<1x32xf32>
    %cst_163 = arith.constant dense<0.000000e+00> : vector<32xf32>
    %310 = vector.multi_reduction <add>, %305, %cst_163 [1] : vector<32x32xf32> to vector<32xf32>
    %311 = vector.shape_cast %310 : vector<32xf32> to vector<32x1xf32>
    %cst_164 = arith.constant 3.200000e+01 : f32
    %312 = vector.broadcast %cst_164 : f32 to vector<32x1xf32>
    %313 = arith.divf %311, %312 : vector<32x1xf32>
    %314 = vector.broadcast %313 : vector<32x1xf32> to vector<32x32xf32>
    %315 = arith.subf %305, %314 : vector<32x32xf32>
    %316 = arith.mulf %315, %315 : vector<32x32xf32>
    %cst_165 = arith.constant dense<0.000000e+00> : vector<32xf32>
    %317 = vector.multi_reduction <add>, %316, %cst_165 [1] : vector<32x32xf32> to vector<32xf32>
    %318 = vector.shape_cast %317 : vector<32xf32> to vector<32x1xf32>
    %cst_166 = arith.constant 3.200000e+01 : f32
    %319 = vector.broadcast %cst_166 : f32 to vector<32x1xf32>
    %320 = arith.divf %318, %319 : vector<32x1xf32>
    %cst_167 = arith.constant 9.99999974E-6 : f32
    %321 = vector.broadcast %cst_167 : f32 to vector<32x1xf32>
    %322 = arith.addf %320, %321 : vector<32x1xf32>
    %323 = math.rsqrt %322 : vector<32x1xf32>
    %324 = vector.broadcast %323 : vector<32x1xf32> to vector<32x32xf32>
    %325 = arith.mulf %315, %324 : vector<32x32xf32>
    %326 = vector.broadcast %307 : vector<1x32xf32> to vector<32x32xf32>
    %327 = arith.mulf %325, %326 : vector<32x32xf32>
    %328 = vector.broadcast %309 : vector<1x32xf32> to vector<32x32xf32>
    %329 = arith.addf %327, %328 : vector<32x32xf32>
    %c1_168 = arith.constant 1 : index
    %c0_169 = arith.constant 0 : index
    %c0_170 = arith.constant 0 : index
    %330 = vector.load %arg4[%c1_168, %c0_169, %c0_170] : memref<2x32x96xbf16, #tpu.memory_space<vmem>>, vector<1x32x96xbf16>
    %331 = vector.shape_cast %330 : vector<1x32x96xbf16> to vector<32x96xbf16>
    %332 = arith.truncf %329 : vector<32x32xf32> to vector<32x32xbf16>
    %cst_171 = arith.constant dense<0.000000e+00> : vector<32x96xf32>
    %333 = tpu.matmul %332, %331, %cst_171 {dimension_numbers = #tpu.dot_dimension_numbers<[1], [0], [0], [1], [0, 0, 1, 1], [], []>} : vector<32x32xbf16>, vector<32x96xbf16>, vector<32x96xf32> -> vector<32x96xf32>
    %c1_172 = arith.constant 1 : index
    %c0_173 = arith.constant 0 : index
    %c0_174 = arith.constant 0 : index
    %334 = vector.load %arg5[%c1_172, %c0_173, %c0_174] : memref<2x1x96xf32, #tpu.memory_space<vmem>>, vector<1x1x96xf32>
    %335 = vector.shape_cast %334 : vector<1x1x96xf32> to vector<1x96xf32>
    %336 = vector.broadcast %335 : vector<1x96xf32> to vector<32x96xf32>
    %337 = arith.addf %333, %336 : vector<32x96xf32>
    %338 = vector.extract_strided_slice %337 {offsets = [0, 0], sizes = [4, 96], strides = [1, 1]} : vector<32x96xf32> to vector<4x96xf32>
    %c0_175 = arith.constant 0 : index
    %c0_176 = arith.constant 0 : index
    %c0_177 = arith.constant 0 : index
    %339 = vector.load %arg21[%c0_175, %c0_176, %c0_177] : memref<8x4x96xf32, #tpu.memory_space<vmem>>, vector<1x4x96xf32>
    %340 = vector.shape_cast %339 : vector<1x4x96xf32> to vector<4x96xf32>
    %341 = vector.shape_cast %338 : vector<4x96xf32> to vector<1x4x96xf32>
    tpu.vector_store %arg21[%c0_175, %c0_176, %c0_177], %341 {strides = array<i32>} : memref<8x4x96xf32, #tpu.memory_space<vmem>>, vector<1x4x96xf32>,
    %342 = vector.extract_strided_slice %337 {offsets = [4, 0], sizes = [4, 96], strides = [1, 1]} : vector<32x96xf32> to vector<4x96xf32>
    %c1_178 = arith.constant 1 : index
    %c0_179 = arith.constant 0 : index
    %c0_180 = arith.constant 0 : index
    %343 = vector.load %arg21[%c1_178, %c0_179, %c0_180] : memref<8x4x96xf32, #tpu.memory_space<vmem>>, vector<1x4x96xf32>
    %344 = vector.shape_cast %343 : vector<1x4x96xf32> to vector<4x96xf32>
    %345 = vector.shape_cast %342 : vector<4x96xf32> to vector<1x4x96xf32>
    tpu.vector_store %arg21[%c1_178, %c0_179, %c0_180], %345 {strides = array<i32>} : memref<8x4x96xf32, #tpu.memory_space<vmem>>, vector<1x4x96xf32>,
    %346 = vector.extract_strided_slice %337 {offsets = [8, 0], sizes = [4, 96], strides = [1, 1]} : vector<32x96xf32> to vector<4x96xf32>
    %c2_181 = arith.constant 2 : index
    %c0_182 = arith.constant 0 : index
    %c0_183 = arith.constant 0 : index
    %347 = vector.load %arg21[%c2_181, %c0_182, %c0_183] : memref<8x4x96xf32, #tpu.memory_space<vmem>>, vector<1x4x96xf32>
    %348 = vector.shape_cast %347 : vector<1x4x96xf32> to vector<4x96xf32>
    %349 = vector.shape_cast %346 : vector<4x96xf32> to vector<1x4x96xf32>
    tpu.vector_store %arg21[%c2_181, %c0_182, %c0_183], %349 {strides = array<i32>} : memref<8x4x96xf32, #tpu.memory_space<vmem>>, vector<1x4x96xf32>,
    %350 = vector.extract_strided_slice %337 {offsets = [12, 0], sizes = [4, 96], strides = [1, 1]} : vector<32x96xf32> to vector<4x96xf32>
    %c3_184 = arith.constant 3 : index
    %c0_185 = arith.constant 0 : index
    %c0_186 = arith.constant 0 : index
    %351 = vector.load %arg21[%c3_184, %c0_185, %c0_186] : memref<8x4x96xf32, #tpu.memory_space<vmem>>, vector<1x4x96xf32>
    %352 = vector.shape_cast %351 : vector<1x4x96xf32> to vector<4x96xf32>
    %353 = vector.shape_cast %350 : vector<4x96xf32> to vector<1x4x96xf32>
    tpu.vector_store %arg21[%c3_184, %c0_185, %c0_186], %353 {strides = array<i32>} : memref<8x4x96xf32, #tpu.memory_space<vmem>>, vector<1x4x96xf32>,
    %354 = vector.extract_strided_slice %337 {offsets = [16, 0], sizes = [4, 96], strides = [1, 1]} : vector<32x96xf32> to vector<4x96xf32>
    %c4_187 = arith.constant 4 : index
    %c0_188 = arith.constant 0 : index
    %c0_189 = arith.constant 0 : index
    %355 = vector.load %arg21[%c4_187, %c0_188, %c0_189] : memref<8x4x96xf32, #tpu.memory_space<vmem>>, vector<1x4x96xf32>
    %356 = vector.shape_cast %355 : vector<1x4x96xf32> to vector<4x96xf32>
    %357 = vector.shape_cast %354 : vector<4x96xf32> to vector<1x4x96xf32>
    tpu.vector_store %arg21[%c4_187, %c0_188, %c0_189], %357 {strides = array<i32>} : memref<8x4x96xf32, #tpu.memory_space<vmem>>, vector<1x4x96xf32>,
    %358 = vector.extract_strided_slice %337 {offsets = [20, 0], sizes = [4, 96], strides = [1, 1]} : vector<32x96xf32> to vector<4x96xf32>
    %c5_190 = arith.constant 5 : index
    %c0_191 = arith.constant 0 : index
    %c0_192 = arith.constant 0 : index
    %359 = vector.load %arg21[%c5_190, %c0_191, %c0_192] : memref<8x4x96xf32, #tpu.memory_space<vmem>>, vector<1x4x96xf32>
    %360 = vector.shape_cast %359 : vector<1x4x96xf32> to vector<4x96xf32>
    %361 = vector.shape_cast %358 : vector<4x96xf32> to vector<1x4x96xf32>
    tpu.vector_store %arg21[%c5_190, %c0_191, %c0_192], %361 {strides = array<i32>} : memref<8x4x96xf32, #tpu.memory_space<vmem>>, vector<1x4x96xf32>,
    %362 = vector.extract_strided_slice %337 {offsets = [24, 0], sizes = [4, 96], strides = [1, 1]} : vector<32x96xf32> to vector<4x96xf32>
    %c6_193 = arith.constant 6 : index
    %c0_194 = arith.constant 0 : index
    %c0_195 = arith.constant 0 : index
    %363 = vector.load %arg21[%c6_193, %c0_194, %c0_195] : memref<8x4x96xf32, #tpu.memory_space<vmem>>, vector<1x4x96xf32>
    %364 = vector.shape_cast %363 : vector<1x4x96xf32> to vector<4x96xf32>
    %365 = vector.shape_cast %362 : vector<4x96xf32> to vector<1x4x96xf32>
    tpu.vector_store %arg21[%c6_193, %c0_194, %c0_195], %365 {strides = array<i32>} : memref<8x4x96xf32, #tpu.memory_space<vmem>>, vector<1x4x96xf32>,
    %366 = vector.extract_strided_slice %337 {offsets = [28, 0], sizes = [4, 96], strides = [1, 1]} : vector<32x96xf32> to vector<4x96xf32>
    %c7_196 = arith.constant 7 : index
    %c0_197 = arith.constant 0 : index
    %c0_198 = arith.constant 0 : index
    %367 = vector.load %arg21[%c7_196, %c0_197, %c0_198] : memref<8x4x96xf32, #tpu.memory_space<vmem>>, vector<1x4x96xf32>
    %368 = vector.shape_cast %367 : vector<1x4x96xf32> to vector<4x96xf32>
    %369 = vector.shape_cast %366 : vector<4x96xf32> to vector<1x4x96xf32>
    tpu.vector_store %arg21[%c7_196, %c0_197, %c0_198], %369 {strides = array<i32>} : memref<8x4x96xf32, #tpu.memory_space<vmem>>, vector<1x4x96xf32>,
    %c0_199 = arith.constant 0 : index
    %c0_200 = arith.constant 0 : index
    %c0_201 = arith.constant 0 : index
    %370 = vector.load %arg21[%c0_199, %c0_200, %c0_201] : memref<8x4x96xf32, #tpu.memory_space<vmem>>, vector<8x4x96xf32>
    %371 = arith.truncf %370 : vector<8x4x96xf32> to vector<8x4x96xbf16>
    %372 = vector.extract_strided_slice %371 {offsets = [0, 0, 0], sizes = [8, 4, 8], strides = [1, 1, 1]} : vector<8x4x96xbf16> to vector<8x4x8xbf16>
    %373 = vector.extract_strided_slice %371 {offsets = [0, 0, 32], sizes = [8, 4, 8], strides = [1, 1, 1]} : vector<8x4x96xbf16> to vector<8x4x8xbf16>
    %374 = vector.extract_strided_slice %371 {offsets = [0, 0, 64], sizes = [8, 4, 8], strides = [1, 1, 1]} : vector<8x4x96xbf16> to vector<8x4x8xbf16>
    %cst_202 = arith.constant dense<0.000000e+00> : vector<8x4x4xf32>
    %375 = tpu.matmul %372, %373, %cst_202 {dimension_numbers = #tpu.dot_dimension_numbers<[2], [2], [1], [1], [0, 0, 0, 1, 1, 1], [0], [0]>} : vector<8x4x8xbf16>, vector<8x4x8xbf16>, vector<8x4x4xf32> -> vector<8x4x4xf32>
    %cst_203 = arith.constant dense<0xFF800000> : vector<8x4xf32>
    %376 = vector.multi_reduction <maximumf>, %375, %cst_203 [2] : vector<8x4x4xf32> to vector<8x4xf32>
    %377 = vector.shape_cast %376 : vector<8x4xf32> to vector<8x4x1xf32>
    %378 = vector.broadcast %377 : vector<8x4x1xf32> to vector<8x4x4xf32>
    %379 = arith.subf %375, %378 : vector<8x4x4xf32>
    %380 = math.exp %379 : vector<8x4x4xf32>
    %cst_204 = arith.constant dense<0.000000e+00> : vector<8x4xf32>
    %381 = vector.multi_reduction <add>, %380, %cst_204 [2] : vector<8x4x4xf32> to vector<8x4xf32>
    %382 = vector.shape_cast %381 : vector<8x4xf32> to vector<8x4x1xf32>
    %383 = tpu.reciprocal %382 {approx = true} : vector<8x4x1xf32> -> vector<8x4x1xf32>
    %384 = vector.broadcast %383 : vector<8x4x1xf32> to vector<8x4x4xf32>
    %385 = arith.mulf %380, %384 : vector<8x4x4xf32>
    %386 = arith.truncf %385 : vector<8x4x4xf32> to vector<8x4x4xbf16>
    %cst_205 = arith.constant dense<0.000000e+00> : vector<8x4x8xf32>
    %387 = tpu.matmul %386, %374, %cst_205 {dimension_numbers = #tpu.dot_dimension_numbers<[2], [1], [1], [2], [0, 0, 0, 1, 1, 2], [0], [0]>} : vector<8x4x4xbf16>, vector<8x4x8xbf16>, vector<8x4x8xf32> -> vector<8x4x8xf32>
    %388 = vector.extract_strided_slice %387 {offsets = [0, 0, 0], sizes = [1, 4, 8], strides = [1, 1, 1]} : vector<8x4x8xf32> to vector<1x4x8xf32>
    %389 = vector.shape_cast %388 : vector<1x4x8xf32> to vector<4x8xf32>
    %c0_206 = arith.constant 0 : index
    %c0_207 = arith.constant 0 : index
    %390 = vector.load %arg22[%c0_206, %c0_207] : memref<32x32xf32, #tpu.memory_space<vmem>>, vector<4x8xf32>
    tpu.vector_store %arg22[%c0_206, %c0_207], %389 {strides = array<i32>} : memref<32x32xf32, #tpu.memory_space<vmem>>, vector<4x8xf32>,
    %391 = vector.extract_strided_slice %387 {offsets = [1, 0, 0], sizes = [1, 4, 8], strides = [1, 1, 1]} : vector<8x4x8xf32> to vector<1x4x8xf32>
    %392 = vector.shape_cast %391 : vector<1x4x8xf32> to vector<4x8xf32>
    %c4_208 = arith.constant 4 : index
    %c0_209 = arith.constant 0 : index
    %393 = vector.load %arg22[%c4_208, %c0_209] : memref<32x32xf32, #tpu.memory_space<vmem>>, vector<4x8xf32>
    tpu.vector_store %arg22[%c4_208, %c0_209], %392 {strides = array<i32>} : memref<32x32xf32, #tpu.memory_space<vmem>>, vector<4x8xf32>,
    %394 = vector.extract_strided_slice %387 {offsets = [2, 0, 0], sizes = [1, 4, 8], strides = [1, 1, 1]} : vector<8x4x8xf32> to vector<1x4x8xf32>
    %395 = vector.shape_cast %394 : vector<1x4x8xf32> to vector<4x8xf32>
    %c8_210 = arith.constant 8 : index
    %c0_211 = arith.constant 0 : index
    %396 = vector.load %arg22[%c8_210, %c0_211] : memref<32x32xf32, #tpu.memory_space<vmem>>, vector<4x8xf32>
    tpu.vector_store %arg22[%c8_210, %c0_211], %395 {strides = array<i32>} : memref<32x32xf32, #tpu.memory_space<vmem>>, vector<4x8xf32>,
    %397 = vector.extract_strided_slice %387 {offsets = [3, 0, 0], sizes = [1, 4, 8], strides = [1, 1, 1]} : vector<8x4x8xf32> to vector<1x4x8xf32>
    %398 = vector.shape_cast %397 : vector<1x4x8xf32> to vector<4x8xf32>
    %c12_212 = arith.constant 12 : index
    %c0_213 = arith.constant 0 : index
    %399 = vector.load %arg22[%c12_212, %c0_213] : memref<32x32xf32, #tpu.memory_space<vmem>>, vector<4x8xf32>
    tpu.vector_store %arg22[%c12_212, %c0_213], %398 {strides = array<i32>} : memref<32x32xf32, #tpu.memory_space<vmem>>, vector<4x8xf32>,
    %400 = vector.extract_strided_slice %387 {offsets = [4, 0, 0], sizes = [1, 4, 8], strides = [1, 1, 1]} : vector<8x4x8xf32> to vector<1x4x8xf32>
    %401 = vector.shape_cast %400 : vector<1x4x8xf32> to vector<4x8xf32>
    %c16_214 = arith.constant 16 : index
    %c0_215 = arith.constant 0 : index
    %402 = vector.load %arg22[%c16_214, %c0_215] : memref<32x32xf32, #tpu.memory_space<vmem>>, vector<4x8xf32>
    tpu.vector_store %arg22[%c16_214, %c0_215], %401 {strides = array<i32>} : memref<32x32xf32, #tpu.memory_space<vmem>>, vector<4x8xf32>,
    %403 = vector.extract_strided_slice %387 {offsets = [5, 0, 0], sizes = [1, 4, 8], strides = [1, 1, 1]} : vector<8x4x8xf32> to vector<1x4x8xf32>
    %404 = vector.shape_cast %403 : vector<1x4x8xf32> to vector<4x8xf32>
    %c20_216 = arith.constant 20 : index
    %c0_217 = arith.constant 0 : index
    %405 = vector.load %arg22[%c20_216, %c0_217] : memref<32x32xf32, #tpu.memory_space<vmem>>, vector<4x8xf32>
    tpu.vector_store %arg22[%c20_216, %c0_217], %404 {strides = array<i32>} : memref<32x32xf32, #tpu.memory_space<vmem>>, vector<4x8xf32>,
    %406 = vector.extract_strided_slice %387 {offsets = [6, 0, 0], sizes = [1, 4, 8], strides = [1, 1, 1]} : vector<8x4x8xf32> to vector<1x4x8xf32>
    %407 = vector.shape_cast %406 : vector<1x4x8xf32> to vector<4x8xf32>
    %c24_218 = arith.constant 24 : index
    %c0_219 = arith.constant 0 : index
    %408 = vector.load %arg22[%c24_218, %c0_219] : memref<32x32xf32, #tpu.memory_space<vmem>>, vector<4x8xf32>
    tpu.vector_store %arg22[%c24_218, %c0_219], %407 {strides = array<i32>} : memref<32x32xf32, #tpu.memory_space<vmem>>, vector<4x8xf32>,
    %409 = vector.extract_strided_slice %387 {offsets = [7, 0, 0], sizes = [1, 4, 8], strides = [1, 1, 1]} : vector<8x4x8xf32> to vector<1x4x8xf32>
    %410 = vector.shape_cast %409 : vector<1x4x8xf32> to vector<4x8xf32>
    %c28_220 = arith.constant 28 : index
    %c0_221 = arith.constant 0 : index
    %411 = vector.load %arg22[%c28_220, %c0_221] : memref<32x32xf32, #tpu.memory_space<vmem>>, vector<4x8xf32>
    tpu.vector_store %arg22[%c28_220, %c0_221], %410 {strides = array<i32>} : memref<32x32xf32, #tpu.memory_space<vmem>>, vector<4x8xf32>,
    %412 = vector.extract_strided_slice %371 {offsets = [0, 0, 8], sizes = [8, 4, 8], strides = [1, 1, 1]} : vector<8x4x96xbf16> to vector<8x4x8xbf16>
    %413 = vector.extract_strided_slice %371 {offsets = [0, 0, 40], sizes = [8, 4, 8], strides = [1, 1, 1]} : vector<8x4x96xbf16> to vector<8x4x8xbf16>
    %414 = vector.extract_strided_slice %371 {offsets = [0, 0, 72], sizes = [8, 4, 8], strides = [1, 1, 1]} : vector<8x4x96xbf16> to vector<8x4x8xbf16>
    %cst_222 = arith.constant dense<0.000000e+00> : vector<8x4x4xf32>
    %415 = tpu.matmul %412, %413, %cst_222 {dimension_numbers = #tpu.dot_dimension_numbers<[2], [2], [1], [1], [0, 0, 0, 1, 1, 1], [0], [0]>} : vector<8x4x8xbf16>, vector<8x4x8xbf16>, vector<8x4x4xf32> -> vector<8x4x4xf32>
    %cst_223 = arith.constant dense<0xFF800000> : vector<8x4xf32>
    %416 = vector.multi_reduction <maximumf>, %415, %cst_223 [2] : vector<8x4x4xf32> to vector<8x4xf32>
    %417 = vector.shape_cast %416 : vector<8x4xf32> to vector<8x4x1xf32>
    %418 = vector.broadcast %417 : vector<8x4x1xf32> to vector<8x4x4xf32>
    %419 = arith.subf %415, %418 : vector<8x4x4xf32>
    %420 = math.exp %419 : vector<8x4x4xf32>
    %cst_224 = arith.constant dense<0.000000e+00> : vector<8x4xf32>
    %421 = vector.multi_reduction <add>, %420, %cst_224 [2] : vector<8x4x4xf32> to vector<8x4xf32>
    %422 = vector.shape_cast %421 : vector<8x4xf32> to vector<8x4x1xf32>
    %423 = tpu.reciprocal %422 {approx = true} : vector<8x4x1xf32> -> vector<8x4x1xf32>
    %424 = vector.broadcast %423 : vector<8x4x1xf32> to vector<8x4x4xf32>
    %425 = arith.mulf %420, %424 : vector<8x4x4xf32>
    %426 = arith.truncf %425 : vector<8x4x4xf32> to vector<8x4x4xbf16>
    %cst_225 = arith.constant dense<0.000000e+00> : vector<8x4x8xf32>
    %427 = tpu.matmul %426, %414, %cst_225 {dimension_numbers = #tpu.dot_dimension_numbers<[2], [1], [1], [2], [0, 0, 0, 1, 1, 2], [0], [0]>} : vector<8x4x4xbf16>, vector<8x4x8xbf16>, vector<8x4x8xf32> -> vector<8x4x8xf32>
    %428 = vector.extract_strided_slice %427 {offsets = [0, 0, 0], sizes = [1, 4, 8], strides = [1, 1, 1]} : vector<8x4x8xf32> to vector<1x4x8xf32>
    %429 = vector.shape_cast %428 : vector<1x4x8xf32> to vector<4x8xf32>
    %c0_226 = arith.constant 0 : index
    %c8_227 = arith.constant 8 : index
    %430 = vector.load %arg22[%c0_226, %c8_227] : memref<32x32xf32, #tpu.memory_space<vmem>>, vector<4x8xf32>
    tpu.vector_store %arg22[%c0_226, %c8_227], %429 {strides = array<i32>} : memref<32x32xf32, #tpu.memory_space<vmem>>, vector<4x8xf32>,
    %431 = vector.extract_strided_slice %427 {offsets = [1, 0, 0], sizes = [1, 4, 8], strides = [1, 1, 1]} : vector<8x4x8xf32> to vector<1x4x8xf32>
    %432 = vector.shape_cast %431 : vector<1x4x8xf32> to vector<4x8xf32>
    %c4_228 = arith.constant 4 : index
    %c8_229 = arith.constant 8 : index
    %433 = vector.load %arg22[%c4_228, %c8_229] : memref<32x32xf32, #tpu.memory_space<vmem>>, vector<4x8xf32>
    tpu.vector_store %arg22[%c4_228, %c8_229], %432 {strides = array<i32>} : memref<32x32xf32, #tpu.memory_space<vmem>>, vector<4x8xf32>,
    %434 = vector.extract_strided_slice %427 {offsets = [2, 0, 0], sizes = [1, 4, 8], strides = [1, 1, 1]} : vector<8x4x8xf32> to vector<1x4x8xf32>
    %435 = vector.shape_cast %434 : vector<1x4x8xf32> to vector<4x8xf32>
    %c8_230 = arith.constant 8 : index
    %c8_231 = arith.constant 8 : index
    %436 = vector.load %arg22[%c8_230, %c8_231] : memref<32x32xf32, #tpu.memory_space<vmem>>, vector<4x8xf32>
    tpu.vector_store %arg22[%c8_230, %c8_231], %435 {strides = array<i32>} : memref<32x32xf32, #tpu.memory_space<vmem>>, vector<4x8xf32>,
    %437 = vector.extract_strided_slice %427 {offsets = [3, 0, 0], sizes = [1, 4, 8], strides = [1, 1, 1]} : vector<8x4x8xf32> to vector<1x4x8xf32>
    %438 = vector.shape_cast %437 : vector<1x4x8xf32> to vector<4x8xf32>
    %c12_232 = arith.constant 12 : index
    %c8_233 = arith.constant 8 : index
    %439 = vector.load %arg22[%c12_232, %c8_233] : memref<32x32xf32, #tpu.memory_space<vmem>>, vector<4x8xf32>
    tpu.vector_store %arg22[%c12_232, %c8_233], %438 {strides = array<i32>} : memref<32x32xf32, #tpu.memory_space<vmem>>, vector<4x8xf32>,
    %440 = vector.extract_strided_slice %427 {offsets = [4, 0, 0], sizes = [1, 4, 8], strides = [1, 1, 1]} : vector<8x4x8xf32> to vector<1x4x8xf32>
    %441 = vector.shape_cast %440 : vector<1x4x8xf32> to vector<4x8xf32>
    %c16_234 = arith.constant 16 : index
    %c8_235 = arith.constant 8 : index
    %442 = vector.load %arg22[%c16_234, %c8_235] : memref<32x32xf32, #tpu.memory_space<vmem>>, vector<4x8xf32>
    tpu.vector_store %arg22[%c16_234, %c8_235], %441 {strides = array<i32>} : memref<32x32xf32, #tpu.memory_space<vmem>>, vector<4x8xf32>,
    %443 = vector.extract_strided_slice %427 {offsets = [5, 0, 0], sizes = [1, 4, 8], strides = [1, 1, 1]} : vector<8x4x8xf32> to vector<1x4x8xf32>
    %444 = vector.shape_cast %443 : vector<1x4x8xf32> to vector<4x8xf32>
    %c20_236 = arith.constant 20 : index
    %c8_237 = arith.constant 8 : index
    %445 = vector.load %arg22[%c20_236, %c8_237] : memref<32x32xf32, #tpu.memory_space<vmem>>, vector<4x8xf32>
    tpu.vector_store %arg22[%c20_236, %c8_237], %444 {strides = array<i32>} : memref<32x32xf32, #tpu.memory_space<vmem>>, vector<4x8xf32>,
    %446 = vector.extract_strided_slice %427 {offsets = [6, 0, 0], sizes = [1, 4, 8], strides = [1, 1, 1]} : vector<8x4x8xf32> to vector<1x4x8xf32>
    %447 = vector.shape_cast %446 : vector<1x4x8xf32> to vector<4x8xf32>
    %c24_238 = arith.constant 24 : index
    %c8_239 = arith.constant 8 : index
    %448 = vector.load %arg22[%c24_238, %c8_239] : memref<32x32xf32, #tpu.memory_space<vmem>>, vector<4x8xf32>
    tpu.vector_store %arg22[%c24_238, %c8_239], %447 {strides = array<i32>} : memref<32x32xf32, #tpu.memory_space<vmem>>, vector<4x8xf32>,
    %449 = vector.extract_strided_slice %427 {offsets = [7, 0, 0], sizes = [1, 4, 8], strides = [1, 1, 1]} : vector<8x4x8xf32> to vector<1x4x8xf32>
    %450 = vector.shape_cast %449 : vector<1x4x8xf32> to vector<4x8xf32>
    %c28_240 = arith.constant 28 : index
    %c8_241 = arith.constant 8 : index
    %451 = vector.load %arg22[%c28_240, %c8_241] : memref<32x32xf32, #tpu.memory_space<vmem>>, vector<4x8xf32>
    tpu.vector_store %arg22[%c28_240, %c8_241], %450 {strides = array<i32>} : memref<32x32xf32, #tpu.memory_space<vmem>>, vector<4x8xf32>,
    %452 = vector.extract_strided_slice %371 {offsets = [0, 0, 16], sizes = [8, 4, 8], strides = [1, 1, 1]} : vector<8x4x96xbf16> to vector<8x4x8xbf16>
    %453 = vector.extract_strided_slice %371 {offsets = [0, 0, 48], sizes = [8, 4, 8], strides = [1, 1, 1]} : vector<8x4x96xbf16> to vector<8x4x8xbf16>
    %454 = vector.extract_strided_slice %371 {offsets = [0, 0, 80], sizes = [8, 4, 8], strides = [1, 1, 1]} : vector<8x4x96xbf16> to vector<8x4x8xbf16>
    %cst_242 = arith.constant dense<0.000000e+00> : vector<8x4x4xf32>
    %455 = tpu.matmul %452, %453, %cst_242 {dimension_numbers = #tpu.dot_dimension_numbers<[2], [2], [1], [1], [0, 0, 0, 1, 1, 1], [0], [0]>} : vector<8x4x8xbf16>, vector<8x4x8xbf16>, vector<8x4x4xf32> -> vector<8x4x4xf32>
    %cst_243 = arith.constant dense<0xFF800000> : vector<8x4xf32>
    %456 = vector.multi_reduction <maximumf>, %455, %cst_243 [2] : vector<8x4x4xf32> to vector<8x4xf32>
    %457 = vector.shape_cast %456 : vector<8x4xf32> to vector<8x4x1xf32>
    %458 = vector.broadcast %457 : vector<8x4x1xf32> to vector<8x4x4xf32>
    %459 = arith.subf %455, %458 : vector<8x4x4xf32>
    %460 = math.exp %459 : vector<8x4x4xf32>
    %cst_244 = arith.constant dense<0.000000e+00> : vector<8x4xf32>
    %461 = vector.multi_reduction <add>, %460, %cst_244 [2] : vector<8x4x4xf32> to vector<8x4xf32>
    %462 = vector.shape_cast %461 : vector<8x4xf32> to vector<8x4x1xf32>
    %463 = tpu.reciprocal %462 {approx = true} : vector<8x4x1xf32> -> vector<8x4x1xf32>
    %464 = vector.broadcast %463 : vector<8x4x1xf32> to vector<8x4x4xf32>
    %465 = arith.mulf %460, %464 : vector<8x4x4xf32>
    %466 = arith.truncf %465 : vector<8x4x4xf32> to vector<8x4x4xbf16>
    %cst_245 = arith.constant dense<0.000000e+00> : vector<8x4x8xf32>
    %467 = tpu.matmul %466, %454, %cst_245 {dimension_numbers = #tpu.dot_dimension_numbers<[2], [1], [1], [2], [0, 0, 0, 1, 1, 2], [0], [0]>} : vector<8x4x4xbf16>, vector<8x4x8xbf16>, vector<8x4x8xf32> -> vector<8x4x8xf32>
    %468 = vector.extract_strided_slice %467 {offsets = [0, 0, 0], sizes = [1, 4, 8], strides = [1, 1, 1]} : vector<8x4x8xf32> to vector<1x4x8xf32>
    %469 = vector.shape_cast %468 : vector<1x4x8xf32> to vector<4x8xf32>
    %c0_246 = arith.constant 0 : index
    %c16_247 = arith.constant 16 : index
    %470 = vector.load %arg22[%c0_246, %c16_247] : memref<32x32xf32, #tpu.memory_space<vmem>>, vector<4x8xf32>
    tpu.vector_store %arg22[%c0_246, %c16_247], %469 {strides = array<i32>} : memref<32x32xf32, #tpu.memory_space<vmem>>, vector<4x8xf32>,
    %471 = vector.extract_strided_slice %467 {offsets = [1, 0, 0], sizes = [1, 4, 8], strides = [1, 1, 1]} : vector<8x4x8xf32> to vector<1x4x8xf32>
    %472 = vector.shape_cast %471 : vector<1x4x8xf32> to vector<4x8xf32>
    %c4_248 = arith.constant 4 : index
    %c16_249 = arith.constant 16 : index
    %473 = vector.load %arg22[%c4_248, %c16_249] : memref<32x32xf32, #tpu.memory_space<vmem>>, vector<4x8xf32>
    tpu.vector_store %arg22[%c4_248, %c16_249], %472 {strides = array<i32>} : memref<32x32xf32, #tpu.memory_space<vmem>>, vector<4x8xf32>,
    %474 = vector.extract_strided_slice %467 {offsets = [2, 0, 0], sizes = [1, 4, 8], strides = [1, 1, 1]} : vector<8x4x8xf32> to vector<1x4x8xf32>
    %475 = vector.shape_cast %474 : vector<1x4x8xf32> to vector<4x8xf32>
    %c8_250 = arith.constant 8 : index
    %c16_251 = arith.constant 16 : index
    %476 = vector.load %arg22[%c8_250, %c16_251] : memref<32x32xf32, #tpu.memory_space<vmem>>, vector<4x8xf32>
    tpu.vector_store %arg22[%c8_250, %c16_251], %475 {strides = array<i32>} : memref<32x32xf32, #tpu.memory_space<vmem>>, vector<4x8xf32>,
    %477 = vector.extract_strided_slice %467 {offsets = [3, 0, 0], sizes = [1, 4, 8], strides = [1, 1, 1]} : vector<8x4x8xf32> to vector<1x4x8xf32>
    %478 = vector.shape_cast %477 : vector<1x4x8xf32> to vector<4x8xf32>
    %c12_252 = arith.constant 12 : index
    %c16_253 = arith.constant 16 : index
    %479 = vector.load %arg22[%c12_252, %c16_253] : memref<32x32xf32, #tpu.memory_space<vmem>>, vector<4x8xf32>
    tpu.vector_store %arg22[%c12_252, %c16_253], %478 {strides = array<i32>} : memref<32x32xf32, #tpu.memory_space<vmem>>, vector<4x8xf32>,
    %480 = vector.extract_strided_slice %467 {offsets = [4, 0, 0], sizes = [1, 4, 8], strides = [1, 1, 1]} : vector<8x4x8xf32> to vector<1x4x8xf32>
    %481 = vector.shape_cast %480 : vector<1x4x8xf32> to vector<4x8xf32>
    %c16_254 = arith.constant 16 : index
    %c16_255 = arith.constant 16 : index
    %482 = vector.load %arg22[%c16_254, %c16_255] : memref<32x32xf32, #tpu.memory_space<vmem>>, vector<4x8xf32>
    tpu.vector_store %arg22[%c16_254, %c16_255], %481 {strides = array<i32>} : memref<32x32xf32, #tpu.memory_space<vmem>>, vector<4x8xf32>,
    %483 = vector.extract_strided_slice %467 {offsets = [5, 0, 0], sizes = [1, 4, 8], strides = [1, 1, 1]} : vector<8x4x8xf32> to vector<1x4x8xf32>
    %484 = vector.shape_cast %483 : vector<1x4x8xf32> to vector<4x8xf32>
    %c20_256 = arith.constant 20 : index
    %c16_257 = arith.constant 16 : index
    %485 = vector.load %arg22[%c20_256, %c16_257] : memref<32x32xf32, #tpu.memory_space<vmem>>, vector<4x8xf32>
    tpu.vector_store %arg22[%c20_256, %c16_257], %484 {strides = array<i32>} : memref<32x32xf32, #tpu.memory_space<vmem>>, vector<4x8xf32>,
    %486 = vector.extract_strided_slice %467 {offsets = [6, 0, 0], sizes = [1, 4, 8], strides = [1, 1, 1]} : vector<8x4x8xf32> to vector<1x4x8xf32>
    %487 = vector.shape_cast %486 : vector<1x4x8xf32> to vector<4x8xf32>
    %c24_258 = arith.constant 24 : index
    %c16_259 = arith.constant 16 : index
    %488 = vector.load %arg22[%c24_258, %c16_259] : memref<32x32xf32, #tpu.memory_space<vmem>>, vector<4x8xf32>
    tpu.vector_store %arg22[%c24_258, %c16_259], %487 {strides = array<i32>} : memref<32x32xf32, #tpu.memory_space<vmem>>, vector<4x8xf32>,
    %489 = vector.extract_strided_slice %467 {offsets = [7, 0, 0], sizes = [1, 4, 8], strides = [1, 1, 1]} : vector<8x4x8xf32> to vector<1x4x8xf32>
    %490 = vector.shape_cast %489 : vector<1x4x8xf32> to vector<4x8xf32>
    %c28_260 = arith.constant 28 : index
    %c16_261 = arith.constant 16 : index
    %491 = vector.load %arg22[%c28_260, %c16_261] : memref<32x32xf32, #tpu.memory_space<vmem>>, vector<4x8xf32>
    tpu.vector_store %arg22[%c28_260, %c16_261], %490 {strides = array<i32>} : memref<32x32xf32, #tpu.memory_space<vmem>>, vector<4x8xf32>,
    %492 = vector.extract_strided_slice %371 {offsets = [0, 0, 24], sizes = [8, 4, 8], strides = [1, 1, 1]} : vector<8x4x96xbf16> to vector<8x4x8xbf16>
    %493 = vector.extract_strided_slice %371 {offsets = [0, 0, 56], sizes = [8, 4, 8], strides = [1, 1, 1]} : vector<8x4x96xbf16> to vector<8x4x8xbf16>
    %494 = vector.extract_strided_slice %371 {offsets = [0, 0, 88], sizes = [8, 4, 8], strides = [1, 1, 1]} : vector<8x4x96xbf16> to vector<8x4x8xbf16>
    %cst_262 = arith.constant dense<0.000000e+00> : vector<8x4x4xf32>
    %495 = tpu.matmul %492, %493, %cst_262 {dimension_numbers = #tpu.dot_dimension_numbers<[2], [2], [1], [1], [0, 0, 0, 1, 1, 1], [0], [0]>} : vector<8x4x8xbf16>, vector<8x4x8xbf16>, vector<8x4x4xf32> -> vector<8x4x4xf32>
    %cst_263 = arith.constant dense<0xFF800000> : vector<8x4xf32>
    %496 = vector.multi_reduction <maximumf>, %495, %cst_263 [2] : vector<8x4x4xf32> to vector<8x4xf32>
    %497 = vector.shape_cast %496 : vector<8x4xf32> to vector<8x4x1xf32>
    %498 = vector.broadcast %497 : vector<8x4x1xf32> to vector<8x4x4xf32>
    %499 = arith.subf %495, %498 : vector<8x4x4xf32>
    %500 = math.exp %499 : vector<8x4x4xf32>
    %cst_264 = arith.constant dense<0.000000e+00> : vector<8x4xf32>
    %501 = vector.multi_reduction <add>, %500, %cst_264 [2] : vector<8x4x4xf32> to vector<8x4xf32>
    %502 = vector.shape_cast %501 : vector<8x4xf32> to vector<8x4x1xf32>
    %503 = tpu.reciprocal %502 {approx = true} : vector<8x4x1xf32> -> vector<8x4x1xf32>
    %504 = vector.broadcast %503 : vector<8x4x1xf32> to vector<8x4x4xf32>
    %505 = arith.mulf %500, %504 : vector<8x4x4xf32>
    %506 = arith.truncf %505 : vector<8x4x4xf32> to vector<8x4x4xbf16>
    %cst_265 = arith.constant dense<0.000000e+00> : vector<8x4x8xf32>
    %507 = tpu.matmul %506, %494, %cst_265 {dimension_numbers = #tpu.dot_dimension_numbers<[2], [1], [1], [2], [0, 0, 0, 1, 1, 2], [0], [0]>} : vector<8x4x4xbf16>, vector<8x4x8xbf16>, vector<8x4x8xf32> -> vector<8x4x8xf32>
    %508 = vector.extract_strided_slice %507 {offsets = [0, 0, 0], sizes = [1, 4, 8], strides = [1, 1, 1]} : vector<8x4x8xf32> to vector<1x4x8xf32>
    %509 = vector.shape_cast %508 : vector<1x4x8xf32> to vector<4x8xf32>
    %c0_266 = arith.constant 0 : index
    %c24_267 = arith.constant 24 : index
    %510 = vector.load %arg22[%c0_266, %c24_267] : memref<32x32xf32, #tpu.memory_space<vmem>>, vector<4x8xf32>
    tpu.vector_store %arg22[%c0_266, %c24_267], %509 {strides = array<i32>} : memref<32x32xf32, #tpu.memory_space<vmem>>, vector<4x8xf32>,
    %511 = vector.extract_strided_slice %507 {offsets = [1, 0, 0], sizes = [1, 4, 8], strides = [1, 1, 1]} : vector<8x4x8xf32> to vector<1x4x8xf32>
    %512 = vector.shape_cast %511 : vector<1x4x8xf32> to vector<4x8xf32>
    %c4_268 = arith.constant 4 : index
    %c24_269 = arith.constant 24 : index
    %513 = vector.load %arg22[%c4_268, %c24_269] : memref<32x32xf32, #tpu.memory_space<vmem>>, vector<4x8xf32>
    tpu.vector_store %arg22[%c4_268, %c24_269], %512 {strides = array<i32>} : memref<32x32xf32, #tpu.memory_space<vmem>>, vector<4x8xf32>,
    %514 = vector.extract_strided_slice %507 {offsets = [2, 0, 0], sizes = [1, 4, 8], strides = [1, 1, 1]} : vector<8x4x8xf32> to vector<1x4x8xf32>
    %515 = vector.shape_cast %514 : vector<1x4x8xf32> to vector<4x8xf32>
    %c8_270 = arith.constant 8 : index
    %c24_271 = arith.constant 24 : index
    %516 = vector.load %arg22[%c8_270, %c24_271] : memref<32x32xf32, #tpu.memory_space<vmem>>, vector<4x8xf32>
    tpu.vector_store %arg22[%c8_270, %c24_271], %515 {strides = array<i32>} : memref<32x32xf32, #tpu.memory_space<vmem>>, vector<4x8xf32>,
    %517 = vector.extract_strided_slice %507 {offsets = [3, 0, 0], sizes = [1, 4, 8], strides = [1, 1, 1]} : vector<8x4x8xf32> to vector<1x4x8xf32>
    %518 = vector.shape_cast %517 : vector<1x4x8xf32> to vector<4x8xf32>
    %c12_272 = arith.constant 12 : index
    %c24_273 = arith.constant 24 : index
    %519 = vector.load %arg22[%c12_272, %c24_273] : memref<32x32xf32, #tpu.memory_space<vmem>>, vector<4x8xf32>
    tpu.vector_store %arg22[%c12_272, %c24_273], %518 {strides = array<i32>} : memref<32x32xf32, #tpu.memory_space<vmem>>, vector<4x8xf32>,
    %520 = vector.extract_strided_slice %507 {offsets = [4, 0, 0], sizes = [1, 4, 8], strides = [1, 1, 1]} : vector<8x4x8xf32> to vector<1x4x8xf32>
    %521 = vector.shape_cast %520 : vector<1x4x8xf32> to vector<4x8xf32>
    %c16_274 = arith.constant 16 : index
    %c24_275 = arith.constant 24 : index
    %522 = vector.load %arg22[%c16_274, %c24_275] : memref<32x32xf32, #tpu.memory_space<vmem>>, vector<4x8xf32>
    tpu.vector_store %arg22[%c16_274, %c24_275], %521 {strides = array<i32>} : memref<32x32xf32, #tpu.memory_space<vmem>>, vector<4x8xf32>,
    %523 = vector.extract_strided_slice %507 {offsets = [5, 0, 0], sizes = [1, 4, 8], strides = [1, 1, 1]} : vector<8x4x8xf32> to vector<1x4x8xf32>
    %524 = vector.shape_cast %523 : vector<1x4x8xf32> to vector<4x8xf32>
    %c20_276 = arith.constant 20 : index
    %c24_277 = arith.constant 24 : index
    %525 = vector.load %arg22[%c20_276, %c24_277] : memref<32x32xf32, #tpu.memory_space<vmem>>, vector<4x8xf32>
    tpu.vector_store %arg22[%c20_276, %c24_277], %524 {strides = array<i32>} : memref<32x32xf32, #tpu.memory_space<vmem>>, vector<4x8xf32>,
    %526 = vector.extract_strided_slice %507 {offsets = [6, 0, 0], sizes = [1, 4, 8], strides = [1, 1, 1]} : vector<8x4x8xf32> to vector<1x4x8xf32>
    %527 = vector.shape_cast %526 : vector<1x4x8xf32> to vector<4x8xf32>
    %c24_278 = arith.constant 24 : index
    %c24_279 = arith.constant 24 : index
    %528 = vector.load %arg22[%c24_278, %c24_279] : memref<32x32xf32, #tpu.memory_space<vmem>>, vector<4x8xf32>
    tpu.vector_store %arg22[%c24_278, %c24_279], %527 {strides = array<i32>} : memref<32x32xf32, #tpu.memory_space<vmem>>, vector<4x8xf32>,
    %529 = vector.extract_strided_slice %507 {offsets = [7, 0, 0], sizes = [1, 4, 8], strides = [1, 1, 1]} : vector<8x4x8xf32> to vector<1x4x8xf32>
    %530 = vector.shape_cast %529 : vector<1x4x8xf32> to vector<4x8xf32>
    %c28_280 = arith.constant 28 : index
    %c24_281 = arith.constant 24 : index
    %531 = vector.load %arg22[%c28_280, %c24_281] : memref<32x32xf32, #tpu.memory_space<vmem>>, vector<4x8xf32>
    tpu.vector_store %arg22[%c28_280, %c24_281], %530 {strides = array<i32>} : memref<32x32xf32, #tpu.memory_space<vmem>>, vector<4x8xf32>,
    %c0_282 = arith.constant 0 : index
    %c0_283 = arith.constant 0 : index
    %532 = vector.load %arg22[%c0_282, %c0_283] : memref<32x32xf32, #tpu.memory_space<vmem>>, vector<32x32xf32>
    %c1_284 = arith.constant 1 : index
    %c0_285 = arith.constant 0 : index
    %c0_286 = arith.constant 0 : index
    %533 = vector.load %arg6[%c1_284, %c0_285, %c0_286] : memref<2x32x32xbf16, #tpu.memory_space<vmem>>, vector<1x32x32xbf16>
    %534 = vector.shape_cast %533 : vector<1x32x32xbf16> to vector<32x32xbf16>
    %535 = arith.truncf %532 : vector<32x32xf32> to vector<32x32xbf16>
    %cst_287 = arith.constant dense<0.000000e+00> : vector<32x32xf32>
    %536 = tpu.matmul %535, %534, %cst_287 {dimension_numbers = #tpu.dot_dimension_numbers<[1], [0], [0], [1], [0, 0, 1, 1], [], []>} : vector<32x32xbf16>, vector<32x32xbf16>, vector<32x32xf32> -> vector<32x32xf32>
    %c1_288 = arith.constant 1 : index
    %c0_289 = arith.constant 0 : index
    %c0_290 = arith.constant 0 : index
    %537 = vector.load %arg7[%c1_288, %c0_289, %c0_290] : memref<2x1x32xf32, #tpu.memory_space<vmem>>, vector<1x1x32xf32>
    %538 = vector.shape_cast %537 : vector<1x1x32xf32> to vector<1x32xf32>
    %539 = vector.broadcast %538 : vector<1x32xf32> to vector<32x32xf32>
    %540 = arith.addf %536, %539 : vector<32x32xf32>
    %541 = arith.addf %329, %540 : vector<32x32xf32>
    %c1_291 = arith.constant 1 : index
    %c0_292 = arith.constant 0 : index
    %c0_293 = arith.constant 0 : index
    %542 = vector.load %arg8[%c1_291, %c0_292, %c0_293] : memref<2x1x32xf32, #tpu.memory_space<vmem>>, vector<1x1x32xf32>
    %543 = vector.shape_cast %542 : vector<1x1x32xf32> to vector<1x32xf32>
    %c1_294 = arith.constant 1 : index
    %c0_295 = arith.constant 0 : index
    %c0_296 = arith.constant 0 : index
    %544 = vector.load %arg9[%c1_294, %c0_295, %c0_296] : memref<2x1x32xf32, #tpu.memory_space<vmem>>, vector<1x1x32xf32>
    %545 = vector.shape_cast %544 : vector<1x1x32xf32> to vector<1x32xf32>
    %cst_297 = arith.constant dense<0.000000e+00> : vector<32xf32>
    %546 = vector.multi_reduction <add>, %541, %cst_297 [1] : vector<32x32xf32> to vector<32xf32>
    %547 = vector.shape_cast %546 : vector<32xf32> to vector<32x1xf32>
    %cst_298 = arith.constant 3.200000e+01 : f32
    %548 = vector.broadcast %cst_298 : f32 to vector<32x1xf32>
    %549 = arith.divf %547, %548 : vector<32x1xf32>
    %550 = vector.broadcast %549 : vector<32x1xf32> to vector<32x32xf32>
    %551 = arith.subf %541, %550 : vector<32x32xf32>
    %552 = arith.mulf %551, %551 : vector<32x32xf32>
    %cst_299 = arith.constant dense<0.000000e+00> : vector<32xf32>
    %553 = vector.multi_reduction <add>, %552, %cst_299 [1] : vector<32x32xf32> to vector<32xf32>
    %554 = vector.shape_cast %553 : vector<32xf32> to vector<32x1xf32>
    %cst_300 = arith.constant 3.200000e+01 : f32
    %555 = vector.broadcast %cst_300 : f32 to vector<32x1xf32>
    %556 = arith.divf %554, %555 : vector<32x1xf32>
    %cst_301 = arith.constant 9.99999974E-6 : f32
    %557 = vector.broadcast %cst_301 : f32 to vector<32x1xf32>
    %558 = arith.addf %556, %557 : vector<32x1xf32>
    %559 = math.rsqrt %558 : vector<32x1xf32>
    %560 = vector.broadcast %559 : vector<32x1xf32> to vector<32x32xf32>
    %561 = arith.mulf %551, %560 : vector<32x32xf32>
    %562 = vector.broadcast %543 : vector<1x32xf32> to vector<32x32xf32>
    %563 = arith.mulf %561, %562 : vector<32x32xf32>
    %564 = vector.broadcast %545 : vector<1x32xf32> to vector<32x32xf32>
    %565 = arith.addf %563, %564 : vector<32x32xf32>
    %c1_302 = arith.constant 1 : index
    %c0_303 = arith.constant 0 : index
    %c0_304 = arith.constant 0 : index
    %566 = vector.load %arg10[%c1_302, %c0_303, %c0_304] : memref<2x32x64xbf16, #tpu.memory_space<vmem>>, vector<1x32x64xbf16>
    %567 = vector.shape_cast %566 : vector<1x32x64xbf16> to vector<32x64xbf16>
    %568 = arith.truncf %565 : vector<32x32xf32> to vector<32x32xbf16>
    %cst_305 = arith.constant dense<0.000000e+00> : vector<32x64xf32>
    %569 = tpu.matmul %568, %567, %cst_305 {dimension_numbers = #tpu.dot_dimension_numbers<[1], [0], [0], [1], [0, 0, 1, 1], [], []>} : vector<32x32xbf16>, vector<32x64xbf16>, vector<32x64xf32> -> vector<32x64xf32>
    %c1_306 = arith.constant 1 : index
    %c0_307 = arith.constant 0 : index
    %c0_308 = arith.constant 0 : index
    %570 = vector.load %arg11[%c1_306, %c0_307, %c0_308] : memref<2x1x64xf32, #tpu.memory_space<vmem>>, vector<1x1x64xf32>
    %571 = vector.shape_cast %570 : vector<1x1x64xf32> to vector<1x64xf32>
    %572 = vector.broadcast %571 : vector<1x64xf32> to vector<32x64xf32>
    %573 = arith.addf %569, %572 : vector<32x64xf32>
    %cst_309 = arith.constant 0.000000e+00 : f32
    %574 = vector.broadcast %cst_309 : f32 to vector<32x64xf32>
    %575 = arith.maximumf %573, %574 : vector<32x64xf32>
    %c1_310 = arith.constant 1 : index
    %c0_311 = arith.constant 0 : index
    %c0_312 = arith.constant 0 : index
    %576 = vector.load %arg12[%c1_310, %c0_311, %c0_312] : memref<2x64x32xbf16, #tpu.memory_space<vmem>>, vector<1x64x32xbf16>
    %577 = vector.shape_cast %576 : vector<1x64x32xbf16> to vector<64x32xbf16>
    %578 = arith.truncf %575 : vector<32x64xf32> to vector<32x64xbf16>
    %cst_313 = arith.constant dense<0.000000e+00> : vector<32x32xf32>
    %579 = tpu.matmul %578, %577, %cst_313 {dimension_numbers = #tpu.dot_dimension_numbers<[1], [0], [0], [1], [0, 0, 1, 1], [], []>} : vector<32x64xbf16>, vector<64x32xbf16>, vector<32x32xf32> -> vector<32x32xf32>
    %c1_314 = arith.constant 1 : index
    %c0_315 = arith.constant 0 : index
    %c0_316 = arith.constant 0 : index
    %580 = vector.load %arg13[%c1_314, %c0_315, %c0_316] : memref<2x1x32xf32, #tpu.memory_space<vmem>>, vector<1x1x32xf32>
    %581 = vector.shape_cast %580 : vector<1x1x32xf32> to vector<1x32xf32>
    %582 = vector.broadcast %581 : vector<1x32xf32> to vector<32x32xf32>
    %583 = arith.addf %579, %582 : vector<32x32xf32>
    %584 = arith.addf %565, %583 : vector<32x32xf32>
    %c1_317 = arith.constant 1 : index
    %c0_318 = arith.constant 0 : index
    %c0_319 = arith.constant 0 : index
    %585 = vector.load %arg14[%c1_317, %c0_318, %c0_319] : memref<2x1x32xf32, #tpu.memory_space<vmem>>, vector<1x1x32xf32>
    %586 = vector.shape_cast %585 : vector<1x1x32xf32> to vector<1x32xf32>
    %c1_320 = arith.constant 1 : index
    %c0_321 = arith.constant 0 : index
    %c0_322 = arith.constant 0 : index
    %587 = vector.load %arg15[%c1_320, %c0_321, %c0_322] : memref<2x1x32xf32, #tpu.memory_space<vmem>>, vector<1x1x32xf32>
    %588 = vector.shape_cast %587 : vector<1x1x32xf32> to vector<1x32xf32>
    %cst_323 = arith.constant dense<0.000000e+00> : vector<32xf32>
    %589 = vector.multi_reduction <add>, %584, %cst_323 [1] : vector<32x32xf32> to vector<32xf32>
    %590 = vector.shape_cast %589 : vector<32xf32> to vector<32x1xf32>
    %cst_324 = arith.constant 3.200000e+01 : f32
    %591 = vector.broadcast %cst_324 : f32 to vector<32x1xf32>
    %592 = arith.divf %590, %591 : vector<32x1xf32>
    %593 = vector.broadcast %592 : vector<32x1xf32> to vector<32x32xf32>
    %594 = arith.subf %584, %593 : vector<32x32xf32>
    %595 = arith.mulf %594, %594 : vector<32x32xf32>
    %cst_325 = arith.constant dense<0.000000e+00> : vector<32xf32>
    %596 = vector.multi_reduction <add>, %595, %cst_325 [1] : vector<32x32xf32> to vector<32xf32>
    %597 = vector.shape_cast %596 : vector<32xf32> to vector<32x1xf32>
    %cst_326 = arith.constant 3.200000e+01 : f32
    %598 = vector.broadcast %cst_326 : f32 to vector<32x1xf32>
    %599 = arith.divf %597, %598 : vector<32x1xf32>
    %cst_327 = arith.constant 9.99999974E-6 : f32
    %600 = vector.broadcast %cst_327 : f32 to vector<32x1xf32>
    %601 = arith.addf %599, %600 : vector<32x1xf32>
    %602 = math.rsqrt %601 : vector<32x1xf32>
    %603 = vector.broadcast %602 : vector<32x1xf32> to vector<32x32xf32>
    %604 = arith.mulf %594, %603 : vector<32x32xf32>
    %605 = vector.broadcast %586 : vector<1x32xf32> to vector<32x32xf32>
    %606 = arith.mulf %604, %605 : vector<32x32xf32>
    %607 = vector.broadcast %588 : vector<1x32xf32> to vector<32x32xf32>
    %608 = arith.addf %606, %607 : vector<32x32xf32>
    %c0_328 = arith.constant 0 : index
    %c0_329 = arith.constant 0 : index
    %609 = vector.load %arg16[%c0_328, %c0_329] : memref<1x32xf32, #tpu.memory_space<vmem>>, vector<1x32xf32>
    %c0_330 = arith.constant 0 : index
    %c0_331 = arith.constant 0 : index
    %610 = vector.load %arg17[%c0_330, %c0_331] : memref<1x32xf32, #tpu.memory_space<vmem>>, vector<1x32xf32>
    %cst_332 = arith.constant dense<0.000000e+00> : vector<32xf32>
    %611 = vector.multi_reduction <add>, %608, %cst_332 [1] : vector<32x32xf32> to vector<32xf32>
    %612 = vector.shape_cast %611 : vector<32xf32> to vector<32x1xf32>
    %cst_333 = arith.constant 3.200000e+01 : f32
    %613 = vector.broadcast %cst_333 : f32 to vector<32x1xf32>
    %614 = arith.divf %612, %613 : vector<32x1xf32>
    %615 = vector.broadcast %614 : vector<32x1xf32> to vector<32x32xf32>
    %616 = arith.subf %608, %615 : vector<32x32xf32>
    %617 = arith.mulf %616, %616 : vector<32x32xf32>
    %cst_334 = arith.constant dense<0.000000e+00> : vector<32xf32>
    %618 = vector.multi_reduction <add>, %617, %cst_334 [1] : vector<32x32xf32> to vector<32xf32>
    %619 = vector.shape_cast %618 : vector<32xf32> to vector<32x1xf32>
    %cst_335 = arith.constant 3.200000e+01 : f32
    %620 = vector.broadcast %cst_335 : f32 to vector<32x1xf32>
    %621 = arith.divf %619, %620 : vector<32x1xf32>
    %cst_336 = arith.constant 9.99999974E-6 : f32
    %622 = vector.broadcast %cst_336 : f32 to vector<32x1xf32>
    %623 = arith.addf %621, %622 : vector<32x1xf32>
    %624 = math.rsqrt %623 : vector<32x1xf32>
    %625 = vector.broadcast %624 : vector<32x1xf32> to vector<32x32xf32>
    %626 = arith.mulf %616, %625 : vector<32x32xf32>
    %627 = vector.broadcast %609 : vector<1x32xf32> to vector<32x32xf32>
    %628 = arith.mulf %626, %627 : vector<32x32xf32>
    %629 = vector.broadcast %610 : vector<1x32xf32> to vector<32x32xf32>
    %630 = arith.addf %628, %629 : vector<32x32xf32>
    %631 = vector.extract_strided_slice %630 {offsets = [0, 0], sizes = [1, 32], strides = [1, 1]} : vector<32x32xf32> to vector<1x32xf32>
    %c0_337 = arith.constant 0 : index
    %c0_338 = arith.constant 0 : index
    %632 = vector.load %arg23[%c0_337, %c0_338] : memref<2x512xf32, #tpu.memory_space<vmem>>, vector<1x32xf32>
    tpu.vector_store %arg23[%c0_337, %c0_338], %631 {strides = array<i32>} : memref<2x512xf32, #tpu.memory_space<vmem>>, vector<1x32xf32>,
    %633 = vector.extract_strided_slice %630 {offsets = [1, 0], sizes = [1, 32], strides = [1, 1]} : vector<32x32xf32> to vector<1x32xf32>
    %c0_339 = arith.constant 0 : index
    %c32 = arith.constant 32 : index
    %634 = vector.load %arg23[%c0_339, %c32] : memref<2x512xf32, #tpu.memory_space<vmem>>, vector<1x32xf32>
    tpu.vector_store %arg23[%c0_339, %c32], %633 {strides = array<i32>} : memref<2x512xf32, #tpu.memory_space<vmem>>, vector<1x32xf32>,
    %635 = vector.extract_strided_slice %630 {offsets = [2, 0], sizes = [1, 32], strides = [1, 1]} : vector<32x32xf32> to vector<1x32xf32>
    %c0_340 = arith.constant 0 : index
    %c64 = arith.constant 64 : index
    %636 = vector.load %arg23[%c0_340, %c64] : memref<2x512xf32, #tpu.memory_space<vmem>>, vector<1x32xf32>
    tpu.vector_store %arg23[%c0_340, %c64], %635 {strides = array<i32>} : memref<2x512xf32, #tpu.memory_space<vmem>>, vector<1x32xf32>,
    %637 = vector.extract_strided_slice %630 {offsets = [3, 0], sizes = [1, 32], strides = [1, 1]} : vector<32x32xf32> to vector<1x32xf32>
    %c0_341 = arith.constant 0 : index
    %c96 = arith.constant 96 : index
    %638 = vector.load %arg23[%c0_341, %c96] : memref<2x512xf32, #tpu.memory_space<vmem>>, vector<1x32xf32>
    tpu.vector_store %arg23[%c0_341, %c96], %637 {strides = array<i32>} : memref<2x512xf32, #tpu.memory_space<vmem>>, vector<1x32xf32>,
    %639 = vector.extract_strided_slice %630 {offsets = [4, 0], sizes = [1, 32], strides = [1, 1]} : vector<32x32xf32> to vector<1x32xf32>
    %c0_342 = arith.constant 0 : index
    %c128 = arith.constant 128 : index
    %640 = vector.load %arg23[%c0_342, %c128] : memref<2x512xf32, #tpu.memory_space<vmem>>, vector<1x32xf32>
    tpu.vector_store %arg23[%c0_342, %c128], %639 {strides = array<i32>} : memref<2x512xf32, #tpu.memory_space<vmem>>, vector<1x32xf32>,
    %641 = vector.extract_strided_slice %630 {offsets = [5, 0], sizes = [1, 32], strides = [1, 1]} : vector<32x32xf32> to vector<1x32xf32>
    %c0_343 = arith.constant 0 : index
    %c160 = arith.constant 160 : index
    %642 = vector.load %arg23[%c0_343, %c160] : memref<2x512xf32, #tpu.memory_space<vmem>>, vector<1x32xf32>
    tpu.vector_store %arg23[%c0_343, %c160], %641 {strides = array<i32>} : memref<2x512xf32, #tpu.memory_space<vmem>>, vector<1x32xf32>,
    %643 = vector.extract_strided_slice %630 {offsets = [6, 0], sizes = [1, 32], strides = [1, 1]} : vector<32x32xf32> to vector<1x32xf32>
    %c0_344 = arith.constant 0 : index
    %c192 = arith.constant 192 : index
    %644 = vector.load %arg23[%c0_344, %c192] : memref<2x512xf32, #tpu.memory_space<vmem>>, vector<1x32xf32>
    tpu.vector_store %arg23[%c0_344, %c192], %643 {strides = array<i32>} : memref<2x512xf32, #tpu.memory_space<vmem>>, vector<1x32xf32>,
    %645 = vector.extract_strided_slice %630 {offsets = [7, 0], sizes = [1, 32], strides = [1, 1]} : vector<32x32xf32> to vector<1x32xf32>
    %c0_345 = arith.constant 0 : index
    %c224 = arith.constant 224 : index
    %646 = vector.load %arg23[%c0_345, %c224] : memref<2x512xf32, #tpu.memory_space<vmem>>, vector<1x32xf32>
    tpu.vector_store %arg23[%c0_345, %c224], %645 {strides = array<i32>} : memref<2x512xf32, #tpu.memory_space<vmem>>, vector<1x32xf32>,
    %647 = vector.extract_strided_slice %630 {offsets = [8, 0], sizes = [1, 32], strides = [1, 1]} : vector<32x32xf32> to vector<1x32xf32>
    %c0_346 = arith.constant 0 : index
    %c256 = arith.constant 256 : index
    %648 = vector.load %arg23[%c0_346, %c256] : memref<2x512xf32, #tpu.memory_space<vmem>>, vector<1x32xf32>
    tpu.vector_store %arg23[%c0_346, %c256], %647 {strides = array<i32>} : memref<2x512xf32, #tpu.memory_space<vmem>>, vector<1x32xf32>,
    %649 = vector.extract_strided_slice %630 {offsets = [9, 0], sizes = [1, 32], strides = [1, 1]} : vector<32x32xf32> to vector<1x32xf32>
    %c0_347 = arith.constant 0 : index
    %c288 = arith.constant 288 : index
    %650 = vector.load %arg23[%c0_347, %c288] : memref<2x512xf32, #tpu.memory_space<vmem>>, vector<1x32xf32>
    tpu.vector_store %arg23[%c0_347, %c288], %649 {strides = array<i32>} : memref<2x512xf32, #tpu.memory_space<vmem>>, vector<1x32xf32>,
    %651 = vector.extract_strided_slice %630 {offsets = [10, 0], sizes = [1, 32], strides = [1, 1]} : vector<32x32xf32> to vector<1x32xf32>
    %c0_348 = arith.constant 0 : index
    %c320 = arith.constant 320 : index
    %652 = vector.load %arg23[%c0_348, %c320] : memref<2x512xf32, #tpu.memory_space<vmem>>, vector<1x32xf32>
    tpu.vector_store %arg23[%c0_348, %c320], %651 {strides = array<i32>} : memref<2x512xf32, #tpu.memory_space<vmem>>, vector<1x32xf32>,
    %653 = vector.extract_strided_slice %630 {offsets = [11, 0], sizes = [1, 32], strides = [1, 1]} : vector<32x32xf32> to vector<1x32xf32>
    %c0_349 = arith.constant 0 : index
    %c352 = arith.constant 352 : index
    %654 = vector.load %arg23[%c0_349, %c352] : memref<2x512xf32, #tpu.memory_space<vmem>>, vector<1x32xf32>
    tpu.vector_store %arg23[%c0_349, %c352], %653 {strides = array<i32>} : memref<2x512xf32, #tpu.memory_space<vmem>>, vector<1x32xf32>,
    %655 = vector.extract_strided_slice %630 {offsets = [12, 0], sizes = [1, 32], strides = [1, 1]} : vector<32x32xf32> to vector<1x32xf32>
    %c0_350 = arith.constant 0 : index
    %c384 = arith.constant 384 : index
    %656 = vector.load %arg23[%c0_350, %c384] : memref<2x512xf32, #tpu.memory_space<vmem>>, vector<1x32xf32>
    tpu.vector_store %arg23[%c0_350, %c384], %655 {strides = array<i32>} : memref<2x512xf32, #tpu.memory_space<vmem>>, vector<1x32xf32>,
    %657 = vector.extract_strided_slice %630 {offsets = [13, 0], sizes = [1, 32], strides = [1, 1]} : vector<32x32xf32> to vector<1x32xf32>
    %c0_351 = arith.constant 0 : index
    %c416 = arith.constant 416 : index
    %658 = vector.load %arg23[%c0_351, %c416] : memref<2x512xf32, #tpu.memory_space<vmem>>, vector<1x32xf32>
    tpu.vector_store %arg23[%c0_351, %c416], %657 {strides = array<i32>} : memref<2x512xf32, #tpu.memory_space<vmem>>, vector<1x32xf32>,
    %659 = vector.extract_strided_slice %630 {offsets = [14, 0], sizes = [1, 32], strides = [1, 1]} : vector<32x32xf32> to vector<1x32xf32>
    %c0_352 = arith.constant 0 : index
    %c448 = arith.constant 448 : index
    %660 = vector.load %arg23[%c0_352, %c448] : memref<2x512xf32, #tpu.memory_space<vmem>>, vector<1x32xf32>
    tpu.vector_store %arg23[%c0_352, %c448], %659 {strides = array<i32>} : memref<2x512xf32, #tpu.memory_space<vmem>>, vector<1x32xf32>,
    %661 = vector.extract_strided_slice %630 {offsets = [15, 0], sizes = [1, 32], strides = [1, 1]} : vector<32x32xf32> to vector<1x32xf32>
    %c0_353 = arith.constant 0 : index
    %c480 = arith.constant 480 : index
    %662 = vector.load %arg23[%c0_353, %c480] : memref<2x512xf32, #tpu.memory_space<vmem>>, vector<1x32xf32>
    tpu.vector_store %arg23[%c0_353, %c480], %661 {strides = array<i32>} : memref<2x512xf32, #tpu.memory_space<vmem>>, vector<1x32xf32>,
    %663 = vector.extract_strided_slice %630 {offsets = [16, 0], sizes = [1, 32], strides = [1, 1]} : vector<32x32xf32> to vector<1x32xf32>
    %c1_354 = arith.constant 1 : index
    %c0_355 = arith.constant 0 : index
    %664 = vector.load %arg23[%c1_354, %c0_355] : memref<2x512xf32, #tpu.memory_space<vmem>>, vector<1x32xf32>
    tpu.vector_store %arg23[%c1_354, %c0_355], %663 {strides = array<i32>} : memref<2x512xf32, #tpu.memory_space<vmem>>, vector<1x32xf32>,
    %665 = vector.extract_strided_slice %630 {offsets = [17, 0], sizes = [1, 32], strides = [1, 1]} : vector<32x32xf32> to vector<1x32xf32>
    %c1_356 = arith.constant 1 : index
    %c32_357 = arith.constant 32 : index
    %666 = vector.load %arg23[%c1_356, %c32_357] : memref<2x512xf32, #tpu.memory_space<vmem>>, vector<1x32xf32>
    tpu.vector_store %arg23[%c1_356, %c32_357], %665 {strides = array<i32>} : memref<2x512xf32, #tpu.memory_space<vmem>>, vector<1x32xf32>,
    %667 = vector.extract_strided_slice %630 {offsets = [18, 0], sizes = [1, 32], strides = [1, 1]} : vector<32x32xf32> to vector<1x32xf32>
    %c1_358 = arith.constant 1 : index
    %c64_359 = arith.constant 64 : index
    %668 = vector.load %arg23[%c1_358, %c64_359] : memref<2x512xf32, #tpu.memory_space<vmem>>, vector<1x32xf32>
    tpu.vector_store %arg23[%c1_358, %c64_359], %667 {strides = array<i32>} : memref<2x512xf32, #tpu.memory_space<vmem>>, vector<1x32xf32>,
    %669 = vector.extract_strided_slice %630 {offsets = [19, 0], sizes = [1, 32], strides = [1, 1]} : vector<32x32xf32> to vector<1x32xf32>
    %c1_360 = arith.constant 1 : index
    %c96_361 = arith.constant 96 : index
    %670 = vector.load %arg23[%c1_360, %c96_361] : memref<2x512xf32, #tpu.memory_space<vmem>>, vector<1x32xf32>
    tpu.vector_store %arg23[%c1_360, %c96_361], %669 {strides = array<i32>} : memref<2x512xf32, #tpu.memory_space<vmem>>, vector<1x32xf32>,
    %671 = vector.extract_strided_slice %630 {offsets = [20, 0], sizes = [1, 32], strides = [1, 1]} : vector<32x32xf32> to vector<1x32xf32>
    %c1_362 = arith.constant 1 : index
    %c128_363 = arith.constant 128 : index
    %672 = vector.load %arg23[%c1_362, %c128_363] : memref<2x512xf32, #tpu.memory_space<vmem>>, vector<1x32xf32>
    tpu.vector_store %arg23[%c1_362, %c128_363], %671 {strides = array<i32>} : memref<2x512xf32, #tpu.memory_space<vmem>>, vector<1x32xf32>,
    %673 = vector.extract_strided_slice %630 {offsets = [21, 0], sizes = [1, 32], strides = [1, 1]} : vector<32x32xf32> to vector<1x32xf32>
    %c1_364 = arith.constant 1 : index
    %c160_365 = arith.constant 160 : index
    %674 = vector.load %arg23[%c1_364, %c160_365] : memref<2x512xf32, #tpu.memory_space<vmem>>, vector<1x32xf32>
    tpu.vector_store %arg23[%c1_364, %c160_365], %673 {strides = array<i32>} : memref<2x512xf32, #tpu.memory_space<vmem>>, vector<1x32xf32>,
    %675 = vector.extract_strided_slice %630 {offsets = [22, 0], sizes = [1, 32], strides = [1, 1]} : vector<32x32xf32> to vector<1x32xf32>
    %c1_366 = arith.constant 1 : index
    %c192_367 = arith.constant 192 : index
    %676 = vector.load %arg23[%c1_366, %c192_367] : memref<2x512xf32, #tpu.memory_space<vmem>>, vector<1x32xf32>
    tpu.vector_store %arg23[%c1_366, %c192_367], %675 {strides = array<i32>} : memref<2x512xf32, #tpu.memory_space<vmem>>, vector<1x32xf32>,
    %677 = vector.extract_strided_slice %630 {offsets = [23, 0], sizes = [1, 32], strides = [1, 1]} : vector<32x32xf32> to vector<1x32xf32>
    %c1_368 = arith.constant 1 : index
    %c224_369 = arith.constant 224 : index
    %678 = vector.load %arg23[%c1_368, %c224_369] : memref<2x512xf32, #tpu.memory_space<vmem>>, vector<1x32xf32>
    tpu.vector_store %arg23[%c1_368, %c224_369], %677 {strides = array<i32>} : memref<2x512xf32, #tpu.memory_space<vmem>>, vector<1x32xf32>,
    %679 = vector.extract_strided_slice %630 {offsets = [24, 0], sizes = [1, 32], strides = [1, 1]} : vector<32x32xf32> to vector<1x32xf32>
    %c1_370 = arith.constant 1 : index
    %c256_371 = arith.constant 256 : index
    %680 = vector.load %arg23[%c1_370, %c256_371] : memref<2x512xf32, #tpu.memory_space<vmem>>, vector<1x32xf32>
    tpu.vector_store %arg23[%c1_370, %c256_371], %679 {strides = array<i32>} : memref<2x512xf32, #tpu.memory_space<vmem>>, vector<1x32xf32>,
    %681 = vector.extract_strided_slice %630 {offsets = [25, 0], sizes = [1, 32], strides = [1, 1]} : vector<32x32xf32> to vector<1x32xf32>
    %c1_372 = arith.constant 1 : index
    %c288_373 = arith.constant 288 : index
    %682 = vector.load %arg23[%c1_372, %c288_373] : memref<2x512xf32, #tpu.memory_space<vmem>>, vector<1x32xf32>
    tpu.vector_store %arg23[%c1_372, %c288_373], %681 {strides = array<i32>} : memref<2x512xf32, #tpu.memory_space<vmem>>, vector<1x32xf32>,
    %683 = vector.extract_strided_slice %630 {offsets = [26, 0], sizes = [1, 32], strides = [1, 1]} : vector<32x32xf32> to vector<1x32xf32>
    %c1_374 = arith.constant 1 : index
    %c320_375 = arith.constant 320 : index
    %684 = vector.load %arg23[%c1_374, %c320_375] : memref<2x512xf32, #tpu.memory_space<vmem>>, vector<1x32xf32>
    tpu.vector_store %arg23[%c1_374, %c320_375], %683 {strides = array<i32>} : memref<2x512xf32, #tpu.memory_space<vmem>>, vector<1x32xf32>,
    %685 = vector.extract_strided_slice %630 {offsets = [27, 0], sizes = [1, 32], strides = [1, 1]} : vector<32x32xf32> to vector<1x32xf32>
    %c1_376 = arith.constant 1 : index
    %c352_377 = arith.constant 352 : index
    %686 = vector.load %arg23[%c1_376, %c352_377] : memref<2x512xf32, #tpu.memory_space<vmem>>, vector<1x32xf32>
    tpu.vector_store %arg23[%c1_376, %c352_377], %685 {strides = array<i32>} : memref<2x512xf32, #tpu.memory_space<vmem>>, vector<1x32xf32>,
    %687 = vector.extract_strided_slice %630 {offsets = [28, 0], sizes = [1, 32], strides = [1, 1]} : vector<32x32xf32> to vector<1x32xf32>
    %c1_378 = arith.constant 1 : index
    %c384_379 = arith.constant 384 : index
    %688 = vector.load %arg23[%c1_378, %c384_379] : memref<2x512xf32, #tpu.memory_space<vmem>>, vector<1x32xf32>
    tpu.vector_store %arg23[%c1_378, %c384_379], %687 {strides = array<i32>} : memref<2x512xf32, #tpu.memory_space<vmem>>, vector<1x32xf32>,
    %689 = vector.extract_strided_slice %630 {offsets = [29, 0], sizes = [1, 32], strides = [1, 1]} : vector<32x32xf32> to vector<1x32xf32>
    %c1_380 = arith.constant 1 : index
    %c416_381 = arith.constant 416 : index
    %690 = vector.load %arg23[%c1_380, %c416_381] : memref<2x512xf32, #tpu.memory_space<vmem>>, vector<1x32xf32>
    tpu.vector_store %arg23[%c1_380, %c416_381], %689 {strides = array<i32>} : memref<2x512xf32, #tpu.memory_space<vmem>>, vector<1x32xf32>,
    %691 = vector.extract_strided_slice %630 {offsets = [30, 0], sizes = [1, 32], strides = [1, 1]} : vector<32x32xf32> to vector<1x32xf32>
    %c1_382 = arith.constant 1 : index
    %c448_383 = arith.constant 448 : index
    %692 = vector.load %arg23[%c1_382, %c448_383] : memref<2x512xf32, #tpu.memory_space<vmem>>, vector<1x32xf32>
    tpu.vector_store %arg23[%c1_382, %c448_383], %691 {strides = array<i32>} : memref<2x512xf32, #tpu.memory_space<vmem>>, vector<1x32xf32>,
    %693 = vector.extract_strided_slice %630 {offsets = [31, 0], sizes = [1, 32], strides = [1, 1]} : vector<32x32xf32> to vector<1x32xf32>
    %c1_384 = arith.constant 1 : index
    %c480_385 = arith.constant 480 : index
    %694 = vector.load %arg23[%c1_384, %c480_385] : memref<2x512xf32, #tpu.memory_space<vmem>>, vector<1x32xf32>
    tpu.vector_store %arg23[%c1_384, %c480_385], %693 {strides = array<i32>} : memref<2x512xf32, #tpu.memory_space<vmem>>, vector<1x32xf32>,
    %c0_386 = arith.constant 0 : index
    %c0_387 = arith.constant 0 : index
    %695 = vector.load %arg23[%c0_386, %c0_387] : memref<2x512xf32, #tpu.memory_space<vmem>>, vector<2x512xf32>
    %c0_388 = arith.constant 0 : index
    %c0_389 = arith.constant 0 : index
    %696 = vector.load %arg18[%c0_388, %c0_389] : memref<512x128xf32, #tpu.memory_space<vmem>>, vector<512x128xf32>
    %cst_390 = arith.constant dense<0.000000e+00> : vector<2x128xf32>
    %697 = tpu.matmul %695, %696, %cst_390 {dimension_numbers = #tpu.dot_dimension_numbers<[1], [0], [0], [1], [0, 0, 1, 1], [], []>} : vector<2x512xf32>, vector<512x128xf32>, vector<2x128xf32> -> vector<2x128xf32>
    %c0_391 = arith.constant 0 : index
    %c0_392 = arith.constant 0 : index
    %698 = vector.load %arg19[%c0_391, %c0_392] : memref<1x128xf32, #tpu.memory_space<vmem>>, vector<1x128xf32>
    %699 = vector.broadcast %698 : vector<1x128xf32> to vector<2x128xf32>
    %700 = arith.addf %697, %699 : vector<2x128xf32>
    %c0_393 = arith.constant 0 : index
    %c0_394 = arith.constant 0 : index
    %701 = vector.load %arg20[%c0_393, %c0_394] : memref<2x128xf32, #tpu.memory_space<vmem>>, vector<2x128xf32>
    tpu.vector_store %arg20[%c0_393, %c0_394], %700 {strides = array<i32>} : memref<2x128xf32, #tpu.memory_space<vmem>>, vector<2x128xf32>,
    return
  }
}

</mosaic_0001>

<llo_original>
// kernel: _lambda_.1
$region0: #{_lambda_.1}
  #allocation0 [shape = 'u32[]', space=smem, size = 0x4, offset = 0x4, fixed_abs, tag = 'smem constant byte address 0x4 - core index']
  #allocation1 [shape = 'u32[144,128]{1,0:T(1,128)}', space=vmem, size = 0x12000, scoped, tag = 'internal scratch']
  #allocation2 [shape = 'f32[8,4,96]{2,1,0:T(4,128)}', space=vmem, size = 0x4000, scoped, tag = 'scratch operand']
  #allocation3 [shape = 'f32[32,32]{1,0:T(8,128)}', space=vmem, size = 0x4000, scoped, tag = 'scratch operand']
  #allocation4 [shape = 'f32[2,512]{1,0:T(2,128)}', space=vmem, size = 0x1000, scoped, tag = 'scratch operand']
  %s0 = inlined_call_operand.vmem [shape: f32[8,32], index: 0, kind: input, shape index: {}]
  %s1 = inlined_call_operand.vmem [shape: f32[32,16], index: 1, kind: input, shape index: {}]
  %s2 = inlined_call_operand.vmem [shape: f32[16,32], index: 2, kind: input, shape index: {}]
  %s3 = inlined_call_operand.vmem [shape: f32[4,32], index: 3, kind: input, shape index: {}]
  %s4 = inlined_call_operand.vmem [shape: bf16[2,32,96], index: 4, kind: input, shape index: {}]
  %s5 = inlined_call_operand.vmem [shape: f32[2,1,96], index: 5, kind: input, shape index: {}]
  %s6 = inlined_call_operand.vmem [shape: bf16[2,32,32], index: 6, kind: input, shape index: {}]
  %s7 = inlined_call_operand.vmem [shape: f32[2,1,32], index: 7, kind: input, shape index: {}]
  %s8 = inlined_call_operand.vmem [shape: f32[2,1,32], index: 8, kind: input, shape index: {}]
  %s9 = inlined_call_operand.vmem [shape: f32[2,1,32], index: 9, kind: input, shape index: {}]
  %s10 = inlined_call_operand.vmem [shape: bf16[2,32,64], index: 10, kind: input, shape index: {}]
  %s11 = inlined_call_operand.vmem [shape: f32[2,1,64], index: 11, kind: input, shape index: {}]
  %s12 = inlined_call_operand.vmem [shape: bf16[2,64,32], index: 12, kind: input, shape index: {}]
  %s13 = inlined_call_operand.vmem [shape: f32[2,1,32], index: 13, kind: input, shape index: {}]
  %s14 = inlined_call_operand.vmem [shape: f32[2,1,32], index: 14, kind: input, shape index: {}]
  %s15 = inlined_call_operand.vmem [shape: f32[2,1,32], index: 15, kind: input, shape index: {}]
  %s16 = inlined_call_operand.vmem [shape: f32[1,32], index: 16, kind: input, shape index: {}]
  %s17 = inlined_call_operand.vmem [shape: f32[1,32], index: 17, kind: input, shape index: {}]
  %s18 = inlined_call_operand.vmem [shape: f32[512,128], index: 18, kind: input, shape index: {}]
  %s19 = inlined_call_operand.vmem [shape: f32[1,128], index: 19, kind: input, shape index: {}]
  %s20 = inlined_call_operand.hbm [shape: f32[2,128], index: 20, kind: output, shape index: {}]
  %s21 = sld [smem:[#allocation0]]
  $region90: #{_lambda_.1} parent=0
    _
  %s23 = ssub.s32 1, %s21
  %s24 = scalar_select 0, %s23, %s21
  $region1: #{_lambda_.1} parent=0
    #allocation5 [shape = 'u8[1024]{0}', space=vmem, size = 0x400, scoped, tag = 'output window, operand 0, single buffered']
    #allocation6 [shape = 's32[1]{0}', space=sflag, size = 0x4, scoped, tag = 'scoped memory for _lambda_.1']
    %25 = vsyncpa [#allocation6], 0
    // Predicated region
    $region2: #{_lambda_.1} parent=1 // pred_check
      _
    $region3: #{_lambda_.1} parent=1 // pred_check_branch
      %27 = sbr.rel (0) target = $region5
    $region4: #{_lambda_.1} parent=1 // pred_region
      _
    $region5: #{_lambda_.1} parent=1 // pred_fallthru
      _
    // Predicated region
    $region6: #{_lambda_.1} parent=1 // pred_check
      _
    $region7: #{_lambda_.1} parent=1 // pred_check_branch
      %29 = sbr.rel (0) target = $region9
    $region8: #{_lambda_.1} parent=1 // pred_region
      _
    $region9: #{_lambda_.1} parent=1 // pred_fallthru
      _
    // Predicated region
    $region10: #{_lambda_.1} parent=1 // pred_check
      _
    $region11: #{_lambda_.1} parent=1 // pred_check_branch
      %31 = sbr.rel (0) target = $region13
    $region12: #{_lambda_.1} parent=1 // pred_region
      _
    $region13: #{_lambda_.1} parent=1 // pred_fallthru
      _
    // Predicated region
    $region14: #{_lambda_.1} parent=1 // pred_check
      _
    $region15: #{_lambda_.1} parent=1 // pred_check_branch
      %33 = sbr.rel (0) target = $region17
    $region16: #{_lambda_.1} parent=1 // pred_region
      _
    $region17: #{_lambda_.1} parent=1 // pred_fallthru
      _
    // Predicated region
    $region18: #{_lambda_.1} parent=1 // pred_check
      _
    $region19: #{_lambda_.1} parent=1 // pred_check_branch
      %35 = sbr.rel (0) target = $region21
    $region20: #{_lambda_.1} parent=1 // pred_region
      _
    $region21: #{_lambda_.1} parent=1 // pred_fallthru
      _
    // Predicated region
    $region22: #{_lambda_.1} parent=1 // pred_check
      _
    $region23: #{_lambda_.1} parent=1 // pred_check_branch
      %37 = sbr.rel (0) target = $region25
    $region24: #{_lambda_.1} parent=1 // pred_region
      _
    $region25: #{_lambda_.1} parent=1 // pred_fallthru
      _
    // Predicated region
    $region26: #{_lambda_.1} parent=1 // pred_check
      _
    $region27: #{_lambda_.1} parent=1 // pred_check_branch
      %39 = sbr.rel (0) target = $region29
    $region28: #{_lambda_.1} parent=1 // pred_region
      _
    $region29: #{_lambda_.1} parent=1 // pred_fallthru
      _
    // Predicated region
    $region30: #{_lambda_.1} parent=1 // pred_check
      _
    $region31: #{_lambda_.1} parent=1 // pred_check_branch
      %41 = sbr.rel (0) target = $region33
    $region32: #{_lambda_.1} parent=1 // pred_region
      _
    $region33: #{_lambda_.1} parent=1 // pred_fallthru
      _
    // Predicated region
    $region34: #{_lambda_.1} parent=1 // pred_check
      _
    $region35: #{_lambda_.1} parent=1 // pred_check_branch
      %43 = sbr.rel (0) target = $region37
    $region36: #{_lambda_.1} parent=1 // pred_region
      _
    $region37: #{_lambda_.1} parent=1 // pred_fallthru
      _
    // Predicated region
    $region38: #{_lambda_.1} parent=1 // pred_check
      _
    $region39: #{_lambda_.1} parent=1 // pred_check_branch
      %45 = sbr.rel (0) target = $region41
    $region40: #{_lambda_.1} parent=1 // pred_region
      _
    $region41: #{_lambda_.1} parent=1 // pred_fallthru
      _
    // Predicated region
    $region42: #{_lambda_.1} parent=1 // pred_check
      _
    $region43: #{_lambda_.1} parent=1 // pred_check_branch
      %47 = sbr.rel (0) target = $region45
    $region44: #{_lambda_.1} parent=1 // pred_region
      _
    $region45: #{_lambda_.1} parent=1 // pred_fallthru
      _
    // Predicated region
    $region46: #{_lambda_.1} parent=1 // pred_check
      _
    $region47: #{_lambda_.1} parent=1 // pred_check_branch
      %49 = sbr.rel (0) target = $region49
    $region48: #{_lambda_.1} parent=1 // pred_region
      _
    $region49: #{_lambda_.1} parent=1 // pred_fallthru
      _
    // Predicated region
    $region50: #{_lambda_.1} parent=1 // pred_check
      _
    $region51: #{_lambda_.1} parent=1 // pred_check_branch
      %51 = sbr.rel (0) target = $region53
    $region52: #{_lambda_.1} parent=1 // pred_region
      _
    $region53: #{_lambda_.1} parent=1 // pred_fallthru
      _
    // Predicated region
    $region54: #{_lambda_.1} parent=1 // pred_check
      _
    $region55: #{_lambda_.1} parent=1 // pred_check_branch
      %53 = sbr.rel (0) target = $region57
    $region56: #{_lambda_.1} parent=1 // pred_region
      _
    $region57: #{_lambda_.1} parent=1 // pred_fallthru
      _
    // Predicated region
    $region58: #{_lambda_.1} parent=1 // pred_check
      _
    $region59: #{_lambda_.1} parent=1 // pred_check_branch
      %55 = sbr.rel (0) target = $region61
    $region60: #{_lambda_.1} parent=1 // pred_region
      _
    $region61: #{_lambda_.1} parent=1 // pred_fallthru
      _
    // Predicated region
    $region62: #{_lambda_.1} parent=1 // pred_check
      _
    $region63: #{_lambda_.1} parent=1 // pred_check_branch
      %57 = sbr.rel (0) target = $region65
    $region64: #{_lambda_.1} parent=1 // pred_region
      _
    $region65: #{_lambda_.1} parent=1 // pred_fallthru
      _
    // Predicated region
    $region66: #{_lambda_.1} parent=1 // pred_check
      _
    $region67: #{_lambda_.1} parent=1 // pred_check_branch
      %59 = sbr.rel (0) target = $region69
    $region68: #{_lambda_.1} parent=1 // pred_region
      _
    $region69: #{_lambda_.1} parent=1 // pred_fallthru
      _
    // Predicated region
    $region70: #{_lambda_.1} parent=1 // pred_check
      _
    $region71: #{_lambda_.1} parent=1 // pred_check_branch
      %61 = sbr.rel (0) target = $region73
    $region72: #{_lambda_.1} parent=1 // pred_region
      _
    $region73: #{_lambda_.1} parent=1 // pred_fallthru
      _
    // Predicated region
    $region74: #{_lambda_.1} parent=1 // pred_check
      _
    $region75: #{_lambda_.1} parent=1 // pred_check_branch
      %63 = sbr.rel (0) target = $region77
    $region76: #{_lambda_.1} parent=1 // pred_region
      _
    $region77: #{_lambda_.1} parent=1 // pred_fallthru
      _
    // Predicated region
    $region78: #{_lambda_.1} parent=1 // pred_check
      _
    $region79: #{_lambda_.1} parent=1 // pred_check_branch
      %65 = sbr.rel (0) target = $region81
    $region80: #{_lambda_.1} parent=1 // pred_region
      _
    $region81: #{_lambda_.1} parent=1 // pred_fallthru
      _
    %v67 = vld [vmem:[%s0] sm:$0xff]
    %vm68 = vcmask 261120
    %v69 = vsel %vm68, %v67, 0.0
    %70 = vadd.xlane.f32.xlu0 %v69
    %v71 = vpop.xlane.xlu0 %70
    %v72 = vrcp.pop 32.0
    %v73 = vmul.f32 %v71, %v72
    %v74 = vsub.f32 %v67, %v73
    %v75 = vmul.f32 %v74, %v74
    %v76 = vsel %vm68, %v75, 0.0
    %77 = vadd.xlane.f32.xlu0 %v76
    %v78 = vpop.xlane.xlu0 %77
    %v79 = vmul.f32 %v78, %v72
    %v80 = vadd.f32 %v79, 1e-05
    %v81 = vrsqrt.pop %v80
    %v82 = vlaneseq
    %v83 = vshrl.u32 %v82, 7
    %v84 = vadd.s32 %v83, 8
    %v85 = vadd.s32 %v83, 16
    %v86 = vadd.s32 %v83, 24
    %v87 = vcvt.s32.f32 %v83
    %v88 = vcvt.s32.f32 %v84
    %v89 = vcvt.s32.f32 %v85
    %v90 = vcvt.s32.f32 %v86
    %v91 = vrcp.pop 4.0
    %v92 = vmul.f32 %v87, %v91
    %v93 = vmul.f32 %v88, %v91
    %v94 = vmul.f32 %v89, %v91
    %v95 = vmul.f32 %v90, %v91
    %v96 = vfloor.f32 %v92
    %v97 = vfloor.f32 %v93
    %v98 = vfloor.f32 %v94
    %v99 = vfloor.f32 %v95
    %v100 = vmul.f32 %v96, 4.0
    %v101 = vmul.f32 %v97, 4.0
    %v102 = vmul.f32 %v98, 4.0
    %v103 = vmul.f32 %v99, 4.0
    %v104 = vsub.f32 %v87, %v100
    %v105 = vsub.f32 %v88, %v101
    %v106 = vsub.f32 %v89, %v102
    %v107 = vsub.f32 %v90, %v103
    %v108 = vlaneseq
    %v109 = vand.u32 %v108, 127
    %v110 = vcvt.s32.f32 %v109
    %vm111 = vcmp.eq.f32.partialorder %v96, %v110
    %vm112 = vcmp.eq.f32.partialorder %v97, %v110
    %vm113 = vcmp.eq.f32.partialorder %v98, %v110
    %vm114 = vcmp.eq.f32.partialorder %v99, %v110
    %v115 = vsel %vm111, 1.0, 0.0
    %v116 = vsel %vm112, 1.0, 0.0
    %v117 = vsel %vm113, 1.0, 0.0
    %v118 = vsel %vm114, 1.0, 0.0
    %vm119 = vcmp.eq.f32.partialorder %v104, %v110
    %vm120 = vcmp.eq.f32.partialorder %v105, %v110
    %vm121 = vcmp.eq.f32.partialorder %v106, %v110
    %vm122 = vcmp.eq.f32.partialorder %v107, %v110
    %v123 = vsel %vm119, 1.0, 0.0
    %v124 = vsel %vm120, 1.0, 0.0
    %v125 = vsel %vm121, 1.0, 0.0
    %v126 = vsel %vm122, 1.0, 0.0
    %vm127 = vcmask 64512
    %v129 = vsel %vm127, %v115, 0
    %v132 = vsel %vm127, %v116, 0
    %v135 = vsel %vm127, %v117, 0
    %v138 = vsel %vm127, %v118, 0
    %140 = vmatprep.subr.mxu0 0.0
    %141 = vmatpush1.msra.mxu0 0.0
    %142 = vmatprep.subr.mxu0 0.0
    %143 = vmatpush1.msra.mxu0 0.0
    %144 = vmatprep.subr.mxu0 0.0
    %145 = vmatpush1.msra.mxu0 0.0
    %146 = vmatprep.subr.mxu0 0.0
    %147 = vmatpush1.msra.mxu0 0.0
    %148 = vmatprep.subr.mxu0 0.0
    %149 = vmatpush1.msra.mxu0 0.0
    %150 = vmatprep.subr.mxu0 0.0
    %151 = vmatpush1.msra.mxu0 0.0
    %152 = vmatprep.subr.mxu0 0.0
    %153 = vmatpush1.msra.mxu0 0.0
    %154 = vmatprep.subr.mxu0 0.0
    %155 = vmatpush1.msra.mxu0 0.0
    %156 = vmatprep.subr.mxu0 0.0
    %157 = vmatpush1.msra.mxu0 0.0
    %158 = vmatprep.subr.mxu0 0.0
    %159 = vmatpush1.msra.mxu0 0.0
    %160 = vmatprep.subr.mxu0 0.0
    %161 = vmatpush1.msra.mxu0 0.0
    %162 = vmatprep.subr.mxu0 0.0
    %163 = vmatpush1.msra.mxu0 0.0
    %164 = vmatprep.subr.mxu0 0.0
    %165 = vmatpush1.msra.mxu0 0.0
    %166 = vmatprep.subr.mxu0 0.0
    %167 = vmatpush1.msra.mxu0 0.0
    %168 = vmatprep.subr.mxu0 0.0
    %169 = vmatpush1.msra.mxu0 0.0
    %170 = vmatprep.subr.mxu0 0.0
    %171 = vmatpush1.msra.mxu0 %v73
    %172 = vmatprep.subr.mxu0 0.0
    %173 = vmatpush2.msra.mxu0 0.0
    %174 = vmatprep.subr.mxu0 0.0
    %175 = vmatpush2.msra.mxu0 0.0
    %176 = vmatprep.subr.mxu0 0.0
    %177 = vmatpush2.msra.mxu0 0.0
    %178 = vmatprep.subr.mxu0 0.0
    %179 = vmatpush2.msra.mxu0 0.0
    %180 = vmatprep.subr.mxu0 0.0
    %181 = vmatpush2.msra.mxu0 0.0
    %182 = vmatprep.subr.mxu0 0.0
    %183 = vmatpush2.msra.mxu0 0.0
    %184 = vmatprep.subr.mxu0 0.0
    %185 = vmatpush2.msra.mxu0 0.0
    %186 = vmatprep.subr.mxu0 0.0
    %187 = vmatpush2.msra.mxu0 0.0
    %188 = vmatprep.subr.mxu0 0.0
    %189 = vmatpush2.msra.mxu0 0.0
    %190 = vmatprep.subr.mxu0 0.0
    %191 = vmatpush2.msra.mxu0 0.0
    %192 = vmatprep.subr.mxu0 0.0
    %193 = vmatpush2.msra.mxu0 0.0
    %194 = vmatprep.subr.mxu0 0.0
    %195 = vmatpush2.msra.mxu0 0.0
    %196 = vmatprep.subr.mxu0 0.0
    %197 = vmatpush2.msra.mxu0 0.0
    %198 = vmatprep.subr.mxu0 0.0
    %199 = vmatpush2.msra.mxu0 0.0
    %200 = vmatprep.subr.mxu0 0.0
    %201 = vmatpush2.msra.mxu0 0.0
    %202 = vmatprep.subr.mxu0 0.0
    %203 = vmatpush2.msra.mxu0 0.0
    %204 = vmatprep.mubr.f32.mxu0 0.0
    %205 = vmatmul.mubr.f32.gmra.mxu0 %v129
    %v206 = vpop.f32.mrf.mxu0
    %v207 = vadd.f32 0.0, %v206
    %v208 = vpop.f32.mrf.mxu0
    %209 = vmatprep.mubr.f32.mxu0 0.0
    %210 = vmatmul.mubr.f32.gmra.mxu0 %v132
    %v211 = vpop.f32.mrf.mxu0
    %v212 = vadd.f32 0.0, %v211
    %v213 = vpop.f32.mrf.mxu0
    %214 = vmatprep.mubr.f32.mxu0 0.0
    %215 = vmatmul.mubr.f32.gmra.mxu0 %v135
    %v216 = vpop.f32.mrf.mxu0
    %v217 = vadd.f32 0.0, %v216
    %v218 = vpop.f32.mrf.mxu0
    %219 = vmatprep.mubr.f32.mxu0 0.0
    %220 = vmatmul.mubr.f32.gmra.mxu0 %v138
    %v221 = vpop.f32.mrf.mxu0
    %v222 = vadd.f32 0.0, %v221
    %v223 = vpop.f32.mrf.mxu0
    %224 = vdwg.mxu0
    %225 = vmatprep.subr.mxu0 0.0
    %226 = vmatpush1.msra.mxu0 0.0
    %227 = vmatprep.subr.mxu0 0.0
    %228 = vmatpush1.msra.mxu0 0.0
    %229 = vmatprep.subr.mxu0 0.0
    %230 = vmatpush1.msra.mxu0 0.0
    %231 = vmatprep.subr.mxu0 0.0
    %232 = vmatpush1.msra.mxu0 0.0
    %233 = vmatprep.subr.mxu0 0.0
    %234 = vmatpush1.msra.mxu0 0.0
    %235 = vmatprep.subr.mxu0 0.0
    %236 = vmatpush1.msra.mxu0 0.0
    %237 = vmatprep.subr.mxu0 0.0
    %238 = vmatpush1.msra.mxu0 0.0
    %239 = vmatprep.subr.mxu0 0.0
    %240 = vmatpush1.msra.mxu0 0.0
    %241 = vmatprep.subr.mxu0 0.0
    %242 = vmatpush1.msra.mxu0 0.0
    %243 = vmatprep.subr.mxu0 0.0
    %244 = vmatpush1.msra.mxu0 0.0
    %245 = vmatprep.subr.mxu0 0.0
    %246 = vmatpush1.msra.mxu0 0.0
    %247 = vmatprep.subr.mxu0 0.0
    %248 = vmatpush1.msra.mxu0 0.0
    %249 = vmatprep.subr.mxu0 0.0
    %250 = vmatpush1.msra.mxu0 0.0
    %251 = vmatprep.subr.mxu0 0.0
    %252 = vmatpush1.msra.mxu0 0.0
    %253 = vmatprep.subr.mxu0 0.0
    %254 = vmatpush1.msra.mxu0 0.0
    %255 = vmatprep.subr.mxu0 0.0
    %256 = vmatpush1.msra.mxu0 %v81
    %257 = vmatprep.subr.mxu0 0.0
    %258 = vmatpush2.msra.mxu0 0.0
    %259 = vmatprep.subr.mxu0 0.0
    %260 = vmatpush2.msra.mxu0 0.0
    %261 = vmatprep.subr.mxu0 0.0
    %262 = vmatpush2.msra.mxu0 0.0
    %263 = vmatprep.subr.mxu0 0.0
    %264 = vmatpush2.msra.mxu0 0.0
    %265 = vmatprep.subr.mxu0 0.0
    %266 = vmatpush2.msra.mxu0 0.0
    %267 = vmatprep.subr.mxu0 0.0
    %268 = vmatpush2.msra.mxu0 0.0
    %269 = vmatprep.subr.mxu0 0.0
    %270 = vmatpush2.msra.mxu0 0.0
    %271 = vmatprep.subr.mxu0 0.0
    %272 = vmatpush2.msra.mxu0 0.0
    %273 = vmatprep.subr.mxu0 0.0
    %274 = vmatpush2.msra.mxu0 0.0
    %275 = vmatprep.subr.mxu0 0.0
    %276 = vmatpush2.msra.mxu0 0.0
    %277 = vmatprep.subr.mxu0 0.0
    %278 = vmatpush2.msra.mxu0 0.0
    %279 = vmatprep.subr.mxu0 0.0
    %280 = vmatpush2.msra.mxu0 0.0
    %281 = vmatprep.subr.mxu0 0.0
    %282 = vmatpush2.msra.mxu0 0.0
    %283 = vmatprep.subr.mxu0 0.0
    %284 = vmatpush2.msra.mxu0 0.0
    %285 = vmatprep.subr.mxu0 0.0
    %286 = vmatpush2.msra.mxu0 0.0
    %287 = vmatprep.subr.mxu0 0.0
    %288 = vmatpush2.msra.mxu0 0.0
    %289 = vmatprep.mubr.f32.mxu0 0.0
    %290 = vmatmul.mubr.f32.gmra.mxu0 %v129
    %v291 = vpop.f32.mrf.mxu0
    %v292 = vadd.f32 0.0, %v291
    %v293 = vpop.f32.mrf.mxu0
    %294 = vmatprep.mubr.f32.mxu0 0.0
    %295 = vmatmul.mubr.f32.gmra.mxu0 %v132
    %v296 = vpop.f32.mrf.mxu0
    %v297 = vadd.f32 0.0, %v296
    %v298 = vpop.f32.mrf.mxu0
    %299 = vmatprep.mubr.f32.mxu0 0.0
    %300 = vmatmul.mubr.f32.gmra.mxu0 %v135
    %v301 = vpop.f32.mrf.mxu0
    %v302 = vadd.f32 0.0, %v301
    %v303 = vpop.f32.mrf.mxu0
    %304 = vmatprep.mubr.f32.mxu0 0.0
    %305 = vmatmul.mubr.f32.gmra.mxu0 %v138
    %v306 = vpop.f32.mrf.mxu0
    %v307 = vadd.f32 0.0, %v306
    %v308 = vpop.f32.mrf.mxu0
    %309 = vdwg.mxu0
    %v310 = vld [vmem:[%s1] sm:$0xff]
    %v311 = vld [vmem:[%s1 + $0x8] sm:$0xff]
    %v312 = vld [vmem:[%s1 + $0x10] sm:$0xff]
    %v313 = vld [vmem:[%s1 + $0x18] sm:$0xff]
    %315 = vset.pattern.permute.xlu0 0
    %316 = vperm.xlu0 %315, %v207
    %v317 = vpop.permute.xlu0 %316
    %320 = vset.pattern.permute.xlu0 0
    %321 = vperm.xlu0 %320, %v212
    %v322 = vpop.permute.xlu0 %321
    %325 = vset.pattern.permute.xlu0 0
    %326 = vperm.xlu0 %325, %v217
    %v327 = vpop.permute.xlu0 %326
    %330 = vset.pattern.permute.xlu0 0
    %331 = vperm.xlu0 %330, %v222
    %v332 = vpop.permute.xlu0 %331
    %v334 = vsub.f32 %v310, %v317
    %v335 = vsub.f32 %v311, %v322
    %v336 = vsub.f32 %v312, %v327
    %v337 = vsub.f32 %v313, %v332
    %339 = vset.pattern.permute.xlu0 0
    %340 = vperm.xlu0 %339, %v292
    %v341 = vpop.permute.xlu0 %340
    %344 = vset.pattern.permute.xlu0 0
    %345 = vperm.xlu0 %344, %v297
    %v346 = vpop.permute.xlu0 %345
    %349 = vset.pattern.permute.xlu0 0
    %350 = vperm.xlu0 %349, %v302
    %v351 = vpop.permute.xlu0 %350
    %354 = vset.pattern.permute.xlu0 0
    %355 = vperm.xlu0 %354, %v307
    %v356 = vpop.permute.xlu0 %355
    %v358 = vmul.f32 %v334, %v341
    %v359 = vmul.f32 %v335, %v346
    %v360 = vmul.f32 %v336, %v351
    %v361 = vmul.f32 %v337, %v356
    %v362 = vld [vmem:[%s2] sm:$0xff]
    %v363 = vld [vmem:[%s2 + $0x8] sm:$0xff]
    %v364 = vld [vmem:[%s3] sm:$0xf]
    %vm365 = vcmask 31744
    %v367 = vsel %vm365, %v123, 0
    %v370 = vsel %vm365, %v124, 0
    %v373 = vsel %vm365, %v125, 0
    %v376 = vsel %vm365, %v126, 0
    %vm378 = vcmask 1043456
    %v380 = vsel %vm378, %v364, 0
    %382 = vmatprep.subr.mxu0 0.0
    %383 = vmatpush1.msra.mxu0 0.0
    %384 = vmatprep.subr.mxu0 0.0
    %385 = vmatpush1.msra.mxu0 0.0
    %386 = vmatprep.subr.mxu0 0.0
    %387 = vmatpush1.msra.mxu0 0.0
    %388 = vmatprep.subr.mxu0 0.0
    %389 = vmatpush1.msra.mxu0 0.0
    %390 = vmatprep.subr.mxu0 0.0
    %391 = vmatpush1.msra.mxu0 0.0
    %392 = vmatprep.subr.mxu0 0.0
    %393 = vmatpush1.msra.mxu0 0.0
    %394 = vmatprep.subr.mxu0 0.0
    %395 = vmatpush1.msra.mxu0 0.0
    %396 = vmatprep.subr.mxu0 0.0
    %397 = vmatpush1.msra.mxu0 0.0
    %398 = vmatprep.subr.mxu0 0.0
    %399 = vmatpush1.msra.mxu0 0.0
    %400 = vmatprep.subr.mxu0 0.0
    %401 = vmatpush1.msra.mxu0 0.0
    %402 = vmatprep.subr.mxu0 0.0
    %403 = vmatpush1.msra.mxu0 0.0
    %404 = vmatprep.subr.mxu0 0.0
    %405 = vmatpush1.msra.mxu0 0.0
    %406 = vmatprep.subr.mxu0 0.0
    %407 = vmatpush1.msra.mxu0 0.0
    %408 = vmatprep.subr.mxu0 0.0
    %409 = vmatpush1.msra.mxu0 0.0
    %410 = vmatprep.subr.mxu0 0.0
    %411 = vmatpush1.msra.mxu0 0.0
    %412 = vmatprep.subr.mxu0 0.0
    %413 = vmatpush1.msra.mxu0 %v380
    %414 = vmatprep.subr.mxu0 0.0
    %415 = vmatpush2.msra.mxu0 0.0
    %416 = vmatprep.subr.mxu0 0.0
    %417 = vmatpush2.msra.mxu0 0.0
    %418 = vmatprep.subr.mxu0 0.0
    %419 = vmatpush2.msra.mxu0 0.0
    %420 = vmatprep.subr.mxu0 0.0
    %421 = vmatpush2.msra.mxu0 0.0
    %422 = vmatprep.subr.mxu0 0.0
    %423 = vmatpush2.msra.mxu0 0.0
    %424 = vmatprep.subr.mxu0 0.0
    %425 = vmatpush2.msra.mxu0 0.0
    %426 = vmatprep.subr.mxu0 0.0
    %427 = vmatpush2.msra.mxu0 0.0
    %428 = vmatprep.subr.mxu0 0.0
    %429 = vmatpush2.msra.mxu0 0.0
    %430 = vmatprep.subr.mxu0 0.0
    %431 = vmatpush2.msra.mxu0 0.0
    %432 = vmatprep.subr.mxu0 0.0
    %433 = vmatpush2.msra.mxu0 0.0
    %434 = vmatprep.subr.mxu0 0.0
    %435 = vmatpush2.msra.mxu0 0.0
    %436 = vmatprep.subr.mxu0 0.0
    %437 = vmatpush2.msra.mxu0 0.0
    %438 = vmatprep.subr.mxu0 0.0
    %439 = vmatpush2.msra.mxu0 0.0
    %440 = vmatprep.subr.mxu0 0.0
    %441 = vmatpush2.msra.mxu0 0.0
    %442 = vmatprep.subr.mxu0 0.0
    %443 = vmatpush2.msra.mxu0 0.0
    %444 = vmatprep.subr.mxu0 0.0
    %445 = vmatpush2.msra.mxu0 0.0
    %446 = vmatprep.mubr.f32.mxu0 0.0
    %447 = vmatmul.mubr.f32.gmra.mxu0 %v367
    %v448 = vpop.f32.mrf.mxu0
    %v449 = vadd.f32 0.0, %v448
    %v450 = vpop.f32.mrf.mxu0
    %451 = vmatprep.mubr.f32.mxu0 0.0
    %452 = vmatmul.mubr.f32.gmra.mxu0 %v370
    %v453 = vpop.f32.mrf.mxu0
    %v454 = vadd.f32 0.0, %v453
    %v455 = vpop.f32.mrf.mxu0
    %456 = vmatprep.mubr.f32.mxu0 0.0
    %457 = vmatmul.mubr.f32.gmra.mxu0 %v373
    %v458 = vpop.f32.mrf.mxu0
    %v459 = vadd.f32 0.0, %v458
    %v460 = vpop.f32.mrf.mxu0
    %461 = vmatprep.mubr.f32.mxu0 0.0
    %462 = vmatmul.mubr.f32.gmra.mxu0 %v376
    %v463 = vpop.f32.mrf.mxu0
    %v464 = vadd.f32 0.0, %v463
    %v465 = vpop.f32.mrf.mxu0
    %466 = vdwg.mxu0
    %vm467 = vcmask 130048
    %v469 = vsel %vm467, %v358, 0
    %v472 = vsel %vm467, %v359, 0
    %v475 = vsel %vm467, %v360, 0
    %v478 = vsel %vm467, %v361, 0
    %480 = vmatprep.subr.mxu0 0.0
    %481 = vmatpush1.msra.mxu0 0.0
    %482 = vmatprep.subr.mxu0 0.0
    %483 = vmatpush1.msra.mxu0 0.0
    %484 = vmatprep.subr.mxu0 0.0
    %485 = vmatpush1.msra.mxu0 0.0
    %486 = vmatprep.subr.mxu0 0.0
    %487 = vmatpush1.msra.mxu0 0.0
    %488 = vmatprep.subr.mxu0 0.0
    %489 = vmatpush1.msra.mxu0 0.0
    %490 = vmatprep.subr.mxu0 0.0
    %491 = vmatpush1.msra.mxu0 0.0
    %492 = vmatprep.subr.mxu0 0.0
    %493 = vmatpush1.msra.mxu0 0.0
    %494 = vmatprep.subr.mxu0 0.0
    %495 = vmatpush1.msra.mxu0 0.0
    %496 = vmatprep.subr.mxu0 0.0
    %497 = vmatpush1.msra.mxu0 0.0
    %498 = vmatprep.subr.mxu0 0.0
    %499 = vmatpush1.msra.mxu0 0.0
    %500 = vmatprep.subr.mxu0 0.0
    %501 = vmatpush1.msra.mxu0 0.0
    %502 = vmatprep.subr.mxu0 0.0
    %503 = vmatpush1.msra.mxu0 0.0
    %504 = vmatprep.subr.mxu0 0.0
    %505 = vmatpush1.msra.mxu0 0.0
    %506 = vmatprep.subr.mxu0 0.0
    %507 = vmatpush1.msra.mxu0 0.0
    %508 = vmatprep.subr.mxu0 0.0
    %509 = vmatpush1.msra.mxu0 %v363
    %510 = vmatprep.subr.mxu0 0.0
    %511 = vmatpush1.msra.mxu0 %v362
    %512 = vmatprep.subr.mxu0 0.0
    %513 = vmatpush2.msra.mxu0 0.0
    %514 = vmatprep.subr.mxu0 0.0
    %515 = vmatpush2.msra.mxu0 0.0
    %516 = vmatprep.subr.mxu0 0.0
    %517 = vmatpush2.msra.mxu0 0.0
    %518 = vmatprep.subr.mxu0 0.0
    %519 = vmatpush2.msra.mxu0 0.0
    %520 = vmatprep.subr.mxu0 0.0
    %521 = vmatpush2.msra.mxu0 0.0
    %522 = vmatprep.subr.mxu0 0.0
    %523 = vmatpush2.msra.mxu0 0.0
    %524 = vmatprep.subr.mxu0 0.0
    %525 = vmatpush2.msra.mxu0 0.0
    %526 = vmatprep.subr.mxu0 0.0
    %527 = vmatpush2.msra.mxu0 0.0
    %528 = vmatprep.subr.mxu0 0.0
    %529 = vmatpush2.msra.mxu0 0.0
    %530 = vmatprep.subr.mxu0 0.0
    %531 = vmatpush2.msra.mxu0 0.0
    %532 = vmatprep.subr.mxu0 0.0
    %533 = vmatpush2.msra.mxu0 0.0
    %534 = vmatprep.subr.mxu0 0.0
    %535 = vmatpush2.msra.mxu0 0.0
    %536 = vmatprep.subr.mxu0 0.0
    %537 = vmatpush2.msra.mxu0 0.0
    %538 = vmatprep.subr.mxu0 0.0
    %539 = vmatpush2.msra.mxu0 0.0
    %540 = vmatprep.subr.mxu0 0.0
    %541 = vmatpush2.msra.mxu0 0.0
    %542 = vmatprep.subr.mxu0 0.0
    %543 = vmatpush2.msra.mxu0 0.0
    %544 = vmatprep.mubr.f32.mxu0 0.0
    %545 = vmatmul.mubr.f32.gmra.mxu0 %v469
    %v546 = vpop.f32.mrf.mxu0
    %v547 = vadd.f32 %v449, %v546
    %v548 = vpop.f32.mrf.mxu0
    %549 = vmatprep.mubr.f32.mxu0 0.0
    %550 = vmatmul.mubr.f32.gmra.mxu0 %v472
    %v551 = vpop.f32.mrf.mxu0
    %v552 = vadd.f32 %v454, %v551
    %v553 = vpop.f32.mrf.mxu0
    %554 = vmatprep.mubr.f32.mxu0 0.0
    %555 = vmatmul.mubr.f32.gmra.mxu0 %v475
    %v556 = vpop.f32.mrf.mxu0
    %v557 = vadd.f32 %v459, %v556
    %v558 = vpop.f32.mrf.mxu0
    %559 = vmatprep.mubr.f32.mxu0 0.0
    %560 = vmatmul.mubr.f32.gmra.mxu0 %v478
    %v561 = vpop.f32.mrf.mxu0
    %v562 = vadd.f32 %v464, %v561
    %v563 = vpop.f32.mrf.mxu0
    %564 = vdwg.mxu0
    %v565 = vld [vmem:[%s4] sm:$0xf]
    %v566 = vld [vmem:[%s4 + $0x4] sm:$0xf]
    %v567 = vld [vmem:[%s4 + $0x8] sm:$0xf]
    %v568 = vld [vmem:[%s4 + $0xc] sm:$0xf]
    %v569 = vpack.c.bf16 %v552, %v547
    %v570 = vpack.c.bf16 %v562, %v557
    %v571 = vld [vmem:[%s5] sm:$0x1]
    %v573 = vlaneseq
    %v574 = vshrl.u32 %v573, 7
    %v575 = vsub.s32 0, %v574
    %v576 = vrot.slane %v571, %v575
    %v582 = vunpack.c.l.b16 %v565
    %v583 = vunpack.c.l.b16 %v566
    %v584 = vunpack.c.l.b16 %v567
    %v585 = vunpack.c.l.b16 %v568
    %v586 = vpack.c.b16 %v583, %v582
    %v587 = vpack.c.b16 %v585, %v584
    %v591 = vsel %vm68, %v569, 0
    %v594 = vsel %vm68, %v570, 0
    %596 = vmatprep.subr.bf16.mxu0 0
    %597 = vmatpush1.bf16.msra.mxu0 0
    %598 = vmatprep.subr.bf16.mxu0 0
    %599 = vmatpush1.bf16.msra.mxu0 0
    %600 = vmatprep.subr.bf16.mxu0 0
    %601 = vmatpush1.bf16.msra.mxu0 0
    %602 = vmatprep.subr.bf16.mxu0 0
    %603 = vmatpush1.bf16.msra.mxu0 0
    %604 = vmatprep.subr.bf16.mxu0 0
    %605 = vmatpush1.bf16.msra.mxu0 0
    %606 = vmatprep.subr.bf16.mxu0 0
    %607 = vmatpush1.bf16.msra.mxu0 0
    %608 = vmatprep.subr.bf16.mxu0 0
    %609 = vmatpush1.bf16.msra.mxu0 %v587
    %610 = vmatprep.subr.bf16.mxu0 0
    %611 = vmatpush1.bf16.msra.mxu0 %v586
    %612 = vmatprep.subr.bf16.mxu0 0
    %613 = vmatpush2.bf16.msra.mxu0 0
    %614 = vmatprep.subr.bf16.mxu0 0
    %615 = vmatpush2.bf16.msra.mxu0 0
    %616 = vmatprep.subr.bf16.mxu0 0
    %617 = vmatpush2.bf16.msra.mxu0 0
    %618 = vmatprep.subr.bf16.mxu0 0
    %619 = vmatpush2.bf16.msra.mxu0 0
    %620 = vmatprep.subr.bf16.mxu0 0
    %621 = vmatpush2.bf16.msra.mxu0 0
    %622 = vmatprep.subr.bf16.mxu0 0
    %623 = vmatpush2.bf16.msra.mxu0 0
    %624 = vmatprep.subr.bf16.mxu0 0
    %625 = vmatpush2.bf16.msra.mxu0 0
    %626 = vmatprep.subr.bf16.mxu0 0
    %627 = vmatpush2.bf16.msra.mxu0 0
    %628 = vmatprep.mubr.bf16.mxu0 0
    %629 = vmatmul.mubr.bf16.gmra.mxu0 %v591
    %v630 = vpop.f32.mrf.mxu0
    %v631 = vadd.f32 %v576, %v630
    %v632 = vpop.f32.mrf.mxu0
    %v633 = vpop.f32.mrf.mxu0
    %v634 = vadd.f32 %v576, %v633
    %v635 = vpop.f32.mrf.mxu0
    %636 = vmatprep.mubr.bf16.mxu0 0
    %637 = vmatmul.mubr.bf16.gmra.mxu0 %v594
    %v638 = vpop.f32.mrf.mxu0
    %v639 = vadd.f32 %v576, %v638
    %v640 = vpop.f32.mrf.mxu0
    %v641 = vpop.f32.mrf.mxu0
    %v642 = vadd.f32 %v576, %v641
    %v643 = vpop.f32.mrf.mxu0
    %644 = vdwg.mxu0
    %vm645 = vcmask 781312
    %646 = vst.msk [vmem:[#allocation2] sm:$0xf] %vm645, %v631
    %s647 = scalar_lea.vmem [#allocation2], 4
    %vm648 = vcmask 785412
    %649 = vst.msk [vmem:[%s647 - $0x4] sm:$0xf0] %vm648, %v631
    %s650 = scalar_lea.vmem [#allocation2], 8
    %651 = vst.msk [vmem:[%s650] sm:$0xf] %vm645, %v634
    %s652 = scalar_lea.vmem [#allocation2], 12
    %653 = vst.msk [vmem:[%s652 - $0x4] sm:$0xf0] %vm648, %v634
    %s654 = scalar_lea.vmem [#allocation2], 16
    %655 = vst.msk [vmem:[%s654] sm:$0xf] %vm645, %v639
    %s656 = scalar_lea.vmem [#allocation2], 20
    %657 = vst.msk [vmem:[%s656 - $0x4] sm:$0xf0] %vm648, %v639
    %s658 = scalar_lea.vmem [#allocation2], 24
    %659 = vst.msk [vmem:[%s658] sm:$0xf] %vm645, %v642
    %s660 = scalar_lea.vmem [#allocation2], 28
    %661 = vst.msk [vmem:[%s660 - $0x4] sm:$0xf0] %vm648, %v642
    %v662 = vld [vmem:[#allocation2] sm:$0xf]
    %v663 = vld [vmem:[#allocation2 + $0x4] sm:$0xf]
    %v664 = vld [vmem:[#allocation2 + $0x8] sm:$0xf]
    %v665 = vld [vmem:[#allocation2 + $0xc] sm:$0xf]
    %v666 = vld [vmem:[#allocation2 + $0x10] sm:$0xf]
    %v667 = vld [vmem:[#allocation2 + $0x14] sm:$0xf]
    %v668 = vld [vmem:[#allocation2 + $0x18] sm:$0xf]
    %v669 = vld [vmem:[#allocation2 + $0x1c] sm:$0xf]
    %v670 = vpack.c.bf16 %v662, %v662
    %v671 = vpack.c.bf16 %v663, %v663
    %v672 = vpack.c.bf16 %v664, %v664
    %v673 = vpack.c.bf16 %v665, %v665
    %v674 = vpack.c.bf16 %v666, %v666
    %v675 = vpack.c.bf16 %v667, %v667
    %v676 = vpack.c.bf16 %v668, %v668
    %v677 = vpack.c.bf16 %v669, %v669
    %679 = vrot.lane.b32.xlu0 %v670, 96
    %v680 = vpop.permute.xlu0 %679
    %v682 = vsel %vm127, %v670, 0
    %v685 = vsel %vm127, %v680, 0
    %687 = vmatprep.subr.bf16.mxu0 0
    %688 = vmatpush1.bf16.xpose.msra.mxu0 0
    %689 = vmatprep.subr.bf16.mxu0 0
    %690 = vmatpush1.bf16.xpose.msra.mxu0 0
    %691 = vmatprep.subr.bf16.mxu0 0
    %692 = vmatpush1.bf16.xpose.msra.mxu0 0
    %693 = vmatprep.subr.bf16.mxu0 0
    %694 = vmatpush1.bf16.xpose.msra.mxu0 0
    %695 = vmatprep.subr.bf16.mxu0 0
    %696 = vmatpush1.bf16.xpose.msra.mxu0 0
    %697 = vmatprep.subr.bf16.mxu0 0
    %698 = vmatpush1.bf16.xpose.msra.mxu0 0
    %699 = vmatprep.subr.bf16.mxu0 0
    %700 = vmatpush1.bf16.xpose.msra.mxu0 0
    %701 = vmatprep.subr.bf16.mxu0 0
    %702 = vmatpush1.bf16.xpose.msra.mxu0 %v685
    %703 = vmatprep.subr.bf16.mxu0 0
    %704 = vmatpush2.bf16.xpose.msra.mxu0 0
    %705 = vmatprep.subr.bf16.mxu0 0
    %706 = vmatpush2.bf16.xpose.msra.mxu0 0
    %707 = vmatprep.subr.bf16.mxu0 0
    %708 = vmatpush2.bf16.xpose.msra.mxu0 0
    %709 = vmatprep.subr.bf16.mxu0 0
    %710 = vmatpush2.bf16.xpose.msra.mxu0 0
    %711 = vmatprep.subr.bf16.mxu0 0
    %712 = vmatpush2.bf16.xpose.msra.mxu0 0
    %713 = vmatprep.subr.bf16.mxu0 0
    %714 = vmatpush2.bf16.xpose.msra.mxu0 0
    %715 = vmatprep.subr.bf16.mxu0 0
    %716 = vmatpush2.bf16.xpose.msra.mxu0 0
    %717 = vmatprep.subr.bf16.mxu0 0
    %718 = vmatpush2.bf16.xpose.msra.mxu0 0
    %719 = vmatprep.mubr.bf16.mxu0 0
    %720 = vmatmul.mubr.bf16.gmra.mxu0 %v682
    %v721 = vpop.f32.mrf.mxu0
    %v722 = vadd.f32 0.0, %v721
    %v723 = vpop.f32.mrf.mxu0
    %v724 = vpop.f32.mrf.mxu0
    %v725 = vpop.f32.mrf.mxu0
    %726 = vdwg.mxu0
    %728 = vrot.lane.b32.xlu0 %v671, 96
    %v729 = vpop.permute.xlu0 %728
    %v731 = vsel %vm127, %v671, 0
    %v734 = vsel %vm127, %v729, 0
    %736 = vmatprep.subr.bf16.mxu0 0
    %737 = vmatpush1.bf16.xpose.msra.mxu0 0
    %738 = vmatprep.subr.bf16.mxu0 0
    %739 = vmatpush1.bf16.xpose.msra.mxu0 0
    %740 = vmatprep.subr.bf16.mxu0 0
    %741 = vmatpush1.bf16.xpose.msra.mxu0 0
    %742 = vmatprep.subr.bf16.mxu0 0
    %743 = vmatpush1.bf16.xpose.msra.mxu0 0
    %744 = vmatprep.subr.bf16.mxu0 0
    %745 = vmatpush1.bf16.xpose.msra.mxu0 0
    %746 = vmatprep.subr.bf16.mxu0 0
    %747 = vmatpush1.bf16.xpose.msra.mxu0 0
    %748 = vmatprep.subr.bf16.mxu0 0
    %749 = vmatpush1.bf16.xpose.msra.mxu0 0
    %750 = vmatprep.subr.bf16.mxu0 0
    %751 = vmatpush1.bf16.xpose.msra.mxu0 %v734
    %752 = vmatprep.subr.bf16.mxu0 0
    %753 = vmatpush2.bf16.xpose.msra.mxu0 0
    %754 = vmatprep.subr.bf16.mxu0 0
    %755 = vmatpush2.bf16.xpose.msra.mxu0 0
    %756 = vmatprep.subr.bf16.mxu0 0
    %757 = vmatpush2.bf16.xpose.msra.mxu0 0
    %758 = vmatprep.subr.bf16.mxu0 0
    %759 = vmatpush2.bf16.xpose.msra.mxu0 0
    %760 = vmatprep.subr.bf16.mxu0 0
    %761 = vmatpush2.bf16.xpose.msra.mxu0 0
    %762 = vmatprep.subr.bf16.mxu0 0
    %763 = vmatpush2.bf16.xpose.msra.mxu0 0
    %764 = vmatprep.subr.bf16.mxu0 0
    %765 = vmatpush2.bf16.xpose.msra.mxu0 0
    %766 = vmatprep.subr.bf16.mxu0 0
    %767 = vmatpush2.bf16.xpose.msra.mxu0 0
    %768 = vmatprep.mubr.bf16.mxu0 0
    %769 = vmatmul.mubr.bf16.gmra.mxu0 %v731
    %v770 = vpop.f32.mrf.mxu0
    %v771 = vadd.f32 0.0, %v770
    %v772 = vpop.f32.mrf.mxu0
    %v773 = vpop.f32.mrf.mxu0
    %v774 = vpop.f32.mrf.mxu0
    %775 = vdwg.mxu0
    %777 = vrot.lane.b32.xlu0 %v672, 96
    %v778 = vpop.permute.xlu0 %777
    %v780 = vsel %vm127, %v672, 0
    %v783 = vsel %vm127, %v778, 0
    %785 = vmatprep.subr.bf16.mxu0 0
    %786 = vmatpush1.bf16.xpose.msra.mxu0 0
    %787 = vmatprep.subr.bf16.mxu0 0
    %788 = vmatpush1.bf16.xpose.msra.mxu0 0
    %789 = vmatprep.subr.bf16.mxu0 0
    %790 = vmatpush1.bf16.xpose.msra.mxu0 0
    %791 = vmatprep.subr.bf16.mxu0 0
    %792 = vmatpush1.bf16.xpose.msra.mxu0 0
    %793 = vmatprep.subr.bf16.mxu0 0
    %794 = vmatpush1.bf16.xpose.msra.mxu0 0
    %795 = vmatprep.subr.bf16.mxu0 0
    %796 = vmatpush1.bf16.xpose.msra.mxu0 0
    %797 = vmatprep.subr.bf16.mxu0 0
    %798 = vmatpush1.bf16.xpose.msra.mxu0 0
    %799 = vmatprep.subr.bf16.mxu0 0
    %800 = vmatpush1.bf16.xpose.msra.mxu0 %v783
    %801 = vmatprep.subr.bf16.mxu0 0
    %802 = vmatpush2.bf16.xpose.msra.mxu0 0
    %803 = vmatprep.subr.bf16.mxu0 0
    %804 = vmatpush2.bf16.xpose.msra.mxu0 0
    %805 = vmatprep.subr.bf16.mxu0 0
    %806 = vmatpush2.bf16.xpose.msra.mxu0 0
    %807 = vmatprep.subr.bf16.mxu0 0
    %808 = vmatpush2.bf16.xpose.msra.mxu0 0
    %809 = vmatprep.subr.bf16.mxu0 0
    %810 = vmatpush2.bf16.xpose.msra.mxu0 0
    %811 = vmatprep.subr.bf16.mxu0 0
    %812 = vmatpush2.bf16.xpose.msra.mxu0 0
    %813 = vmatprep.subr.bf16.mxu0 0
    %814 = vmatpush2.bf16.xpose.msra.mxu0 0
    %815 = vmatprep.subr.bf16.mxu0 0
    %816 = vmatpush2.bf16.xpose.msra.mxu0 0
    %817 = vmatprep.mubr.bf16.mxu0 0
    %818 = vmatmul.mubr.bf16.gmra.mxu0 %v780
    %v819 = vpop.f32.mrf.mxu0
    %v820 = vadd.f32 0.0, %v819
    %v821 = vpop.f32.mrf.mxu0
    %v822 = vpop.f32.mrf.mxu0
    %v823 = vpop.f32.mrf.mxu0
    %824 = vdwg.mxu0
    %826 = vrot.lane.b32.xlu0 %v673, 96
    %v827 = vpop.permute.xlu0 %826
    %v829 = vsel %vm127, %v673, 0
    %v832 = vsel %vm127, %v827, 0
    %834 = vmatprep.subr.bf16.mxu0 0
    %835 = vmatpush1.bf16.xpose.msra.mxu0 0
    %836 = vmatprep.subr.bf16.mxu0 0
    %837 = vmatpush1.bf16.xpose.msra.mxu0 0
    %838 = vmatprep.subr.bf16.mxu0 0
    %839 = vmatpush1.bf16.xpose.msra.mxu0 0
    %840 = vmatprep.subr.bf16.mxu0 0
    %841 = vmatpush1.bf16.xpose.msra.mxu0 0
    %842 = vmatprep.subr.bf16.mxu0 0
    %843 = vmatpush1.bf16.xpose.msra.mxu0 0
    %844 = vmatprep.subr.bf16.mxu0 0
    %845 = vmatpush1.bf16.xpose.msra.mxu0 0
    %846 = vmatprep.subr.bf16.mxu0 0
    %847 = vmatpush1.bf16.xpose.msra.mxu0 0
    %848 = vmatprep.subr.bf16.mxu0 0
    %849 = vmatpush1.bf16.xpose.msra.mxu0 %v832
    %850 = vmatprep.subr.bf16.mxu0 0
    %851 = vmatpush2.bf16.xpose.msra.mxu0 0
    %852 = vmatprep.subr.bf16.mxu0 0
    %853 = vmatpush2.bf16.xpose.msra.mxu0 0
    %854 = vmatprep.subr.bf16.mxu0 0
    %855 = vmatpush2.bf16.xpose.msra.mxu0 0
    %856 = vmatprep.subr.bf16.mxu0 0
    %857 = vmatpush2.bf16.xpose.msra.mxu0 0
    %858 = vmatprep.subr.bf16.mxu0 0
    %859 = vmatpush2.bf16.xpose.msra.mxu0 0
    %860 = vmatprep.subr.bf16.mxu0 0
    %861 = vmatpush2.bf16.xpose.msra.mxu0 0
    %862 = vmatprep.subr.bf16.mxu0 0
    %863 = vmatpush2.bf16.xpose.msra.mxu0 0
    %864 = vmatprep.subr.bf16.mxu0 0
    %865 = vmatpush2.bf16.xpose.msra.mxu0 0
    %866 = vmatprep.mubr.bf16.mxu0 0
    %867 = vmatmul.mubr.bf16.gmra.mxu0 %v829
    %v868 = vpop.f32.mrf.mxu0
    %v869 = vadd.f32 0.0, %v868
    %v870 = vpop.f32.mrf.mxu0
    %v871 = vpop.f32.mrf.mxu0
    %v872 = vpop.f32.mrf.mxu0
    %873 = vdwg.mxu0
    %875 = vrot.lane.b32.xlu0 %v674, 96
    %v876 = vpop.permute.xlu0 %875
    %v878 = vsel %vm127, %v674, 0
    %v881 = vsel %vm127, %v876, 0
    %883 = vmatprep.subr.bf16.mxu0 0
    %884 = vmatpush1.bf16.xpose.msra.mxu0 0
    %885 = vmatprep.subr.bf16.mxu0 0
    %886 = vmatpush1.bf16.xpose.msra.mxu0 0
    %887 = vmatprep.subr.bf16.mxu0 0
    %888 = vmatpush1.bf16.xpose.msra.mxu0 0
    %889 = vmatprep.subr.bf16.mxu0 0
    %890 = vmatpush1.bf16.xpose.msra.mxu0 0
    %891 = vmatprep.subr.bf16.mxu0 0
    %892 = vmatpush1.bf16.xpose.msra.mxu0 0
    %893 = vmatprep.subr.bf16.mxu0 0
    %894 = vmatpush1.bf16.xpose.msra.mxu0 0
    %895 = vmatprep.subr.bf16.mxu0 0
    %896 = vmatpush1.bf16.xpose.msra.mxu0 0
    %897 = vmatprep.subr.bf16.mxu0 0
    %898 = vmatpush1.bf16.xpose.msra.mxu0 %v881
    %899 = vmatprep.subr.bf16.mxu0 0
    %900 = vmatpush2.bf16.xpose.msra.mxu0 0
    %901 = vmatprep.subr.bf16.mxu0 0
    %902 = vmatpush2.bf16.xpose.msra.mxu0 0
    %903 = vmatprep.subr.bf16.mxu0 0
    %904 = vmatpush2.bf16.xpose.msra.mxu0 0
    %905 = vmatprep.subr.bf16.mxu0 0
    %906 = vmatpush2.bf16.xpose.msra.mxu0 0
    %907 = vmatprep.subr.bf16.mxu0 0
    %908 = vmatpush2.bf16.xpose.msra.mxu0 0
    %909 = vmatprep.subr.bf16.mxu0 0
    %910 = vmatpush2.bf16.xpose.msra.mxu0 0
    %911 = vmatprep.subr.bf16.mxu0 0
    %912 = vmatpush2.bf16.xpose.msra.mxu0 0
    %913 = vmatprep.subr.bf16.mxu0 0
    %914 = vmatpush2.bf16.xpose.msra.mxu0 0
    %915 = vmatprep.mubr.bf16.mxu0 0
    %916 = vmatmul.mubr.bf16.gmra.mxu0 %v878
    %v917 = vpop.f32.mrf.mxu0
    %v918 = vadd.f32 0.0, %v917
    %v919 = vpop.f32.mrf.mxu0
    %v920 = vpop.f32.mrf.mxu0
    %v921 = vpop.f32.mrf.mxu0
    %922 = vdwg.mxu0
    %924 = vrot.lane.b32.xlu0 %v675, 96
    %v925 = vpop.permute.xlu0 %924
    %v927 = vsel %vm127, %v675, 0
    %v930 = vsel %vm127, %v925, 0
    %932 = vmatprep.subr.bf16.mxu0 0
    %933 = vmatpush1.bf16.xpose.msra.mxu0 0
    %934 = vmatprep.subr.bf16.mxu0 0
    %935 = vmatpush1.bf16.xpose.msra.mxu0 0
    %936 = vmatprep.subr.bf16.mxu0 0
    %937 = vmatpush1.bf16.xpose.msra.mxu0 0
    %938 = vmatprep.subr.bf16.mxu0 0
    %939 = vmatpush1.bf16.xpose.msra.mxu0 0
    %940 = vmatprep.subr.bf16.mxu0 0
    %941 = vmatpush1.bf16.xpose.msra.mxu0 0
    %942 = vmatprep.subr.bf16.mxu0 0
    %943 = vmatpush1.bf16.xpose.msra.mxu0 0
    %944 = vmatprep.subr.bf16.mxu0 0
    %945 = vmatpush1.bf16.xpose.msra.mxu0 0
    %946 = vmatprep.subr.bf16.mxu0 0
    %947 = vmatpush1.bf16.xpose.msra.mxu0 %v930
    %948 = vmatprep.subr.bf16.mxu0 0
    %949 = vmatpush2.bf16.xpose.msra.mxu0 0
    %950 = vmatprep.subr.bf16.mxu0 0
    %951 = vmatpush2.bf16.xpose.msra.mxu0 0
    %952 = vmatprep.subr.bf16.mxu0 0
    %953 = vmatpush2.bf16.xpose.msra.mxu0 0
    %954 = vmatprep.subr.bf16.mxu0 0
    %955 = vmatpush2.bf16.xpose.msra.mxu0 0
    %956 = vmatprep.subr.bf16.mxu0 0
    %957 = vmatpush2.bf16.xpose.msra.mxu0 0
    %958 = vmatprep.subr.bf16.mxu0 0
    %959 = vmatpush2.bf16.xpose.msra.mxu0 0
    %960 = vmatprep.subr.bf16.mxu0 0
    %961 = vmatpush2.bf16.xpose.msra.mxu0 0
    %962 = vmatprep.subr.bf16.mxu0 0
    %963 = vmatpush2.bf16.xpose.msra.mxu0 0
    %964 = vmatprep.mubr.bf16.mxu0 0
    %965 = vmatmul.mubr.bf16.gmra.mxu0 %v927
    %v966 = vpop.f32.mrf.mxu0
    %v967 = vadd.f32 0.0, %v966
    %v968 = vpop.f32.mrf.mxu0
    %v969 = vpop.f32.mrf.mxu0
    %v970 = vpop.f32.mrf.mxu0
    %971 = vdwg.mxu0
    %973 = vrot.lane.b32.xlu0 %v676, 96
    %v974 = vpop.permute.xlu0 %973
    %v976 = vsel %vm127, %v676, 0
    %v979 = vsel %vm127, %v974, 0
    %981 = vmatprep.subr.bf16.mxu0 0
    %982 = vmatpush1.bf16.xpose.msra.mxu0 0
    %983 = vmatprep.subr.bf16.mxu0 0
    %984 = vmatpush1.bf16.xpose.msra.mxu0 0
    %985 = vmatprep.subr.bf16.mxu0 0
    %986 = vmatpush1.bf16.xpose.msra.mxu0 0
    %987 = vmatprep.subr.bf16.mxu0 0
    %988 = vmatpush1.bf16.xpose.msra.mxu0 0
    %989 = vmatprep.subr.bf16.mxu0 0
    %990 = vmatpush1.bf16.xpose.msra.mxu0 0
    %991 = vmatprep.subr.bf16.mxu0 0
    %992 = vmatpush1.bf16.xpose.msra.mxu0 0
    %993 = vmatprep.subr.bf16.mxu0 0
    %994 = vmatpush1.bf16.xpose.msra.mxu0 0
    %995 = vmatprep.subr.bf16.mxu0 0
    %996 = vmatpush1.bf16.xpose.msra.mxu0 %v979
    %997 = vmatprep.subr.bf16.mxu0 0
    %998 = vmatpush2.bf16.xpose.msra.mxu0 0
    %999 = vmatprep.subr.bf16.mxu0 0
    %1000 = vmatpush2.bf16.xpose.msra.mxu0 0
    %1001 = vmatprep.subr.bf16.mxu0 0
    %1002 = vmatpush2.bf16.xpose.msra.mxu0 0
    %1003 = vmatprep.subr.bf16.mxu0 0
    %1004 = vmatpush2.bf16.xpose.msra.mxu0 0
    %1005 = vmatprep.subr.bf16.mxu0 0
    %1006 = vmatpush2.bf16.xpose.msra.mxu0 0
    %1007 = vmatprep.subr.bf16.mxu0 0
    %1008 = vmatpush2.bf16.xpose.msra.mxu0 0
    %1009 = vmatprep.subr.bf16.mxu0 0
    %1010 = vmatpush2.bf16.xpose.msra.mxu0 0
    %1011 = vmatprep.subr.bf16.mxu0 0
    %1012 = vmatpush2.bf16.xpose.msra.mxu0 0
    %1013 = vmatprep.mubr.bf16.mxu0 0
    %1014 = vmatmul.mubr.bf16.gmra.mxu0 %v976
    %v1015 = vpop.f32.mrf.mxu0
    %v1016 = vadd.f32 0.0, %v1015
    %v1017 = vpop.f32.mrf.mxu0
    %v1018 = vpop.f32.mrf.mxu0
    %v1019 = vpop.f32.mrf.mxu0
    %1020 = vdwg.mxu0
    %1022 = vrot.lane.b32.xlu0 %v677, 96
    %v1023 = vpop.permute.xlu0 %1022
    %v1025 = vsel %vm127, %v677, 0
    %v1028 = vsel %vm127, %v1023, 0
    %1030 = vmatprep.subr.bf16.mxu0 0
    %1031 = vmatpush1.bf16.xpose.msra.mxu0 0
    %1032 = vmatprep.subr.bf16.mxu0 0
    %1033 = vmatpush1.bf16.xpose.msra.mxu0 0
    %1034 = vmatprep.subr.bf16.mxu0 0
    %1035 = vmatpush1.bf16.xpose.msra.mxu0 0
    %1036 = vmatprep.subr.bf16.mxu0 0
    %1037 = vmatpush1.bf16.xpose.msra.mxu0 0
    %1038 = vmatprep.subr.bf16.mxu0 0
    %1039 = vmatpush1.bf16.xpose.msra.mxu0 0
    %1040 = vmatprep.subr.bf16.mxu0 0
    %1041 = vmatpush1.bf16.xpose.msra.mxu0 0
    %1042 = vmatprep.subr.bf16.mxu0 0
    %1043 = vmatpush1.bf16.xpose.msra.mxu0 0
    %1044 = vmatprep.subr.bf16.mxu0 0
    %1045 = vmatpush1.bf16.xpose.msra.mxu0 %v1028
    %1046 = vmatprep.subr.bf16.mxu0 0
    %1047 = vmatpush2.bf16.xpose.msra.mxu0 0
    %1048 = vmatprep.subr.bf16.mxu0 0
    %1049 = vmatpush2.bf16.xpose.msra.mxu0 0
    %1050 = vmatprep.subr.bf16.mxu0 0
    %1051 = vmatpush2.bf16.xpose.msra.mxu0 0
    %1052 = vmatprep.subr.bf16.mxu0 0
    %1053 = vmatpush2.bf16.xpose.msra.mxu0 0
    %1054 = vmatprep.subr.bf16.mxu0 0
    %1055 = vmatpush2.bf16.xpose.msra.mxu0 0
    %1056 = vmatprep.subr.bf16.mxu0 0
    %1057 = vmatpush2.bf16.xpose.msra.mxu0 0
    %1058 = vmatprep.subr.bf16.mxu0 0
    %1059 = vmatpush2.bf16.xpose.msra.mxu0 0
    %1060 = vmatprep.subr.bf16.mxu0 0
    %1061 = vmatpush2.bf16.xpose.msra.mxu0 0
    %1062 = vmatprep.mubr.bf16.mxu0 0
    %1063 = vmatmul.mubr.bf16.gmra.mxu0 %v1025
    %v1064 = vpop.f32.mrf.mxu0
    %v1065 = vadd.f32 0.0, %v1064
    %v1066 = vpop.f32.mrf.mxu0
    %v1067 = vpop.f32.mrf.mxu0
    %v1068 = vpop.f32.mrf.mxu0
    %1069 = vdwg.mxu0
    %vm1070 = vcmask 27648
    %v1071 = vsel %vm1070, %v722, -inf
    %1072 = vmax.xlane.f32.xlu0 %v1071
    %v1073 = vpop.xlane.xlu0 %1072
    %v1074 = vsel %vm1070, %v771, -inf
    %1075 = vmax.xlane.f32.xlu0 %v1074
    %v1076 = vpop.xlane.xlu0 %1075
    %v1077 = vsel %vm1070, %v820, -inf
    %1078 = vmax.xlane.f32.xlu0 %v1077
    %v1079 = vpop.xlane.xlu0 %1078
    %v1080 = vsel %vm1070, %v869, -inf
    %1081 = vmax.xlane.f32.xlu0 %v1080
    %v1082 = vpop.xlane.xlu0 %1081
    %v1083 = vsel %vm1070, %v918, -inf
    %1084 = vmax.xlane.f32.xlu0 %v1083
    %v1085 = vpop.xlane.xlu0 %1084
    %v1086 = vsel %vm1070, %v967, -inf
    %1087 = vmax.xlane.f32.xlu0 %v1086
    %v1088 = vpop.xlane.xlu0 %1087
    %v1089 = vsel %vm1070, %v1016, -inf
    %1090 = vmax.xlane.f32.xlu0 %v1089
    %v1091 = vpop.xlane.xlu0 %1090
    %v1092 = vsel %vm1070, %v1065, -inf
    %1093 = vmax.xlane.f32.xlu0 %v1092
    %v1094 = vpop.xlane.xlu0 %1093
    %v1095 = vsub.f32 %v722, %v1073
    %v1096 = vsub.f32 %v771, %v1076
    %v1097 = vsub.f32 %v820, %v1079
    %v1098 = vsub.f32 %v869, %v1082
    %v1099 = vsub.f32 %v918, %v1085
    %v1100 = vsub.f32 %v967, %v1088
    %v1101 = vsub.f32 %v1016, %v1091
    %v1102 = vsub.f32 %v1065, %v1094
    %v1103 = vmul.f32 %v1095, 1.442695
    %v1104 = vpow.pop %v1103
    %v1105 = vmul.f32 %v1096, 1.442695
    %v1106 = vpow.pop %v1105
    %v1107 = vmul.f32 %v1097, 1.442695
    %v1108 = vpow.pop %v1107
    %v1109 = vmul.f32 %v1098, 1.442695
    %v1110 = vpow.pop %v1109
    %v1111 = vmul.f32 %v1099, 1.442695
    %v1112 = vpow.pop %v1111
    %v1113 = vmul.f32 %v1100, 1.442695
    %v1114 = vpow.pop %v1113
    %v1115 = vmul.f32 %v1101, 1.442695
    %v1116 = vpow.pop %v1115
    %v1117 = vmul.f32 %v1102, 1.442695
    %v1118 = vpow.pop %v1117
    %v1119 = vsel %vm1070, %v1104, 0.0
    %1120 = vadd.xlane.f32.xlu0 %v1119
    %v1121 = vpop.xlane.xlu0 %1120
    %v1122 = vsel %vm1070, %v1106, 0.0
    %1123 = vadd.xlane.f32.xlu0 %v1122
    %v1124 = vpop.xlane.xlu0 %1123
    %v1125 = vsel %vm1070, %v1108, 0.0
    %1126 = vadd.xlane.f32.xlu0 %v1125
    %v1127 = vpop.xlane.xlu0 %1126
    %v1128 = vsel %vm1070, %v1110, 0.0
    %1129 = vadd.xlane.f32.xlu0 %v1128
    %v1130 = vpop.xlane.xlu0 %1129
    %v1131 = vsel %vm1070, %v1112, 0.0
    %1132 = vadd.xlane.f32.xlu0 %v1131
    %v1133 = vpop.xlane.xlu0 %1132
    %v1134 = vsel %vm1070, %v1114, 0.0
    %1135 = vadd.xlane.f32.xlu0 %v1134
    %v1136 = vpop.xlane.xlu0 %1135
    %v1137 = vsel %vm1070, %v1116, 0.0
    %1138 = vadd.xlane.f32.xlu0 %v1137
    %v1139 = vpop.xlane.xlu0 %1138
    %v1140 = vsel %vm1070, %v1118, 0.0
    %1141 = vadd.xlane.f32.xlu0 %v1140
    %v1142 = vpop.xlane.xlu0 %1141
    %v1143 = vrcp.pop %v1121
    %v1144 = vrcp.pop %v1124
    %v1145 = vrcp.pop %v1127
    %v1146 = vrcp.pop %v1130
    %v1147 = vrcp.pop %v1133
    %v1148 = vrcp.pop %v1136
    %v1149 = vrcp.pop %v1139
    %v1150 = vrcp.pop %v1142
    %v1151 = vmul.f32 %v1104, %v1143
    %v1152 = vmul.f32 %v1106, %v1144
    %v1153 = vmul.f32 %v1108, %v1145
    %v1154 = vmul.f32 %v1110, %v1146
    %v1155 = vmul.f32 %v1112, %v1147
    %v1156 = vmul.f32 %v1114, %v1148
    %v1157 = vmul.f32 %v1116, %v1149
    %v1158 = vmul.f32 %v1118, %v1150
    %v1159 = vpack.c.bf16 %v1151, %v1151
    %v1160 = vpack.c.bf16 %v1152, %v1152
    %v1161 = vpack.c.bf16 %v1153, %v1153
    %v1162 = vpack.c.bf16 %v1154, %v1154
    %v1163 = vpack.c.bf16 %v1155, %v1155
    %v1164 = vpack.c.bf16 %v1156, %v1156
    %v1165 = vpack.c.bf16 %v1157, %v1157
    %v1166 = vpack.c.bf16 %v1158, %v1158
    %1167 = vrot.lane.b32.xlu0 %v670, 64
    %v1168 = vpop.permute.xlu0 %1167
    %v1170 = vsel %vm365, %v1159, 0
    %vm1172 = vcmask 1041408
    %v1174 = vsel %vm1172, %v1168, 0
    %1176 = vmatprep.subr.bf16.mxu0 0
    %1177 = vmatpush1.bf16.msra.mxu0 0
    %1178 = vmatprep.subr.bf16.mxu0 0
    %1179 = vmatpush1.bf16.msra.mxu0 0
    %1180 = vmatprep.subr.bf16.mxu0 0
    %1181 = vmatpush1.bf16.msra.mxu0 0
    %1182 = vmatprep.subr.bf16.mxu0 0
    %1183 = vmatpush1.bf16.msra.mxu0 0
    %1184 = vmatprep.subr.bf16.mxu0 0
    %1185 = vmatpush1.bf16.msra.mxu0 0
    %1186 = vmatprep.subr.bf16.mxu0 0
    %1187 = vmatpush1.bf16.msra.mxu0 0
    %1188 = vmatprep.subr.bf16.mxu0 0
    %1189 = vmatpush1.bf16.msra.mxu0 0
    %1190 = vmatprep.subr.bf16.mxu0 0
    %1191 = vmatpush1.bf16.msra.mxu0 %v1174
    %1192 = vmatprep.subr.bf16.mxu0 0
    %1193 = vmatpush2.bf16.msra.mxu0 0
    %1194 = vmatprep.subr.bf16.mxu0 0
    %1195 = vmatpush2.bf16.msra.mxu0 0
    %1196 = vmatprep.subr.bf16.mxu0 0
    %1197 = vmatpush2.bf16.msra.mxu0 0
    %1198 = vmatprep.subr.bf16.mxu0 0
    %1199 = vmatpush2.bf16.msra.mxu0 0
    %1200 = vmatprep.subr.bf16.mxu0 0
    %1201 = vmatpush2.bf16.msra.mxu0 0
    %1202 = vmatprep.subr.bf16.mxu0 0
    %1203 = vmatpush2.bf16.msra.mxu0 0
    %1204 = vmatprep.subr.bf16.mxu0 0
    %1205 = vmatpush2.bf16.msra.mxu0 0
    %1206 = vmatprep.subr.bf16.mxu0 0
    %1207 = vmatpush2.bf16.msra.mxu0 0
    %1208 = vmatprep.mubr.bf16.mxu0 0
    %1209 = vmatmul.mubr.bf16.gmra.mxu0 %v1170
    %v1210 = vpop.f32.mrf.mxu0
    %v1211 = vadd.f32 0.0, %v1210
    %v1212 = vpop.f32.mrf.mxu0
    %v1213 = vpop.f32.mrf.mxu0
    %v1214 = vpop.f32.mrf.mxu0
    %1215 = vdwg.mxu0
    %1216 = vrot.lane.b32.xlu0 %v671, 64
    %v1217 = vpop.permute.xlu0 %1216
    %v1219 = vsel %vm365, %v1160, 0
    %v1222 = vsel %vm1172, %v1217, 0
    %1224 = vmatprep.subr.bf16.mxu0 0
    %1225 = vmatpush1.bf16.msra.mxu0 0
    %1226 = vmatprep.subr.bf16.mxu0 0
    %1227 = vmatpush1.bf16.msra.mxu0 0
    %1228 = vmatprep.subr.bf16.mxu0 0
    %1229 = vmatpush1.bf16.msra.mxu0 0
    %1230 = vmatprep.subr.bf16.mxu0 0
    %1231 = vmatpush1.bf16.msra.mxu0 0
    %1232 = vmatprep.subr.bf16.mxu0 0
    %1233 = vmatpush1.bf16.msra.mxu0 0
    %1234 = vmatprep.subr.bf16.mxu0 0
    %1235 = vmatpush1.bf16.msra.mxu0 0
    %1236 = vmatprep.subr.bf16.mxu0 0
    %1237 = vmatpush1.bf16.msra.mxu0 0
    %1238 = vmatprep.subr.bf16.mxu0 0
    %1239 = vmatpush1.bf16.msra.mxu0 %v1222
    %1240 = vmatprep.subr.bf16.mxu0 0
    %1241 = vmatpush2.bf16.msra.mxu0 0
    %1242 = vmatprep.subr.bf16.mxu0 0
    %1243 = vmatpush2.bf16.msra.mxu0 0
    %1244 = vmatprep.subr.bf16.mxu0 0
    %1245 = vmatpush2.bf16.msra.mxu0 0
    %1246 = vmatprep.subr.bf16.mxu0 0
    %1247 = vmatpush2.bf16.msra.mxu0 0
    %1248 = vmatprep.subr.bf16.mxu0 0
    %1249 = vmatpush2.bf16.msra.mxu0 0
    %1250 = vmatprep.subr.bf16.mxu0 0
    %1251 = vmatpush2.bf16.msra.mxu0 0
    %1252 = vmatprep.subr.bf16.mxu0 0
    %1253 = vmatpush2.bf16.msra.mxu0 0
    %1254 = vmatprep.subr.bf16.mxu0 0
    %1255 = vmatpush2.bf16.msra.mxu0 0
    %1256 = vmatprep.mubr.bf16.mxu0 0
    %1257 = vmatmul.mubr.bf16.gmra.mxu0 %v1219
    %v1258 = vpop.f32.mrf.mxu0
    %v1259 = vadd.f32 0.0, %v1258
    %v1260 = vpop.f32.mrf.mxu0
    %v1261 = vpop.f32.mrf.mxu0
    %v1262 = vpop.f32.mrf.mxu0
    %1263 = vdwg.mxu0
    %1264 = vrot.lane.b32.xlu0 %v672, 64
    %v1265 = vpop.permute.xlu0 %1264
    %v1267 = vsel %vm365, %v1161, 0
    %v1270 = vsel %vm1172, %v1265, 0
    %1272 = vmatprep.subr.bf16.mxu0 0
    %1273 = vmatpush1.bf16.msra.mxu0 0
    %1274 = vmatprep.subr.bf16.mxu0 0
    %1275 = vmatpush1.bf16.msra.mxu0 0
    %1276 = vmatprep.subr.bf16.mxu0 0
    %1277 = vmatpush1.bf16.msra.mxu0 0
    %1278 = vmatprep.subr.bf16.mxu0 0
    %1279 = vmatpush1.bf16.msra.mxu0 0
    %1280 = vmatprep.subr.bf16.mxu0 0
    %1281 = vmatpush1.bf16.msra.mxu0 0
    %1282 = vmatprep.subr.bf16.mxu0 0
    %1283 = vmatpush1.bf16.msra.mxu0 0
    %1284 = vmatprep.subr.bf16.mxu0 0
    %1285 = vmatpush1.bf16.msra.mxu0 0
    %1286 = vmatprep.subr.bf16.mxu0 0
    %1287 = vmatpush1.bf16.msra.mxu0 %v1270
    %1288 = vmatprep.subr.bf16.mxu0 0
    %1289 = vmatpush2.bf16.msra.mxu0 0
    %1290 = vmatprep.subr.bf16.mxu0 0
    %1291 = vmatpush2.bf16.msra.mxu0 0
    %1292 = vmatprep.subr.bf16.mxu0 0
    %1293 = vmatpush2.bf16.msra.mxu0 0
    %1294 = vmatprep.subr.bf16.mxu0 0
    %1295 = vmatpush2.bf16.msra.mxu0 0
    %1296 = vmatprep.subr.bf16.mxu0 0
    %1297 = vmatpush2.bf16.msra.mxu0 0
    %1298 = vmatprep.subr.bf16.mxu0 0
    %1299 = vmatpush2.bf16.msra.mxu0 0
    %1300 = vmatprep.subr.bf16.mxu0 0
    %1301 = vmatpush2.bf16.msra.mxu0 0
    %1302 = vmatprep.subr.bf16.mxu0 0
    %1303 = vmatpush2.bf16.msra.mxu0 0
    %1304 = vmatprep.mubr.bf16.mxu0 0
    %1305 = vmatmul.mubr.bf16.gmra.mxu0 %v1267
    %v1306 = vpop.f32.mrf.mxu0
    %v1307 = vadd.f32 0.0, %v1306
    %v1308 = vpop.f32.mrf.mxu0
    %v1309 = vpop.f32.mrf.mxu0
    %v1310 = vpop.f32.mrf.mxu0
    %1311 = vdwg.mxu0
    %1312 = vrot.lane.b32.xlu0 %v673, 64
    %v1313 = vpop.permute.xlu0 %1312
    %v1315 = vsel %vm365, %v1162, 0
    %v1318 = vsel %vm1172, %v1313, 0
    %1320 = vmatprep.subr.bf16.mxu0 0
    %1321 = vmatpush1.bf16.msra.mxu0 0
    %1322 = vmatprep.subr.bf16.mxu0 0
    %1323 = vmatpush1.bf16.msra.mxu0 0
    %1324 = vmatprep.subr.bf16.mxu0 0
    %1325 = vmatpush1.bf16.msra.mxu0 0
    %1326 = vmatprep.subr.bf16.mxu0 0
    %1327 = vmatpush1.bf16.msra.mxu0 0
    %1328 = vmatprep.subr.bf16.mxu0 0
    %1329 = vmatpush1.bf16.msra.mxu0 0
    %1330 = vmatprep.subr.bf16.mxu0 0
    %1331 = vmatpush1.bf16.msra.mxu0 0
    %1332 = vmatprep.subr.bf16.mxu0 0
    %1333 = vmatpush1.bf16.msra.mxu0 0
    %1334 = vmatprep.subr.bf16.mxu0 0
    %1335 = vmatpush1.bf16.msra.mxu0 %v1318
    %1336 = vmatprep.subr.bf16.mxu0 0
    %1337 = vmatpush2.bf16.msra.mxu0 0
    %1338 = vmatprep.subr.bf16.mxu0 0
    %1339 = vmatpush2.bf16.msra.mxu0 0
    %1340 = vmatprep.subr.bf16.mxu0 0
    %1341 = vmatpush2.bf16.msra.mxu0 0
    %1342 = vmatprep.subr.bf16.mxu0 0
    %1343 = vmatpush2.bf16.msra.mxu0 0
    %1344 = vmatprep.subr.bf16.mxu0 0
    %1345 = vmatpush2.bf16.msra.mxu0 0
    %1346 = vmatprep.subr.bf16.mxu0 0
    %1347 = vmatpush2.bf16.msra.mxu0 0
    %1348 = vmatprep.subr.bf16.mxu0 0
    %1349 = vmatpush2.bf16.msra.mxu0 0
    %1350 = vmatprep.subr.bf16.mxu0 0
    %1351 = vmatpush2.bf16.msra.mxu0 0
    %1352 = vmatprep.mubr.bf16.mxu0 0
    %1353 = vmatmul.mubr.bf16.gmra.mxu0 %v1315
    %v1354 = vpop.f32.mrf.mxu0
    %v1355 = vadd.f32 0.0, %v1354
    %v1356 = vpop.f32.mrf.mxu0
    %v1357 = vpop.f32.mrf.mxu0
    %v1358 = vpop.f32.mrf.mxu0
    %1359 = vdwg.mxu0
    %1360 = vrot.lane.b32.xlu0 %v674, 64
    %v1361 = vpop.permute.xlu0 %1360
    %v1363 = vsel %vm365, %v1163, 0
    %v1366 = vsel %vm1172, %v1361, 0
    %1368 = vmatprep.subr.bf16.mxu0 0
    %1369 = vmatpush1.bf16.msra.mxu0 0
    %1370 = vmatprep.subr.bf16.mxu0 0
    %1371 = vmatpush1.bf16.msra.mxu0 0
    %1372 = vmatprep.subr.bf16.mxu0 0
    %1373 = vmatpush1.bf16.msra.mxu0 0
    %1374 = vmatprep.subr.bf16.mxu0 0
    %1375 = vmatpush1.bf16.msra.mxu0 0
    %1376 = vmatprep.subr.bf16.mxu0 0
    %1377 = vmatpush1.bf16.msra.mxu0 0
    %1378 = vmatprep.subr.bf16.mxu0 0
    %1379 = vmatpush1.bf16.msra.mxu0 0
    %1380 = vmatprep.subr.bf16.mxu0 0
    %1381 = vmatpush1.bf16.msra.mxu0 0
    %1382 = vmatprep.subr.bf16.mxu0 0
    %1383 = vmatpush1.bf16.msra.mxu0 %v1366
    %1384 = vmatprep.subr.bf16.mxu0 0
    %1385 = vmatpush2.bf16.msra.mxu0 0
    %1386 = vmatprep.subr.bf16.mxu0 0
    %1387 = vmatpush2.bf16.msra.mxu0 0
    %1388 = vmatprep.subr.bf16.mxu0 0
    %1389 = vmatpush2.bf16.msra.mxu0 0
    %1390 = vmatprep.subr.bf16.mxu0 0
    %1391 = vmatpush2.bf16.msra.mxu0 0
    %1392 = vmatprep.subr.bf16.mxu0 0
    %1393 = vmatpush2.bf16.msra.mxu0 0
    %1394 = vmatprep.subr.bf16.mxu0 0
    %1395 = vmatpush2.bf16.msra.mxu0 0
    %1396 = vmatprep.subr.bf16.mxu0 0
    %1397 = vmatpush2.bf16.msra.mxu0 0
    %1398 = vmatprep.subr.bf16.mxu0 0
    %1399 = vmatpush2.bf16.msra.mxu0 0
    %1400 = vmatprep.mubr.bf16.mxu0 0
    %1401 = vmatmul.mubr.bf16.gmra.mxu0 %v1363
    %v1402 = vpop.f32.mrf.mxu0
    %v1403 = vadd.f32 0.0, %v1402
    %v1404 = vpop.f32.mrf.mxu0
    %v1405 = vpop.f32.mrf.mxu0
    %v1406 = vpop.f32.mrf.mxu0
    %1407 = vdwg.mxu0
    %1408 = vrot.lane.b32.xlu0 %v675, 64
    %v1409 = vpop.permute.xlu0 %1408
    %v1411 = vsel %vm365, %v1164, 0
    %v1414 = vsel %vm1172, %v1409, 0
    %1416 = vmatprep.subr.bf16.mxu0 0
    %1417 = vmatpush1.bf16.msra.mxu0 0
    %1418 = vmatprep.subr.bf16.mxu0 0
    %1419 = vmatpush1.bf16.msra.mxu0 0
    %1420 = vmatprep.subr.bf16.mxu0 0
    %1421 = vmatpush1.bf16.msra.mxu0 0
    %1422 = vmatprep.subr.bf16.mxu0 0
    %1423 = vmatpush1.bf16.msra.mxu0 0
    %1424 = vmatprep.subr.bf16.mxu0 0
    %1425 = vmatpush1.bf16.msra.mxu0 0
    %1426 = vmatprep.subr.bf16.mxu0 0
    %1427 = vmatpush1.bf16.msra.mxu0 0
    %1428 = vmatprep.subr.bf16.mxu0 0
    %1429 = vmatpush1.bf16.msra.mxu0 0
    %1430 = vmatprep.subr.bf16.mxu0 0
    %1431 = vmatpush1.bf16.msra.mxu0 %v1414
    %1432 = vmatprep.subr.bf16.mxu0 0
    %1433 = vmatpush2.bf16.msra.mxu0 0
    %1434 = vmatprep.subr.bf16.mxu0 0
    %1435 = vmatpush2.bf16.msra.mxu0 0
    %1436 = vmatprep.subr.bf16.mxu0 0
    %1437 = vmatpush2.bf16.msra.mxu0 0
    %1438 = vmatprep.subr.bf16.mxu0 0
    %1439 = vmatpush2.bf16.msra.mxu0 0
    %1440 = vmatprep.subr.bf16.mxu0 0
    %1441 = vmatpush2.bf16.msra.mxu0 0
    %1442 = vmatprep.subr.bf16.mxu0 0
    %1443 = vmatpush2.bf16.msra.mxu0 0
    %1444 = vmatprep.subr.bf16.mxu0 0
    %1445 = vmatpush2.bf16.msra.mxu0 0
    %1446 = vmatprep.subr.bf16.mxu0 0
    %1447 = vmatpush2.bf16.msra.mxu0 0
    %1448 = vmatprep.mubr.bf16.mxu0 0
    %1449 = vmatmul.mubr.bf16.gmra.mxu0 %v1411
    %v1450 = vpop.f32.mrf.mxu0
    %v1451 = vadd.f32 0.0, %v1450
    %v1452 = vpop.f32.mrf.mxu0
    %v1453 = vpop.f32.mrf.mxu0
    %v1454 = vpop.f32.mrf.mxu0
    %1455 = vdwg.mxu0
    %1456 = vrot.lane.b32.xlu0 %v676, 64
    %v1457 = vpop.permute.xlu0 %1456
    %v1459 = vsel %vm365, %v1165, 0
    %v1462 = vsel %vm1172, %v1457, 0
    %1464 = vmatprep.subr.bf16.mxu0 0
    %1465 = vmatpush1.bf16.msra.mxu0 0
    %1466 = vmatprep.subr.bf16.mxu0 0
    %1467 = vmatpush1.bf16.msra.mxu0 0
    %1468 = vmatprep.subr.bf16.mxu0 0
    %1469 = vmatpush1.bf16.msra.mxu0 0
    %1470 = vmatprep.subr.bf16.mxu0 0
    %1471 = vmatpush1.bf16.msra.mxu0 0
    %1472 = vmatprep.subr.bf16.mxu0 0
    %1473 = vmatpush1.bf16.msra.mxu0 0
    %1474 = vmatprep.subr.bf16.mxu0 0
    %1475 = vmatpush1.bf16.msra.mxu0 0
    %1476 = vmatprep.subr.bf16.mxu0 0
    %1477 = vmatpush1.bf16.msra.mxu0 0
    %1478 = vmatprep.subr.bf16.mxu0 0
    %1479 = vmatpush1.bf16.msra.mxu0 %v1462
    %1480 = vmatprep.subr.bf16.mxu0 0
    %1481 = vmatpush2.bf16.msra.mxu0 0
    %1482 = vmatprep.subr.bf16.mxu0 0
    %1483 = vmatpush2.bf16.msra.mxu0 0
    %1484 = vmatprep.subr.bf16.mxu0 0
    %1485 = vmatpush2.bf16.msra.mxu0 0
    %1486 = vmatprep.subr.bf16.mxu0 0
    %1487 = vmatpush2.bf16.msra.mxu0 0
    %1488 = vmatprep.subr.bf16.mxu0 0
    %1489 = vmatpush2.bf16.msra.mxu0 0
    %1490 = vmatprep.subr.bf16.mxu0 0
    %1491 = vmatpush2.bf16.msra.mxu0 0
    %1492 = vmatprep.subr.bf16.mxu0 0
    %1493 = vmatpush2.bf16.msra.mxu0 0
    %1494 = vmatprep.subr.bf16.mxu0 0
    %1495 = vmatpush2.bf16.msra.mxu0 0
    %1496 = vmatprep.mubr.bf16.mxu0 0
    %1497 = vmatmul.mubr.bf16.gmra.mxu0 %v1459
    %v1498 = vpop.f32.mrf.mxu0
    %v1499 = vadd.f32 0.0, %v1498
    %v1500 = vpop.f32.mrf.mxu0
    %v1501 = vpop.f32.mrf.mxu0
    %v1502 = vpop.f32.mrf.mxu0
    %1503 = vdwg.mxu0
    %1504 = vrot.lane.b32.xlu0 %v677, 64
    %v1505 = vpop.permute.xlu0 %1504
    %v1507 = vsel %vm365, %v1166, 0
    %v1510 = vsel %vm1172, %v1505, 0
    %1512 = vmatprep.subr.bf16.mxu0 0
    %1513 = vmatpush1.bf16.msra.mxu0 0
    %1514 = vmatprep.subr.bf16.mxu0 0
    %1515 = vmatpush1.bf16.msra.mxu0 0
    %1516 = vmatprep.subr.bf16.mxu0 0
    %1517 = vmatpush1.bf16.msra.mxu0 0
    %1518 = vmatprep.subr.bf16.mxu0 0
    %1519 = vmatpush1.bf16.msra.mxu0 0
    %1520 = vmatprep.subr.bf16.mxu0 0
    %1521 = vmatpush1.bf16.msra.mxu0 0
    %1522 = vmatprep.subr.bf16.mxu0 0
    %1523 = vmatpush1.bf16.msra.mxu0 0
    %1524 = vmatprep.subr.bf16.mxu0 0
    %1525 = vmatpush1.bf16.msra.mxu0 0
    %1526 = vmatprep.subr.bf16.mxu0 0
    %1527 = vmatpush1.bf16.msra.mxu0 %v1510
    %1528 = vmatprep.subr.bf16.mxu0 0
    %1529 = vmatpush2.bf16.msra.mxu0 0
    %1530 = vmatprep.subr.bf16.mxu0 0
    %1531 = vmatpush2.bf16.msra.mxu0 0
    %1532 = vmatprep.subr.bf16.mxu0 0
    %1533 = vmatpush2.bf16.msra.mxu0 0
    %1534 = vmatprep.subr.bf16.mxu0 0
    %1535 = vmatpush2.bf16.msra.mxu0 0
    %1536 = vmatprep.subr.bf16.mxu0 0
    %1537 = vmatpush2.bf16.msra.mxu0 0
    %1538 = vmatprep.subr.bf16.mxu0 0
    %1539 = vmatpush2.bf16.msra.mxu0 0
    %1540 = vmatprep.subr.bf16.mxu0 0
    %1541 = vmatpush2.bf16.msra.mxu0 0
    %1542 = vmatprep.subr.bf16.mxu0 0
    %1543 = vmatpush2.bf16.msra.mxu0 0
    %1544 = vmatprep.mubr.bf16.mxu0 0
    %1545 = vmatmul.mubr.bf16.gmra.mxu0 %v1507
    %v1546 = vpop.f32.mrf.mxu0
    %v1547 = vadd.f32 0.0, %v1546
    %v1548 = vpop.f32.mrf.mxu0
    %v1549 = vpop.f32.mrf.mxu0
    %v1550 = vpop.f32.mrf.mxu0
    %1551 = vdwg.mxu0
    %vm1552 = vcmask 60416
    %1553 = vst.msk [vmem:[#allocation3] sm:$0xf] %vm1552, %v1211
    %1554 = vst.msk [vmem:[#allocation3 + $0x4] sm:$0xf] %vm1552, %v1259
    %1555 = vst.msk [vmem:[#allocation3 + $0x8] sm:$0xf] %vm1552, %v1307
    %1556 = vst.msk [vmem:[#allocation3 + $0xc] sm:$0xf] %vm1552, %v1355
    %1557 = vst.msk [vmem:[#allocation3 + $0x10] sm:$0xf] %vm1552, %v1403
    %1558 = vst.msk [vmem:[#allocation3 + $0x14] sm:$0xf] %vm1552, %v1451
    %1559 = vst.msk [vmem:[#allocation3 + $0x18] sm:$0xf] %vm1552, %v1499
    %1560 = vst.msk [vmem:[#allocation3 + $0x1c] sm:$0xf] %vm1552, %v1547
    %1561 = vrot.lane.b32.xlu0 %v670, 120
    %v1562 = vpop.permute.xlu0 %1561
    %1563 = vrot.lane.b32.xlu0 %v670, 88
    %v1564 = vpop.permute.xlu0 %1563
    %v1566 = vsel %vm127, %v1562, 0
    %v1569 = vsel %vm127, %v1564, 0
    %1571 = vmatprep.subr.bf16.mxu0 0
    %1572 = vmatpush1.bf16.xpose.msra.mxu0 0
    %1573 = vmatprep.subr.bf16.mxu0 0
    %1574 = vmatpush1.bf16.xpose.msra.mxu0 0
    %1575 = vmatprep.subr.bf16.mxu0 0
    %1576 = vmatpush1.bf16.xpose.msra.mxu0 0
    %1577 = vmatprep.subr.bf16.mxu0 0
    %1578 = vmatpush1.bf16.xpose.msra.mxu0 0
    %1579 = vmatprep.subr.bf16.mxu0 0
    %1580 = vmatpush1.bf16.xpose.msra.mxu0 0
    %1581 = vmatprep.subr.bf16.mxu0 0
    %1582 = vmatpush1.bf16.xpose.msra.mxu0 0
    %1583 = vmatprep.subr.bf16.mxu0 0
    %1584 = vmatpush1.bf16.xpose.msra.mxu0 0
    %1585 = vmatprep.subr.bf16.mxu0 0
    %1586 = vmatpush1.bf16.xpose.msra.mxu0 %v1569
    %1587 = vmatprep.subr.bf16.mxu0 0
    %1588 = vmatpush2.bf16.xpose.msra.mxu0 0
    %1589 = vmatprep.subr.bf16.mxu0 0
    %1590 = vmatpush2.bf16.xpose.msra.mxu0 0
    %1591 = vmatprep.subr.bf16.mxu0 0
    %1592 = vmatpush2.bf16.xpose.msra.mxu0 0
    %1593 = vmatprep.subr.bf16.mxu0 0
    %1594 = vmatpush2.bf16.xpose.msra.mxu0 0
    %1595 = vmatprep.subr.bf16.mxu0 0
    %1596 = vmatpush2.bf16.xpose.msra.mxu0 0
    %1597 = vmatprep.subr.bf16.mxu0 0
    %1598 = vmatpush2.bf16.xpose.msra.mxu0 0
    %1599 = vmatprep.subr.bf16.mxu0 0
    %1600 = vmatpush2.bf16.xpose.msra.mxu0 0
    %1601 = vmatprep.subr.bf16.mxu0 0
    %1602 = vmatpush2.bf16.xpose.msra.mxu0 0
    %1603 = vmatprep.mubr.bf16.mxu0 0
    %1604 = vmatmul.mubr.bf16.gmra.mxu0 %v1566
    %v1605 = vpop.f32.mrf.mxu0
    %v1606 = vadd.f32 0.0, %v1605
    %v1607 = vpop.f32.mrf.mxu0
    %v1608 = vpop.f32.mrf.mxu0
    %v1609 = vpop.f32.mrf.mxu0
    %1610 = vdwg.mxu0
    %1611 = vrot.lane.b32.xlu0 %v671, 120
    %v1612 = vpop.permute.xlu0 %1611
    %1613 = vrot.lane.b32.xlu0 %v671, 88
    %v1614 = vpop.permute.xlu0 %1613
    %v1616 = vsel %vm127, %v1612, 0
    %v1619 = vsel %vm127, %v1614, 0
    %1621 = vmatprep.subr.bf16.mxu0 0
    %1622 = vmatpush1.bf16.xpose.msra.mxu0 0
    %1623 = vmatprep.subr.bf16.mxu0 0
    %1624 = vmatpush1.bf16.xpose.msra.mxu0 0
    %1625 = vmatprep.subr.bf16.mxu0 0
    %1626 = vmatpush1.bf16.xpose.msra.mxu0 0
    %1627 = vmatprep.subr.bf16.mxu0 0
    %1628 = vmatpush1.bf16.xpose.msra.mxu0 0
    %1629 = vmatprep.subr.bf16.mxu0 0
    %1630 = vmatpush1.bf16.xpose.msra.mxu0 0
    %1631 = vmatprep.subr.bf16.mxu0 0
    %1632 = vmatpush1.bf16.xpose.msra.mxu0 0
    %1633 = vmatprep.subr.bf16.mxu0 0
    %1634 = vmatpush1.bf16.xpose.msra.mxu0 0
    %1635 = vmatprep.subr.bf16.mxu0 0
    %1636 = vmatpush1.bf16.xpose.msra.mxu0 %v1619
    %1637 = vmatprep.subr.bf16.mxu0 0
    %1638 = vmatpush2.bf16.xpose.msra.mxu0 0
    %1639 = vmatprep.subr.bf16.mxu0 0
    %1640 = vmatpush2.bf16.xpose.msra.mxu0 0
    %1641 = vmatprep.subr.bf16.mxu0 0
    %1642 = vmatpush2.bf16.xpose.msra.mxu0 0
    %1643 = vmatprep.subr.bf16.mxu0 0
    %1644 = vmatpush2.bf16.xpose.msra.mxu0 0
    %1645 = vmatprep.subr.bf16.mxu0 0
    %1646 = vmatpush2.bf16.xpose.msra.mxu0 0
    %1647 = vmatprep.subr.bf16.mxu0 0
    %1648 = vmatpush2.bf16.xpose.msra.mxu0 0
    %1649 = vmatprep.subr.bf16.mxu0 0
    %1650 = vmatpush2.bf16.xpose.msra.mxu0 0
    %1651 = vmatprep.subr.bf16.mxu0 0
    %1652 = vmatpush2.bf16.xpose.msra.mxu0 0
    %1653 = vmatprep.mubr.bf16.mxu0 0
    %1654 = vmatmul.mubr.bf16.gmra.mxu0 %v1616
    %v1655 = vpop.f32.mrf.mxu0
    %v1656 = vadd.f32 0.0, %v1655
    %v1657 = vpop.f32.mrf.mxu0
    %v1658 = vpop.f32.mrf.mxu0
    %v1659 = vpop.f32.mrf.mxu0
    %1660 = vdwg.mxu0
    %1661 = vrot.lane.b32.xlu0 %v672, 120
    %v1662 = vpop.permute.xlu0 %1661
    %1663 = vrot.lane.b32.xlu0 %v672, 88
    %v1664 = vpop.permute.xlu0 %1663
    %v1666 = vsel %vm127, %v1662, 0
    %v1669 = vsel %vm127, %v1664, 0
    %1671 = vmatprep.subr.bf16.mxu0 0
    %1672 = vmatpush1.bf16.xpose.msra.mxu0 0
    %1673 = vmatprep.subr.bf16.mxu0 0
    %1674 = vmatpush1.bf16.xpose.msra.mxu0 0
    %1675 = vmatprep.subr.bf16.mxu0 0
    %1676 = vmatpush1.bf16.xpose.msra.mxu0 0
    %1677 = vmatprep.subr.bf16.mxu0 0
    %1678 = vmatpush1.bf16.xpose.msra.mxu0 0
    %1679 = vmatprep.subr.bf16.mxu0 0
    %1680 = vmatpush1.bf16.xpose.msra.mxu0 0
    %1681 = vmatprep.subr.bf16.mxu0 0
    %1682 = vmatpush1.bf16.xpose.msra.mxu0 0
    %1683 = vmatprep.subr.bf16.mxu0 0
    %1684 = vmatpush1.bf16.xpose.msra.mxu0 0
    %1685 = vmatprep.subr.bf16.mxu0 0
    %1686 = vmatpush1.bf16.xpose.msra.mxu0 %v1669
    %1687 = vmatprep.subr.bf16.mxu0 0
    %1688 = vmatpush2.bf16.xpose.msra.mxu0 0
    %1689 = vmatprep.subr.bf16.mxu0 0
    %1690 = vmatpush2.bf16.xpose.msra.mxu0 0
    %1691 = vmatprep.subr.bf16.mxu0 0
    %1692 = vmatpush2.bf16.xpose.msra.mxu0 0
    %1693 = vmatprep.subr.bf16.mxu0 0
    %1694 = vmatpush2.bf16.xpose.msra.mxu0 0
    %1695 = vmatprep.subr.bf16.mxu0 0
    %1696 = vmatpush2.bf16.xpose.msra.mxu0 0
    %1697 = vmatprep.subr.bf16.mxu0 0
    %1698 = vmatpush2.bf16.xpose.msra.mxu0 0
    %1699 = vmatprep.subr.bf16.mxu0 0
    %1700 = vmatpush2.bf16.xpose.msra.mxu0 0
    %1701 = vmatprep.subr.bf16.mxu0 0
    %1702 = vmatpush2.bf16.xpose.msra.mxu0 0
    %1703 = vmatprep.mubr.bf16.mxu0 0
    %1704 = vmatmul.mubr.bf16.gmra.mxu0 %v1666
    %v1705 = vpop.f32.mrf.mxu0
    %v1706 = vadd.f32 0.0, %v1705
    %v1707 = vpop.f32.mrf.mxu0
    %v1708 = vpop.f32.mrf.mxu0
    %v1709 = vpop.f32.mrf.mxu0
    %1710 = vdwg.mxu0
    %1711 = vrot.lane.b32.xlu0 %v673, 120
    %v1712 = vpop.permute.xlu0 %1711
    %1713 = vrot.lane.b32.xlu0 %v673, 88
    %v1714 = vpop.permute.xlu0 %1713
    %v1716 = vsel %vm127, %v1712, 0
    %v1719 = vsel %vm127, %v1714, 0
    %1721 = vmatprep.subr.bf16.mxu0 0
    %1722 = vmatpush1.bf16.xpose.msra.mxu0 0
    %1723 = vmatprep.subr.bf16.mxu0 0
    %1724 = vmatpush1.bf16.xpose.msra.mxu0 0
    %1725 = vmatprep.subr.bf16.mxu0 0
    %1726 = vmatpush1.bf16.xpose.msra.mxu0 0
    %1727 = vmatprep.subr.bf16.mxu0 0
    %1728 = vmatpush1.bf16.xpose.msra.mxu0 0
    %1729 = vmatprep.subr.bf16.mxu0 0
    %1730 = vmatpush1.bf16.xpose.msra.mxu0 0
    %1731 = vmatprep.subr.bf16.mxu0 0
    %1732 = vmatpush1.bf16.xpose.msra.mxu0 0
    %1733 = vmatprep.subr.bf16.mxu0 0
    %1734 = vmatpush1.bf16.xpose.msra.mxu0 0
    %1735 = vmatprep.subr.bf16.mxu0 0
    %1736 = vmatpush1.bf16.xpose.msra.mxu0 %v1719
    %1737 = vmatprep.subr.bf16.mxu0 0
    %1738 = vmatpush2.bf16.xpose.msra.mxu0 0
    %1739 = vmatprep.subr.bf16.mxu0 0
    %1740 = vmatpush2.bf16.xpose.msra.mxu0 0
    %1741 = vmatprep.subr.bf16.mxu0 0
    %1742 = vmatpush2.bf16.xpose.msra.mxu0 0
    %1743 = vmatprep.subr.bf16.mxu0 0
    %1744 = vmatpush2.bf16.xpose.msra.mxu0 0
    %1745 = vmatprep.subr.bf16.mxu0 0
    %1746 = vmatpush2.bf16.xpose.msra.mxu0 0
    %1747 = vmatprep.subr.bf16.mxu0 0
    %1748 = vmatpush2.bf16.xpose.msra.mxu0 0
    %1749 = vmatprep.subr.bf16.mxu0 0
    %1750 = vmatpush2.bf16.xpose.msra.mxu0 0
    %1751 = vmatprep.subr.bf16.mxu0 0
    %1752 = vmatpush2.bf16.xpose.msra.mxu0 0
    %1753 = vmatprep.mubr.bf16.mxu0 0
    %1754 = vmatmul.mubr.bf16.gmra.mxu0 %v1716
    %v1755 = vpop.f32.mrf.mxu0
    %v1756 = vadd.f32 0.0, %v1755
    %v1757 = vpop.f32.mrf.mxu0
    %v1758 = vpop.f32.mrf.mxu0
    %v1759 = vpop.f32.mrf.mxu0
    %1760 = vdwg.mxu0
    %1761 = vrot.lane.b32.xlu0 %v674, 120
    %v1762 = vpop.permute.xlu0 %1761
    %1763 = vrot.lane.b32.xlu0 %v674, 88
    %v1764 = vpop.permute.xlu0 %1763
    %v1766 = vsel %vm127, %v1762, 0
    %v1769 = vsel %vm127, %v1764, 0
    %1771 = vmatprep.subr.bf16.mxu0 0
    %1772 = vmatpush1.bf16.xpose.msra.mxu0 0
    %1773 = vmatprep.subr.bf16.mxu0 0
    %1774 = vmatpush1.bf16.xpose.msra.mxu0 0
    %1775 = vmatprep.subr.bf16.mxu0 0
    %1776 = vmatpush1.bf16.xpose.msra.mxu0 0
    %1777 = vmatprep.subr.bf16.mxu0 0
    %1778 = vmatpush1.bf16.xpose.msra.mxu0 0
    %1779 = vmatprep.subr.bf16.mxu0 0
    %1780 = vmatpush1.bf16.xpose.msra.mxu0 0
    %1781 = vmatprep.subr.bf16.mxu0 0
    %1782 = vmatpush1.bf16.xpose.msra.mxu0 0
    %1783 = vmatprep.subr.bf16.mxu0 0
    %1784 = vmatpush1.bf16.xpose.msra.mxu0 0
    %1785 = vmatprep.subr.bf16.mxu0 0
    %1786 = vmatpush1.bf16.xpose.msra.mxu0 %v1769
    %1787 = vmatprep.subr.bf16.mxu0 0
    %1788 = vmatpush2.bf16.xpose.msra.mxu0 0
    %1789 = vmatprep.subr.bf16.mxu0 0
    %1790 = vmatpush2.bf16.xpose.msra.mxu0 0
    %1791 = vmatprep.subr.bf16.mxu0 0
    %1792 = vmatpush2.bf16.xpose.msra.mxu0 0
    %1793 = vmatprep.subr.bf16.mxu0 0
    %1794 = vmatpush2.bf16.xpose.msra.mxu0 0
    %1795 = vmatprep.subr.bf16.mxu0 0
    %1796 = vmatpush2.bf16.xpose.msra.mxu0 0
    %1797 = vmatprep.subr.bf16.mxu0 0
    %1798 = vmatpush2.bf16.xpose.msra.mxu0 0
    %1799 = vmatprep.subr.bf16.mxu0 0
    %1800 = vmatpush2.bf16.xpose.msra.mxu0 0
    %1801 = vmatprep.subr.bf16.mxu0 0
    %1802 = vmatpush2.bf16.xpose.msra.mxu0 0
    %1803 = vmatprep.mubr.bf16.mxu0 0
    %1804 = vmatmul.mubr.bf16.gmra.mxu0 %v1766
    %v1805 = vpop.f32.mrf.mxu0
    %v1806 = vadd.f32 0.0, %v1805
    %v1807 = vpop.f32.mrf.mxu0
    %v1808 = vpop.f32.mrf.mxu0
    %v1809 = vpop.f32.mrf.mxu0
    %1810 = vdwg.mxu0
    %1811 = vrot.lane.b32.xlu0 %v675, 120
    %v1812 = vpop.permute.xlu0 %1811
    %1813 = vrot.lane.b32.xlu0 %v675, 88
    %v1814 = vpop.permute.xlu0 %1813
    %v1816 = vsel %vm127, %v1812, 0
    %v1819 = vsel %vm127, %v1814, 0
    %1821 = vmatprep.subr.bf16.mxu0 0
    %1822 = vmatpush1.bf16.xpose.msra.mxu0 0
    %1823 = vmatprep.subr.bf16.mxu0 0
    %1824 = vmatpush1.bf16.xpose.msra.mxu0 0
    %1825 = vmatprep.subr.bf16.mxu0 0
    %1826 = vmatpush1.bf16.xpose.msra.mxu0 0
    %1827 = vmatprep.subr.bf16.mxu0 0
    %1828 = vmatpush1.bf16.xpose.msra.mxu0 0
    %1829 = vmatprep.subr.bf16.mxu0 0
    %1830 = vmatpush1.bf16.xpose.msra.mxu0 0
    %1831 = vmatprep.subr.bf16.mxu0 0
    %1832 = vmatpush1.bf16.xpose.msra.mxu0 0
    %1833 = vmatprep.subr.bf16.mxu0 0
    %1834 = vmatpush1.bf16.xpose.msra.mxu0 0
    %1835 = vmatprep.subr.bf16.mxu0 0
    %1836 = vmatpush1.bf16.xpose.msra.mxu0 %v1819
    %1837 = vmatprep.subr.bf16.mxu0 0
    %1838 = vmatpush2.bf16.xpose.msra.mxu0 0
    %1839 = vmatprep.subr.bf16.mxu0 0
    %1840 = vmatpush2.bf16.xpose.msra.mxu0 0
    %1841 = vmatprep.subr.bf16.mxu0 0
    %1842 = vmatpush2.bf16.xpose.msra.mxu0 0
    %1843 = vmatprep.subr.bf16.mxu0 0
    %1844 = vmatpush2.bf16.xpose.msra.mxu0 0
    %1845 = vmatprep.subr.bf16.mxu0 0
    %1846 = vmatpush2.bf16.xpose.msra.mxu0 0
    %1847 = vmatprep.subr.bf16.mxu0 0
    %1848 = vmatpush2.bf16.xpose.msra.mxu0 0
    %1849 = vmatprep.subr.bf16.mxu0 0
    %1850 = vmatpush2.bf16.xpose.msra.mxu0 0
    %1851 = vmatprep.subr.bf16.mxu0 0
    %1852 = vmatpush2.bf16.xpose.msra.mxu0 0
    %1853 = vmatprep.mubr.bf16.mxu0 0
    %1854 = vmatmul.mubr.bf16.gmra.mxu0 %v1816
    %v1855 = vpop.f32.mrf.mxu0
    %v1856 = vadd.f32 0.0, %v1855
    %v1857 = vpop.f32.mrf.mxu0
    %v1858 = vpop.f32.mrf.mxu0
    %v1859 = vpop.f32.mrf.mxu0
    %1860 = vdwg.mxu0
    %1861 = vrot.lane.b32.xlu0 %v676, 120
    %v1862 = vpop.permute.xlu0 %1861
    %1863 = vrot.lane.b32.xlu0 %v676, 88
    %v1864 = vpop.permute.xlu0 %1863
    %v1866 = vsel %vm127, %v1862, 0
    %v1869 = vsel %vm127, %v1864, 0
    %1871 = vmatprep.subr.bf16.mxu0 0
    %1872 = vmatpush1.bf16.xpose.msra.mxu0 0
    %1873 = vmatprep.subr.bf16.mxu0 0
    %1874 = vmatpush1.bf16.xpose.msra.mxu0 0
    %1875 = vmatprep.subr.bf16.mxu0 0
    %1876 = vmatpush1.bf16.xpose.msra.mxu0 0
    %1877 = vmatprep.subr.bf16.mxu0 0
    %1878 = vmatpush1.bf16.xpose.msra.mxu0 0
    %1879 = vmatprep.subr.bf16.mxu0 0
    %1880 = vmatpush1.bf16.xpose.msra.mxu0 0
    %1881 = vmatprep.subr.bf16.mxu0 0
    %1882 = vmatpush1.bf16.xpose.msra.mxu0 0
    %1883 = vmatprep.subr.bf16.mxu0 0
    %1884 = vmatpush1.bf16.xpose.msra.mxu0 0
    %1885 = vmatprep.subr.bf16.mxu0 0
    %1886 = vmatpush1.bf16.xpose.msra.mxu0 %v1869
    %1887 = vmatprep.subr.bf16.mxu0 0
    %1888 = vmatpush2.bf16.xpose.msra.mxu0 0
    %1889 = vmatprep.subr.bf16.mxu0 0
    %1890 = vmatpush2.bf16.xpose.msra.mxu0 0
    %1891 = vmatprep.subr.bf16.mxu0 0
    %1892 = vmatpush2.bf16.xpose.msra.mxu0 0
    %1893 = vmatprep.subr.bf16.mxu0 0
    %1894 = vmatpush2.bf16.xpose.msra.mxu0 0
    %1895 = vmatprep.subr.bf16.mxu0 0
    %1896 = vmatpush2.bf16.xpose.msra.mxu0 0
    %1897 = vmatprep.subr.bf16.mxu0 0
    %1898 = vmatpush2.bf16.xpose.msra.mxu0 0
    %1899 = vmatprep.subr.bf16.mxu0 0
    %1900 = vmatpush2.bf16.xpose.msra.mxu0 0
    %1901 = vmatprep.subr.bf16.mxu0 0
    %1902 = vmatpush2.bf16.xpose.msra.mxu0 0
    %1903 = vmatprep.mubr.bf16.mxu0 0
    %1904 = vmatmul.mubr.bf16.gmra.mxu0 %v1866
    %v1905 = vpop.f32.mrf.mxu0
    %v1906 = vadd.f32 0.0, %v1905
    %v1907 = vpop.f32.mrf.mxu0
    %v1908 = vpop.f32.mrf.mxu0
    %v1909 = vpop.f32.mrf.mxu0
    %1910 = vdwg.mxu0
    %1911 = vrot.lane.b32.xlu0 %v677, 120
    %v1912 = vpop.permute.xlu0 %1911
    %1913 = vrot.lane.b32.xlu0 %v677, 88
    %v1914 = vpop.permute.xlu0 %1913
    %v1916 = vsel %vm127, %v1912, 0
    %v1919 = vsel %vm127, %v1914, 0
    %1921 = vmatprep.subr.bf16.mxu0 0
    %1922 = vmatpush1.bf16.xpose.msra.mxu0 0
    %1923 = vmatprep.subr.bf16.mxu0 0
    %1924 = vmatpush1.bf16.xpose.msra.mxu0 0
    %1925 = vmatprep.subr.bf16.mxu0 0
    %1926 = vmatpush1.bf16.xpose.msra.mxu0 0
    %1927 = vmatprep.subr.bf16.mxu0 0
    %1928 = vmatpush1.bf16.xpose.msra.mxu0 0
    %1929 = vmatprep.subr.bf16.mxu0 0
    %1930 = vmatpush1.bf16.xpose.msra.mxu0 0
    %1931 = vmatprep.subr.bf16.mxu0 0
    %1932 = vmatpush1.bf16.xpose.msra.mxu0 0
    %1933 = vmatprep.subr.bf16.mxu0 0
    %1934 = vmatpush1.bf16.xpose.msra.mxu0 0
    %1935 = vmatprep.subr.bf16.mxu0 0
    %1936 = vmatpush1.bf16.xpose.msra.mxu0 %v1919
    %1937 = vmatprep.subr.bf16.mxu0 0
    %1938 = vmatpush2.bf16.xpose.msra.mxu0 0
    %1939 = vmatprep.subr.bf16.mxu0 0
    %1940 = vmatpush2.bf16.xpose.msra.mxu0 0
    %1941 = vmatprep.subr.bf16.mxu0 0
    %1942 = vmatpush2.bf16.xpose.msra.mxu0 0
    %1943 = vmatprep.subr.bf16.mxu0 0
    %1944 = vmatpush2.bf16.xpose.msra.mxu0 0
    %1945 = vmatprep.subr.bf16.mxu0 0
    %1946 = vmatpush2.bf16.xpose.msra.mxu0 0
    %1947 = vmatprep.subr.bf16.mxu0 0
    %1948 = vmatpush2.bf16.xpose.msra.mxu0 0
    %1949 = vmatprep.subr.bf16.mxu0 0
    %1950 = vmatpush2.bf16.xpose.msra.mxu0 0
    %1951 = vmatprep.subr.bf16.mxu0 0
    %1952 = vmatpush2.bf16.xpose.msra.mxu0 0
    %1953 = vmatprep.mubr.bf16.mxu0 0
    %1954 = vmatmul.mubr.bf16.gmra.mxu0 %v1916
    %v1955 = vpop.f32.mrf.mxu0
    %v1956 = vadd.f32 0.0, %v1955
    %v1957 = vpop.f32.mrf.mxu0
    %v1958 = vpop.f32.mrf.mxu0
    %v1959 = vpop.f32.mrf.mxu0
    %1960 = vdwg.mxu0
    %v1961 = vsel %vm1070, %v1606, -inf
    %1962 = vmax.xlane.f32.xlu0 %v1961
    %v1963 = vpop.xlane.xlu0 %1962
    %v1964 = vsel %vm1070, %v1656, -inf
    %1965 = vmax.xlane.f32.xlu0 %v1964
    %v1966 = vpop.xlane.xlu0 %1965
    %v1967 = vsel %vm1070, %v1706, -inf
    %1968 = vmax.xlane.f32.xlu0 %v1967
    %v1969 = vpop.xlane.xlu0 %1968
    %v1970 = vsel %vm1070, %v1756, -inf
    %1971 = vmax.xlane.f32.xlu0 %v1970
    %v1972 = vpop.xlane.xlu0 %1971
    %v1973 = vsel %vm1070, %v1806, -inf
    %1974 = vmax.xlane.f32.xlu0 %v1973
    %v1975 = vpop.xlane.xlu0 %1974
    %v1976 = vsel %vm1070, %v1856, -inf
    %1977 = vmax.xlane.f32.xlu0 %v1976
    %v1978 = vpop.xlane.xlu0 %1977
    %v1979 = vsel %vm1070, %v1906, -inf
    %1980 = vmax.xlane.f32.xlu0 %v1979
    %v1981 = vpop.xlane.xlu0 %1980
    %v1982 = vsel %vm1070, %v1956, -inf
    %1983 = vmax.xlane.f32.xlu0 %v1982
    %v1984 = vpop.xlane.xlu0 %1983
    %v1985 = vsub.f32 %v1606, %v1963
    %v1986 = vsub.f32 %v1656, %v1966
    %v1987 = vsub.f32 %v1706, %v1969
    %v1988 = vsub.f32 %v1756, %v1972
    %v1989 = vsub.f32 %v1806, %v1975
    %v1990 = vsub.f32 %v1856, %v1978
    %v1991 = vsub.f32 %v1906, %v1981
    %v1992 = vsub.f32 %v1956, %v1984
    %v1993 = vmul.f32 %v1985, 1.442695
    %v1994 = vpow.pop %v1993
    %v1995 = vmul.f32 %v1986, 1.442695
    %v1996 = vpow.pop %v1995
    %v1997 = vmul.f32 %v1987, 1.442695
    %v1998 = vpow.pop %v1997
    %v1999 = vmul.f32 %v1988, 1.442695
    %v2000 = vpow.pop %v1999
    %v2001 = vmul.f32 %v1989, 1.442695
    %v2002 = vpow.pop %v2001
    %v2003 = vmul.f32 %v1990, 1.442695
    %v2004 = vpow.pop %v2003
    %v2005 = vmul.f32 %v1991, 1.442695
    %v2006 = vpow.pop %v2005
    %v2007 = vmul.f32 %v1992, 1.442695
    %v2008 = vpow.pop %v2007
    %v2009 = vsel %vm1070, %v1994, 0.0
    %2010 = vadd.xlane.f32.xlu0 %v2009
    %v2011 = vpop.xlane.xlu0 %2010
    %v2012 = vsel %vm1070, %v1996, 0.0
    %2013 = vadd.xlane.f32.xlu0 %v2012
    %v2014 = vpop.xlane.xlu0 %2013
    %v2015 = vsel %vm1070, %v1998, 0.0
    %2016 = vadd.xlane.f32.xlu0 %v2015
    %v2017 = vpop.xlane.xlu0 %2016
    %v2018 = vsel %vm1070, %v2000, 0.0
    %2019 = vadd.xlane.f32.xlu0 %v2018
    %v2020 = vpop.xlane.xlu0 %2019
    %v2021 = vsel %vm1070, %v2002, 0.0
    %2022 = vadd.xlane.f32.xlu0 %v2021
    %v2023 = vpop.xlane.xlu0 %2022
    %v2024 = vsel %vm1070, %v2004, 0.0
    %2025 = vadd.xlane.f32.xlu0 %v2024
    %v2026 = vpop.xlane.xlu0 %2025
    %v2027 = vsel %vm1070, %v2006, 0.0
    %2028 = vadd.xlane.f32.xlu0 %v2027
    %v2029 = vpop.xlane.xlu0 %2028
    %v2030 = vsel %vm1070, %v2008, 0.0
    %2031 = vadd.xlane.f32.xlu0 %v2030
    %v2032 = vpop.xlane.xlu0 %2031
    %v2033 = vrcp.pop %v2011
    %v2034 = vrcp.pop %v2014
    %v2035 = vrcp.pop %v2017
    %v2036 = vrcp.pop %v2020
    %v2037 = vrcp.pop %v2023
    %v2038 = vrcp.pop %v2026
    %v2039 = vrcp.pop %v2029
    %v2040 = vrcp.pop %v2032
    %v2041 = vmul.f32 %v1994, %v2033
    %v2042 = vmul.f32 %v1996, %v2034
    %v2043 = vmul.f32 %v1998, %v2035
    %v2044 = vmul.f32 %v2000, %v2036
    %v2045 = vmul.f32 %v2002, %v2037
    %v2046 = vmul.f32 %v2004, %v2038
    %v2047 = vmul.f32 %v2006, %v2039
    %v2048 = vmul.f32 %v2008, %v2040
    %v2049 = vpack.c.bf16 %v2041, %v2041
    %v2050 = vpack.c.bf16 %v2042, %v2042
    %v2051 = vpack.c.bf16 %v2043, %v2043
    %v2052 = vpack.c.bf16 %v2044, %v2044
    %v2053 = vpack.c.bf16 %v2045, %v2045
    %v2054 = vpack.c.bf16 %v2046, %v2046
    %v2055 = vpack.c.bf16 %v2047, %v2047
    %v2056 = vpack.c.bf16 %v2048, %v2048
    %2057 = vrot.lane.b32.xlu0 %v670, 56
    %v2058 = vpop.permute.xlu0 %2057
    %v2060 = vsel %vm365, %v2049, 0
    %v2063 = vsel %vm1172, %v2058, 0
    %2065 = vmatprep.subr.bf16.mxu0 0
    %2066 = vmatpush1.bf16.msra.mxu0 0
    %2067 = vmatprep.subr.bf16.mxu0 0
    %2068 = vmatpush1.bf16.msra.mxu0 0
    %2069 = vmatprep.subr.bf16.mxu0 0
    %2070 = vmatpush1.bf16.msra.mxu0 0
    %2071 = vmatprep.subr.bf16.mxu0 0
    %2072 = vmatpush1.bf16.msra.mxu0 0
    %2073 = vmatprep.subr.bf16.mxu0 0
    %2074 = vmatpush1.bf16.msra.mxu0 0
    %2075 = vmatprep.subr.bf16.mxu0 0
    %2076 = vmatpush1.bf16.msra.mxu0 0
    %2077 = vmatprep.subr.bf16.mxu0 0
    %2078 = vmatpush1.bf16.msra.mxu0 0
    %2079 = vmatprep.subr.bf16.mxu0 0
    %2080 = vmatpush1.bf16.msra.mxu0 %v2063
    %2081 = vmatprep.subr.bf16.mxu0 0
    %2082 = vmatpush2.bf16.msra.mxu0 0
    %2083 = vmatprep.subr.bf16.mxu0 0
    %2084 = vmatpush2.bf16.msra.mxu0 0
    %2085 = vmatprep.subr.bf16.mxu0 0
    %2086 = vmatpush2.bf16.msra.mxu0 0
    %2087 = vmatprep.subr.bf16.mxu0 0
    %2088 = vmatpush2.bf16.msra.mxu0 0
    %2089 = vmatprep.subr.bf16.mxu0 0
    %2090 = vmatpush2.bf16.msra.mxu0 0
    %2091 = vmatprep.subr.bf16.mxu0 0
    %2092 = vmatpush2.bf16.msra.mxu0 0
    %2093 = vmatprep.subr.bf16.mxu0 0
    %2094 = vmatpush2.bf16.msra.mxu0 0
    %2095 = vmatprep.subr.bf16.mxu0 0
    %2096 = vmatpush2.bf16.msra.mxu0 0
    %2097 = vmatprep.mubr.bf16.mxu0 0
    %2098 = vmatmul.mubr.bf16.gmra.mxu0 %v2060
    %v2099 = vpop.f32.mrf.mxu0
    %v2100 = vadd.f32 0.0, %v2099
    %v2101 = vpop.f32.mrf.mxu0
    %v2102 = vpop.f32.mrf.mxu0
    %v2103 = vpop.f32.mrf.mxu0
    %2104 = vdwg.mxu0
    %2105 = vrot.lane.b32.xlu0 %v671, 56
    %v2106 = vpop.permute.xlu0 %2105
    %v2108 = vsel %vm365, %v2050, 0
    %v2111 = vsel %vm1172, %v2106, 0
    %2113 = vmatprep.subr.bf16.mxu0 0
    %2114 = vmatpush1.bf16.msra.mxu0 0
    %2115 = vmatprep.subr.bf16.mxu0 0
    %2116 = vmatpush1.bf16.msra.mxu0 0
    %2117 = vmatprep.subr.bf16.mxu0 0
    %2118 = vmatpush1.bf16.msra.mxu0 0
    %2119 = vmatprep.subr.bf16.mxu0 0
    %2120 = vmatpush1.bf16.msra.mxu0 0
    %2121 = vmatprep.subr.bf16.mxu0 0
    %2122 = vmatpush1.bf16.msra.mxu0 0
    %2123 = vmatprep.subr.bf16.mxu0 0
    %2124 = vmatpush1.bf16.msra.mxu0 0
    %2125 = vmatprep.subr.bf16.mxu0 0
    %2126 = vmatpush1.bf16.msra.mxu0 0
    %2127 = vmatprep.subr.bf16.mxu0 0
    %2128 = vmatpush1.bf16.msra.mxu0 %v2111
    %2129 = vmatprep.subr.bf16.mxu0 0
    %2130 = vmatpush2.bf16.msra.mxu0 0
    %2131 = vmatprep.subr.bf16.mxu0 0
    %2132 = vmatpush2.bf16.msra.mxu0 0
    %2133 = vmatprep.subr.bf16.mxu0 0
    %2134 = vmatpush2.bf16.msra.mxu0 0
    %2135 = vmatprep.subr.bf16.mxu0 0
    %2136 = vmatpush2.bf16.msra.mxu0 0
    %2137 = vmatprep.subr.bf16.mxu0 0
    %2138 = vmatpush2.bf16.msra.mxu0 0
    %2139 = vmatprep.subr.bf16.mxu0 0
    %2140 = vmatpush2.bf16.msra.mxu0 0
    %2141 = vmatprep.subr.bf16.mxu0 0
    %2142 = vmatpush2.bf16.msra.mxu0 0
    %2143 = vmatprep.subr.bf16.mxu0 0
    %2144 = vmatpush2.bf16.msra.mxu0 0
    %2145 = vmatprep.mubr.bf16.mxu0 0
    %2146 = vmatmul.mubr.bf16.gmra.mxu0 %v2108
    %v2147 = vpop.f32.mrf.mxu0
    %v2148 = vadd.f32 0.0, %v2147
    %v2149 = vpop.f32.mrf.mxu0
    %v2150 = vpop.f32.mrf.mxu0
    %v2151 = vpop.f32.mrf.mxu0
    %2152 = vdwg.mxu0
    %2153 = vrot.lane.b32.xlu0 %v672, 56
    %v2154 = vpop.permute.xlu0 %2153
    %v2156 = vsel %vm365, %v2051, 0
    %v2159 = vsel %vm1172, %v2154, 0
    %2161 = vmatprep.subr.bf16.mxu0 0
    %2162 = vmatpush1.bf16.msra.mxu0 0
    %2163 = vmatprep.subr.bf16.mxu0 0
    %2164 = vmatpush1.bf16.msra.mxu0 0
    %2165 = vmatprep.subr.bf16.mxu0 0
    %2166 = vmatpush1.bf16.msra.mxu0 0
    %2167 = vmatprep.subr.bf16.mxu0 0
    %2168 = vmatpush1.bf16.msra.mxu0 0
    %2169 = vmatprep.subr.bf16.mxu0 0
    %2170 = vmatpush1.bf16.msra.mxu0 0
    %2171 = vmatprep.subr.bf16.mxu0 0
    %2172 = vmatpush1.bf16.msra.mxu0 0
    %2173 = vmatprep.subr.bf16.mxu0 0
    %2174 = vmatpush1.bf16.msra.mxu0 0
    %2175 = vmatprep.subr.bf16.mxu0 0
    %2176 = vmatpush1.bf16.msra.mxu0 %v2159
    %2177 = vmatprep.subr.bf16.mxu0 0
    %2178 = vmatpush2.bf16.msra.mxu0 0
    %2179 = vmatprep.subr.bf16.mxu0 0
    %2180 = vmatpush2.bf16.msra.mxu0 0
    %2181 = vmatprep.subr.bf16.mxu0 0
    %2182 = vmatpush2.bf16.msra.mxu0 0
    %2183 = vmatprep.subr.bf16.mxu0 0
    %2184 = vmatpush2.bf16.msra.mxu0 0
    %2185 = vmatprep.subr.bf16.mxu0 0
    %2186 = vmatpush2.bf16.msra.mxu0 0
    %2187 = vmatprep.subr.bf16.mxu0 0
    %2188 = vmatpush2.bf16.msra.mxu0 0
    %2189 = vmatprep.subr.bf16.mxu0 0
    %2190 = vmatpush2.bf16.msra.mxu0 0
    %2191 = vmatprep.subr.bf16.mxu0 0
    %2192 = vmatpush2.bf16.msra.mxu0 0
    %2193 = vmatprep.mubr.bf16.mxu0 0
    %2194 = vmatmul.mubr.bf16.gmra.mxu0 %v2156
    %v2195 = vpop.f32.mrf.mxu0
    %v2196 = vadd.f32 0.0, %v2195
    %v2197 = vpop.f32.mrf.mxu0
    %v2198 = vpop.f32.mrf.mxu0
    %v2199 = vpop.f32.mrf.mxu0
    %2200 = vdwg.mxu0
    %2201 = vrot.lane.b32.xlu0 %v673, 56
    %v2202 = vpop.permute.xlu0 %2201
    %v2204 = vsel %vm365, %v2052, 0
    %v2207 = vsel %vm1172, %v2202, 0
    %2209 = vmatprep.subr.bf16.mxu0 0
    %2210 = vmatpush1.bf16.msra.mxu0 0
    %2211 = vmatprep.subr.bf16.mxu0 0
    %2212 = vmatpush1.bf16.msra.mxu0 0
    %2213 = vmatprep.subr.bf16.mxu0 0
    %2214 = vmatpush1.bf16.msra.mxu0 0
    %2215 = vmatprep.subr.bf16.mxu0 0
    %2216 = vmatpush1.bf16.msra.mxu0 0
    %2217 = vmatprep.subr.bf16.mxu0 0
    %2218 = vmatpush1.bf16.msra.mxu0 0
    %2219 = vmatprep.subr.bf16.mxu0 0
    %2220 = vmatpush1.bf16.msra.mxu0 0
    %2221 = vmatprep.subr.bf16.mxu0 0
    %2222 = vmatpush1.bf16.msra.mxu0 0
    %2223 = vmatprep.subr.bf16.mxu0 0
    %2224 = vmatpush1.bf16.msra.mxu0 %v2207
    %2225 = vmatprep.subr.bf16.mxu0 0
    %2226 = vmatpush2.bf16.msra.mxu0 0
    %2227 = vmatprep.subr.bf16.mxu0 0
    %2228 = vmatpush2.bf16.msra.mxu0 0
    %2229 = vmatprep.subr.bf16.mxu0 0
    %2230 = vmatpush2.bf16.msra.mxu0 0
    %2231 = vmatprep.subr.bf16.mxu0 0
    %2232 = vmatpush2.bf16.msra.mxu0 0
    %2233 = vmatprep.subr.bf16.mxu0 0
    %2234 = vmatpush2.bf16.msra.mxu0 0
    %2235 = vmatprep.subr.bf16.mxu0 0
    %2236 = vmatpush2.bf16.msra.mxu0 0
    %2237 = vmatprep.subr.bf16.mxu0 0
    %2238 = vmatpush2.bf16.msra.mxu0 0
    %2239 = vmatprep.subr.bf16.mxu0 0
    %2240 = vmatpush2.bf16.msra.mxu0 0
    %2241 = vmatprep.mubr.bf16.mxu0 0
    %2242 = vmatmul.mubr.bf16.gmra.mxu0 %v2204
    %v2243 = vpop.f32.mrf.mxu0
    %v2244 = vadd.f32 0.0, %v2243
    %v2245 = vpop.f32.mrf.mxu0
    %v2246 = vpop.f32.mrf.mxu0
    %v2247 = vpop.f32.mrf.mxu0
    %2248 = vdwg.mxu0
    %2249 = vrot.lane.b32.xlu0 %v674, 56
    %v2250 = vpop.permute.xlu0 %2249
    %v2252 = vsel %vm365, %v2053, 0
    %v2255 = vsel %vm1172, %v2250, 0
    %2257 = vmatprep.subr.bf16.mxu0 0
    %2258 = vmatpush1.bf16.msra.mxu0 0
    %2259 = vmatprep.subr.bf16.mxu0 0
    %2260 = vmatpush1.bf16.msra.mxu0 0
    %2261 = vmatprep.subr.bf16.mxu0 0
    %2262 = vmatpush1.bf16.msra.mxu0 0
    %2263 = vmatprep.subr.bf16.mxu0 0
    %2264 = vmatpush1.bf16.msra.mxu0 0
    %2265 = vmatprep.subr.bf16.mxu0 0
    %2266 = vmatpush1.bf16.msra.mxu0 0
    %2267 = vmatprep.subr.bf16.mxu0 0
    %2268 = vmatpush1.bf16.msra.mxu0 0
    %2269 = vmatprep.subr.bf16.mxu0 0
    %2270 = vmatpush1.bf16.msra.mxu0 0
    %2271 = vmatprep.subr.bf16.mxu0 0
    %2272 = vmatpush1.bf16.msra.mxu0 %v2255
    %2273 = vmatprep.subr.bf16.mxu0 0
    %2274 = vmatpush2.bf16.msra.mxu0 0
    %2275 = vmatprep.subr.bf16.mxu0 0
    %2276 = vmatpush2.bf16.msra.mxu0 0
    %2277 = vmatprep.subr.bf16.mxu0 0
    %2278 = vmatpush2.bf16.msra.mxu0 0
    %2279 = vmatprep.subr.bf16.mxu0 0
    %2280 = vmatpush2.bf16.msra.mxu0 0
    %2281 = vmatprep.subr.bf16.mxu0 0
    %2282 = vmatpush2.bf16.msra.mxu0 0
    %2283 = vmatprep.subr.bf16.mxu0 0
    %2284 = vmatpush2.bf16.msra.mxu0 0
    %2285 = vmatprep.subr.bf16.mxu0 0
    %2286 = vmatpush2.bf16.msra.mxu0 0
    %2287 = vmatprep.subr.bf16.mxu0 0
    %2288 = vmatpush2.bf16.msra.mxu0 0
    %2289 = vmatprep.mubr.bf16.mxu0 0
    %2290 = vmatmul.mubr.bf16.gmra.mxu0 %v2252
    %v2291 = vpop.f32.mrf.mxu0
    %v2292 = vadd.f32 0.0, %v2291
    %v2293 = vpop.f32.mrf.mxu0
    %v2294 = vpop.f32.mrf.mxu0
    %v2295 = vpop.f32.mrf.mxu0
    %2296 = vdwg.mxu0
    %2297 = vrot.lane.b32.xlu0 %v675, 56
    %v2298 = vpop.permute.xlu0 %2297
    %v2300 = vsel %vm365, %v2054, 0
    %v2303 = vsel %vm1172, %v2298, 0
    %2305 = vmatprep.subr.bf16.mxu0 0
    %2306 = vmatpush1.bf16.msra.mxu0 0
    %2307 = vmatprep.subr.bf16.mxu0 0
    %2308 = vmatpush1.bf16.msra.mxu0 0
    %2309 = vmatprep.subr.bf16.mxu0 0
    %2310 = vmatpush1.bf16.msra.mxu0 0
    %2311 = vmatprep.subr.bf16.mxu0 0
    %2312 = vmatpush1.bf16.msra.mxu0 0
    %2313 = vmatprep.subr.bf16.mxu0 0
    %2314 = vmatpush1.bf16.msra.mxu0 0
    %2315 = vmatprep.subr.bf16.mxu0 0
    %2316 = vmatpush1.bf16.msra.mxu0 0
    %2317 = vmatprep.subr.bf16.mxu0 0
    %2318 = vmatpush1.bf16.msra.mxu0 0
    %2319 = vmatprep.subr.bf16.mxu0 0
    %2320 = vmatpush1.bf16.msra.mxu0 %v2303
    %2321 = vmatprep.subr.bf16.mxu0 0
    %2322 = vmatpush2.bf16.msra.mxu0 0
    %2323 = vmatprep.subr.bf16.mxu0 0
    %2324 = vmatpush2.bf16.msra.mxu0 0
    %2325 = vmatprep.subr.bf16.mxu0 0
    %2326 = vmatpush2.bf16.msra.mxu0 0
    %2327 = vmatprep.subr.bf16.mxu0 0
    %2328 = vmatpush2.bf16.msra.mxu0 0
    %2329 = vmatprep.subr.bf16.mxu0 0
    %2330 = vmatpush2.bf16.msra.mxu0 0
    %2331 = vmatprep.subr.bf16.mxu0 0
    %2332 = vmatpush2.bf16.msra.mxu0 0
    %2333 = vmatprep.subr.bf16.mxu0 0
    %2334 = vmatpush2.bf16.msra.mxu0 0
    %2335 = vmatprep.subr.bf16.mxu0 0
    %2336 = vmatpush2.bf16.msra.mxu0 0
    %2337 = vmatprep.mubr.bf16.mxu0 0
    %2338 = vmatmul.mubr.bf16.gmra.mxu0 %v2300
    %v2339 = vpop.f32.mrf.mxu0
    %v2340 = vadd.f32 0.0, %v2339
    %v2341 = vpop.f32.mrf.mxu0
    %v2342 = vpop.f32.mrf.mxu0
    %v2343 = vpop.f32.mrf.mxu0
    %2344 = vdwg.mxu0
    %2345 = vrot.lane.b32.xlu0 %v676, 56
    %v2346 = vpop.permute.xlu0 %2345
    %v2348 = vsel %vm365, %v2055, 0
    %v2351 = vsel %vm1172, %v2346, 0
    %2353 = vmatprep.subr.bf16.mxu0 0
    %2354 = vmatpush1.bf16.msra.mxu0 0
    %2355 = vmatprep.subr.bf16.mxu0 0
    %2356 = vmatpush1.bf16.msra.mxu0 0
    %2357 = vmatprep.subr.bf16.mxu0 0
    %2358 = vmatpush1.bf16.msra.mxu0 0
    %2359 = vmatprep.subr.bf16.mxu0 0
    %2360 = vmatpush1.bf16.msra.mxu0 0
    %2361 = vmatprep.subr.bf16.mxu0 0
    %2362 = vmatpush1.bf16.msra.mxu0 0
    %2363 = vmatprep.subr.bf16.mxu0 0
    %2364 = vmatpush1.bf16.msra.mxu0 0
    %2365 = vmatprep.subr.bf16.mxu0 0
    %2366 = vmatpush1.bf16.msra.mxu0 0
    %2367 = vmatprep.subr.bf16.mxu0 0
    %2368 = vmatpush1.bf16.msra.mxu0 %v2351
    %2369 = vmatprep.subr.bf16.mxu0 0
    %2370 = vmatpush2.bf16.msra.mxu0 0
    %2371 = vmatprep.subr.bf16.mxu0 0
    %2372 = vmatpush2.bf16.msra.mxu0 0
    %2373 = vmatprep.subr.bf16.mxu0 0
    %2374 = vmatpush2.bf16.msra.mxu0 0
    %2375 = vmatprep.subr.bf16.mxu0 0
    %2376 = vmatpush2.bf16.msra.mxu0 0
    %2377 = vmatprep.subr.bf16.mxu0 0
    %2378 = vmatpush2.bf16.msra.mxu0 0
    %2379 = vmatprep.subr.bf16.mxu0 0
    %2380 = vmatpush2.bf16.msra.mxu0 0
    %2381 = vmatprep.subr.bf16.mxu0 0
    %2382 = vmatpush2.bf16.msra.mxu0 0
    %2383 = vmatprep.subr.bf16.mxu0 0
    %2384 = vmatpush2.bf16.msra.mxu0 0
    %2385 = vmatprep.mubr.bf16.mxu0 0
    %2386 = vmatmul.mubr.bf16.gmra.mxu0 %v2348
    %v2387 = vpop.f32.mrf.mxu0
    %v2388 = vadd.f32 0.0, %v2387
    %v2389 = vpop.f32.mrf.mxu0
    %v2390 = vpop.f32.mrf.mxu0
    %v2391 = vpop.f32.mrf.mxu0
    %2392 = vdwg.mxu0
    %2393 = vrot.lane.b32.xlu0 %v677, 56
    %v2394 = vpop.permute.xlu0 %2393
    %v2396 = vsel %vm365, %v2056, 0
    %v2399 = vsel %vm1172, %v2394, 0
    %2401 = vmatprep.subr.bf16.mxu0 0
    %2402 = vmatpush1.bf16.msra.mxu0 0
    %2403 = vmatprep.subr.bf16.mxu0 0
    %2404 = vmatpush1.bf16.msra.mxu0 0
    %2405 = vmatprep.subr.bf16.mxu0 0
    %2406 = vmatpush1.bf16.msra.mxu0 0
    %2407 = vmatprep.subr.bf16.mxu0 0
    %2408 = vmatpush1.bf16.msra.mxu0 0
    %2409 = vmatprep.subr.bf16.mxu0 0
    %2410 = vmatpush1.bf16.msra.mxu0 0
    %2411 = vmatprep.subr.bf16.mxu0 0
    %2412 = vmatpush1.bf16.msra.mxu0 0
    %2413 = vmatprep.subr.bf16.mxu0 0
    %2414 = vmatpush1.bf16.msra.mxu0 0
    %2415 = vmatprep.subr.bf16.mxu0 0
    %2416 = vmatpush1.bf16.msra.mxu0 %v2399
    %2417 = vmatprep.subr.bf16.mxu0 0
    %2418 = vmatpush2.bf16.msra.mxu0 0
    %2419 = vmatprep.subr.bf16.mxu0 0
    %2420 = vmatpush2.bf16.msra.mxu0 0
    %2421 = vmatprep.subr.bf16.mxu0 0
    %2422 = vmatpush2.bf16.msra.mxu0 0
    %2423 = vmatprep.subr.bf16.mxu0 0
    %2424 = vmatpush2.bf16.msra.mxu0 0
    %2425 = vmatprep.subr.bf16.mxu0 0
    %2426 = vmatpush2.bf16.msra.mxu0 0
    %2427 = vmatprep.subr.bf16.mxu0 0
    %2428 = vmatpush2.bf16.msra.mxu0 0
    %2429 = vmatprep.subr.bf16.mxu0 0
    %2430 = vmatpush2.bf16.msra.mxu0 0
    %2431 = vmatprep.subr.bf16.mxu0 0
    %2432 = vmatpush2.bf16.msra.mxu0 0
    %2433 = vmatprep.mubr.bf16.mxu0 0
    %2434 = vmatmul.mubr.bf16.gmra.mxu0 %v2396
    %v2435 = vpop.f32.mrf.mxu0
    %v2436 = vadd.f32 0.0, %v2435
    %v2437 = vpop.f32.mrf.mxu0
    %v2438 = vpop.f32.mrf.mxu0
    %v2439 = vpop.f32.mrf.mxu0
    %2440 = vdwg.mxu0
    %2442 = vrot.lane.b32.xlu0 %v2100, 8
    %v2443 = vpop.permute.xlu0 %2442
    %vm2445 = vcmask 126016
    %2446 = vst.msk [vmem:[#allocation3] sm:$0xf] %vm2445, %v2443
    %2448 = vrot.lane.b32.xlu0 %v2148, 8
    %v2449 = vpop.permute.xlu0 %2448
    %2451 = vst.msk [vmem:[#allocation3 + $0x4] sm:$0xf] %vm2445, %v2449
    %2453 = vrot.lane.b32.xlu0 %v2196, 8
    %v2454 = vpop.permute.xlu0 %2453
    %2456 = vst.msk [vmem:[#allocation3 + $0x8] sm:$0xf] %vm2445, %v2454
    %2458 = vrot.lane.b32.xlu0 %v2244, 8
    %v2459 = vpop.permute.xlu0 %2458
    %2461 = vst.msk [vmem:[#allocation3 + $0xc] sm:$0xf] %vm2445, %v2459
    %2463 = vrot.lane.b32.xlu0 %v2292, 8
    %v2464 = vpop.permute.xlu0 %2463
    %2466 = vst.msk [vmem:[#allocation3 + $0x10] sm:$0xf] %vm2445, %v2464
    %2468 = vrot.lane.b32.xlu0 %v2340, 8
    %v2469 = vpop.permute.xlu0 %2468
    %2471 = vst.msk [vmem:[#allocation3 + $0x14] sm:$0xf] %vm2445, %v2469
    %2473 = vrot.lane.b32.xlu0 %v2388, 8
    %v2474 = vpop.permute.xlu0 %2473
    %2476 = vst.msk [vmem:[#allocation3 + $0x18] sm:$0xf] %vm2445, %v2474
    %2478 = vrot.lane.b32.xlu0 %v2436, 8
    %v2479 = vpop.permute.xlu0 %2478
    %2481 = vst.msk [vmem:[#allocation3 + $0x1c] sm:$0xf] %vm2445, %v2479
    %2482 = vrot.lane.b32.xlu0 %v670, 112
    %v2483 = vpop.permute.xlu0 %2482
    %2484 = vrot.lane.b32.xlu0 %v670, 80
    %v2485 = vpop.permute.xlu0 %2484
    %v2487 = vsel %vm127, %v2483, 0
    %v2490 = vsel %vm127, %v2485, 0
    %2492 = vmatprep.subr.bf16.mxu0 0
    %2493 = vmatpush1.bf16.xpose.msra.mxu0 0
    %2494 = vmatprep.subr.bf16.mxu0 0
    %2495 = vmatpush1.bf16.xpose.msra.mxu0 0
    %2496 = vmatprep.subr.bf16.mxu0 0
    %2497 = vmatpush1.bf16.xpose.msra.mxu0 0
    %2498 = vmatprep.subr.bf16.mxu0 0
    %2499 = vmatpush1.bf16.xpose.msra.mxu0 0
    %2500 = vmatprep.subr.bf16.mxu0 0
    %2501 = vmatpush1.bf16.xpose.msra.mxu0 0
    %2502 = vmatprep.subr.bf16.mxu0 0
    %2503 = vmatpush1.bf16.xpose.msra.mxu0 0
    %2504 = vmatprep.subr.bf16.mxu0 0
    %2505 = vmatpush1.bf16.xpose.msra.mxu0 0
    %2506 = vmatprep.subr.bf16.mxu0 0
    %2507 = vmatpush1.bf16.xpose.msra.mxu0 %v2490
    %2508 = vmatprep.subr.bf16.mxu0 0
    %2509 = vmatpush2.bf16.xpose.msra.mxu0 0
    %2510 = vmatprep.subr.bf16.mxu0 0
    %2511 = vmatpush2.bf16.xpose.msra.mxu0 0
    %2512 = vmatprep.subr.bf16.mxu0 0
    %2513 = vmatpush2.bf16.xpose.msra.mxu0 0
    %2514 = vmatprep.subr.bf16.mxu0 0
    %2515 = vmatpush2.bf16.xpose.msra.mxu0 0
    %2516 = vmatprep.subr.bf16.mxu0 0
    %2517 = vmatpush2.bf16.xpose.msra.mxu0 0
    %2518 = vmatprep.subr.bf16.mxu0 0
    %2519 = vmatpush2.bf16.xpose.msra.mxu0 0
    %2520 = vmatprep.subr.bf16.mxu0 0
    %2521 = vmatpush2.bf16.xpose.msra.mxu0 0
    %2522 = vmatprep.subr.bf16.mxu0 0
    %2523 = vmatpush2.bf16.xpose.msra.mxu0 0
    %2524 = vmatprep.mubr.bf16.mxu0 0
    %2525 = vmatmul.mubr.bf16.gmra.mxu0 %v2487
    %v2526 = vpop.f32.mrf.mxu0
    %v2527 = vadd.f32 0.0, %v2526
    %v2528 = vpop.f32.mrf.mxu0
    %v2529 = vpop.f32.mrf.mxu0
    %v2530 = vpop.f32.mrf.mxu0
    %2531 = vdwg.mxu0
    %2532 = vrot.lane.b32.xlu0 %v671, 112
    %v2533 = vpop.permute.xlu0 %2532
    %2534 = vrot.lane.b32.xlu0 %v671, 80
    %v2535 = vpop.permute.xlu0 %2534
    %v2537 = vsel %vm127, %v2533, 0
    %v2540 = vsel %vm127, %v2535, 0
    %2542 = vmatprep.subr.bf16.mxu0 0
    %2543 = vmatpush1.bf16.xpose.msra.mxu0 0
    %2544 = vmatprep.subr.bf16.mxu0 0
    %2545 = vmatpush1.bf16.xpose.msra.mxu0 0
    %2546 = vmatprep.subr.bf16.mxu0 0
    %2547 = vmatpush1.bf16.xpose.msra.mxu0 0
    %2548 = vmatprep.subr.bf16.mxu0 0
    %2549 = vmatpush1.bf16.xpose.msra.mxu0 0
    %2550 = vmatprep.subr.bf16.mxu0 0
    %2551 = vmatpush1.bf16.xpose.msra.mxu0 0
    %2552 = vmatprep.subr.bf16.mxu0 0
    %2553 = vmatpush1.bf16.xpose.msra.mxu0 0
    %2554 = vmatprep.subr.bf16.mxu0 0
    %2555 = vmatpush1.bf16.xpose.msra.mxu0 0
    %2556 = vmatprep.subr.bf16.mxu0 0
    %2557 = vmatpush1.bf16.xpose.msra.mxu0 %v2540
    %2558 = vmatprep.subr.bf16.mxu0 0
    %2559 = vmatpush2.bf16.xpose.msra.mxu0 0
    %2560 = vmatprep.subr.bf16.mxu0 0
    %2561 = vmatpush2.bf16.xpose.msra.mxu0 0
    %2562 = vmatprep.subr.bf16.mxu0 0
    %2563 = vmatpush2.bf16.xpose.msra.mxu0 0
    %2564 = vmatprep.subr.bf16.mxu0 0
    %2565 = vmatpush2.bf16.xpose.msra.mxu0 0
    %2566 = vmatprep.subr.bf16.mxu0 0
    %2567 = vmatpush2.bf16.xpose.msra.mxu0 0
    %2568 = vmatprep.subr.bf16.mxu0 0
    %2569 = vmatpush2.bf16.xpose.msra.mxu0 0
    %2570 = vmatprep.subr.bf16.mxu0 0
    %2571 = vmatpush2.bf16.xpose.msra.mxu0 0
    %2572 = vmatprep.subr.bf16.mxu0 0
    %2573 = vmatpush2.bf16.xpose.msra.mxu0 0
    %2574 = vmatprep.mubr.bf16.mxu0 0
    %2575 = vmatmul.mubr.bf16.gmra.mxu0 %v2537
    %v2576 = vpop.f32.mrf.mxu0
    %v2577 = vadd.f32 0.0, %v2576
    %v2578 = vpop.f32.mrf.mxu0
    %v2579 = vpop.f32.mrf.mxu0
    %v2580 = vpop.f32.mrf.mxu0
    %2581 = vdwg.mxu0
    %2582 = vrot.lane.b32.xlu0 %v672, 112
    %v2583 = vpop.permute.xlu0 %2582
    %2584 = vrot.lane.b32.xlu0 %v672, 80
    %v2585 = vpop.permute.xlu0 %2584
    %v2587 = vsel %vm127, %v2583, 0
    %v2590 = vsel %vm127, %v2585, 0
    %2592 = vmatprep.subr.bf16.mxu0 0
    %2593 = vmatpush1.bf16.xpose.msra.mxu0 0
    %2594 = vmatprep.subr.bf16.mxu0 0
    %2595 = vmatpush1.bf16.xpose.msra.mxu0 0
    %2596 = vmatprep.subr.bf16.mxu0 0
    %2597 = vmatpush1.bf16.xpose.msra.mxu0 0
    %2598 = vmatprep.subr.bf16.mxu0 0
    %2599 = vmatpush1.bf16.xpose.msra.mxu0 0
    %2600 = vmatprep.subr.bf16.mxu0 0
    %2601 = vmatpush1.bf16.xpose.msra.mxu0 0
    %2602 = vmatprep.subr.bf16.mxu0 0
    %2603 = vmatpush1.bf16.xpose.msra.mxu0 0
    %2604 = vmatprep.subr.bf16.mxu0 0
    %2605 = vmatpush1.bf16.xpose.msra.mxu0 0
    %2606 = vmatprep.subr.bf16.mxu0 0
    %2607 = vmatpush1.bf16.xpose.msra.mxu0 %v2590
    %2608 = vmatprep.subr.bf16.mxu0 0
    %2609 = vmatpush2.bf16.xpose.msra.mxu0 0
    %2610 = vmatprep.subr.bf16.mxu0 0
    %2611 = vmatpush2.bf16.xpose.msra.mxu0 0
    %2612 = vmatprep.subr.bf16.mxu0 0
    %2613 = vmatpush2.bf16.xpose.msra.mxu0 0
    %2614 = vmatprep.subr.bf16.mxu0 0
    %2615 = vmatpush2.bf16.xpose.msra.mxu0 0
    %2616 = vmatprep.subr.bf16.mxu0 0
    %2617 = vmatpush2.bf16.xpose.msra.mxu0 0
    %2618 = vmatprep.subr.bf16.mxu0 0
    %2619 = vmatpush2.bf16.xpose.msra.mxu0 0
    %2620 = vmatprep.subr.bf16.mxu0 0
    %2621 = vmatpush2.bf16.xpose.msra.mxu0 0
    %2622 = vmatprep.subr.bf16.mxu0 0
    %2623 = vmatpush2.bf16.xpose.msra.mxu0 0
    %2624 = vmatprep.mubr.bf16.mxu0 0
    %2625 = vmatmul.mubr.bf16.gmra.mxu0 %v2587
    %v2626 = vpop.f32.mrf.mxu0
    %v2627 = vadd.f32 0.0, %v2626
    %v2628 = vpop.f32.mrf.mxu0
    %v2629 = vpop.f32.mrf.mxu0
    %v2630 = vpop.f32.mrf.mxu0
    %2631 = vdwg.mxu0
    %2632 = vrot.lane.b32.xlu0 %v673, 112
    %v2633 = vpop.permute.xlu0 %2632
    %2634 = vrot.lane.b32.xlu0 %v673, 80
    %v2635 = vpop.permute.xlu0 %2634
    %v2637 = vsel %vm127, %v2633, 0
    %v2640 = vsel %vm127, %v2635, 0
    %2642 = vmatprep.subr.bf16.mxu0 0
    %2643 = vmatpush1.bf16.xpose.msra.mxu0 0
    %2644 = vmatprep.subr.bf16.mxu0 0
    %2645 = vmatpush1.bf16.xpose.msra.mxu0 0
    %2646 = vmatprep.subr.bf16.mxu0 0
    %2647 = vmatpush1.bf16.xpose.msra.mxu0 0
    %2648 = vmatprep.subr.bf16.mxu0 0
    %2649 = vmatpush1.bf16.xpose.msra.mxu0 0
    %2650 = vmatprep.subr.bf16.mxu0 0
    %2651 = vmatpush1.bf16.xpose.msra.mxu0 0
    %2652 = vmatprep.subr.bf16.mxu0 0
    %2653 = vmatpush1.bf16.xpose.msra.mxu0 0
    %2654 = vmatprep.subr.bf16.mxu0 0
    %2655 = vmatpush1.bf16.xpose.msra.mxu0 0
    %2656 = vmatprep.subr.bf16.mxu0 0
    %2657 = vmatpush1.bf16.xpose.msra.mxu0 %v2640
    %2658 = vmatprep.subr.bf16.mxu0 0
    %2659 = vmatpush2.bf16.xpose.msra.mxu0 0
    %2660 = vmatprep.subr.bf16.mxu0 0
    %2661 = vmatpush2.bf16.xpose.msra.mxu0 0
    %2662 = vmatprep.subr.bf16.mxu0 0
    %2663 = vmatpush2.bf16.xpose.msra.mxu0 0
    %2664 = vmatprep.subr.bf16.mxu0 0
    %2665 = vmatpush2.bf16.xpose.msra.mxu0 0
    %2666 = vmatprep.subr.bf16.mxu0 0
    %2667 = vmatpush2.bf16.xpose.msra.mxu0 0
    %2668 = vmatprep.subr.bf16.mxu0 0
    %2669 = vmatpush2.bf16.xpose.msra.mxu0 0
    %2670 = vmatprep.subr.bf16.mxu0 0
    %2671 = vmatpush2.bf16.xpose.msra.mxu0 0
    %2672 = vmatprep.subr.bf16.mxu0 0
    %2673 = vmatpush2.bf16.xpose.msra.mxu0 0
    %2674 = vmatprep.mubr.bf16.mxu0 0
    %2675 = vmatmul.mubr.bf16.gmra.mxu0 %v2637
    %v2676 = vpop.f32.mrf.mxu0
    %v2677 = vadd.f32 0.0, %v2676
    %v2678 = vpop.f32.mrf.mxu0
    %v2679 = vpop.f32.mrf.mxu0
    %v2680 = vpop.f32.mrf.mxu0
    %2681 = vdwg.mxu0
    %2682 = vrot.lane.b32.xlu0 %v674, 112
    %v2683 = vpop.permute.xlu0 %2682
    %2684 = vrot.lane.b32.xlu0 %v674, 80
    %v2685 = vpop.permute.xlu0 %2684
    %v2687 = vsel %vm127, %v2683, 0
    %v2690 = vsel %vm127, %v2685, 0
    %2692 = vmatprep.subr.bf16.mxu0 0
    %2693 = vmatpush1.bf16.xpose.msra.mxu0 0
    %2694 = vmatprep.subr.bf16.mxu0 0
    %2695 = vmatpush1.bf16.xpose.msra.mxu0 0
    %2696 = vmatprep.subr.bf16.mxu0 0
    %2697 = vmatpush1.bf16.xpose.msra.mxu0 0
    %2698 = vmatprep.subr.bf16.mxu0 0
    %2699 = vmatpush1.bf16.xpose.msra.mxu0 0
    %2700 = vmatprep.subr.bf16.mxu0 0
    %2701 = vmatpush1.bf16.xpose.msra.mxu0 0
    %2702 = vmatprep.subr.bf16.mxu0 0
    %2703 = vmatpush1.bf16.xpose.msra.mxu0 0
    %2704 = vmatprep.subr.bf16.mxu0 0
    %2705 = vmatpush1.bf16.xpose.msra.mxu0 0
    %2706 = vmatprep.subr.bf16.mxu0 0
    %2707 = vmatpush1.bf16.xpose.msra.mxu0 %v2690
    %2708 = vmatprep.subr.bf16.mxu0 0
    %2709 = vmatpush2.bf16.xpose.msra.mxu0 0
    %2710 = vmatprep.subr.bf16.mxu0 0
    %2711 = vmatpush2.bf16.xpose.msra.mxu0 0
    %2712 = vmatprep.subr.bf16.mxu0 0
    %2713 = vmatpush2.bf16.xpose.msra.mxu0 0
    %2714 = vmatprep.subr.bf16.mxu0 0
    %2715 = vmatpush2.bf16.xpose.msra.mxu0 0
    %2716 = vmatprep.subr.bf16.mxu0 0
    %2717 = vmatpush2.bf16.xpose.msra.mxu0 0
    %2718 = vmatprep.subr.bf16.mxu0 0
    %2719 = vmatpush2.bf16.xpose.msra.mxu0 0
    %2720 = vmatprep.subr.bf16.mxu0 0
    %2721 = vmatpush2.bf16.xpose.msra.mxu0 0
    %2722 = vmatprep.subr.bf16.mxu0 0
    %2723 = vmatpush2.bf16.xpose.msra.mxu0 0
    %2724 = vmatprep.mubr.bf16.mxu0 0
    %2725 = vmatmul.mubr.bf16.gmra.mxu0 %v2687
    %v2726 = vpop.f32.mrf.mxu0
    %v2727 = vadd.f32 0.0, %v2726
    %v2728 = vpop.f32.mrf.mxu0
    %v2729 = vpop.f32.mrf.mxu0
    %v2730 = vpop.f32.mrf.mxu0
    %2731 = vdwg.mxu0
    %2732 = vrot.lane.b32.xlu0 %v675, 112
    %v2733 = vpop.permute.xlu0 %2732
    %2734 = vrot.lane.b32.xlu0 %v675, 80
    %v2735 = vpop.permute.xlu0 %2734
    %v2737 = vsel %vm127, %v2733, 0
    %v2740 = vsel %vm127, %v2735, 0
    %2742 = vmatprep.subr.bf16.mxu0 0
    %2743 = vmatpush1.bf16.xpose.msra.mxu0 0
    %2744 = vmatprep.subr.bf16.mxu0 0
    %2745 = vmatpush1.bf16.xpose.msra.mxu0 0
    %2746 = vmatprep.subr.bf16.mxu0 0
    %2747 = vmatpush1.bf16.xpose.msra.mxu0 0
    %2748 = vmatprep.subr.bf16.mxu0 0
    %2749 = vmatpush1.bf16.xpose.msra.mxu0 0
    %2750 = vmatprep.subr.bf16.mxu0 0
    %2751 = vmatpush1.bf16.xpose.msra.mxu0 0
    %2752 = vmatprep.subr.bf16.mxu0 0
    %2753 = vmatpush1.bf16.xpose.msra.mxu0 0
    %2754 = vmatprep.subr.bf16.mxu0 0
    %2755 = vmatpush1.bf16.xpose.msra.mxu0 0
    %2756 = vmatprep.subr.bf16.mxu0 0
    %2757 = vmatpush1.bf16.xpose.msra.mxu0 %v2740
    %2758 = vmatprep.subr.bf16.mxu0 0
    %2759 = vmatpush2.bf16.xpose.msra.mxu0 0
    %2760 = vmatprep.subr.bf16.mxu0 0
    %2761 = vmatpush2.bf16.xpose.msra.mxu0 0
    %2762 = vmatprep.subr.bf16.mxu0 0
    %2763 = vmatpush2.bf16.xpose.msra.mxu0 0
    %2764 = vmatprep.subr.bf16.mxu0 0
    %2765 = vmatpush2.bf16.xpose.msra.mxu0 0
    %2766 = vmatprep.subr.bf16.mxu0 0
    %2767 = vmatpush2.bf16.xpose.msra.mxu0 0
    %2768 = vmatprep.subr.bf16.mxu0 0
    %2769 = vmatpush2.bf16.xpose.msra.mxu0 0
    %2770 = vmatprep.subr.bf16.mxu0 0
    %2771 = vmatpush2.bf16.xpose.msra.mxu0 0
    %2772 = vmatprep.subr.bf16.mxu0 0
    %2773 = vmatpush2.bf16.xpose.msra.mxu0 0
    %2774 = vmatprep.mubr.bf16.mxu0 0
    %2775 = vmatmul.mubr.bf16.gmra.mxu0 %v2737
    %v2776 = vpop.f32.mrf.mxu0
    %v2777 = vadd.f32 0.0, %v2776
    %v2778 = vpop.f32.mrf.mxu0
    %v2779 = vpop.f32.mrf.mxu0
    %v2780 = vpop.f32.mrf.mxu0
    %2781 = vdwg.mxu0
    %2782 = vrot.lane.b32.xlu0 %v676, 112
    %v2783 = vpop.permute.xlu0 %2782
    %2784 = vrot.lane.b32.xlu0 %v676, 80
    %v2785 = vpop.permute.xlu0 %2784
    %v2787 = vsel %vm127, %v2783, 0
    %v2790 = vsel %vm127, %v2785, 0
    %2792 = vmatprep.subr.bf16.mxu0 0
    %2793 = vmatpush1.bf16.xpose.msra.mxu0 0
    %2794 = vmatprep.subr.bf16.mxu0 0
    %2795 = vmatpush1.bf16.xpose.msra.mxu0 0
    %2796 = vmatprep.subr.bf16.mxu0 0
    %2797 = vmatpush1.bf16.xpose.msra.mxu0 0
    %2798 = vmatprep.subr.bf16.mxu0 0
    %2799 = vmatpush1.bf16.xpose.msra.mxu0 0
    %2800 = vmatprep.subr.bf16.mxu0 0
    %2801 = vmatpush1.bf16.xpose.msra.mxu0 0
    %2802 = vmatprep.subr.bf16.mxu0 0
    %2803 = vmatpush1.bf16.xpose.msra.mxu0 0
    %2804 = vmatprep.subr.bf16.mxu0 0
    %2805 = vmatpush1.bf16.xpose.msra.mxu0 0
    %2806 = vmatprep.subr.bf16.mxu0 0
    %2807 = vmatpush1.bf16.xpose.msra.mxu0 %v2790
    %2808 = vmatprep.subr.bf16.mxu0 0
    %2809 = vmatpush2.bf16.xpose.msra.mxu0 0
    %2810 = vmatprep.subr.bf16.mxu0 0
    %2811 = vmatpush2.bf16.xpose.msra.mxu0 0
    %2812 = vmatprep.subr.bf16.mxu0 0
    %2813 = vmatpush2.bf16.xpose.msra.mxu0 0
    %2814 = vmatprep.subr.bf16.mxu0 0
    %2815 = vmatpush2.bf16.xpose.msra.mxu0 0
    %2816 = vmatprep.subr.bf16.mxu0 0
    %2817 = vmatpush2.bf16.xpose.msra.mxu0 0
    %2818 = vmatprep.subr.bf16.mxu0 0
    %2819 = vmatpush2.bf16.xpose.msra.mxu0 0
    %2820 = vmatprep.subr.bf16.mxu0 0
    %2821 = vmatpush2.bf16.xpose.msra.mxu0 0
    %2822 = vmatprep.subr.bf16.mxu0 0
    %2823 = vmatpush2.bf16.xpose.msra.mxu0 0
    %2824 = vmatprep.mubr.bf16.mxu0 0
    %2825 = vmatmul.mubr.bf16.gmra.mxu0 %v2787
    %v2826 = vpop.f32.mrf.mxu0
    %v2827 = vadd.f32 0.0, %v2826
    %v2828 = vpop.f32.mrf.mxu0
    %v2829 = vpop.f32.mrf.mxu0
    %v2830 = vpop.f32.mrf.mxu0
    %2831 = vdwg.mxu0
    %2832 = vrot.lane.b32.xlu0 %v677, 112
    %v2833 = vpop.permute.xlu0 %2832
    %2834 = vrot.lane.b32.xlu0 %v677, 80
    %v2835 = vpop.permute.xlu0 %2834
    %v2837 = vsel %vm127, %v2833, 0
    %v2840 = vsel %vm127, %v2835, 0
    %2842 = vmatprep.subr.bf16.mxu0 0
    %2843 = vmatpush1.bf16.xpose.msra.mxu0 0
    %2844 = vmatprep.subr.bf16.mxu0 0
    %2845 = vmatpush1.bf16.xpose.msra.mxu0 0
    %2846 = vmatprep.subr.bf16.mxu0 0
    %2847 = vmatpush1.bf16.xpose.msra.mxu0 0
    %2848 = vmatprep.subr.bf16.mxu0 0
    %2849 = vmatpush1.bf16.xpose.msra.mxu0 0
    %2850 = vmatprep.subr.bf16.mxu0 0
    %2851 = vmatpush1.bf16.xpose.msra.mxu0 0
    %2852 = vmatprep.subr.bf16.mxu0 0
    %2853 = vmatpush1.bf16.xpose.msra.mxu0 0
    %2854 = vmatprep.subr.bf16.mxu0 0
    %2855 = vmatpush1.bf16.xpose.msra.mxu0 0
    %2856 = vmatprep.subr.bf16.mxu0 0
    %2857 = vmatpush1.bf16.xpose.msra.mxu0 %v2840
    %2858 = vmatprep.subr.bf16.mxu0 0
    %2859 = vmatpush2.bf16.xpose.msra.mxu0 0
    %2860 = vmatprep.subr.bf16.mxu0 0
    %2861 = vmatpush2.bf16.xpose.msra.mxu0 0
    %2862 = vmatprep.subr.bf16.mxu0 0
    %2863 = vmatpush2.bf16.xpose.msra.mxu0 0
    %2864 = vmatprep.subr.bf16.mxu0 0
    %2865 = vmatpush2.bf16.xpose.msra.mxu0 0
    %2866 = vmatprep.subr.bf16.mxu0 0
    %2867 = vmatpush2.bf16.xpose.msra.mxu0 0
    %2868 = vmatprep.subr.bf16.mxu0 0
    %2869 = vmatpush2.bf16.xpose.msra.mxu0 0
    %2870 = vmatprep.subr.bf16.mxu0 0
    %2871 = vmatpush2.bf16.xpose.msra.mxu0 0
    %2872 = vmatprep.subr.bf16.mxu0 0
    %2873 = vmatpush2.bf16.xpose.msra.mxu0 0
    %2874 = vmatprep.mubr.bf16.mxu0 0
    %2875 = vmatmul.mubr.bf16.gmra.mxu0 %v2837
    %v2876 = vpop.f32.mrf.mxu0
    %v2877 = vadd.f32 0.0, %v2876
    %v2878 = vpop.f32.mrf.mxu0
    %v2879 = vpop.f32.mrf.mxu0
    %v2880 = vpop.f32.mrf.mxu0
    %2881 = vdwg.mxu0
    %v2882 = vsel %vm1070, %v2527, -inf
    %2883 = vmax.xlane.f32.xlu0 %v2882
    %v2884 = vpop.xlane.xlu0 %2883
    %v2885 = vsel %vm1070, %v2577, -inf
    %2886 = vmax.xlane.f32.xlu0 %v2885
    %v2887 = vpop.xlane.xlu0 %2886
    %v2888 = vsel %vm1070, %v2627, -inf
    %2889 = vmax.xlane.f32.xlu0 %v2888
    %v2890 = vpop.xlane.xlu0 %2889
    %v2891 = vsel %vm1070, %v2677, -inf
    %2892 = vmax.xlane.f32.xlu0 %v2891
    %v2893 = vpop.xlane.xlu0 %2892
    %v2894 = vsel %vm1070, %v2727, -inf
    %2895 = vmax.xlane.f32.xlu0 %v2894
    %v2896 = vpop.xlane.xlu0 %2895
    %v2897 = vsel %vm1070, %v2777, -inf
    %2898 = vmax.xlane.f32.xlu0 %v2897
    %v2899 = vpop.xlane.xlu0 %2898
    %v2900 = vsel %vm1070, %v2827, -inf
    %2901 = vmax.xlane.f32.xlu0 %v2900
    %v2902 = vpop.xlane.xlu0 %2901
    %v2903 = vsel %vm1070, %v2877, -inf
    %2904 = vmax.xlane.f32.xlu0 %v2903
    %v2905 = vpop.xlane.xlu0 %2904
    %v2906 = vsub.f32 %v2527, %v2884
    %v2907 = vsub.f32 %v2577, %v2887
    %v2908 = vsub.f32 %v2627, %v2890
    %v2909 = vsub.f32 %v2677, %v2893
    %v2910 = vsub.f32 %v2727, %v2896
    %v2911 = vsub.f32 %v2777, %v2899
    %v2912 = vsub.f32 %v2827, %v2902
    %v2913 = vsub.f32 %v2877, %v2905
    %v2914 = vmul.f32 %v2906, 1.442695
    %v2915 = vpow.pop %v2914
    %v2916 = vmul.f32 %v2907, 1.442695
    %v2917 = vpow.pop %v2916
    %v2918 = vmul.f32 %v2908, 1.442695
    %v2919 = vpow.pop %v2918
    %v2920 = vmul.f32 %v2909, 1.442695
    %v2921 = vpow.pop %v2920
    %v2922 = vmul.f32 %v2910, 1.442695
    %v2923 = vpow.pop %v2922
    %v2924 = vmul.f32 %v2911, 1.442695
    %v2925 = vpow.pop %v2924
    %v2926 = vmul.f32 %v2912, 1.442695
    %v2927 = vpow.pop %v2926
    %v2928 = vmul.f32 %v2913, 1.442695
    %v2929 = vpow.pop %v2928
    %v2930 = vsel %vm1070, %v2915, 0.0
    %2931 = vadd.xlane.f32.xlu0 %v2930
    %v2932 = vpop.xlane.xlu0 %2931
    %v2933 = vsel %vm1070, %v2917, 0.0
    %2934 = vadd.xlane.f32.xlu0 %v2933
    %v2935 = vpop.xlane.xlu0 %2934
    %v2936 = vsel %vm1070, %v2919, 0.0
    %2937 = vadd.xlane.f32.xlu0 %v2936
    %v2938 = vpop.xlane.xlu0 %2937
    %v2939 = vsel %vm1070, %v2921, 0.0
    %2940 = vadd.xlane.f32.xlu0 %v2939
    %v2941 = vpop.xlane.xlu0 %2940
    %v2942 = vsel %vm1070, %v2923, 0.0
    %2943 = vadd.xlane.f32.xlu0 %v2942
    %v2944 = vpop.xlane.xlu0 %2943
    %v2945 = vsel %vm1070, %v2925, 0.0
    %2946 = vadd.xlane.f32.xlu0 %v2945
    %v2947 = vpop.xlane.xlu0 %2946
    %v2948 = vsel %vm1070, %v2927, 0.0
    %2949 = vadd.xlane.f32.xlu0 %v2948
    %v2950 = vpop.xlane.xlu0 %2949
    %v2951 = vsel %vm1070, %v2929, 0.0
    %2952 = vadd.xlane.f32.xlu0 %v2951
    %v2953 = vpop.xlane.xlu0 %2952
    %v2954 = vrcp.pop %v2932
    %v2955 = vrcp.pop %v2935
    %v2956 = vrcp.pop %v2938
    %v2957 = vrcp.pop %v2941
    %v2958 = vrcp.pop %v2944
    %v2959 = vrcp.pop %v2947
    %v2960 = vrcp.pop %v2950
    %v2961 = vrcp.pop %v2953
    %v2962 = vmul.f32 %v2915, %v2954
    %v2963 = vmul.f32 %v2917, %v2955
    %v2964 = vmul.f32 %v2919, %v2956
    %v2965 = vmul.f32 %v2921, %v2957
    %v2966 = vmul.f32 %v2923, %v2958
    %v2967 = vmul.f32 %v2925, %v2959
    %v2968 = vmul.f32 %v2927, %v2960
    %v2969 = vmul.f32 %v2929, %v2961
    %v2970 = vpack.c.bf16 %v2962, %v2962
    %v2971 = vpack.c.bf16 %v2963, %v2963
    %v2972 = vpack.c.bf16 %v2964, %v2964
    %v2973 = vpack.c.bf16 %v2965, %v2965
    %v2974 = vpack.c.bf16 %v2966, %v2966
    %v2975 = vpack.c.bf16 %v2967, %v2967
    %v2976 = vpack.c.bf16 %v2968, %v2968
    %v2977 = vpack.c.bf16 %v2969, %v2969
    %2978 = vrot.lane.b32.xlu0 %v670, 48
    %v2979 = vpop.permute.xlu0 %2978
    %v2981 = vsel %vm365, %v2970, 0
    %v2984 = vsel %vm1172, %v2979, 0
    %2986 = vmatprep.subr.bf16.mxu0 0
    %2987 = vmatpush1.bf16.msra.mxu0 0
    %2988 = vmatprep.subr.bf16.mxu0 0
    %2989 = vmatpush1.bf16.msra.mxu0 0
    %2990 = vmatprep.subr.bf16.mxu0 0
    %2991 = vmatpush1.bf16.msra.mxu0 0
    %2992 = vmatprep.subr.bf16.mxu0 0
    %2993 = vmatpush1.bf16.msra.mxu0 0
    %2994 = vmatprep.subr.bf16.mxu0 0
    %2995 = vmatpush1.bf16.msra.mxu0 0
    %2996 = vmatprep.subr.bf16.mxu0 0
    %2997 = vmatpush1.bf16.msra.mxu0 0
    %2998 = vmatprep.subr.bf16.mxu0 0
    %2999 = vmatpush1.bf16.msra.mxu0 0
    %3000 = vmatprep.subr.bf16.mxu0 0
    %3001 = vmatpush1.bf16.msra.mxu0 %v2984
    %3002 = vmatprep.subr.bf16.mxu0 0
    %3003 = vmatpush2.bf16.msra.mxu0 0
    %3004 = vmatprep.subr.bf16.mxu0 0
    %3005 = vmatpush2.bf16.msra.mxu0 0
    %3006 = vmatprep.subr.bf16.mxu0 0
    %3007 = vmatpush2.bf16.msra.mxu0 0
    %3008 = vmatprep.subr.bf16.mxu0 0
    %3009 = vmatpush2.bf16.msra.mxu0 0
    %3010 = vmatprep.subr.bf16.mxu0 0
    %3011 = vmatpush2.bf16.msra.mxu0 0
    %3012 = vmatprep.subr.bf16.mxu0 0
    %3013 = vmatpush2.bf16.msra.mxu0 0
    %3014 = vmatprep.subr.bf16.mxu0 0
    %3015 = vmatpush2.bf16.msra.mxu0 0
    %3016 = vmatprep.subr.bf16.mxu0 0
    %3017 = vmatpush2.bf16.msra.mxu0 0
    %3018 = vmatprep.mubr.bf16.mxu0 0
    %3019 = vmatmul.mubr.bf16.gmra.mxu0 %v2981
    %v3020 = vpop.f32.mrf.mxu0
    %v3021 = vadd.f32 0.0, %v3020
    %v3022 = vpop.f32.mrf.mxu0
    %v3023 = vpop.f32.mrf.mxu0
    %v3024 = vpop.f32.mrf.mxu0
    %3025 = vdwg.mxu0
    %3026 = vrot.lane.b32.xlu0 %v671, 48
    %v3027 = vpop.permute.xlu0 %3026
    %v3029 = vsel %vm365, %v2971, 0
    %v3032 = vsel %vm1172, %v3027, 0
    %3034 = vmatprep.subr.bf16.mxu0 0
    %3035 = vmatpush1.bf16.msra.mxu0 0
    %3036 = vmatprep.subr.bf16.mxu0 0
    %3037 = vmatpush1.bf16.msra.mxu0 0
    %3038 = vmatprep.subr.bf16.mxu0 0
    %3039 = vmatpush1.bf16.msra.mxu0 0
    %3040 = vmatprep.subr.bf16.mxu0 0
    %3041 = vmatpush1.bf16.msra.mxu0 0
    %3042 = vmatprep.subr.bf16.mxu0 0
    %3043 = vmatpush1.bf16.msra.mxu0 0
    %3044 = vmatprep.subr.bf16.mxu0 0
    %3045 = vmatpush1.bf16.msra.mxu0 0
    %3046 = vmatprep.subr.bf16.mxu0 0
    %3047 = vmatpush1.bf16.msra.mxu0 0
    %3048 = vmatprep.subr.bf16.mxu0 0
    %3049 = vmatpush1.bf16.msra.mxu0 %v3032
    %3050 = vmatprep.subr.bf16.mxu0 0
    %3051 = vmatpush2.bf16.msra.mxu0 0
    %3052 = vmatprep.subr.bf16.mxu0 0
    %3053 = vmatpush2.bf16.msra.mxu0 0
    %3054 = vmatprep.subr.bf16.mxu0 0
    %3055 = vmatpush2.bf16.msra.mxu0 0
    %3056 = vmatprep.subr.bf16.mxu0 0
    %3057 = vmatpush2.bf16.msra.mxu0 0
    %3058 = vmatprep.subr.bf16.mxu0 0
    %3059 = vmatpush2.bf16.msra.mxu0 0
    %3060 = vmatprep.subr.bf16.mxu0 0
    %3061 = vmatpush2.bf16.msra.mxu0 0
    %3062 = vmatprep.subr.bf16.mxu0 0
    %3063 = vmatpush2.bf16.msra.mxu0 0
    %3064 = vmatprep.subr.bf16.mxu0 0
    %3065 = vmatpush2.bf16.msra.mxu0 0
    %3066 = vmatprep.mubr.bf16.mxu0 0
    %3067 = vmatmul.mubr.bf16.gmra.mxu0 %v3029
    %v3068 = vpop.f32.mrf.mxu0
    %v3069 = vadd.f32 0.0, %v3068
    %v3070 = vpop.f32.mrf.mxu0
    %v3071 = vpop.f32.mrf.mxu0
    %v3072 = vpop.f32.mrf.mxu0
    %3073 = vdwg.mxu0
    %3074 = vrot.lane.b32.xlu0 %v672, 48
    %v3075 = vpop.permute.xlu0 %3074
    %v3077 = vsel %vm365, %v2972, 0
    %v3080 = vsel %vm1172, %v3075, 0
    %3082 = vmatprep.subr.bf16.mxu0 0
    %3083 = vmatpush1.bf16.msra.mxu0 0
    %3084 = vmatprep.subr.bf16.mxu0 0
    %3085 = vmatpush1.bf16.msra.mxu0 0
    %3086 = vmatprep.subr.bf16.mxu0 0
    %3087 = vmatpush1.bf16.msra.mxu0 0
    %3088 = vmatprep.subr.bf16.mxu0 0
    %3089 = vmatpush1.bf16.msra.mxu0 0
    %3090 = vmatprep.subr.bf16.mxu0 0
    %3091 = vmatpush1.bf16.msra.mxu0 0
    %3092 = vmatprep.subr.bf16.mxu0 0
    %3093 = vmatpush1.bf16.msra.mxu0 0
    %3094 = vmatprep.subr.bf16.mxu0 0
    %3095 = vmatpush1.bf16.msra.mxu0 0
    %3096 = vmatprep.subr.bf16.mxu0 0
    %3097 = vmatpush1.bf16.msra.mxu0 %v3080
    %3098 = vmatprep.subr.bf16.mxu0 0
    %3099 = vmatpush2.bf16.msra.mxu0 0
    %3100 = vmatprep.subr.bf16.mxu0 0
    %3101 = vmatpush2.bf16.msra.mxu0 0
    %3102 = vmatprep.subr.bf16.mxu0 0
    %3103 = vmatpush2.bf16.msra.mxu0 0
    %3104 = vmatprep.subr.bf16.mxu0 0
    %3105 = vmatpush2.bf16.msra.mxu0 0
    %3106 = vmatprep.subr.bf16.mxu0 0
    %3107 = vmatpush2.bf16.msra.mxu0 0
    %3108 = vmatprep.subr.bf16.mxu0 0
    %3109 = vmatpush2.bf16.msra.mxu0 0
    %3110 = vmatprep.subr.bf16.mxu0 0
    %3111 = vmatpush2.bf16.msra.mxu0 0
    %3112 = vmatprep.subr.bf16.mxu0 0
    %3113 = vmatpush2.bf16.msra.mxu0 0
    %3114 = vmatprep.mubr.bf16.mxu0 0
    %3115 = vmatmul.mubr.bf16.gmra.mxu0 %v3077
    %v3116 = vpop.f32.mrf.mxu0
    %v3117 = vadd.f32 0.0, %v3116
    %v3118 = vpop.f32.mrf.mxu0
    %v3119 = vpop.f32.mrf.mxu0
    %v3120 = vpop.f32.mrf.mxu0
    %3121 = vdwg.mxu0
    %3122 = vrot.lane.b32.xlu0 %v673, 48
    %v3123 = vpop.permute.xlu0 %3122
    %v3125 = vsel %vm365, %v2973, 0
    %v3128 = vsel %vm1172, %v3123, 0
    %3130 = vmatprep.subr.bf16.mxu0 0
    %3131 = vmatpush1.bf16.msra.mxu0 0
    %3132 = vmatprep.subr.bf16.mxu0 0
    %3133 = vmatpush1.bf16.msra.mxu0 0
    %3134 = vmatprep.subr.bf16.mxu0 0
    %3135 = vmatpush1.bf16.msra.mxu0 0
    %3136 = vmatprep.subr.bf16.mxu0 0
    %3137 = vmatpush1.bf16.msra.mxu0 0
    %3138 = vmatprep.subr.bf16.mxu0 0
    %3139 = vmatpush1.bf16.msra.mxu0 0
    %3140 = vmatprep.subr.bf16.mxu0 0
    %3141 = vmatpush1.bf16.msra.mxu0 0
    %3142 = vmatprep.subr.bf16.mxu0 0
    %3143 = vmatpush1.bf16.msra.mxu0 0
    %3144 = vmatprep.subr.bf16.mxu0 0
    %3145 = vmatpush1.bf16.msra.mxu0 %v3128
    %3146 = vmatprep.subr.bf16.mxu0 0
    %3147 = vmatpush2.bf16.msra.mxu0 0
    %3148 = vmatprep.subr.bf16.mxu0 0
    %3149 = vmatpush2.bf16.msra.mxu0 0
    %3150 = vmatprep.subr.bf16.mxu0 0
    %3151 = vmatpush2.bf16.msra.mxu0 0
    %3152 = vmatprep.subr.bf16.mxu0 0
    %3153 = vmatpush2.bf16.msra.mxu0 0
    %3154 = vmatprep.subr.bf16.mxu0 0
    %3155 = vmatpush2.bf16.msra.mxu0 0
    %3156 = vmatprep.subr.bf16.mxu0 0
    %3157 = vmatpush2.bf16.msra.mxu0 0
    %3158 = vmatprep.subr.bf16.mxu0 0
    %3159 = vmatpush2.bf16.msra.mxu0 0
    %3160 = vmatprep.subr.bf16.mxu0 0
    %3161 = vmatpush2.bf16.msra.mxu0 0
    %3162 = vmatprep.mubr.bf16.mxu0 0
    %3163 = vmatmul.mubr.bf16.gmra.mxu0 %v3125
    %v3164 = vpop.f32.mrf.mxu0
    %v3165 = vadd.f32 0.0, %v3164
    %v3166 = vpop.f32.mrf.mxu0
    %v3167 = vpop.f32.mrf.mxu0
    %v3168 = vpop.f32.mrf.mxu0
    %3169 = vdwg.mxu0
    %3170 = vrot.lane.b32.xlu0 %v674, 48
    %v3171 = vpop.permute.xlu0 %3170
    %v3173 = vsel %vm365, %v2974, 0
    %v3176 = vsel %vm1172, %v3171, 0
    %3178 = vmatprep.subr.bf16.mxu0 0
    %3179 = vmatpush1.bf16.msra.mxu0 0
    %3180 = vmatprep.subr.bf16.mxu0 0
    %3181 = vmatpush1.bf16.msra.mxu0 0
    %3182 = vmatprep.subr.bf16.mxu0 0
    %3183 = vmatpush1.bf16.msra.mxu0 0
    %3184 = vmatprep.subr.bf16.mxu0 0
    %3185 = vmatpush1.bf16.msra.mxu0 0
    %3186 = vmatprep.subr.bf16.mxu0 0
    %3187 = vmatpush1.bf16.msra.mxu0 0
    %3188 = vmatprep.subr.bf16.mxu0 0
    %3189 = vmatpush1.bf16.msra.mxu0 0
    %3190 = vmatprep.subr.bf16.mxu0 0
    %3191 = vmatpush1.bf16.msra.mxu0 0
    %3192 = vmatprep.subr.bf16.mxu0 0
    %3193 = vmatpush1.bf16.msra.mxu0 %v3176
    %3194 = vmatprep.subr.bf16.mxu0 0
    %3195 = vmatpush2.bf16.msra.mxu0 0
    %3196 = vmatprep.subr.bf16.mxu0 0
    %3197 = vmatpush2.bf16.msra.mxu0 0
    %3198 = vmatprep.subr.bf16.mxu0 0
    %3199 = vmatpush2.bf16.msra.mxu0 0
    %3200 = vmatprep.subr.bf16.mxu0 0
    %3201 = vmatpush2.bf16.msra.mxu0 0
    %3202 = vmatprep.subr.bf16.mxu0 0
    %3203 = vmatpush2.bf16.msra.mxu0 0
    %3204 = vmatprep.subr.bf16.mxu0 0
    %3205 = vmatpush2.bf16.msra.mxu0 0
    %3206 = vmatprep.subr.bf16.mxu0 0
    %3207 = vmatpush2.bf16.msra.mxu0 0
    %3208 = vmatprep.subr.bf16.mxu0 0
    %3209 = vmatpush2.bf16.msra.mxu0 0
    %3210 = vmatprep.mubr.bf16.mxu0 0
    %3211 = vmatmul.mubr.bf16.gmra.mxu0 %v3173
    %v3212 = vpop.f32.mrf.mxu0
    %v3213 = vadd.f32 0.0, %v3212
    %v3214 = vpop.f32.mrf.mxu0
    %v3215 = vpop.f32.mrf.mxu0
    %v3216 = vpop.f32.mrf.mxu0
    %3217 = vdwg.mxu0
    %3218 = vrot.lane.b32.xlu0 %v675, 48
    %v3219 = vpop.permute.xlu0 %3218
    %v3221 = vsel %vm365, %v2975, 0
    %v3224 = vsel %vm1172, %v3219, 0
    %3226 = vmatprep.subr.bf16.mxu0 0
    %3227 = vmatpush1.bf16.msra.mxu0 0
    %3228 = vmatprep.subr.bf16.mxu0 0
    %3229 = vmatpush1.bf16.msra.mxu0 0
    %3230 = vmatprep.subr.bf16.mxu0 0
    %3231 = vmatpush1.bf16.msra.mxu0 0
    %3232 = vmatprep.subr.bf16.mxu0 0
    %3233 = vmatpush1.bf16.msra.mxu0 0
    %3234 = vmatprep.subr.bf16.mxu0 0
    %3235 = vmatpush1.bf16.msra.mxu0 0
    %3236 = vmatprep.subr.bf16.mxu0 0
    %3237 = vmatpush1.bf16.msra.mxu0 0
    %3238 = vmatprep.subr.bf16.mxu0 0
    %3239 = vmatpush1.bf16.msra.mxu0 0
    %3240 = vmatprep.subr.bf16.mxu0 0
    %3241 = vmatpush1.bf16.msra.mxu0 %v3224
    %3242 = vmatprep.subr.bf16.mxu0 0
    %3243 = vmatpush2.bf16.msra.mxu0 0
    %3244 = vmatprep.subr.bf16.mxu0 0
    %3245 = vmatpush2.bf16.msra.mxu0 0
    %3246 = vmatprep.subr.bf16.mxu0 0
    %3247 = vmatpush2.bf16.msra.mxu0 0
    %3248 = vmatprep.subr.bf16.mxu0 0
    %3249 = vmatpush2.bf16.msra.mxu0 0
    %3250 = vmatprep.subr.bf16.mxu0 0
    %3251 = vmatpush2.bf16.msra.mxu0 0
    %3252 = vmatprep.subr.bf16.mxu0 0
    %3253 = vmatpush2.bf16.msra.mxu0 0
    %3254 = vmatprep.subr.bf16.mxu0 0
    %3255 = vmatpush2.bf16.msra.mxu0 0
    %3256 = vmatprep.subr.bf16.mxu0 0
    %3257 = vmatpush2.bf16.msra.mxu0 0
    %3258 = vmatprep.mubr.bf16.mxu0 0
    %3259 = vmatmul.mubr.bf16.gmra.mxu0 %v3221
    %v3260 = vpop.f32.mrf.mxu0
    %v3261 = vadd.f32 0.0, %v3260
    %v3262 = vpop.f32.mrf.mxu0
    %v3263 = vpop.f32.mrf.mxu0
    %v3264 = vpop.f32.mrf.mxu0
    %3265 = vdwg.mxu0
    %3266 = vrot.lane.b32.xlu0 %v676, 48
    %v3267 = vpop.permute.xlu0 %3266
    %v3269 = vsel %vm365, %v2976, 0
    %v3272 = vsel %vm1172, %v3267, 0
    %3274 = vmatprep.subr.bf16.mxu0 0
    %3275 = vmatpush1.bf16.msra.mxu0 0
    %3276 = vmatprep.subr.bf16.mxu0 0
    %3277 = vmatpush1.bf16.msra.mxu0 0
    %3278 = vmatprep.subr.bf16.mxu0 0
    %3279 = vmatpush1.bf16.msra.mxu0 0
    %3280 = vmatprep.subr.bf16.mxu0 0
    %3281 = vmatpush1.bf16.msra.mxu0 0
    %3282 = vmatprep.subr.bf16.mxu0 0
    %3283 = vmatpush1.bf16.msra.mxu0 0
    %3284 = vmatprep.subr.bf16.mxu0 0
    %3285 = vmatpush1.bf16.msra.mxu0 0
    %3286 = vmatprep.subr.bf16.mxu0 0
    %3287 = vmatpush1.bf16.msra.mxu0 0
    %3288 = vmatprep.subr.bf16.mxu0 0
    %3289 = vmatpush1.bf16.msra.mxu0 %v3272
    %3290 = vmatprep.subr.bf16.mxu0 0
    %3291 = vmatpush2.bf16.msra.mxu0 0
    %3292 = vmatprep.subr.bf16.mxu0 0
    %3293 = vmatpush2.bf16.msra.mxu0 0
    %3294 = vmatprep.subr.bf16.mxu0 0
    %3295 = vmatpush2.bf16.msra.mxu0 0
    %3296 = vmatprep.subr.bf16.mxu0 0
    %3297 = vmatpush2.bf16.msra.mxu0 0
    %3298 = vmatprep.subr.bf16.mxu0 0
    %3299 = vmatpush2.bf16.msra.mxu0 0
    %3300 = vmatprep.subr.bf16.mxu0 0
    %3301 = vmatpush2.bf16.msra.mxu0 0
    %3302 = vmatprep.subr.bf16.mxu0 0
    %3303 = vmatpush2.bf16.msra.mxu0 0
    %3304 = vmatprep.subr.bf16.mxu0 0
    %3305 = vmatpush2.bf16.msra.mxu0 0
    %3306 = vmatprep.mubr.bf16.mxu0 0
    %3307 = vmatmul.mubr.bf16.gmra.mxu0 %v3269
    %v3308 = vpop.f32.mrf.mxu0
    %v3309 = vadd.f32 0.0, %v3308
    %v3310 = vpop.f32.mrf.mxu0
    %v3311 = vpop.f32.mrf.mxu0
    %v3312 = vpop.f32.mrf.mxu0
    %3313 = vdwg.mxu0
    %3314 = vrot.lane.b32.xlu0 %v677, 48
    %v3315 = vpop.permute.xlu0 %3314
    %v3317 = vsel %vm365, %v2977, 0
    %v3320 = vsel %vm1172, %v3315, 0
    %3322 = vmatprep.subr.bf16.mxu0 0
    %3323 = vmatpush1.bf16.msra.mxu0 0
    %3324 = vmatprep.subr.bf16.mxu0 0
    %3325 = vmatpush1.bf16.msra.mxu0 0
    %3326 = vmatprep.subr.bf16.mxu0 0
    %3327 = vmatpush1.bf16.msra.mxu0 0
    %3328 = vmatprep.subr.bf16.mxu0 0
    %3329 = vmatpush1.bf16.msra.mxu0 0
    %3330 = vmatprep.subr.bf16.mxu0 0
    %3331 = vmatpush1.bf16.msra.mxu0 0
    %3332 = vmatprep.subr.bf16.mxu0 0
    %3333 = vmatpush1.bf16.msra.mxu0 0
    %3334 = vmatprep.subr.bf16.mxu0 0
    %3335 = vmatpush1.bf16.msra.mxu0 0
    %3336 = vmatprep.subr.bf16.mxu0 0
    %3337 = vmatpush1.bf16.msra.mxu0 %v3320
    %3338 = vmatprep.subr.bf16.mxu0 0
    %3339 = vmatpush2.bf16.msra.mxu0 0
    %3340 = vmatprep.subr.bf16.mxu0 0
    %3341 = vmatpush2.bf16.msra.mxu0 0
    %3342 = vmatprep.subr.bf16.mxu0 0
    %3343 = vmatpush2.bf16.msra.mxu0 0
    %3344 = vmatprep.subr.bf16.mxu0 0
    %3345 = vmatpush2.bf16.msra.mxu0 0
    %3346 = vmatprep.subr.bf16.mxu0 0
    %3347 = vmatpush2.bf16.msra.mxu0 0
    %3348 = vmatprep.subr.bf16.mxu0 0
    %3349 = vmatpush2.bf16.msra.mxu0 0
    %3350 = vmatprep.subr.bf16.mxu0 0
    %3351 = vmatpush2.bf16.msra.mxu0 0
    %3352 = vmatprep.subr.bf16.mxu0 0
    %3353 = vmatpush2.bf16.msra.mxu0 0
    %3354 = vmatprep.mubr.bf16.mxu0 0
    %3355 = vmatmul.mubr.bf16.gmra.mxu0 %v3317
    %v3356 = vpop.f32.mrf.mxu0
    %v3357 = vadd.f32 0.0, %v3356
    %v3358 = vpop.f32.mrf.mxu0
    %v3359 = vpop.f32.mrf.mxu0
    %v3360 = vpop.f32.mrf.mxu0
    %3361 = vdwg.mxu0
    %3363 = vrot.lane.b32.xlu0 %v3021, 16
    %v3364 = vpop.permute.xlu0 %3363
    %vm3366 = vcmask 191616
    %3367 = vst.msk [vmem:[#allocation3] sm:$0xf] %vm3366, %v3364
    %3369 = vrot.lane.b32.xlu0 %v3069, 16
    %v3370 = vpop.permute.xlu0 %3369
    %3372 = vst.msk [vmem:[#allocation3 + $0x4] sm:$0xf] %vm3366, %v3370
    %3374 = vrot.lane.b32.xlu0 %v3117, 16
    %v3375 = vpop.permute.xlu0 %3374
    %3377 = vst.msk [vmem:[#allocation3 + $0x8] sm:$0xf] %vm3366, %v3375
    %3379 = vrot.lane.b32.xlu0 %v3165, 16
    %v3380 = vpop.permute.xlu0 %3379
    %3382 = vst.msk [vmem:[#allocation3 + $0xc] sm:$0xf] %vm3366, %v3380
    %3384 = vrot.lane.b32.xlu0 %v3213, 16
    %v3385 = vpop.permute.xlu0 %3384
    %3387 = vst.msk [vmem:[#allocation3 + $0x10] sm:$0xf] %vm3366, %v3385
    %3389 = vrot.lane.b32.xlu0 %v3261, 16
    %v3390 = vpop.permute.xlu0 %3389
    %3392 = vst.msk [vmem:[#allocation3 + $0x14] sm:$0xf] %vm3366, %v3390
    %3394 = vrot.lane.b32.xlu0 %v3309, 16
    %v3395 = vpop.permute.xlu0 %3394
    %3397 = vst.msk [vmem:[#allocation3 + $0x18] sm:$0xf] %vm3366, %v3395
    %3399 = vrot.lane.b32.xlu0 %v3357, 16
    %v3400 = vpop.permute.xlu0 %3399
    %3402 = vst.msk [vmem:[#allocation3 + $0x1c] sm:$0xf] %vm3366, %v3400
    %3403 = vrot.lane.b32.xlu0 %v670, 104
    %v3404 = vpop.permute.xlu0 %3403
    %3405 = vrot.lane.b32.xlu0 %v670, 72
    %v3406 = vpop.permute.xlu0 %3405
    %v3408 = vsel %vm127, %v3404, 0
    %v3411 = vsel %vm127, %v3406, 0
    %3413 = vmatprep.subr.bf16.mxu0 0
    %3414 = vmatpush1.bf16.xpose.msra.mxu0 0
    %3415 = vmatprep.subr.bf16.mxu0 0
    %3416 = vmatpush1.bf16.xpose.msra.mxu0 0
    %3417 = vmatprep.subr.bf16.mxu0 0
    %3418 = vmatpush1.bf16.xpose.msra.mxu0 0
    %3419 = vmatprep.subr.bf16.mxu0 0
    %3420 = vmatpush1.bf16.xpose.msra.mxu0 0
    %3421 = vmatprep.subr.bf16.mxu0 0
    %3422 = vmatpush1.bf16.xpose.msra.mxu0 0
    %3423 = vmatprep.subr.bf16.mxu0 0
    %3424 = vmatpush1.bf16.xpose.msra.mxu0 0
    %3425 = vmatprep.subr.bf16.mxu0 0
    %3426 = vmatpush1.bf16.xpose.msra.mxu0 0
    %3427 = vmatprep.subr.bf16.mxu0 0
    %3428 = vmatpush1.bf16.xpose.msra.mxu0 %v3411
    %3429 = vmatprep.subr.bf16.mxu0 0
    %3430 = vmatpush2.bf16.xpose.msra.mxu0 0
    %3431 = vmatprep.subr.bf16.mxu0 0
    %3432 = vmatpush2.bf16.xpose.msra.mxu0 0
    %3433 = vmatprep.subr.bf16.mxu0 0
    %3434 = vmatpush2.bf16.xpose.msra.mxu0 0
    %3435 = vmatprep.subr.bf16.mxu0 0
    %3436 = vmatpush2.bf16.xpose.msra.mxu0 0
    %3437 = vmatprep.subr.bf16.mxu0 0
    %3438 = vmatpush2.bf16.xpose.msra.mxu0 0
    %3439 = vmatprep.subr.bf16.mxu0 0
    %3440 = vmatpush2.bf16.xpose.msra.mxu0 0
    %3441 = vmatprep.subr.bf16.mxu0 0
    %3442 = vmatpush2.bf16.xpose.msra.mxu0 0
    %3443 = vmatprep.subr.bf16.mxu0 0
    %3444 = vmatpush2.bf16.xpose.msra.mxu0 0
    %3445 = vmatprep.mubr.bf16.mxu0 0
    %3446 = vmatmul.mubr.bf16.gmra.mxu0 %v3408
    %v3447 = vpop.f32.mrf.mxu0
    %v3448 = vadd.f32 0.0, %v3447
    %v3449 = vpop.f32.mrf.mxu0
    %v3450 = vpop.f32.mrf.mxu0
    %v3451 = vpop.f32.mrf.mxu0
    %3452 = vdwg.mxu0
    %3453 = vrot.lane.b32.xlu0 %v671, 104
    %v3454 = vpop.permute.xlu0 %3453
    %3455 = vrot.lane.b32.xlu0 %v671, 72
    %v3456 = vpop.permute.xlu0 %3455
    %v3458 = vsel %vm127, %v3454, 0
    %v3461 = vsel %vm127, %v3456, 0
    %3463 = vmatprep.subr.bf16.mxu0 0
    %3464 = vmatpush1.bf16.xpose.msra.mxu0 0
    %3465 = vmatprep.subr.bf16.mxu0 0
    %3466 = vmatpush1.bf16.xpose.msra.mxu0 0
    %3467 = vmatprep.subr.bf16.mxu0 0
    %3468 = vmatpush1.bf16.xpose.msra.mxu0 0
    %3469 = vmatprep.subr.bf16.mxu0 0
    %3470 = vmatpush1.bf16.xpose.msra.mxu0 0
    %3471 = vmatprep.subr.bf16.mxu0 0
    %3472 = vmatpush1.bf16.xpose.msra.mxu0 0
    %3473 = vmatprep.subr.bf16.mxu0 0
    %3474 = vmatpush1.bf16.xpose.msra.mxu0 0
    %3475 = vmatprep.subr.bf16.mxu0 0
    %3476 = vmatpush1.bf16.xpose.msra.mxu0 0
    %3477 = vmatprep.subr.bf16.mxu0 0
    %3478 = vmatpush1.bf16.xpose.msra.mxu0 %v3461
    %3479 = vmatprep.subr.bf16.mxu0 0
    %3480 = vmatpush2.bf16.xpose.msra.mxu0 0
    %3481 = vmatprep.subr.bf16.mxu0 0
    %3482 = vmatpush2.bf16.xpose.msra.mxu0 0
    %3483 = vmatprep.subr.bf16.mxu0 0
    %3484 = vmatpush2.bf16.xpose.msra.mxu0 0
    %3485 = vmatprep.subr.bf16.mxu0 0
    %3486 = vmatpush2.bf16.xpose.msra.mxu0 0
    %3487 = vmatprep.subr.bf16.mxu0 0
    %3488 = vmatpush2.bf16.xpose.msra.mxu0 0
    %3489 = vmatprep.subr.bf16.mxu0 0
    %3490 = vmatpush2.bf16.xpose.msra.mxu0 0
    %3491 = vmatprep.subr.bf16.mxu0 0
    %3492 = vmatpush2.bf16.xpose.msra.mxu0 0
    %3493 = vmatprep.subr.bf16.mxu0 0
    %3494 = vmatpush2.bf16.xpose.msra.mxu0 0
    %3495 = vmatprep.mubr.bf16.mxu0 0
    %3496 = vmatmul.mubr.bf16.gmra.mxu0 %v3458
    %v3497 = vpop.f32.mrf.mxu0
    %v3498 = vadd.f32 0.0, %v3497
    %v3499 = vpop.f32.mrf.mxu0
    %v3500 = vpop.f32.mrf.mxu0
    %v3501 = vpop.f32.mrf.mxu0
    %3502 = vdwg.mxu0
    %3503 = vrot.lane.b32.xlu0 %v672, 104
    %v3504 = vpop.permute.xlu0 %3503
    %3505 = vrot.lane.b32.xlu0 %v672, 72
    %v3506 = vpop.permute.xlu0 %3505
    %v3508 = vsel %vm127, %v3504, 0
    %v3511 = vsel %vm127, %v3506, 0
    %3513 = vmatprep.subr.bf16.mxu0 0
    %3514 = vmatpush1.bf16.xpose.msra.mxu0 0
    %3515 = vmatprep.subr.bf16.mxu0 0
    %3516 = vmatpush1.bf16.xpose.msra.mxu0 0
    %3517 = vmatprep.subr.bf16.mxu0 0
    %3518 = vmatpush1.bf16.xpose.msra.mxu0 0
    %3519 = vmatprep.subr.bf16.mxu0 0
    %3520 = vmatpush1.bf16.xpose.msra.mxu0 0
    %3521 = vmatprep.subr.bf16.mxu0 0
    %3522 = vmatpush1.bf16.xpose.msra.mxu0 0
    %3523 = vmatprep.subr.bf16.mxu0 0
    %3524 = vmatpush1.bf16.xpose.msra.mxu0 0
    %3525 = vmatprep.subr.bf16.mxu0 0
    %3526 = vmatpush1.bf16.xpose.msra.mxu0 0
    %3527 = vmatprep.subr.bf16.mxu0 0
    %3528 = vmatpush1.bf16.xpose.msra.mxu0 %v3511
    %3529 = vmatprep.subr.bf16.mxu0 0
    %3530 = vmatpush2.bf16.xpose.msra.mxu0 0
    %3531 = vmatprep.subr.bf16.mxu0 0
    %3532 = vmatpush2.bf16.xpose.msra.mxu0 0
    %3533 = vmatprep.subr.bf16.mxu0 0
    %3534 = vmatpush2.bf16.xpose.msra.mxu0 0
    %3535 = vmatprep.subr.bf16.mxu0 0
    %3536 = vmatpush2.bf16.xpose.msra.mxu0 0
    %3537 = vmatprep.subr.bf16.mxu0 0
    %3538 = vmatpush2.bf16.xpose.msra.mxu0 0
    %3539 = vmatprep.subr.bf16.mxu0 0
    %3540 = vmatpush2.bf16.xpose.msra.mxu0 0
    %3541 = vmatprep.subr.bf16.mxu0 0
    %3542 = vmatpush2.bf16.xpose.msra.mxu0 0
    %3543 = vmatprep.subr.bf16.mxu0 0
    %3544 = vmatpush2.bf16.xpose.msra.mxu0 0
    %3545 = vmatprep.mubr.bf16.mxu0 0
    %3546 = vmatmul.mubr.bf16.gmra.mxu0 %v3508
    %v3547 = vpop.f32.mrf.mxu0
    %v3548 = vadd.f32 0.0, %v3547
    %v3549 = vpop.f32.mrf.mxu0
    %v3550 = vpop.f32.mrf.mxu0
    %v3551 = vpop.f32.mrf.mxu0
    %3552 = vdwg.mxu0
    %3553 = vrot.lane.b32.xlu0 %v673, 104
    %v3554 = vpop.permute.xlu0 %3553
    %3555 = vrot.lane.b32.xlu0 %v673, 72
    %v3556 = vpop.permute.xlu0 %3555
    %v3558 = vsel %vm127, %v3554, 0
    %v3561 = vsel %vm127, %v3556, 0
    %3563 = vmatprep.subr.bf16.mxu0 0
    %3564 = vmatpush1.bf16.xpose.msra.mxu0 0
    %3565 = vmatprep.subr.bf16.mxu0 0
    %3566 = vmatpush1.bf16.xpose.msra.mxu0 0
    %3567 = vmatprep.subr.bf16.mxu0 0
    %3568 = vmatpush1.bf16.xpose.msra.mxu0 0
    %3569 = vmatprep.subr.bf16.mxu0 0
    %3570 = vmatpush1.bf16.xpose.msra.mxu0 0
    %3571 = vmatprep.subr.bf16.mxu0 0
    %3572 = vmatpush1.bf16.xpose.msra.mxu0 0
    %3573 = vmatprep.subr.bf16.mxu0 0
    %3574 = vmatpush1.bf16.xpose.msra.mxu0 0
    %3575 = vmatprep.subr.bf16.mxu0 0
    %3576 = vmatpush1.bf16.xpose.msra.mxu0 0
    %3577 = vmatprep.subr.bf16.mxu0 0
    %3578 = vmatpush1.bf16.xpose.msra.mxu0 %v3561
    %3579 = vmatprep.subr.bf16.mxu0 0
    %3580 = vmatpush2.bf16.xpose.msra.mxu0 0
    %3581 = vmatprep.subr.bf16.mxu0 0
    %3582 = vmatpush2.bf16.xpose.msra.mxu0 0
    %3583 = vmatprep.subr.bf16.mxu0 0
    %3584 = vmatpush2.bf16.xpose.msra.mxu0 0
    %3585 = vmatprep.subr.bf16.mxu0 0
    %3586 = vmatpush2.bf16.xpose.msra.mxu0 0
    %3587 = vmatprep.subr.bf16.mxu0 0
    %3588 = vmatpush2.bf16.xpose.msra.mxu0 0
    %3589 = vmatprep.subr.bf16.mxu0 0
    %3590 = vmatpush2.bf16.xpose.msra.mxu0 0
    %3591 = vmatprep.subr.bf16.mxu0 0
    %3592 = vmatpush2.bf16.xpose.msra.mxu0 0
    %3593 = vmatprep.subr.bf16.mxu0 0
    %3594 = vmatpush2.bf16.xpose.msra.mxu0 0
    %3595 = vmatprep.mubr.bf16.mxu0 0
    %3596 = vmatmul.mubr.bf16.gmra.mxu0 %v3558
    %v3597 = vpop.f32.mrf.mxu0
    %v3598 = vadd.f32 0.0, %v3597
    %v3599 = vpop.f32.mrf.mxu0
    %v3600 = vpop.f32.mrf.mxu0
    %v3601 = vpop.f32.mrf.mxu0
    %3602 = vdwg.mxu0
    %3603 = vrot.lane.b32.xlu0 %v674, 104
    %v3604 = vpop.permute.xlu0 %3603
    %3605 = vrot.lane.b32.xlu0 %v674, 72
    %v3606 = vpop.permute.xlu0 %3605
    %v3608 = vsel %vm127, %v3604, 0
    %v3611 = vsel %vm127, %v3606, 0
    %3613 = vmatprep.subr.bf16.mxu0 0
    %3614 = vmatpush1.bf16.xpose.msra.mxu0 0
    %3615 = vmatprep.subr.bf16.mxu0 0
    %3616 = vmatpush1.bf16.xpose.msra.mxu0 0
    %3617 = vmatprep.subr.bf16.mxu0 0
    %3618 = vmatpush1.bf16.xpose.msra.mxu0 0
    %3619 = vmatprep.subr.bf16.mxu0 0
    %3620 = vmatpush1.bf16.xpose.msra.mxu0 0
    %3621 = vmatprep.subr.bf16.mxu0 0
    %3622 = vmatpush1.bf16.xpose.msra.mxu0 0
    %3623 = vmatprep.subr.bf16.mxu0 0
    %3624 = vmatpush1.bf16.xpose.msra.mxu0 0
    %3625 = vmatprep.subr.bf16.mxu0 0
    %3626 = vmatpush1.bf16.xpose.msra.mxu0 0
    %3627 = vmatprep.subr.bf16.mxu0 0
    %3628 = vmatpush1.bf16.xpose.msra.mxu0 %v3611
    %3629 = vmatprep.subr.bf16.mxu0 0
    %3630 = vmatpush2.bf16.xpose.msra.mxu0 0
    %3631 = vmatprep.subr.bf16.mxu0 0
    %3632 = vmatpush2.bf16.xpose.msra.mxu0 0
    %3633 = vmatprep.subr.bf16.mxu0 0
    %3634 = vmatpush2.bf16.xpose.msra.mxu0 0
    %3635 = vmatprep.subr.bf16.mxu0 0
    %3636 = vmatpush2.bf16.xpose.msra.mxu0 0
    %3637 = vmatprep.subr.bf16.mxu0 0
    %3638 = vmatpush2.bf16.xpose.msra.mxu0 0
    %3639 = vmatprep.subr.bf16.mxu0 0
    %3640 = vmatpush2.bf16.xpose.msra.mxu0 0
    %3641 = vmatprep.subr.bf16.mxu0 0
    %3642 = vmatpush2.bf16.xpose.msra.mxu0 0
    %3643 = vmatprep.subr.bf16.mxu0 0
    %3644 = vmatpush2.bf16.xpose.msra.mxu0 0
    %3645 = vmatprep.mubr.bf16.mxu0 0
    %3646 = vmatmul.mubr.bf16.gmra.mxu0 %v3608
    %v3647 = vpop.f32.mrf.mxu0
    %v3648 = vadd.f32 0.0, %v3647
    %v3649 = vpop.f32.mrf.mxu0
    %v3650 = vpop.f32.mrf.mxu0
    %v3651 = vpop.f32.mrf.mxu0
    %3652 = vdwg.mxu0
    %3653 = vrot.lane.b32.xlu0 %v675, 104
    %v3654 = vpop.permute.xlu0 %3653
    %3655 = vrot.lane.b32.xlu0 %v675, 72
    %v3656 = vpop.permute.xlu0 %3655
    %v3658 = vsel %vm127, %v3654, 0
    %v3661 = vsel %vm127, %v3656, 0
    %3663 = vmatprep.subr.bf16.mxu0 0
    %3664 = vmatpush1.bf16.xpose.msra.mxu0 0
    %3665 = vmatprep.subr.bf16.mxu0 0
    %3666 = vmatpush1.bf16.xpose.msra.mxu0 0
    %3667 = vmatprep.subr.bf16.mxu0 0
    %3668 = vmatpush1.bf16.xpose.msra.mxu0 0
    %3669 = vmatprep.subr.bf16.mxu0 0
    %3670 = vmatpush1.bf16.xpose.msra.mxu0 0
    %3671 = vmatprep.subr.bf16.mxu0 0
    %3672 = vmatpush1.bf16.xpose.msra.mxu0 0
    %3673 = vmatprep.subr.bf16.mxu0 0
    %3674 = vmatpush1.bf16.xpose.msra.mxu0 0
    %3675 = vmatprep.subr.bf16.mxu0 0
    %3676 = vmatpush1.bf16.xpose.msra.mxu0 0
    %3677 = vmatprep.subr.bf16.mxu0 0
    %3678 = vmatpush1.bf16.xpose.msra.mxu0 %v3661
    %3679 = vmatprep.subr.bf16.mxu0 0
    %3680 = vmatpush2.bf16.xpose.msra.mxu0 0
    %3681 = vmatprep.subr.bf16.mxu0 0
    %3682 = vmatpush2.bf16.xpose.msra.mxu0 0
    %3683 = vmatprep.subr.bf16.mxu0 0
    %3684 = vmatpush2.bf16.xpose.msra.mxu0 0
    %3685 = vmatprep.subr.bf16.mxu0 0
    %3686 = vmatpush2.bf16.xpose.msra.mxu0 0
    %3687 = vmatprep.subr.bf16.mxu0 0
    %3688 = vmatpush2.bf16.xpose.msra.mxu0 0
    %3689 = vmatprep.subr.bf16.mxu0 0
    %3690 = vmatpush2.bf16.xpose.msra.mxu0 0
    %3691 = vmatprep.subr.bf16.mxu0 0
    %3692 = vmatpush2.bf16.xpose.msra.mxu0 0
    %3693 = vmatprep.subr.bf16.mxu0 0
    %3694 = vmatpush2.bf16.xpose.msra.mxu0 0
    %3695 = vmatprep.mubr.bf16.mxu0 0
    %3696 = vmatmul.mubr.bf16.gmra.mxu0 %v3658
    %v3697 = vpop.f32.mrf.mxu0
    %v3698 = vadd.f32 0.0, %v3697
    %v3699 = vpop.f32.mrf.mxu0
    %v3700 = vpop.f32.mrf.mxu0
    %v3701 = vpop.f32.mrf.mxu0
    %3702 = vdwg.mxu0
    %3703 = vrot.lane.b32.xlu0 %v676, 104
    %v3704 = vpop.permute.xlu0 %3703
    %3705 = vrot.lane.b32.xlu0 %v676, 72
    %v3706 = vpop.permute.xlu0 %3705
    %v3708 = vsel %vm127, %v3704, 0
    %v3711 = vsel %vm127, %v3706, 0
    %3713 = vmatprep.subr.bf16.mxu0 0
    %3714 = vmatpush1.bf16.xpose.msra.mxu0 0
    %3715 = vmatprep.subr.bf16.mxu0 0
    %3716 = vmatpush1.bf16.xpose.msra.mxu0 0
    %3717 = vmatprep.subr.bf16.mxu0 0
    %3718 = vmatpush1.bf16.xpose.msra.mxu0 0
    %3719 = vmatprep.subr.bf16.mxu0 0
    %3720 = vmatpush1.bf16.xpose.msra.mxu0 0
    %3721 = vmatprep.subr.bf16.mxu0 0
    %3722 = vmatpush1.bf16.xpose.msra.mxu0 0
    %3723 = vmatprep.subr.bf16.mxu0 0
    %3724 = vmatpush1.bf16.xpose.msra.mxu0 0
    %3725 = vmatprep.subr.bf16.mxu0 0
    %3726 = vmatpush1.bf16.xpose.msra.mxu0 0
    %3727 = vmatprep.subr.bf16.mxu0 0
    %3728 = vmatpush1.bf16.xpose.msra.mxu0 %v3711
    %3729 = vmatprep.subr.bf16.mxu0 0
    %3730 = vmatpush2.bf16.xpose.msra.mxu0 0
    %3731 = vmatprep.subr.bf16.mxu0 0
    %3732 = vmatpush2.bf16.xpose.msra.mxu0 0
    %3733 = vmatprep.subr.bf16.mxu0 0
    %3734 = vmatpush2.bf16.xpose.msra.mxu0 0
    %3735 = vmatprep.subr.bf16.mxu0 0
    %3736 = vmatpush2.bf16.xpose.msra.mxu0 0
    %3737 = vmatprep.subr.bf16.mxu0 0
    %3738 = vmatpush2.bf16.xpose.msra.mxu0 0
    %3739 = vmatprep.subr.bf16.mxu0 0
    %3740 = vmatpush2.bf16.xpose.msra.mxu0 0
    %3741 = vmatprep.subr.bf16.mxu0 0
    %3742 = vmatpush2.bf16.xpose.msra.mxu0 0
    %3743 = vmatprep.subr.bf16.mxu0 0
    %3744 = vmatpush2.bf16.xpose.msra.mxu0 0
    %3745 = vmatprep.mubr.bf16.mxu0 0
    %3746 = vmatmul.mubr.bf16.gmra.mxu0 %v3708
    %v3747 = vpop.f32.mrf.mxu0
    %v3748 = vadd.f32 0.0, %v3747
    %v3749 = vpop.f32.mrf.mxu0
    %v3750 = vpop.f32.mrf.mxu0
    %v3751 = vpop.f32.mrf.mxu0
    %3752 = vdwg.mxu0
    %3753 = vrot.lane.b32.xlu0 %v677, 104
    %v3754 = vpop.permute.xlu0 %3753
    %3755 = vrot.lane.b32.xlu0 %v677, 72
    %v3756 = vpop.permute.xlu0 %3755
    %v3758 = vsel %vm127, %v3754, 0
    %v3761 = vsel %vm127, %v3756, 0
    %3763 = vmatprep.subr.bf16.mxu0 0
    %3764 = vmatpush1.bf16.xpose.msra.mxu0 0
    %3765 = vmatprep.subr.bf16.mxu0 0
    %3766 = vmatpush1.bf16.xpose.msra.mxu0 0
    %3767 = vmatprep.subr.bf16.mxu0 0
    %3768 = vmatpush1.bf16.xpose.msra.mxu0 0
    %3769 = vmatprep.subr.bf16.mxu0 0
    %3770 = vmatpush1.bf16.xpose.msra.mxu0 0
    %3771 = vmatprep.subr.bf16.mxu0 0
    %3772 = vmatpush1.bf16.xpose.msra.mxu0 0
    %3773 = vmatprep.subr.bf16.mxu0 0
    %3774 = vmatpush1.bf16.xpose.msra.mxu0 0
    %3775 = vmatprep.subr.bf16.mxu0 0
    %3776 = vmatpush1.bf16.xpose.msra.mxu0 0
    %3777 = vmatprep.subr.bf16.mxu0 0
    %3778 = vmatpush1.bf16.xpose.msra.mxu0 %v3761
    %3779 = vmatprep.subr.bf16.mxu0 0
    %3780 = vmatpush2.bf16.xpose.msra.mxu0 0
    %3781 = vmatprep.subr.bf16.mxu0 0
    %3782 = vmatpush2.bf16.xpose.msra.mxu0 0
    %3783 = vmatprep.subr.bf16.mxu0 0
    %3784 = vmatpush2.bf16.xpose.msra.mxu0 0
    %3785 = vmatprep.subr.bf16.mxu0 0
    %3786 = vmatpush2.bf16.xpose.msra.mxu0 0
    %3787 = vmatprep.subr.bf16.mxu0 0
    %3788 = vmatpush2.bf16.xpose.msra.mxu0 0
    %3789 = vmatprep.subr.bf16.mxu0 0
    %3790 = vmatpush2.bf16.xpose.msra.mxu0 0
    %3791 = vmatprep.subr.bf16.mxu0 0
    %3792 = vmatpush2.bf16.xpose.msra.mxu0 0
    %3793 = vmatprep.subr.bf16.mxu0 0
    %3794 = vmatpush2.bf16.xpose.msra.mxu0 0
    %3795 = vmatprep.mubr.bf16.mxu0 0
    %3796 = vmatmul.mubr.bf16.gmra.mxu0 %v3758
    %v3797 = vpop.f32.mrf.mxu0
    %v3798 = vadd.f32 0.0, %v3797
    %v3799 = vpop.f32.mrf.mxu0
    %v3800 = vpop.f32.mrf.mxu0
    %v3801 = vpop.f32.mrf.mxu0
    %3802 = vdwg.mxu0
    %v3803 = vsel %vm1070, %v3448, -inf
    %3804 = vmax.xlane.f32.xlu0 %v3803
    %v3805 = vpop.xlane.xlu0 %3804
    %v3806 = vsel %vm1070, %v3498, -inf
    %3807 = vmax.xlane.f32.xlu0 %v3806
    %v3808 = vpop.xlane.xlu0 %3807
    %v3809 = vsel %vm1070, %v3548, -inf
    %3810 = vmax.xlane.f32.xlu0 %v3809
    %v3811 = vpop.xlane.xlu0 %3810
    %v3812 = vsel %vm1070, %v3598, -inf
    %3813 = vmax.xlane.f32.xlu0 %v3812
    %v3814 = vpop.xlane.xlu0 %3813
    %v3815 = vsel %vm1070, %v3648, -inf
    %3816 = vmax.xlane.f32.xlu0 %v3815
    %v3817 = vpop.xlane.xlu0 %3816
    %v3818 = vsel %vm1070, %v3698, -inf
    %3819 = vmax.xlane.f32.xlu0 %v3818
    %v3820 = vpop.xlane.xlu0 %3819
    %v3821 = vsel %vm1070, %v3748, -inf
    %3822 = vmax.xlane.f32.xlu0 %v3821
    %v3823 = vpop.xlane.xlu0 %3822
    %v3824 = vsel %vm1070, %v3798, -inf
    %3825 = vmax.xlane.f32.xlu0 %v3824
    %v3826 = vpop.xlane.xlu0 %3825
    %v3827 = vsub.f32 %v3448, %v3805
    %v3828 = vsub.f32 %v3498, %v3808
    %v3829 = vsub.f32 %v3548, %v3811
    %v3830 = vsub.f32 %v3598, %v3814
    %v3831 = vsub.f32 %v3648, %v3817
    %v3832 = vsub.f32 %v3698, %v3820
    %v3833 = vsub.f32 %v3748, %v3823
    %v3834 = vsub.f32 %v3798, %v3826
    %v3835 = vmul.f32 %v3827, 1.442695
    %v3836 = vpow.pop %v3835
    %v3837 = vmul.f32 %v3828, 1.442695
    %v3838 = vpow.pop %v3837
    %v3839 = vmul.f32 %v3829, 1.442695
    %v3840 = vpow.pop %v3839
    %v3841 = vmul.f32 %v3830, 1.442695
    %v3842 = vpow.pop %v3841
    %v3843 = vmul.f32 %v3831, 1.442695
    %v3844 = vpow.pop %v3843
    %v3845 = vmul.f32 %v3832, 1.442695
    %v3846 = vpow.pop %v3845
    %v3847 = vmul.f32 %v3833, 1.442695
    %v3848 = vpow.pop %v3847
    %v3849 = vmul.f32 %v3834, 1.442695
    %v3850 = vpow.pop %v3849
    %v3851 = vsel %vm1070, %v3836, 0.0
    %3852 = vadd.xlane.f32.xlu0 %v3851
    %v3853 = vpop.xlane.xlu0 %3852
    %v3854 = vsel %vm1070, %v3838, 0.0
    %3855 = vadd.xlane.f32.xlu0 %v3854
    %v3856 = vpop.xlane.xlu0 %3855
    %v3857 = vsel %vm1070, %v3840, 0.0
    %3858 = vadd.xlane.f32.xlu0 %v3857
    %v3859 = vpop.xlane.xlu0 %3858
    %v3860 = vsel %vm1070, %v3842, 0.0
    %3861 = vadd.xlane.f32.xlu0 %v3860
    %v3862 = vpop.xlane.xlu0 %3861
    %v3863 = vsel %vm1070, %v3844, 0.0
    %3864 = vadd.xlane.f32.xlu0 %v3863
    %v3865 = vpop.xlane.xlu0 %3864
    %v3866 = vsel %vm1070, %v3846, 0.0
    %3867 = vadd.xlane.f32.xlu0 %v3866
    %v3868 = vpop.xlane.xlu0 %3867
    %v3869 = vsel %vm1070, %v3848, 0.0
    %3870 = vadd.xlane.f32.xlu0 %v3869
    %v3871 = vpop.xlane.xlu0 %3870
    %v3872 = vsel %vm1070, %v3850, 0.0
    %3873 = vadd.xlane.f32.xlu0 %v3872
    %v3874 = vpop.xlane.xlu0 %3873
    %v3875 = vrcp.pop %v3853
    %v3876 = vrcp.pop %v3856
    %v3877 = vrcp.pop %v3859
    %v3878 = vrcp.pop %v3862
    %v3879 = vrcp.pop %v3865
    %v3880 = vrcp.pop %v3868
    %v3881 = vrcp.pop %v3871
    %v3882 = vrcp.pop %v3874
    %v3883 = vmul.f32 %v3836, %v3875
    %v3884 = vmul.f32 %v3838, %v3876
    %v3885 = vmul.f32 %v3840, %v3877
    %v3886 = vmul.f32 %v3842, %v3878
    %v3887 = vmul.f32 %v3844, %v3879
    %v3888 = vmul.f32 %v3846, %v3880
    %v3889 = vmul.f32 %v3848, %v3881
    %v3890 = vmul.f32 %v3850, %v3882
    %v3891 = vpack.c.bf16 %v3883, %v3883
    %v3892 = vpack.c.bf16 %v3884, %v3884
    %v3893 = vpack.c.bf16 %v3885, %v3885
    %v3894 = vpack.c.bf16 %v3886, %v3886
    %v3895 = vpack.c.bf16 %v3887, %v3887
    %v3896 = vpack.c.bf16 %v3888, %v3888
    %v3897 = vpack.c.bf16 %v3889, %v3889
    %v3898 = vpack.c.bf16 %v3890, %v3890
    %3899 = vrot.lane.b32.xlu0 %v670, 40
    %v3900 = vpop.permute.xlu0 %3899
    %v3902 = vsel %vm365, %v3891, 0
    %v3905 = vsel %vm1172, %v3900, 0
    %3907 = vmatprep.subr.bf16.mxu0 0
    %3908 = vmatpush1.bf16.msra.mxu0 0
    %3909 = vmatprep.subr.bf16.mxu0 0
    %3910 = vmatpush1.bf16.msra.mxu0 0
    %3911 = vmatprep.subr.bf16.mxu0 0
    %3912 = vmatpush1.bf16.msra.mxu0 0
    %3913 = vmatprep.subr.bf16.mxu0 0
    %3914 = vmatpush1.bf16.msra.mxu0 0
    %3915 = vmatprep.subr.bf16.mxu0 0
    %3916 = vmatpush1.bf16.msra.mxu0 0
    %3917 = vmatprep.subr.bf16.mxu0 0
    %3918 = vmatpush1.bf16.msra.mxu0 0
    %3919 = vmatprep.subr.bf16.mxu0 0
    %3920 = vmatpush1.bf16.msra.mxu0 0
    %3921 = vmatprep.subr.bf16.mxu0 0
    %3922 = vmatpush1.bf16.msra.mxu0 %v3905
    %3923 = vmatprep.subr.bf16.mxu0 0
    %3924 = vmatpush2.bf16.msra.mxu0 0
    %3925 = vmatprep.subr.bf16.mxu0 0
    %3926 = vmatpush2.bf16.msra.mxu0 0
    %3927 = vmatprep.subr.bf16.mxu0 0
    %3928 = vmatpush2.bf16.msra.mxu0 0
    %3929 = vmatprep.subr.bf16.mxu0 0
    %3930 = vmatpush2.bf16.msra.mxu0 0
    %3931 = vmatprep.subr.bf16.mxu0 0
    %3932 = vmatpush2.bf16.msra.mxu0 0
    %3933 = vmatprep.subr.bf16.mxu0 0
    %3934 = vmatpush2.bf16.msra.mxu0 0
    %3935 = vmatprep.subr.bf16.mxu0 0
    %3936 = vmatpush2.bf16.msra.mxu0 0
    %3937 = vmatprep.subr.bf16.mxu0 0
    %3938 = vmatpush2.bf16.msra.mxu0 0
    %3939 = vmatprep.mubr.bf16.mxu0 0
    %3940 = vmatmul.mubr.bf16.gmra.mxu0 %v3902
    %v3941 = vpop.f32.mrf.mxu0
    %v3942 = vadd.f32 0.0, %v3941
    %v3943 = vpop.f32.mrf.mxu0
    %v3944 = vpop.f32.mrf.mxu0
    %v3945 = vpop.f32.mrf.mxu0
    %3946 = vdwg.mxu0
    %3947 = vrot.lane.b32.xlu0 %v671, 40
    %v3948 = vpop.permute.xlu0 %3947
    %v3950 = vsel %vm365, %v3892, 0
    %v3953 = vsel %vm1172, %v3948, 0
    %3955 = vmatprep.subr.bf16.mxu0 0
    %3956 = vmatpush1.bf16.msra.mxu0 0
    %3957 = vmatprep.subr.bf16.mxu0 0
    %3958 = vmatpush1.bf16.msra.mxu0 0
    %3959 = vmatprep.subr.bf16.mxu0 0
    %3960 = vmatpush1.bf16.msra.mxu0 0
    %3961 = vmatprep.subr.bf16.mxu0 0
    %3962 = vmatpush1.bf16.msra.mxu0 0
    %3963 = vmatprep.subr.bf16.mxu0 0
    %3964 = vmatpush1.bf16.msra.mxu0 0
    %3965 = vmatprep.subr.bf16.mxu0 0
    %3966 = vmatpush1.bf16.msra.mxu0 0
    %3967 = vmatprep.subr.bf16.mxu0 0
    %3968 = vmatpush1.bf16.msra.mxu0 0
    %3969 = vmatprep.subr.bf16.mxu0 0
    %3970 = vmatpush1.bf16.msra.mxu0 %v3953
    %3971 = vmatprep.subr.bf16.mxu0 0
    %3972 = vmatpush2.bf16.msra.mxu0 0
    %3973 = vmatprep.subr.bf16.mxu0 0
    %3974 = vmatpush2.bf16.msra.mxu0 0
    %3975 = vmatprep.subr.bf16.mxu0 0
    %3976 = vmatpush2.bf16.msra.mxu0 0
    %3977 = vmatprep.subr.bf16.mxu0 0
    %3978 = vmatpush2.bf16.msra.mxu0 0
    %3979 = vmatprep.subr.bf16.mxu0 0
    %3980 = vmatpush2.bf16.msra.mxu0 0
    %3981 = vmatprep.subr.bf16.mxu0 0
    %3982 = vmatpush2.bf16.msra.mxu0 0
    %3983 = vmatprep.subr.bf16.mxu0 0
    %3984 = vmatpush2.bf16.msra.mxu0 0
    %3985 = vmatprep.subr.bf16.mxu0 0
    %3986 = vmatpush2.bf16.msra.mxu0 0
    %3987 = vmatprep.mubr.bf16.mxu0 0
    %3988 = vmatmul.mubr.bf16.gmra.mxu0 %v3950
    %v3989 = vpop.f32.mrf.mxu0
    %v3990 = vadd.f32 0.0, %v3989
    %v3991 = vpop.f32.mrf.mxu0
    %v3992 = vpop.f32.mrf.mxu0
    %v3993 = vpop.f32.mrf.mxu0
    %3994 = vdwg.mxu0
    %3995 = vrot.lane.b32.xlu0 %v672, 40
    %v3996 = vpop.permute.xlu0 %3995
    %v3998 = vsel %vm365, %v3893, 0
    %v4001 = vsel %vm1172, %v3996, 0
    %4003 = vmatprep.subr.bf16.mxu0 0
    %4004 = vmatpush1.bf16.msra.mxu0 0
    %4005 = vmatprep.subr.bf16.mxu0 0
    %4006 = vmatpush1.bf16.msra.mxu0 0
    %4007 = vmatprep.subr.bf16.mxu0 0
    %4008 = vmatpush1.bf16.msra.mxu0 0
    %4009 = vmatprep.subr.bf16.mxu0 0
    %4010 = vmatpush1.bf16.msra.mxu0 0
    %4011 = vmatprep.subr.bf16.mxu0 0
    %4012 = vmatpush1.bf16.msra.mxu0 0
    %4013 = vmatprep.subr.bf16.mxu0 0
    %4014 = vmatpush1.bf16.msra.mxu0 0
    %4015 = vmatprep.subr.bf16.mxu0 0
    %4016 = vmatpush1.bf16.msra.mxu0 0
    %4017 = vmatprep.subr.bf16.mxu0 0
    %4018 = vmatpush1.bf16.msra.mxu0 %v4001
    %4019 = vmatprep.subr.bf16.mxu0 0
    %4020 = vmatpush2.bf16.msra.mxu0 0
    %4021 = vmatprep.subr.bf16.mxu0 0
    %4022 = vmatpush2.bf16.msra.mxu0 0
    %4023 = vmatprep.subr.bf16.mxu0 0
    %4024 = vmatpush2.bf16.msra.mxu0 0
    %4025 = vmatprep.subr.bf16.mxu0 0
    %4026 = vmatpush2.bf16.msra.mxu0 0
    %4027 = vmatprep.subr.bf16.mxu0 0
    %4028 = vmatpush2.bf16.msra.mxu0 0
    %4029 = vmatprep.subr.bf16.mxu0 0
    %4030 = vmatpush2.bf16.msra.mxu0 0
    %4031 = vmatprep.subr.bf16.mxu0 0
    %4032 = vmatpush2.bf16.msra.mxu0 0
    %4033 = vmatprep.subr.bf16.mxu0 0
    %4034 = vmatpush2.bf16.msra.mxu0 0
    %4035 = vmatprep.mubr.bf16.mxu0 0
    %4036 = vmatmul.mubr.bf16.gmra.mxu0 %v3998
    %v4037 = vpop.f32.mrf.mxu0
    %v4038 = vadd.f32 0.0, %v4037
    %v4039 = vpop.f32.mrf.mxu0
    %v4040 = vpop.f32.mrf.mxu0
    %v4041 = vpop.f32.mrf.mxu0
    %4042 = vdwg.mxu0
    %4043 = vrot.lane.b32.xlu0 %v673, 40
    %v4044 = vpop.permute.xlu0 %4043
    %v4046 = vsel %vm365, %v3894, 0
    %v4049 = vsel %vm1172, %v4044, 0
    %4051 = vmatprep.subr.bf16.mxu0 0
    %4052 = vmatpush1.bf16.msra.mxu0 0
    %4053 = vmatprep.subr.bf16.mxu0 0
    %4054 = vmatpush1.bf16.msra.mxu0 0
    %4055 = vmatprep.subr.bf16.mxu0 0
    %4056 = vmatpush1.bf16.msra.mxu0 0
    %4057 = vmatprep.subr.bf16.mxu0 0
    %4058 = vmatpush1.bf16.msra.mxu0 0
    %4059 = vmatprep.subr.bf16.mxu0 0
    %4060 = vmatpush1.bf16.msra.mxu0 0
    %4061 = vmatprep.subr.bf16.mxu0 0
    %4062 = vmatpush1.bf16.msra.mxu0 0
    %4063 = vmatprep.subr.bf16.mxu0 0
    %4064 = vmatpush1.bf16.msra.mxu0 0
    %4065 = vmatprep.subr.bf16.mxu0 0
    %4066 = vmatpush1.bf16.msra.mxu0 %v4049
    %4067 = vmatprep.subr.bf16.mxu0 0
    %4068 = vmatpush2.bf16.msra.mxu0 0
    %4069 = vmatprep.subr.bf16.mxu0 0
    %4070 = vmatpush2.bf16.msra.mxu0 0
    %4071 = vmatprep.subr.bf16.mxu0 0
    %4072 = vmatpush2.bf16.msra.mxu0 0
    %4073 = vmatprep.subr.bf16.mxu0 0
    %4074 = vmatpush2.bf16.msra.mxu0 0
    %4075 = vmatprep.subr.bf16.mxu0 0
    %4076 = vmatpush2.bf16.msra.mxu0 0
    %4077 = vmatprep.subr.bf16.mxu0 0
    %4078 = vmatpush2.bf16.msra.mxu0 0
    %4079 = vmatprep.subr.bf16.mxu0 0
    %4080 = vmatpush2.bf16.msra.mxu0 0
    %4081 = vmatprep.subr.bf16.mxu0 0
    %4082 = vmatpush2.bf16.msra.mxu0 0
    %4083 = vmatprep.mubr.bf16.mxu0 0
    %4084 = vmatmul.mubr.bf16.gmra.mxu0 %v4046
    %v4085 = vpop.f32.mrf.mxu0
    %v4086 = vadd.f32 0.0, %v4085
    %v4087 = vpop.f32.mrf.mxu0
    %v4088 = vpop.f32.mrf.mxu0
    %v4089 = vpop.f32.mrf.mxu0
    %4090 = vdwg.mxu0
    %4091 = vrot.lane.b32.xlu0 %v674, 40
    %v4092 = vpop.permute.xlu0 %4091
    %v4094 = vsel %vm365, %v3895, 0
    %v4097 = vsel %vm1172, %v4092, 0
    %4099 = vmatprep.subr.bf16.mxu0 0
    %4100 = vmatpush1.bf16.msra.mxu0 0
    %4101 = vmatprep.subr.bf16.mxu0 0
    %4102 = vmatpush1.bf16.msra.mxu0 0
    %4103 = vmatprep.subr.bf16.mxu0 0
    %4104 = vmatpush1.bf16.msra.mxu0 0
    %4105 = vmatprep.subr.bf16.mxu0 0
    %4106 = vmatpush1.bf16.msra.mxu0 0
    %4107 = vmatprep.subr.bf16.mxu0 0
    %4108 = vmatpush1.bf16.msra.mxu0 0
    %4109 = vmatprep.subr.bf16.mxu0 0
    %4110 = vmatpush1.bf16.msra.mxu0 0
    %4111 = vmatprep.subr.bf16.mxu0 0
    %4112 = vmatpush1.bf16.msra.mxu0 0
    %4113 = vmatprep.subr.bf16.mxu0 0
    %4114 = vmatpush1.bf16.msra.mxu0 %v4097
    %4115 = vmatprep.subr.bf16.mxu0 0
    %4116 = vmatpush2.bf16.msra.mxu0 0
    %4117 = vmatprep.subr.bf16.mxu0 0
    %4118 = vmatpush2.bf16.msra.mxu0 0
    %4119 = vmatprep.subr.bf16.mxu0 0
    %4120 = vmatpush2.bf16.msra.mxu0 0
    %4121 = vmatprep.subr.bf16.mxu0 0
    %4122 = vmatpush2.bf16.msra.mxu0 0
    %4123 = vmatprep.subr.bf16.mxu0 0
    %4124 = vmatpush2.bf16.msra.mxu0 0
    %4125 = vmatprep.subr.bf16.mxu0 0
    %4126 = vmatpush2.bf16.msra.mxu0 0
    %4127 = vmatprep.subr.bf16.mxu0 0
    %4128 = vmatpush2.bf16.msra.mxu0 0
    %4129 = vmatprep.subr.bf16.mxu0 0
    %4130 = vmatpush2.bf16.msra.mxu0 0
    %4131 = vmatprep.mubr.bf16.mxu0 0
    %4132 = vmatmul.mubr.bf16.gmra.mxu0 %v4094
    %v4133 = vpop.f32.mrf.mxu0
    %v4134 = vadd.f32 0.0, %v4133
    %v4135 = vpop.f32.mrf.mxu0
    %v4136 = vpop.f32.mrf.mxu0
    %v4137 = vpop.f32.mrf.mxu0
    %4138 = vdwg.mxu0
    %4139 = vrot.lane.b32.xlu0 %v675, 40
    %v4140 = vpop.permute.xlu0 %4139
    %v4142 = vsel %vm365, %v3896, 0
    %v4145 = vsel %vm1172, %v4140, 0
    %4147 = vmatprep.subr.bf16.mxu0 0
    %4148 = vmatpush1.bf16.msra.mxu0 0
    %4149 = vmatprep.subr.bf16.mxu0 0
    %4150 = vmatpush1.bf16.msra.mxu0 0
    %4151 = vmatprep.subr.bf16.mxu0 0
    %4152 = vmatpush1.bf16.msra.mxu0 0
    %4153 = vmatprep.subr.bf16.mxu0 0
    %4154 = vmatpush1.bf16.msra.mxu0 0
    %4155 = vmatprep.subr.bf16.mxu0 0
    %4156 = vmatpush1.bf16.msra.mxu0 0
    %4157 = vmatprep.subr.bf16.mxu0 0
    %4158 = vmatpush1.bf16.msra.mxu0 0
    %4159 = vmatprep.subr.bf16.mxu0 0
    %4160 = vmatpush1.bf16.msra.mxu0 0
    %4161 = vmatprep.subr.bf16.mxu0 0
    %4162 = vmatpush1.bf16.msra.mxu0 %v4145
    %4163 = vmatprep.subr.bf16.mxu0 0
    %4164 = vmatpush2.bf16.msra.mxu0 0
    %4165 = vmatprep.subr.bf16.mxu0 0
    %4166 = vmatpush2.bf16.msra.mxu0 0
    %4167 = vmatprep.subr.bf16.mxu0 0
    %4168 = vmatpush2.bf16.msra.mxu0 0
    %4169 = vmatprep.subr.bf16.mxu0 0
    %4170 = vmatpush2.bf16.msra.mxu0 0
    %4171 = vmatprep.subr.bf16.mxu0 0
    %4172 = vmatpush2.bf16.msra.mxu0 0
    %4173 = vmatprep.subr.bf16.mxu0 0
    %4174 = vmatpush2.bf16.msra.mxu0 0
    %4175 = vmatprep.subr.bf16.mxu0 0
    %4176 = vmatpush2.bf16.msra.mxu0 0
    %4177 = vmatprep.subr.bf16.mxu0 0
    %4178 = vmatpush2.bf16.msra.mxu0 0
    %4179 = vmatprep.mubr.bf16.mxu0 0
    %4180 = vmatmul.mubr.bf16.gmra.mxu0 %v4142
    %v4181 = vpop.f32.mrf.mxu0
    %v4182 = vadd.f32 0.0, %v4181
    %v4183 = vpop.f32.mrf.mxu0
    %v4184 = vpop.f32.mrf.mxu0
    %v4185 = vpop.f32.mrf.mxu0
    %4186 = vdwg.mxu0
    %4187 = vrot.lane.b32.xlu0 %v676, 40
    %v4188 = vpop.permute.xlu0 %4187
    %v4190 = vsel %vm365, %v3897, 0
    %v4193 = vsel %vm1172, %v4188, 0
    %4195 = vmatprep.subr.bf16.mxu0 0
    %4196 = vmatpush1.bf16.msra.mxu0 0
    %4197 = vmatprep.subr.bf16.mxu0 0
    %4198 = vmatpush1.bf16.msra.mxu0 0
    %4199 = vmatprep.subr.bf16.mxu0 0
    %4200 = vmatpush1.bf16.msra.mxu0 0
    %4201 = vmatprep.subr.bf16.mxu0 0
    %4202 = vmatpush1.bf16.msra.mxu0 0
    %4203 = vmatprep.subr.bf16.mxu0 0
    %4204 = vmatpush1.bf16.msra.mxu0 0
    %4205 = vmatprep.subr.bf16.mxu0 0
    %4206 = vmatpush1.bf16.msra.mxu0 0
    %4207 = vmatprep.subr.bf16.mxu0 0
    %4208 = vmatpush1.bf16.msra.mxu0 0
    %4209 = vmatprep.subr.bf16.mxu0 0
    %4210 = vmatpush1.bf16.msra.mxu0 %v4193
    %4211 = vmatprep.subr.bf16.mxu0 0
    %4212 = vmatpush2.bf16.msra.mxu0 0
    %4213 = vmatprep.subr.bf16.mxu0 0
    %4214 = vmatpush2.bf16.msra.mxu0 0
    %4215 = vmatprep.subr.bf16.mxu0 0
    %4216 = vmatpush2.bf16.msra.mxu0 0
    %4217 = vmatprep.subr.bf16.mxu0 0
    %4218 = vmatpush2.bf16.msra.mxu0 0
    %4219 = vmatprep.subr.bf16.mxu0 0
    %4220 = vmatpush2.bf16.msra.mxu0 0
    %4221 = vmatprep.subr.bf16.mxu0 0
    %4222 = vmatpush2.bf16.msra.mxu0 0
    %4223 = vmatprep.subr.bf16.mxu0 0
    %4224 = vmatpush2.bf16.msra.mxu0 0
    %4225 = vmatprep.subr.bf16.mxu0 0
    %4226 = vmatpush2.bf16.msra.mxu0 0
    %4227 = vmatprep.mubr.bf16.mxu0 0
    %4228 = vmatmul.mubr.bf16.gmra.mxu0 %v4190
    %v4229 = vpop.f32.mrf.mxu0
    %v4230 = vadd.f32 0.0, %v4229
    %v4231 = vpop.f32.mrf.mxu0
    %v4232 = vpop.f32.mrf.mxu0
    %v4233 = vpop.f32.mrf.mxu0
    %4234 = vdwg.mxu0
    %4235 = vrot.lane.b32.xlu0 %v677, 40
    %v4236 = vpop.permute.xlu0 %4235
    %v4238 = vsel %vm365, %v3898, 0
    %v4241 = vsel %vm1172, %v4236, 0
    %4243 = vmatprep.subr.bf16.mxu0 0
    %4244 = vmatpush1.bf16.msra.mxu0 0
    %4245 = vmatprep.subr.bf16.mxu0 0
    %4246 = vmatpush1.bf16.msra.mxu0 0
    %4247 = vmatprep.subr.bf16.mxu0 0
    %4248 = vmatpush1.bf16.msra.mxu0 0
    %4249 = vmatprep.subr.bf16.mxu0 0
    %4250 = vmatpush1.bf16.msra.mxu0 0
    %4251 = vmatprep.subr.bf16.mxu0 0
    %4252 = vmatpush1.bf16.msra.mxu0 0
    %4253 = vmatprep.subr.bf16.mxu0 0
    %4254 = vmatpush1.bf16.msra.mxu0 0
    %4255 = vmatprep.subr.bf16.mxu0 0
    %4256 = vmatpush1.bf16.msra.mxu0 0
    %4257 = vmatprep.subr.bf16.mxu0 0
    %4258 = vmatpush1.bf16.msra.mxu0 %v4241
    %4259 = vmatprep.subr.bf16.mxu0 0
    %4260 = vmatpush2.bf16.msra.mxu0 0
    %4261 = vmatprep.subr.bf16.mxu0 0
    %4262 = vmatpush2.bf16.msra.mxu0 0
    %4263 = vmatprep.subr.bf16.mxu0 0
    %4264 = vmatpush2.bf16.msra.mxu0 0
    %4265 = vmatprep.subr.bf16.mxu0 0
    %4266 = vmatpush2.bf16.msra.mxu0 0
    %4267 = vmatprep.subr.bf16.mxu0 0
    %4268 = vmatpush2.bf16.msra.mxu0 0
    %4269 = vmatprep.subr.bf16.mxu0 0
    %4270 = vmatpush2.bf16.msra.mxu0 0
    %4271 = vmatprep.subr.bf16.mxu0 0
    %4272 = vmatpush2.bf16.msra.mxu0 0
    %4273 = vmatprep.subr.bf16.mxu0 0
    %4274 = vmatpush2.bf16.msra.mxu0 0
    %4275 = vmatprep.mubr.bf16.mxu0 0
    %4276 = vmatmul.mubr.bf16.gmra.mxu0 %v4238
    %v4277 = vpop.f32.mrf.mxu0
    %v4278 = vadd.f32 0.0, %v4277
    %v4279 = vpop.f32.mrf.mxu0
    %v4280 = vpop.f32.mrf.mxu0
    %v4281 = vpop.f32.mrf.mxu0
    %4282 = vdwg.mxu0
    %4284 = vrot.lane.b32.xlu0 %v3942, 24
    %v4285 = vpop.permute.xlu0 %4284
    %vm4287 = vcmask 257216
    %4288 = vst.msk [vmem:[#allocation3] sm:$0xf] %vm4287, %v4285
    %4290 = vrot.lane.b32.xlu0 %v3990, 24
    %v4291 = vpop.permute.xlu0 %4290
    %4293 = vst.msk [vmem:[#allocation3 + $0x4] sm:$0xf] %vm4287, %v4291
    %4295 = vrot.lane.b32.xlu0 %v4038, 24
    %v4296 = vpop.permute.xlu0 %4295
    %4298 = vst.msk [vmem:[#allocation3 + $0x8] sm:$0xf] %vm4287, %v4296
    %4300 = vrot.lane.b32.xlu0 %v4086, 24
    %v4301 = vpop.permute.xlu0 %4300
    %4303 = vst.msk [vmem:[#allocation3 + $0xc] sm:$0xf] %vm4287, %v4301
    %4305 = vrot.lane.b32.xlu0 %v4134, 24
    %v4306 = vpop.permute.xlu0 %4305
    %4308 = vst.msk [vmem:[#allocation3 + $0x10] sm:$0xf] %vm4287, %v4306
    %4310 = vrot.lane.b32.xlu0 %v4182, 24
    %v4311 = vpop.permute.xlu0 %4310
    %4313 = vst.msk [vmem:[#allocation3 + $0x14] sm:$0xf] %vm4287, %v4311
    %4315 = vrot.lane.b32.xlu0 %v4230, 24
    %v4316 = vpop.permute.xlu0 %4315
    %4318 = vst.msk [vmem:[#allocation3 + $0x18] sm:$0xf] %vm4287, %v4316
    %4320 = vrot.lane.b32.xlu0 %v4278, 24
    %v4321 = vpop.permute.xlu0 %4320
    %4323 = vst.msk [vmem:[#allocation3 + $0x1c] sm:$0xf] %vm4287, %v4321
    %v4324 = vld [vmem:[#allocation3] sm:$0xff]
    %v4325 = vld [vmem:[#allocation3 + $0x8] sm:$0xff]
    %v4326 = vld [vmem:[#allocation3 + $0x10] sm:$0xff]
    %v4327 = vld [vmem:[#allocation3 + $0x18] sm:$0xff]
    %v4328 = vld [vmem:[%s6] sm:$0xf]
    %v4329 = vld [vmem:[%s6 + $0x4] sm:$0xf]
    %v4330 = vld [vmem:[%s6 + $0x8] sm:$0xf]
    %v4331 = vld [vmem:[%s6 + $0xc] sm:$0xf]
    %v4332 = vpack.c.bf16 %v4325, %v4324
    %v4333 = vpack.c.bf16 %v4327, %v4326
    %v4334 = vld [vmem:[%s7] sm:$0x1]
    %v4336 = vlaneseq
    %v4337 = vshrl.u32 %v4336, 7
    %v4338 = vsub.s32 0, %v4337
    %v4339 = vrot.slane %v4334, %v4338
    %v4345 = vunpack.c.l.b16 %v4328
    %v4346 = vunpack.c.l.b16 %v4329
    %v4347 = vunpack.c.l.b16 %v4330
    %v4348 = vunpack.c.l.b16 %v4331
    %v4349 = vpack.c.b16 %v4346, %v4345
    %v4350 = vpack.c.b16 %v4348, %v4347
    %v4354 = vsel %vm68, %v4332, 0
    %v4357 = vsel %vm68, %v4333, 0
    %4359 = vmatprep.subr.bf16.mxu0 0
    %4360 = vmatpush1.bf16.msra.mxu0 0
    %4361 = vmatprep.subr.bf16.mxu0 0
    %4362 = vmatpush1.bf16.msra.mxu0 0
    %4363 = vmatprep.subr.bf16.mxu0 0
    %4364 = vmatpush1.bf16.msra.mxu0 0
    %4365 = vmatprep.subr.bf16.mxu0 0
    %4366 = vmatpush1.bf16.msra.mxu0 0
    %4367 = vmatprep.subr.bf16.mxu0 0
    %4368 = vmatpush1.bf16.msra.mxu0 0
    %4369 = vmatprep.subr.bf16.mxu0 0
    %4370 = vmatpush1.bf16.msra.mxu0 0
    %4371 = vmatprep.subr.bf16.mxu0 0
    %4372 = vmatpush1.bf16.msra.mxu0 %v4350
    %4373 = vmatprep.subr.bf16.mxu0 0
    %4374 = vmatpush1.bf16.msra.mxu0 %v4349
    %4375 = vmatprep.subr.bf16.mxu0 0
    %4376 = vmatpush2.bf16.msra.mxu0 0
    %4377 = vmatprep.subr.bf16.mxu0 0
    %4378 = vmatpush2.bf16.msra.mxu0 0
    %4379 = vmatprep.subr.bf16.mxu0 0
    %4380 = vmatpush2.bf16.msra.mxu0 0
    %4381 = vmatprep.subr.bf16.mxu0 0
    %4382 = vmatpush2.bf16.msra.mxu0 0
    %4383 = vmatprep.subr.bf16.mxu0 0
    %4384 = vmatpush2.bf16.msra.mxu0 0
    %4385 = vmatprep.subr.bf16.mxu0 0
    %4386 = vmatpush2.bf16.msra.mxu0 0
    %4387 = vmatprep.subr.bf16.mxu0 0
    %4388 = vmatpush2.bf16.msra.mxu0 0
    %4389 = vmatprep.subr.bf16.mxu0 0
    %4390 = vmatpush2.bf16.msra.mxu0 0
    %4391 = vmatprep.mubr.bf16.mxu0 0
    %4392 = vmatmul.mubr.bf16.gmra.mxu0 %v4354
    %v4393 = vpop.f32.mrf.mxu0
    %v4394 = vadd.f32 %v4339, %v4393
    %v4395 = vpop.f32.mrf.mxu0
    %v4396 = vpop.f32.mrf.mxu0
    %v4397 = vadd.f32 %v4339, %v4396
    %v4398 = vpop.f32.mrf.mxu0
    %4399 = vmatprep.mubr.bf16.mxu0 0
    %4400 = vmatmul.mubr.bf16.gmra.mxu0 %v4357
    %v4401 = vpop.f32.mrf.mxu0
    %v4402 = vadd.f32 %v4339, %v4401
    %v4403 = vpop.f32.mrf.mxu0
    %v4404 = vpop.f32.mrf.mxu0
    %v4405 = vadd.f32 %v4339, %v4404
    %v4406 = vpop.f32.mrf.mxu0
    %4407 = vdwg.mxu0
    %v4408 = vadd.f32 %v547, %v4394
    %v4409 = vadd.f32 %v552, %v4397
    %v4410 = vadd.f32 %v557, %v4402
    %v4411 = vadd.f32 %v562, %v4405
    %v4412 = vld [vmem:[%s8] sm:$0x1]
    %v4413 = vld [vmem:[%s9] sm:$0x1]
    %v4414 = vsel %vm68, %v4408, 0.0
    %4415 = vadd.xlane.f32.xlu0 %v4414
    %v4416 = vpop.xlane.xlu0 %4415
    %v4417 = vsel %vm68, %v4409, 0.0
    %4418 = vadd.xlane.f32.xlu0 %v4417
    %v4419 = vpop.xlane.xlu0 %4418
    %v4420 = vsel %vm68, %v4410, 0.0
    %4421 = vadd.xlane.f32.xlu0 %v4420
    %v4422 = vpop.xlane.xlu0 %4421
    %v4423 = vsel %vm68, %v4411, 0.0
    %4424 = vadd.xlane.f32.xlu0 %v4423
    %v4425 = vpop.xlane.xlu0 %4424
    %v4426 = vmul.f32 %v4416, %v72
    %v4427 = vmul.f32 %v4419, %v72
    %v4428 = vmul.f32 %v4422, %v72
    %v4429 = vmul.f32 %v4425, %v72
    %v4430 = vsub.f32 %v4408, %v4426
    %v4431 = vsub.f32 %v4409, %v4427
    %v4432 = vsub.f32 %v4410, %v4428
    %v4433 = vsub.f32 %v4411, %v4429
    %v4434 = vmul.f32 %v4430, %v4430
    %v4435 = vmul.f32 %v4431, %v4431
    %v4436 = vmul.f32 %v4432, %v4432
    %v4437 = vmul.f32 %v4433, %v4433
    %v4438 = vsel %vm68, %v4434, 0.0
    %4439 = vadd.xlane.f32.xlu0 %v4438
    %v4440 = vpop.xlane.xlu0 %4439
    %v4441 = vsel %vm68, %v4435, 0.0
    %4442 = vadd.xlane.f32.xlu0 %v4441
    %v4443 = vpop.xlane.xlu0 %4442
    %v4444 = vsel %vm68, %v4436, 0.0
    %4445 = vadd.xlane.f32.xlu0 %v4444
    %v4446 = vpop.xlane.xlu0 %4445
    %v4447 = vsel %vm68, %v4437, 0.0
    %4448 = vadd.xlane.f32.xlu0 %v4447
    %v4449 = vpop.xlane.xlu0 %4448
    %v4450 = vmul.f32 %v4440, %v72
    %v4451 = vmul.f32 %v4443, %v72
    %v4452 = vmul.f32 %v4446, %v72
    %v4453 = vmul.f32 %v4449, %v72
    %v4454 = vadd.f32 %v4450, 1e-05
    %v4455 = vadd.f32 %v4451, 1e-05
    %v4456 = vadd.f32 %v4452, 1e-05
    %v4457 = vadd.f32 %v4453, 1e-05
    %v4458 = vrsqrt.pop %v4454
    %v4459 = vrsqrt.pop %v4455
    %v4460 = vrsqrt.pop %v4456
    %v4461 = vrsqrt.pop %v4457
    %v4462 = vmul.f32 %v4430, %v4458
    %v4463 = vmul.f32 %v4431, %v4459
    %v4464 = vmul.f32 %v4432, %v4460
    %v4465 = vmul.f32 %v4433, %v4461
    %v4467 = vlaneseq
    %v4468 = vshrl.u32 %v4467, 7
    %v4469 = vsub.s32 0, %v4468
    %v4470 = vrot.slane %v4412, %v4469
    %v4472 = vmul.f32 %v4462, %v4470
    %v4473 = vmul.f32 %v4463, %v4470
    %v4474 = vmul.f32 %v4464, %v4470
    %v4475 = vmul.f32 %v4465, %v4470
    %v4477 = vlaneseq
    %v4478 = vshrl.u32 %v4477, 7
    %v4479 = vsub.s32 0, %v4478
    %v4480 = vrot.slane %v4413, %v4479
    %v4482 = vadd.f32 %v4472, %v4480
    %v4483 = vadd.f32 %v4473, %v4480
    %v4484 = vadd.f32 %v4474, %v4480
    %v4485 = vadd.f32 %v4475, %v4480
    %v4486 = vld [vmem:[%s10] sm:$0xf]
    %v4487 = vld [vmem:[%s10 + $0x4] sm:$0xf]
    %v4488 = vld [vmem:[%s10 + $0x8] sm:$0xf]
    %v4489 = vld [vmem:[%s10 + $0xc] sm:$0xf]
    %v4490 = vpack.c.bf16 %v4483, %v4482
    %v4491 = vpack.c.bf16 %v4485, %v4484
    %v4492 = vld [vmem:[%s11] sm:$0x1]
    %v4494 = vlaneseq
    %v4495 = vshrl.u32 %v4494, 7
    %v4496 = vsub.s32 0, %v4495
    %v4497 = vrot.slane %v4492, %v4496
    %v4503 = vunpack.c.l.b16 %v4486
    %v4504 = vunpack.c.l.b16 %v4487
    %v4505 = vunpack.c.l.b16 %v4488
    %v4506 = vunpack.c.l.b16 %v4489
    %v4507 = vpack.c.b16 %v4504, %v4503
    %v4508 = vpack.c.b16 %v4506, %v4505
    %v4512 = vsel %vm68, %v4490, 0
    %v4515 = vsel %vm68, %v4491, 0
    %4517 = vmatprep.subr.bf16.mxu0 0
    %4518 = vmatpush1.bf16.msra.mxu0 0
    %4519 = vmatprep.subr.bf16.mxu0 0
    %4520 = vmatpush1.bf16.msra.mxu0 0
    %4521 = vmatprep.subr.bf16.mxu0 0
    %4522 = vmatpush1.bf16.msra.mxu0 0
    %4523 = vmatprep.subr.bf16.mxu0 0
    %4524 = vmatpush1.bf16.msra.mxu0 0
    %4525 = vmatprep.subr.bf16.mxu0 0
    %4526 = vmatpush1.bf16.msra.mxu0 0
    %4527 = vmatprep.subr.bf16.mxu0 0
    %4528 = vmatpush1.bf16.msra.mxu0 0
    %4529 = vmatprep.subr.bf16.mxu0 0
    %4530 = vmatpush1.bf16.msra.mxu0 %v4508
    %4531 = vmatprep.subr.bf16.mxu0 0
    %4532 = vmatpush1.bf16.msra.mxu0 %v4507
    %4533 = vmatprep.subr.bf16.mxu0 0
    %4534 = vmatpush2.bf16.msra.mxu0 0
    %4535 = vmatprep.subr.bf16.mxu0 0
    %4536 = vmatpush2.bf16.msra.mxu0 0
    %4537 = vmatprep.subr.bf16.mxu0 0
    %4538 = vmatpush2.bf16.msra.mxu0 0
    %4539 = vmatprep.subr.bf16.mxu0 0
    %4540 = vmatpush2.bf16.msra.mxu0 0
    %4541 = vmatprep.subr.bf16.mxu0 0
    %4542 = vmatpush2.bf16.msra.mxu0 0
    %4543 = vmatprep.subr.bf16.mxu0 0
    %4544 = vmatpush2.bf16.msra.mxu0 0
    %4545 = vmatprep.subr.bf16.mxu0 0
    %4546 = vmatpush2.bf16.msra.mxu0 0
    %4547 = vmatprep.subr.bf16.mxu0 0
    %4548 = vmatpush2.bf16.msra.mxu0 0
    %4549 = vmatprep.mubr.bf16.mxu0 0
    %4550 = vmatmul.mubr.bf16.gmra.mxu0 %v4512
    %v4551 = vpop.f32.mrf.mxu0
    %v4552 = vadd.f32 %v4497, %v4551
    %v4553 = vpop.f32.mrf.mxu0
    %v4554 = vpop.f32.mrf.mxu0
    %v4555 = vadd.f32 %v4497, %v4554
    %v4556 = vpop.f32.mrf.mxu0
    %4557 = vmatprep.mubr.bf16.mxu0 0
    %4558 = vmatmul.mubr.bf16.gmra.mxu0 %v4515
    %v4559 = vpop.f32.mrf.mxu0
    %v4560 = vadd.f32 %v4497, %v4559
    %v4561 = vpop.f32.mrf.mxu0
    %v4562 = vpop.f32.mrf.mxu0
    %v4563 = vadd.f32 %v4497, %v4562
    %v4564 = vpop.f32.mrf.mxu0
    %4565 = vdwg.mxu0
    %v4566 = vmax.f32 %v4552, 0.0
    %v4567 = vmax.f32 %v4555, 0.0
    %v4568 = vmax.f32 %v4560, 0.0
    %v4569 = vmax.f32 %v4563, 0.0
    %v4570 = vld [vmem:[%s12] sm:$0xf]
    %v4571 = vld [vmem:[%s12 + $0x4] sm:$0xf]
    %v4572 = vld [vmem:[%s12 + $0x8] sm:$0xf]
    %v4573 = vld [vmem:[%s12 + $0xc] sm:$0xf]
    %v4574 = vld [vmem:[%s12 + $0x10] sm:$0xf]
    %v4575 = vld [vmem:[%s12 + $0x14] sm:$0xf]
    %v4576 = vld [vmem:[%s12 + $0x18] sm:$0xf]
    %v4577 = vld [vmem:[%s12 + $0x1c] sm:$0xf]
    %v4578 = vpack.c.bf16 %v4567, %v4566
    %v4579 = vpack.c.bf16 %v4569, %v4568
    %v4580 = vld [vmem:[%s13] sm:$0x1]
    %v4582 = vlaneseq
    %v4583 = vshrl.u32 %v4582, 7
    %v4584 = vsub.s32 0, %v4583
    %v4585 = vrot.slane %v4580, %v4584
    %v4595 = vunpack.c.l.b16 %v4570
    %v4596 = vunpack.c.l.b16 %v4571
    %v4597 = vunpack.c.l.b16 %v4572
    %v4598 = vunpack.c.l.b16 %v4573
    %v4599 = vunpack.c.l.b16 %v4574
    %v4600 = vunpack.c.l.b16 %v4575
    %v4601 = vunpack.c.l.b16 %v4576
    %v4602 = vunpack.c.l.b16 %v4577
    %v4603 = vpack.c.b16 %v4596, %v4595
    %v4604 = vpack.c.b16 %v4598, %v4597
    %v4605 = vpack.c.b16 %v4600, %v4599
    %v4606 = vpack.c.b16 %v4602, %v4601
    %vm4611 = vcmask 523264
    %v4613 = vsel %vm4611, %v4578, 0
    %v4616 = vsel %vm4611, %v4579, 0
    %4618 = vmatprep.subr.bf16.mxu0 0
    %4619 = vmatpush1.bf16.msra.mxu0 0
    %4620 = vmatprep.subr.bf16.mxu0 0
    %4621 = vmatpush1.bf16.msra.mxu0 0
    %4622 = vmatprep.subr.bf16.mxu0 0
    %4623 = vmatpush1.bf16.msra.mxu0 0
    %4624 = vmatprep.subr.bf16.mxu0 0
    %4625 = vmatpush1.bf16.msra.mxu0 0
    %4626 = vmatprep.subr.bf16.mxu0 0
    %4627 = vmatpush1.bf16.msra.mxu0 %v4606
    %4628 = vmatprep.subr.bf16.mxu0 0
    %4629 = vmatpush1.bf16.msra.mxu0 %v4605
    %4630 = vmatprep.subr.bf16.mxu0 0
    %4631 = vmatpush1.bf16.msra.mxu0 %v4604
    %4632 = vmatprep.subr.bf16.mxu0 0
    %4633 = vmatpush1.bf16.msra.mxu0 %v4603
    %4634 = vmatprep.subr.bf16.mxu0 0
    %4635 = vmatpush2.bf16.msra.mxu0 0
    %4636 = vmatprep.subr.bf16.mxu0 0
    %4637 = vmatpush2.bf16.msra.mxu0 0
    %4638 = vmatprep.subr.bf16.mxu0 0
    %4639 = vmatpush2.bf16.msra.mxu0 0
    %4640 = vmatprep.subr.bf16.mxu0 0
    %4641 = vmatpush2.bf16.msra.mxu0 0
    %4642 = vmatprep.subr.bf16.mxu0 0
    %4643 = vmatpush2.bf16.msra.mxu0 0
    %4644 = vmatprep.subr.bf16.mxu0 0
    %4645 = vmatpush2.bf16.msra.mxu0 0
    %4646 = vmatprep.subr.bf16.mxu0 0
    %4647 = vmatpush2.bf16.msra.mxu0 0
    %4648 = vmatprep.subr.bf16.mxu0 0
    %4649 = vmatpush2.bf16.msra.mxu0 0
    %4650 = vmatprep.mubr.bf16.mxu0 0
    %4651 = vmatmul.mubr.bf16.gmra.mxu0 %v4613
    %v4652 = vpop.f32.mrf.mxu0
    %v4653 = vadd.f32 %v4585, %v4652
    %v4654 = vpop.f32.mrf.mxu0
    %v4655 = vpop.f32.mrf.mxu0
    %v4656 = vadd.f32 %v4585, %v4655
    %v4657 = vpop.f32.mrf.mxu0
    %4658 = vmatprep.mubr.bf16.mxu0 0
    %4659 = vmatmul.mubr.bf16.gmra.mxu0 %v4616
    %v4660 = vpop.f32.mrf.mxu0
    %v4661 = vadd.f32 %v4585, %v4660
    %v4662 = vpop.f32.mrf.mxu0
    %v4663 = vpop.f32.mrf.mxu0
    %v4664 = vadd.f32 %v4585, %v4663
    %v4665 = vpop.f32.mrf.mxu0
    %4666 = vdwg.mxu0
    %v4667 = vadd.f32 %v4482, %v4653
    %v4668 = vadd.f32 %v4483, %v4656
    %v4669 = vadd.f32 %v4484, %v4661
    %v4670 = vadd.f32 %v4485, %v4664
    %v4671 = vld [vmem:[%s14] sm:$0x1]
    %v4672 = vld [vmem:[%s15] sm:$0x1]
    %v4673 = vsel %vm68, %v4667, 0.0
    %4674 = vadd.xlane.f32.xlu0 %v4673
    %v4675 = vpop.xlane.xlu0 %4674
    %v4676 = vsel %vm68, %v4668, 0.0
    %4677 = vadd.xlane.f32.xlu0 %v4676
    %v4678 = vpop.xlane.xlu0 %4677
    %v4679 = vsel %vm68, %v4669, 0.0
    %4680 = vadd.xlane.f32.xlu0 %v4679
    %v4681 = vpop.xlane.xlu0 %4680
    %v4682 = vsel %vm68, %v4670, 0.0
    %4683 = vadd.xlane.f32.xlu0 %v4682
    %v4684 = vpop.xlane.xlu0 %4683
    %v4685 = vmul.f32 %v4675, %v72
    %v4686 = vmul.f32 %v4678, %v72
    %v4687 = vmul.f32 %v4681, %v72
    %v4688 = vmul.f32 %v4684, %v72
    %v4689 = vsub.f32 %v4667, %v4685
    %v4690 = vsub.f32 %v4668, %v4686
    %v4691 = vsub.f32 %v4669, %v4687
    %v4692 = vsub.f32 %v4670, %v4688
    %v4693 = vmul.f32 %v4689, %v4689
    %v4694 = vmul.f32 %v4690, %v4690
    %v4695 = vmul.f32 %v4691, %v4691
    %v4696 = vmul.f32 %v4692, %v4692
    %v4697 = vsel %vm68, %v4693, 0.0
    %4698 = vadd.xlane.f32.xlu0 %v4697
    %v4699 = vpop.xlane.xlu0 %4698
    %v4700 = vsel %vm68, %v4694, 0.0
    %4701 = vadd.xlane.f32.xlu0 %v4700
    %v4702 = vpop.xlane.xlu0 %4701
    %v4703 = vsel %vm68, %v4695, 0.0
    %4704 = vadd.xlane.f32.xlu0 %v4703
    %v4705 = vpop.xlane.xlu0 %4704
    %v4706 = vsel %vm68, %v4696, 0.0
    %4707 = vadd.xlane.f32.xlu0 %v4706
    %v4708 = vpop.xlane.xlu0 %4707
    %v4709 = vmul.f32 %v4699, %v72
    %v4710 = vmul.f32 %v4702, %v72
    %v4711 = vmul.f32 %v4705, %v72
    %v4712 = vmul.f32 %v4708, %v72
    %v4713 = vadd.f32 %v4709, 1e-05
    %v4714 = vadd.f32 %v4710, 1e-05
    %v4715 = vadd.f32 %v4711, 1e-05
    %v4716 = vadd.f32 %v4712, 1e-05
    %v4717 = vrsqrt.pop %v4713
    %v4718 = vrsqrt.pop %v4714
    %v4719 = vrsqrt.pop %v4715
    %v4720 = vrsqrt.pop %v4716
    %v4721 = vmul.f32 %v4689, %v4717
    %v4722 = vmul.f32 %v4690, %v4718
    %v4723 = vmul.f32 %v4691, %v4719
    %v4724 = vmul.f32 %v4692, %v4720
    %v4726 = vlaneseq
    %v4727 = vshrl.u32 %v4726, 7
    %v4728 = vsub.s32 0, %v4727
    %v4729 = vrot.slane %v4671, %v4728
    %v4731 = vmul.f32 %v4721, %v4729
    %v4732 = vmul.f32 %v4722, %v4729
    %v4733 = vmul.f32 %v4723, %v4729
    %v4734 = vmul.f32 %v4724, %v4729
    %v4736 = vlaneseq
    %v4737 = vshrl.u32 %v4736, 7
    %v4738 = vsub.s32 0, %v4737
    %v4739 = vrot.slane %v4672, %v4738
    %v4741 = vadd.f32 %v4731, %v4739
    %v4742 = vadd.f32 %v4732, %v4739
    %v4743 = vadd.f32 %v4733, %v4739
    %v4744 = vadd.f32 %v4734, %v4739
    %s4745 = scalar_lea.vmem %s4, 16
    %v4746 = vld [vmem:[%s4745] sm:$0xf]
    %v4747 = vld [vmem:[%s4745 + $0x4] sm:$0xf]
    %v4748 = vld [vmem:[%s4745 + $0x8] sm:$0xf]
    %v4749 = vld [vmem:[%s4745 + $0xc] sm:$0xf]
    %v4750 = vpack.c.bf16 %v4742, %v4741
    %v4751 = vpack.c.bf16 %v4744, %v4743
    %s4752 = scalar_lea.vmem %s5, 1
    %v4753 = vld [vmem:[%s4752] sm:$0x1]
    %v4755 = vlaneseq
    %v4756 = vshrl.u32 %v4755, 7
    %v4757 = vsub.s32 0, %v4756
    %v4758 = vrot.slane %v4753, %v4757
    %v4764 = vunpack.c.l.b16 %v4746
    %v4765 = vunpack.c.l.b16 %v4747
    %v4766 = vunpack.c.l.b16 %v4748
    %v4767 = vunpack.c.l.b16 %v4749
    %v4768 = vpack.c.b16 %v4765, %v4764
    %v4769 = vpack.c.b16 %v4767, %v4766
    %v4773 = vsel %vm68, %v4750, 0
    %v4776 = vsel %vm68, %v4751, 0
    %4778 = vmatprep.subr.bf16.mxu0 0
    %4779 = vmatpush1.bf16.msra.mxu0 0
    %4780 = vmatprep.subr.bf16.mxu0 0
    %4781 = vmatpush1.bf16.msra.mxu0 0
    %4782 = vmatprep.subr.bf16.mxu0 0
    %4783 = vmatpush1.bf16.msra.mxu0 0
    %4784 = vmatprep.subr.bf16.mxu0 0
    %4785 = vmatpush1.bf16.msra.mxu0 0
    %4786 = vmatprep.subr.bf16.mxu0 0
    %4787 = vmatpush1.bf16.msra.mxu0 0
    %4788 = vmatprep.subr.bf16.mxu0 0
    %4789 = vmatpush1.bf16.msra.mxu0 0
    %4790 = vmatprep.subr.bf16.mxu0 0
    %4791 = vmatpush1.bf16.msra.mxu0 %v4769
    %4792 = vmatprep.subr.bf16.mxu0 0
    %4793 = vmatpush1.bf16.msra.mxu0 %v4768
    %4794 = vmatprep.subr.bf16.mxu0 0
    %4795 = vmatpush2.bf16.msra.mxu0 0
    %4796 = vmatprep.subr.bf16.mxu0 0
    %4797 = vmatpush2.bf16.msra.mxu0 0
    %4798 = vmatprep.subr.bf16.mxu0 0
    %4799 = vmatpush2.bf16.msra.mxu0 0
    %4800 = vmatprep.subr.bf16.mxu0 0
    %4801 = vmatpush2.bf16.msra.mxu0 0
    %4802 = vmatprep.subr.bf16.mxu0 0
    %4803 = vmatpush2.bf16.msra.mxu0 0
    %4804 = vmatprep.subr.bf16.mxu0 0
    %4805 = vmatpush2.bf16.msra.mxu0 0
    %4806 = vmatprep.subr.bf16.mxu0 0
    %4807 = vmatpush2.bf16.msra.mxu0 0
    %4808 = vmatprep.subr.bf16.mxu0 0
    %4809 = vmatpush2.bf16.msra.mxu0 0
    %4810 = vmatprep.mubr.bf16.mxu0 0
    %4811 = vmatmul.mubr.bf16.gmra.mxu0 %v4773
    %v4812 = vpop.f32.mrf.mxu0
    %v4813 = vadd.f32 %v4758, %v4812
    %v4814 = vpop.f32.mrf.mxu0
    %v4815 = vpop.f32.mrf.mxu0
    %v4816 = vadd.f32 %v4758, %v4815
    %v4817 = vpop.f32.mrf.mxu0
    %4818 = vmatprep.mubr.bf16.mxu0 0
    %4819 = vmatmul.mubr.bf16.gmra.mxu0 %v4776
    %v4820 = vpop.f32.mrf.mxu0
    %v4821 = vadd.f32 %v4758, %v4820
    %v4822 = vpop.f32.mrf.mxu0
    %v4823 = vpop.f32.mrf.mxu0
    %v4824 = vadd.f32 %v4758, %v4823
    %v4825 = vpop.f32.mrf.mxu0
    %4826 = vdwg.mxu0
    %4827 = vst.msk [vmem:[#allocation2] sm:$0xf] %vm645, %v4813
    %4828 = vst.msk [vmem:[%s647 - $0x4] sm:$0xf0] %vm648, %v4813
    %4829 = vst.msk [vmem:[%s650] sm:$0xf] %vm645, %v4816
    %4830 = vst.msk [vmem:[%s652 - $0x4] sm:$0xf0] %vm648, %v4816
    %4831 = vst.msk [vmem:[%s654] sm:$0xf] %vm645, %v4821
    %4832 = vst.msk [vmem:[%s656 - $0x4] sm:$0xf0] %vm648, %v4821
    %4833 = vst.msk [vmem:[%s658] sm:$0xf] %vm645, %v4824
    %4834 = vst.msk [vmem:[%s660 - $0x4] sm:$0xf0] %vm648, %v4824
    %v4835 = vld [vmem:[#allocation2] sm:$0xf]
    %v4836 = vld [vmem:[#allocation2 + $0x4] sm:$0xf]
    %v4837 = vld [vmem:[#allocation2 + $0x8] sm:$0xf]
    %v4838 = vld [vmem:[#allocation2 + $0xc] sm:$0xf]
    %v4839 = vld [vmem:[#allocation2 + $0x10] sm:$0xf]
    %v4840 = vld [vmem:[#allocation2 + $0x14] sm:$0xf]
    %v4841 = vld [vmem:[#allocation2 + $0x18] sm:$0xf]
    %v4842 = vld [vmem:[#allocation2 + $0x1c] sm:$0xf]
    %v4843 = vpack.c.bf16 %v4835, %v4835
    %v4844 = vpack.c.bf16 %v4836, %v4836
    %v4845 = vpack.c.bf16 %v4837, %v4837
    %v4846 = vpack.c.bf16 %v4838, %v4838
    %v4847 = vpack.c.bf16 %v4839, %v4839
    %v4848 = vpack.c.bf16 %v4840, %v4840
    %v4849 = vpack.c.bf16 %v4841, %v4841
    %v4850 = vpack.c.bf16 %v4842, %v4842
    %4852 = vrot.lane.b32.xlu0 %v4843, 96
    %v4853 = vpop.permute.xlu0 %4852
    %v4855 = vsel %vm127, %v4843, 0
    %v4858 = vsel %vm127, %v4853, 0
    %4860 = vmatprep.subr.bf16.mxu0 0
    %4861 = vmatpush1.bf16.xpose.msra.mxu0 0
    %4862 = vmatprep.subr.bf16.mxu0 0
    %4863 = vmatpush1.bf16.xpose.msra.mxu0 0
    %4864 = vmatprep.subr.bf16.mxu0 0
    %4865 = vmatpush1.bf16.xpose.msra.mxu0 0
    %4866 = vmatprep.subr.bf16.mxu0 0
    %4867 = vmatpush1.bf16.xpose.msra.mxu0 0
    %4868 = vmatprep.subr.bf16.mxu0 0
    %4869 = vmatpush1.bf16.xpose.msra.mxu0 0
    %4870 = vmatprep.subr.bf16.mxu0 0
    %4871 = vmatpush1.bf16.xpose.msra.mxu0 0
    %4872 = vmatprep.subr.bf16.mxu0 0
    %4873 = vmatpush1.bf16.xpose.msra.mxu0 0
    %4874 = vmatprep.subr.bf16.mxu0 0
    %4875 = vmatpush1.bf16.xpose.msra.mxu0 %v4858
    %4876 = vmatprep.subr.bf16.mxu0 0
    %4877 = vmatpush2.bf16.xpose.msra.mxu0 0
    %4878 = vmatprep.subr.bf16.mxu0 0
    %4879 = vmatpush2.bf16.xpose.msra.mxu0 0
    %4880 = vmatprep.subr.bf16.mxu0 0
    %4881 = vmatpush2.bf16.xpose.msra.mxu0 0
    %4882 = vmatprep.subr.bf16.mxu0 0
    %4883 = vmatpush2.bf16.xpose.msra.mxu0 0
    %4884 = vmatprep.subr.bf16.mxu0 0
    %4885 = vmatpush2.bf16.xpose.msra.mxu0 0
    %4886 = vmatprep.subr.bf16.mxu0 0
    %4887 = vmatpush2.bf16.xpose.msra.mxu0 0
    %4888 = vmatprep.subr.bf16.mxu0 0
    %4889 = vmatpush2.bf16.xpose.msra.mxu0 0
    %4890 = vmatprep.subr.bf16.mxu0 0
    %4891 = vmatpush2.bf16.xpose.msra.mxu0 0
    %4892 = vmatprep.mubr.bf16.mxu0 0
    %4893 = vmatmul.mubr.bf16.gmra.mxu0 %v4855
    %v4894 = vpop.f32.mrf.mxu0
    %v4895 = vadd.f32 0.0, %v4894
    %v4896 = vpop.f32.mrf.mxu0
    %v4897 = vpop.f32.mrf.mxu0
    %v4898 = vpop.f32.mrf.mxu0
    %4899 = vdwg.mxu0
    %4901 = vrot.lane.b32.xlu0 %v4844, 96
    %v4902 = vpop.permute.xlu0 %4901
    %v4904 = vsel %vm127, %v4844, 0
    %v4907 = vsel %vm127, %v4902, 0
    %4909 = vmatprep.subr.bf16.mxu0 0
    %4910 = vmatpush1.bf16.xpose.msra.mxu0 0
    %4911 = vmatprep.subr.bf16.mxu0 0
    %4912 = vmatpush1.bf16.xpose.msra.mxu0 0
    %4913 = vmatprep.subr.bf16.mxu0 0
    %4914 = vmatpush1.bf16.xpose.msra.mxu0 0
    %4915 = vmatprep.subr.bf16.mxu0 0
    %4916 = vmatpush1.bf16.xpose.msra.mxu0 0
    %4917 = vmatprep.subr.bf16.mxu0 0
    %4918 = vmatpush1.bf16.xpose.msra.mxu0 0
    %4919 = vmatprep.subr.bf16.mxu0 0
    %4920 = vmatpush1.bf16.xpose.msra.mxu0 0
    %4921 = vmatprep.subr.bf16.mxu0 0
    %4922 = vmatpush1.bf16.xpose.msra.mxu0 0
    %4923 = vmatprep.subr.bf16.mxu0 0
    %4924 = vmatpush1.bf16.xpose.msra.mxu0 %v4907
    %4925 = vmatprep.subr.bf16.mxu0 0
    %4926 = vmatpush2.bf16.xpose.msra.mxu0 0
    %4927 = vmatprep.subr.bf16.mxu0 0
    %4928 = vmatpush2.bf16.xpose.msra.mxu0 0
    %4929 = vmatprep.subr.bf16.mxu0 0
    %4930 = vmatpush2.bf16.xpose.msra.mxu0 0
    %4931 = vmatprep.subr.bf16.mxu0 0
    %4932 = vmatpush2.bf16.xpose.msra.mxu0 0
    %4933 = vmatprep.subr.bf16.mxu0 0
    %4934 = vmatpush2.bf16.xpose.msra.mxu0 0
    %4935 = vmatprep.subr.bf16.mxu0 0
    %4936 = vmatpush2.bf16.xpose.msra.mxu0 0
    %4937 = vmatprep.subr.bf16.mxu0 0
    %4938 = vmatpush2.bf16.xpose.msra.mxu0 0
    %4939 = vmatprep.subr.bf16.mxu0 0
    %4940 = vmatpush2.bf16.xpose.msra.mxu0 0
    %4941 = vmatprep.mubr.bf16.mxu0 0
    %4942 = vmatmul.mubr.bf16.gmra.mxu0 %v4904
    %v4943 = vpop.f32.mrf.mxu0
    %v4944 = vadd.f32 0.0, %v4943
    %v4945 = vpop.f32.mrf.mxu0
    %v4946 = vpop.f32.mrf.mxu0
    %v4947 = vpop.f32.mrf.mxu0
    %4948 = vdwg.mxu0
    %4950 = vrot.lane.b32.xlu0 %v4845, 96
    %v4951 = vpop.permute.xlu0 %4950
    %v4953 = vsel %vm127, %v4845, 0
    %v4956 = vsel %vm127, %v4951, 0
    %4958 = vmatprep.subr.bf16.mxu0 0
    %4959 = vmatpush1.bf16.xpose.msra.mxu0 0
    %4960 = vmatprep.subr.bf16.mxu0 0
    %4961 = vmatpush1.bf16.xpose.msra.mxu0 0
    %4962 = vmatprep.subr.bf16.mxu0 0
    %4963 = vmatpush1.bf16.xpose.msra.mxu0 0
    %4964 = vmatprep.subr.bf16.mxu0 0
    %4965 = vmatpush1.bf16.xpose.msra.mxu0 0
    %4966 = vmatprep.subr.bf16.mxu0 0
    %4967 = vmatpush1.bf16.xpose.msra.mxu0 0
    %4968 = vmatprep.subr.bf16.mxu0 0
    %4969 = vmatpush1.bf16.xpose.msra.mxu0 0
    %4970 = vmatprep.subr.bf16.mxu0 0
    %4971 = vmatpush1.bf16.xpose.msra.mxu0 0
    %4972 = vmatprep.subr.bf16.mxu0 0
    %4973 = vmatpush1.bf16.xpose.msra.mxu0 %v4956
    %4974 = vmatprep.subr.bf16.mxu0 0
    %4975 = vmatpush2.bf16.xpose.msra.mxu0 0
    %4976 = vmatprep.subr.bf16.mxu0 0
    %4977 = vmatpush2.bf16.xpose.msra.mxu0 0
    %4978 = vmatprep.subr.bf16.mxu0 0
    %4979 = vmatpush2.bf16.xpose.msra.mxu0 0
    %4980 = vmatprep.subr.bf16.mxu0 0
    %4981 = vmatpush2.bf16.xpose.msra.mxu0 0
    %4982 = vmatprep.subr.bf16.mxu0 0
    %4983 = vmatpush2.bf16.xpose.msra.mxu0 0
    %4984 = vmatprep.subr.bf16.mxu0 0
    %4985 = vmatpush2.bf16.xpose.msra.mxu0 0
    %4986 = vmatprep.subr.bf16.mxu0 0
    %4987 = vmatpush2.bf16.xpose.msra.mxu0 0
    %4988 = vmatprep.subr.bf16.mxu0 0
    %4989 = vmatpush2.bf16.xpose.msra.mxu0 0
    %4990 = vmatprep.mubr.bf16.mxu0 0
    %4991 = vmatmul.mubr.bf16.gmra.mxu0 %v4953
    %v4992 = vpop.f32.mrf.mxu0
    %v4993 = vadd.f32 0.0, %v4992
    %v4994 = vpop.f32.mrf.mxu0
    %v4995 = vpop.f32.mrf.mxu0
    %v4996 = vpop.f32.mrf.mxu0
    %4997 = vdwg.mxu0
    %4999 = vrot.lane.b32.xlu0 %v4846, 96
    %v5000 = vpop.permute.xlu0 %4999
    %v5002 = vsel %vm127, %v4846, 0
    %v5005 = vsel %vm127, %v5000, 0
    %5007 = vmatprep.subr.bf16.mxu0 0
    %5008 = vmatpush1.bf16.xpose.msra.mxu0 0
    %5009 = vmatprep.subr.bf16.mxu0 0
    %5010 = vmatpush1.bf16.xpose.msra.mxu0 0
    %5011 = vmatprep.subr.bf16.mxu0 0
    %5012 = vmatpush1.bf16.xpose.msra.mxu0 0
    %5013 = vmatprep.subr.bf16.mxu0 0
    %5014 = vmatpush1.bf16.xpose.msra.mxu0 0
    %5015 = vmatprep.subr.bf16.mxu0 0
    %5016 = vmatpush1.bf16.xpose.msra.mxu0 0
    %5017 = vmatprep.subr.bf16.mxu0 0
    %5018 = vmatpush1.bf16.xpose.msra.mxu0 0
    %5019 = vmatprep.subr.bf16.mxu0 0
    %5020 = vmatpush1.bf16.xpose.msra.mxu0 0
    %5021 = vmatprep.subr.bf16.mxu0 0
    %5022 = vmatpush1.bf16.xpose.msra.mxu0 %v5005
    %5023 = vmatprep.subr.bf16.mxu0 0
    %5024 = vmatpush2.bf16.xpose.msra.mxu0 0
    %5025 = vmatprep.subr.bf16.mxu0 0
    %5026 = vmatpush2.bf16.xpose.msra.mxu0 0
    %5027 = vmatprep.subr.bf16.mxu0 0
    %5028 = vmatpush2.bf16.xpose.msra.mxu0 0
    %5029 = vmatprep.subr.bf16.mxu0 0
    %5030 = vmatpush2.bf16.xpose.msra.mxu0 0
    %5031 = vmatprep.subr.bf16.mxu0 0
    %5032 = vmatpush2.bf16.xpose.msra.mxu0 0
    %5033 = vmatprep.subr.bf16.mxu0 0
    %5034 = vmatpush2.bf16.xpose.msra.mxu0 0
    %5035 = vmatprep.subr.bf16.mxu0 0
    %5036 = vmatpush2.bf16.xpose.msra.mxu0 0
    %5037 = vmatprep.subr.bf16.mxu0 0
    %5038 = vmatpush2.bf16.xpose.msra.mxu0 0
    %5039 = vmatprep.mubr.bf16.mxu0 0
    %5040 = vmatmul.mubr.bf16.gmra.mxu0 %v5002
    %v5041 = vpop.f32.mrf.mxu0
    %v5042 = vadd.f32 0.0, %v5041
    %v5043 = vpop.f32.mrf.mxu0
    %v5044 = vpop.f32.mrf.mxu0
    %v5045 = vpop.f32.mrf.mxu0
    %5046 = vdwg.mxu0
    %5048 = vrot.lane.b32.xlu0 %v4847, 96
    %v5049 = vpop.permute.xlu0 %5048
    %v5051 = vsel %vm127, %v4847, 0
    %v5054 = vsel %vm127, %v5049, 0
    %5056 = vmatprep.subr.bf16.mxu0 0
    %5057 = vmatpush1.bf16.xpose.msra.mxu0 0
    %5058 = vmatprep.subr.bf16.mxu0 0
    %5059 = vmatpush1.bf16.xpose.msra.mxu0 0
    %5060 = vmatprep.subr.bf16.mxu0 0
    %5061 = vmatpush1.bf16.xpose.msra.mxu0 0
    %5062 = vmatprep.subr.bf16.mxu0 0
    %5063 = vmatpush1.bf16.xpose.msra.mxu0 0
    %5064 = vmatprep.subr.bf16.mxu0 0
    %5065 = vmatpush1.bf16.xpose.msra.mxu0 0
    %5066 = vmatprep.subr.bf16.mxu0 0
    %5067 = vmatpush1.bf16.xpose.msra.mxu0 0
    %5068 = vmatprep.subr.bf16.mxu0 0
    %5069 = vmatpush1.bf16.xpose.msra.mxu0 0
    %5070 = vmatprep.subr.bf16.mxu0 0
    %5071 = vmatpush1.bf16.xpose.msra.mxu0 %v5054
    %5072 = vmatprep.subr.bf16.mxu0 0
    %5073 = vmatpush2.bf16.xpose.msra.mxu0 0
    %5074 = vmatprep.subr.bf16.mxu0 0
    %5075 = vmatpush2.bf16.xpose.msra.mxu0 0
    %5076 = vmatprep.subr.bf16.mxu0 0
    %5077 = vmatpush2.bf16.xpose.msra.mxu0 0
    %5078 = vmatprep.subr.bf16.mxu0 0
    %5079 = vmatpush2.bf16.xpose.msra.mxu0 0
    %5080 = vmatprep.subr.bf16.mxu0 0
    %5081 = vmatpush2.bf16.xpose.msra.mxu0 0
    %5082 = vmatprep.subr.bf16.mxu0 0
    %5083 = vmatpush2.bf16.xpose.msra.mxu0 0
    %5084 = vmatprep.subr.bf16.mxu0 0
    %5085 = vmatpush2.bf16.xpose.msra.mxu0 0
    %5086 = vmatprep.subr.bf16.mxu0 0
    %5087 = vmatpush2.bf16.xpose.msra.mxu0 0
    %5088 = vmatprep.mubr.bf16.mxu0 0
    %5089 = vmatmul.mubr.bf16.gmra.mxu0 %v5051
    %v5090 = vpop.f32.mrf.mxu0
    %v5091 = vadd.f32 0.0, %v5090
    %v5092 = vpop.f32.mrf.mxu0
    %v5093 = vpop.f32.mrf.mxu0
    %v5094 = vpop.f32.mrf.mxu0
    %5095 = vdwg.mxu0
    %5097 = vrot.lane.b32.xlu0 %v4848, 96
    %v5098 = vpop.permute.xlu0 %5097
    %v5100 = vsel %vm127, %v4848, 0
    %v5103 = vsel %vm127, %v5098, 0
    %5105 = vmatprep.subr.bf16.mxu0 0
    %5106 = vmatpush1.bf16.xpose.msra.mxu0 0
    %5107 = vmatprep.subr.bf16.mxu0 0
    %5108 = vmatpush1.bf16.xpose.msra.mxu0 0
    %5109 = vmatprep.subr.bf16.mxu0 0
    %5110 = vmatpush1.bf16.xpose.msra.mxu0 0
    %5111 = vmatprep.subr.bf16.mxu0 0
    %5112 = vmatpush1.bf16.xpose.msra.mxu0 0
    %5113 = vmatprep.subr.bf16.mxu0 0
    %5114 = vmatpush1.bf16.xpose.msra.mxu0 0
    %5115 = vmatprep.subr.bf16.mxu0 0
    %5116 = vmatpush1.bf16.xpose.msra.mxu0 0
    %5117 = vmatprep.subr.bf16.mxu0 0
    %5118 = vmatpush1.bf16.xpose.msra.mxu0 0
    %5119 = vmatprep.subr.bf16.mxu0 0
    %5120 = vmatpush1.bf16.xpose.msra.mxu0 %v5103
    %5121 = vmatprep.subr.bf16.mxu0 0
    %5122 = vmatpush2.bf16.xpose.msra.mxu0 0
    %5123 = vmatprep.subr.bf16.mxu0 0
    %5124 = vmatpush2.bf16.xpose.msra.mxu0 0
    %5125 = vmatprep.subr.bf16.mxu0 0
    %5126 = vmatpush2.bf16.xpose.msra.mxu0 0
    %5127 = vmatprep.subr.bf16.mxu0 0
    %5128 = vmatpush2.bf16.xpose.msra.mxu0 0
    %5129 = vmatprep.subr.bf16.mxu0 0
    %5130 = vmatpush2.bf16.xpose.msra.mxu0 0
    %5131 = vmatprep.subr.bf16.mxu0 0
    %5132 = vmatpush2.bf16.xpose.msra.mxu0 0
    %5133 = vmatprep.subr.bf16.mxu0 0
    %5134 = vmatpush2.bf16.xpose.msra.mxu0 0
    %5135 = vmatprep.subr.bf16.mxu0 0
    %5136 = vmatpush2.bf16.xpose.msra.mxu0 0
    %5137 = vmatprep.mubr.bf16.mxu0 0
    %5138 = vmatmul.mubr.bf16.gmra.mxu0 %v5100
    %v5139 = vpop.f32.mrf.mxu0
    %v5140 = vadd.f32 0.0, %v5139
    %v5141 = vpop.f32.mrf.mxu0
    %v5142 = vpop.f32.mrf.mxu0
    %v5143 = vpop.f32.mrf.mxu0
    %5144 = vdwg.mxu0
    %5146 = vrot.lane.b32.xlu0 %v4849, 96
    %v5147 = vpop.permute.xlu0 %5146
    %v5149 = vsel %vm127, %v4849, 0
    %v5152 = vsel %vm127, %v5147, 0
    %5154 = vmatprep.subr.bf16.mxu0 0
    %5155 = vmatpush1.bf16.xpose.msra.mxu0 0
    %5156 = vmatprep.subr.bf16.mxu0 0
    %5157 = vmatpush1.bf16.xpose.msra.mxu0 0
    %5158 = vmatprep.subr.bf16.mxu0 0
    %5159 = vmatpush1.bf16.xpose.msra.mxu0 0
    %5160 = vmatprep.subr.bf16.mxu0 0
    %5161 = vmatpush1.bf16.xpose.msra.mxu0 0
    %5162 = vmatprep.subr.bf16.mxu0 0
    %5163 = vmatpush1.bf16.xpose.msra.mxu0 0
    %5164 = vmatprep.subr.bf16.mxu0 0
    %5165 = vmatpush1.bf16.xpose.msra.mxu0 0
    %5166 = vmatprep.subr.bf16.mxu0 0
    %5167 = vmatpush1.bf16.xpose.msra.mxu0 0
    %5168 = vmatprep.subr.bf16.mxu0 0
    %5169 = vmatpush1.bf16.xpose.msra.mxu0 %v5152
    %5170 = vmatprep.subr.bf16.mxu0 0
    %5171 = vmatpush2.bf16.xpose.msra.mxu0 0
    %5172 = vmatprep.subr.bf16.mxu0 0
    %5173 = vmatpush2.bf16.xpose.msra.mxu0 0
    %5174 = vmatprep.subr.bf16.mxu0 0
    %5175 = vmatpush2.bf16.xpose.msra.mxu0 0
    %5176 = vmatprep.subr.bf16.mxu0 0
    %5177 = vmatpush2.bf16.xpose.msra.mxu0 0
    %5178 = vmatprep.subr.bf16.mxu0 0
    %5179 = vmatpush2.bf16.xpose.msra.mxu0 0
    %5180 = vmatprep.subr.bf16.mxu0 0
    %5181 = vmatpush2.bf16.xpose.msra.mxu0 0
    %5182 = vmatprep.subr.bf16.mxu0 0
    %5183 = vmatpush2.bf16.xpose.msra.mxu0 0
    %5184 = vmatprep.subr.bf16.mxu0 0
    %5185 = vmatpush2.bf16.xpose.msra.mxu0 0
    %5186 = vmatprep.mubr.bf16.mxu0 0
    %5187 = vmatmul.mubr.bf16.gmra.mxu0 %v5149
    %v5188 = vpop.f32.mrf.mxu0
    %v5189 = vadd.f32 0.0, %v5188
    %v5190 = vpop.f32.mrf.mxu0
    %v5191 = vpop.f32.mrf.mxu0
    %v5192 = vpop.f32.mrf.mxu0
    %5193 = vdwg.mxu0
    %5195 = vrot.lane.b32.xlu0 %v4850, 96
    %v5196 = vpop.permute.xlu0 %5195
    %v5198 = vsel %vm127, %v4850, 0
    %v5201 = vsel %vm127, %v5196, 0
    %5203 = vmatprep.subr.bf16.mxu0 0
    %5204 = vmatpush1.bf16.xpose.msra.mxu0 0
    %5205 = vmatprep.subr.bf16.mxu0 0
    %5206 = vmatpush1.bf16.xpose.msra.mxu0 0
    %5207 = vmatprep.subr.bf16.mxu0 0
    %5208 = vmatpush1.bf16.xpose.msra.mxu0 0
    %5209 = vmatprep.subr.bf16.mxu0 0
    %5210 = vmatpush1.bf16.xpose.msra.mxu0 0
    %5211 = vmatprep.subr.bf16.mxu0 0
    %5212 = vmatpush1.bf16.xpose.msra.mxu0 0
    %5213 = vmatprep.subr.bf16.mxu0 0
    %5214 = vmatpush1.bf16.xpose.msra.mxu0 0
    %5215 = vmatprep.subr.bf16.mxu0 0
    %5216 = vmatpush1.bf16.xpose.msra.mxu0 0
    %5217 = vmatprep.subr.bf16.mxu0 0
    %5218 = vmatpush1.bf16.xpose.msra.mxu0 %v5201
    %5219 = vmatprep.subr.bf16.mxu0 0
    %5220 = vmatpush2.bf16.xpose.msra.mxu0 0
    %5221 = vmatprep.subr.bf16.mxu0 0
    %5222 = vmatpush2.bf16.xpose.msra.mxu0 0
    %5223 = vmatprep.subr.bf16.mxu0 0
    %5224 = vmatpush2.bf16.xpose.msra.mxu0 0
    %5225 = vmatprep.subr.bf16.mxu0 0
    %5226 = vmatpush2.bf16.xpose.msra.mxu0 0
    %5227 = vmatprep.subr.bf16.mxu0 0
    %5228 = vmatpush2.bf16.xpose.msra.mxu0 0
    %5229 = vmatprep.subr.bf16.mxu0 0
    %5230 = vmatpush2.bf16.xpose.msra.mxu0 0
    %5231 = vmatprep.subr.bf16.mxu0 0
    %5232 = vmatpush2.bf16.xpose.msra.mxu0 0
    %5233 = vmatprep.subr.bf16.mxu0 0
    %5234 = vmatpush2.bf16.xpose.msra.mxu0 0
    %5235 = vmatprep.mubr.bf16.mxu0 0
    %5236 = vmatmul.mubr.bf16.gmra.mxu0 %v5198
    %v5237 = vpop.f32.mrf.mxu0
    %v5238 = vadd.f32 0.0, %v5237
    %v5239 = vpop.f32.mrf.mxu0
    %v5240 = vpop.f32.mrf.mxu0
    %v5241 = vpop.f32.mrf.mxu0
    %5242 = vdwg.mxu0
    %v5243 = vsel %vm1070, %v4895, -inf
    %5244 = vmax.xlane.f32.xlu0 %v5243
    %v5245 = vpop.xlane.xlu0 %5244
    %v5246 = vsel %vm1070, %v4944, -inf
    %5247 = vmax.xlane.f32.xlu0 %v5246
    %v5248 = vpop.xlane.xlu0 %5247
    %v5249 = vsel %vm1070, %v4993, -inf
    %5250 = vmax.xlane.f32.xlu0 %v5249
    %v5251 = vpop.xlane.xlu0 %5250
    %v5252 = vsel %vm1070, %v5042, -inf
    %5253 = vmax.xlane.f32.xlu0 %v5252
    %v5254 = vpop.xlane.xlu0 %5253
    %v5255 = vsel %vm1070, %v5091, -inf
    %5256 = vmax.xlane.f32.xlu0 %v5255
    %v5257 = vpop.xlane.xlu0 %5256
    %v5258 = vsel %vm1070, %v5140, -inf
    %5259 = vmax.xlane.f32.xlu0 %v5258
    %v5260 = vpop.xlane.xlu0 %5259
    %v5261 = vsel %vm1070, %v5189, -inf
    %5262 = vmax.xlane.f32.xlu0 %v5261
    %v5263 = vpop.xlane.xlu0 %5262
    %v5264 = vsel %vm1070, %v5238, -inf
    %5265 = vmax.xlane.f32.xlu0 %v5264
    %v5266 = vpop.xlane.xlu0 %5265
    %v5267 = vsub.f32 %v4895, %v5245
    %v5268 = vsub.f32 %v4944, %v5248
    %v5269 = vsub.f32 %v4993, %v5251
    %v5270 = vsub.f32 %v5042, %v5254
    %v5271 = vsub.f32 %v5091, %v5257
    %v5272 = vsub.f32 %v5140, %v5260
    %v5273 = vsub.f32 %v5189, %v5263
    %v5274 = vsub.f32 %v5238, %v5266
    %v5275 = vmul.f32 %v5267, 1.442695
    %v5276 = vpow.pop %v5275
    %v5277 = vmul.f32 %v5268, 1.442695
    %v5278 = vpow.pop %v5277
    %v5279 = vmul.f32 %v5269, 1.442695
    %v5280 = vpow.pop %v5279
    %v5281 = vmul.f32 %v5270, 1.442695
    %v5282 = vpow.pop %v5281
    %v5283 = vmul.f32 %v5271, 1.442695
    %v5284 = vpow.pop %v5283
    %v5285 = vmul.f32 %v5272, 1.442695
    %v5286 = vpow.pop %v5285
    %v5287 = vmul.f32 %v5273, 1.442695
    %v5288 = vpow.pop %v5287
    %v5289 = vmul.f32 %v5274, 1.442695
    %v5290 = vpow.pop %v5289
    %v5291 = vsel %vm1070, %v5276, 0.0
    %5292 = vadd.xlane.f32.xlu0 %v5291
    %v5293 = vpop.xlane.xlu0 %5292
    %v5294 = vsel %vm1070, %v5278, 0.0
    %5295 = vadd.xlane.f32.xlu0 %v5294
    %v5296 = vpop.xlane.xlu0 %5295
    %v5297 = vsel %vm1070, %v5280, 0.0
    %5298 = vadd.xlane.f32.xlu0 %v5297
    %v5299 = vpop.xlane.xlu0 %5298
    %v5300 = vsel %vm1070, %v5282, 0.0
    %5301 = vadd.xlane.f32.xlu0 %v5300
    %v5302 = vpop.xlane.xlu0 %5301
    %v5303 = vsel %vm1070, %v5284, 0.0
    %5304 = vadd.xlane.f32.xlu0 %v5303
    %v5305 = vpop.xlane.xlu0 %5304
    %v5306 = vsel %vm1070, %v5286, 0.0
    %5307 = vadd.xlane.f32.xlu0 %v5306
    %v5308 = vpop.xlane.xlu0 %5307
    %v5309 = vsel %vm1070, %v5288, 0.0
    %5310 = vadd.xlane.f32.xlu0 %v5309
    %v5311 = vpop.xlane.xlu0 %5310
    %v5312 = vsel %vm1070, %v5290, 0.0
    %5313 = vadd.xlane.f32.xlu0 %v5312
    %v5314 = vpop.xlane.xlu0 %5313
    %v5315 = vrcp.pop %v5293
    %v5316 = vrcp.pop %v5296
    %v5317 = vrcp.pop %v5299
    %v5318 = vrcp.pop %v5302
    %v5319 = vrcp.pop %v5305
    %v5320 = vrcp.pop %v5308
    %v5321 = vrcp.pop %v5311
    %v5322 = vrcp.pop %v5314
    %v5323 = vmul.f32 %v5276, %v5315
    %v5324 = vmul.f32 %v5278, %v5316
    %v5325 = vmul.f32 %v5280, %v5317
    %v5326 = vmul.f32 %v5282, %v5318
    %v5327 = vmul.f32 %v5284, %v5319
    %v5328 = vmul.f32 %v5286, %v5320
    %v5329 = vmul.f32 %v5288, %v5321
    %v5330 = vmul.f32 %v5290, %v5322
    %v5331 = vpack.c.bf16 %v5323, %v5323
    %v5332 = vpack.c.bf16 %v5324, %v5324
    %v5333 = vpack.c.bf16 %v5325, %v5325
    %v5334 = vpack.c.bf16 %v5326, %v5326
    %v5335 = vpack.c.bf16 %v5327, %v5327
    %v5336 = vpack.c.bf16 %v5328, %v5328
    %v5337 = vpack.c.bf16 %v5329, %v5329
    %v5338 = vpack.c.bf16 %v5330, %v5330
    %5339 = vrot.lane.b32.xlu0 %v4843, 64
    %v5340 = vpop.permute.xlu0 %5339
    %v5342 = vsel %vm365, %v5331, 0
    %v5345 = vsel %vm1172, %v5340, 0
    %5347 = vmatprep.subr.bf16.mxu0 0
    %5348 = vmatpush1.bf16.msra.mxu0 0
    %5349 = vmatprep.subr.bf16.mxu0 0
    %5350 = vmatpush1.bf16.msra.mxu0 0
    %5351 = vmatprep.subr.bf16.mxu0 0
    %5352 = vmatpush1.bf16.msra.mxu0 0
    %5353 = vmatprep.subr.bf16.mxu0 0
    %5354 = vmatpush1.bf16.msra.mxu0 0
    %5355 = vmatprep.subr.bf16.mxu0 0
    %5356 = vmatpush1.bf16.msra.mxu0 0
    %5357 = vmatprep.subr.bf16.mxu0 0
    %5358 = vmatpush1.bf16.msra.mxu0 0
    %5359 = vmatprep.subr.bf16.mxu0 0
    %5360 = vmatpush1.bf16.msra.mxu0 0
    %5361 = vmatprep.subr.bf16.mxu0 0
    %5362 = vmatpush1.bf16.msra.mxu0 %v5345
    %5363 = vmatprep.subr.bf16.mxu0 0
    %5364 = vmatpush2.bf16.msra.mxu0 0
    %5365 = vmatprep.subr.bf16.mxu0 0
    %5366 = vmatpush2.bf16.msra.mxu0 0
    %5367 = vmatprep.subr.bf16.mxu0 0
    %5368 = vmatpush2.bf16.msra.mxu0 0
    %5369 = vmatprep.subr.bf16.mxu0 0
    %5370 = vmatpush2.bf16.msra.mxu0 0
    %5371 = vmatprep.subr.bf16.mxu0 0
    %5372 = vmatpush2.bf16.msra.mxu0 0
    %5373 = vmatprep.subr.bf16.mxu0 0
    %5374 = vmatpush2.bf16.msra.mxu0 0
    %5375 = vmatprep.subr.bf16.mxu0 0
    %5376 = vmatpush2.bf16.msra.mxu0 0
    %5377 = vmatprep.subr.bf16.mxu0 0
    %5378 = vmatpush2.bf16.msra.mxu0 0
    %5379 = vmatprep.mubr.bf16.mxu0 0
    %5380 = vmatmul.mubr.bf16.gmra.mxu0 %v5342
    %v5381 = vpop.f32.mrf.mxu0
    %v5382 = vadd.f32 0.0, %v5381
    %v5383 = vpop.f32.mrf.mxu0
    %v5384 = vpop.f32.mrf.mxu0
    %v5385 = vpop.f32.mrf.mxu0
    %5386 = vdwg.mxu0
    %5387 = vrot.lane.b32.xlu0 %v4844, 64
    %v5388 = vpop.permute.xlu0 %5387
    %v5390 = vsel %vm365, %v5332, 0
    %v5393 = vsel %vm1172, %v5388, 0
    %5395 = vmatprep.subr.bf16.mxu0 0
    %5396 = vmatpush1.bf16.msra.mxu0 0
    %5397 = vmatprep.subr.bf16.mxu0 0
    %5398 = vmatpush1.bf16.msra.mxu0 0
    %5399 = vmatprep.subr.bf16.mxu0 0
    %5400 = vmatpush1.bf16.msra.mxu0 0
    %5401 = vmatprep.subr.bf16.mxu0 0
    %5402 = vmatpush1.bf16.msra.mxu0 0
    %5403 = vmatprep.subr.bf16.mxu0 0
    %5404 = vmatpush1.bf16.msra.mxu0 0
    %5405 = vmatprep.subr.bf16.mxu0 0
    %5406 = vmatpush1.bf16.msra.mxu0 0
    %5407 = vmatprep.subr.bf16.mxu0 0
    %5408 = vmatpush1.bf16.msra.mxu0 0
    %5409 = vmatprep.subr.bf16.mxu0 0
    %5410 = vmatpush1.bf16.msra.mxu0 %v5393
    %5411 = vmatprep.subr.bf16.mxu0 0
    %5412 = vmatpush2.bf16.msra.mxu0 0
    %5413 = vmatprep.subr.bf16.mxu0 0
    %5414 = vmatpush2.bf16.msra.mxu0 0
    %5415 = vmatprep.subr.bf16.mxu0 0
    %5416 = vmatpush2.bf16.msra.mxu0 0
    %5417 = vmatprep.subr.bf16.mxu0 0
    %5418 = vmatpush2.bf16.msra.mxu0 0
    %5419 = vmatprep.subr.bf16.mxu0 0
    %5420 = vmatpush2.bf16.msra.mxu0 0
    %5421 = vmatprep.subr.bf16.mxu0 0
    %5422 = vmatpush2.bf16.msra.mxu0 0
    %5423 = vmatprep.subr.bf16.mxu0 0
    %5424 = vmatpush2.bf16.msra.mxu0 0
    %5425 = vmatprep.subr.bf16.mxu0 0
    %5426 = vmatpush2.bf16.msra.mxu0 0
    %5427 = vmatprep.mubr.bf16.mxu0 0
    %5428 = vmatmul.mubr.bf16.gmra.mxu0 %v5390
    %v5429 = vpop.f32.mrf.mxu0
    %v5430 = vadd.f32 0.0, %v5429
    %v5431 = vpop.f32.mrf.mxu0
    %v5432 = vpop.f32.mrf.mxu0
    %v5433 = vpop.f32.mrf.mxu0
    %5434 = vdwg.mxu0
    %5435 = vrot.lane.b32.xlu0 %v4845, 64
    %v5436 = vpop.permute.xlu0 %5435
    %v5438 = vsel %vm365, %v5333, 0
    %v5441 = vsel %vm1172, %v5436, 0
    %5443 = vmatprep.subr.bf16.mxu0 0
    %5444 = vmatpush1.bf16.msra.mxu0 0
    %5445 = vmatprep.subr.bf16.mxu0 0
    %5446 = vmatpush1.bf16.msra.mxu0 0
    %5447 = vmatprep.subr.bf16.mxu0 0
    %5448 = vmatpush1.bf16.msra.mxu0 0
    %5449 = vmatprep.subr.bf16.mxu0 0
    %5450 = vmatpush1.bf16.msra.mxu0 0
    %5451 = vmatprep.subr.bf16.mxu0 0
    %5452 = vmatpush1.bf16.msra.mxu0 0
    %5453 = vmatprep.subr.bf16.mxu0 0
    %5454 = vmatpush1.bf16.msra.mxu0 0
    %5455 = vmatprep.subr.bf16.mxu0 0
    %5456 = vmatpush1.bf16.msra.mxu0 0
    %5457 = vmatprep.subr.bf16.mxu0 0
    %5458 = vmatpush1.bf16.msra.mxu0 %v5441
    %5459 = vmatprep.subr.bf16.mxu0 0
    %5460 = vmatpush2.bf16.msra.mxu0 0
    %5461 = vmatprep.subr.bf16.mxu0 0
    %5462 = vmatpush2.bf16.msra.mxu0 0
    %5463 = vmatprep.subr.bf16.mxu0 0
    %5464 = vmatpush2.bf16.msra.mxu0 0
    %5465 = vmatprep.subr.bf16.mxu0 0
    %5466 = vmatpush2.bf16.msra.mxu0 0
    %5467 = vmatprep.subr.bf16.mxu0 0
    %5468 = vmatpush2.bf16.msra.mxu0 0
    %5469 = vmatprep.subr.bf16.mxu0 0
    %5470 = vmatpush2.bf16.msra.mxu0 0
    %5471 = vmatprep.subr.bf16.mxu0 0
    %5472 = vmatpush2.bf16.msra.mxu0 0
    %5473 = vmatprep.subr.bf16.mxu0 0
    %5474 = vmatpush2.bf16.msra.mxu0 0
    %5475 = vmatprep.mubr.bf16.mxu0 0
    %5476 = vmatmul.mubr.bf16.gmra.mxu0 %v5438
    %v5477 = vpop.f32.mrf.mxu0
    %v5478 = vadd.f32 0.0, %v5477
    %v5479 = vpop.f32.mrf.mxu0
    %v5480 = vpop.f32.mrf.mxu0
    %v5481 = vpop.f32.mrf.mxu0
    %5482 = vdwg.mxu0
    %5483 = vrot.lane.b32.xlu0 %v4846, 64
    %v5484 = vpop.permute.xlu0 %5483
    %v5486 = vsel %vm365, %v5334, 0
    %v5489 = vsel %vm1172, %v5484, 0
    %5491 = vmatprep.subr.bf16.mxu0 0
    %5492 = vmatpush1.bf16.msra.mxu0 0
    %5493 = vmatprep.subr.bf16.mxu0 0
    %5494 = vmatpush1.bf16.msra.mxu0 0
    %5495 = vmatprep.subr.bf16.mxu0 0
    %5496 = vmatpush1.bf16.msra.mxu0 0
    %5497 = vmatprep.subr.bf16.mxu0 0
    %5498 = vmatpush1.bf16.msra.mxu0 0
    %5499 = vmatprep.subr.bf16.mxu0 0
    %5500 = vmatpush1.bf16.msra.mxu0 0
    %5501 = vmatprep.subr.bf16.mxu0 0
    %5502 = vmatpush1.bf16.msra.mxu0 0
    %5503 = vmatprep.subr.bf16.mxu0 0
    %5504 = vmatpush1.bf16.msra.mxu0 0
    %5505 = vmatprep.subr.bf16.mxu0 0
    %5506 = vmatpush1.bf16.msra.mxu0 %v5489
    %5507 = vmatprep.subr.bf16.mxu0 0
    %5508 = vmatpush2.bf16.msra.mxu0 0
    %5509 = vmatprep.subr.bf16.mxu0 0
    %5510 = vmatpush2.bf16.msra.mxu0 0
    %5511 = vmatprep.subr.bf16.mxu0 0
    %5512 = vmatpush2.bf16.msra.mxu0 0
    %5513 = vmatprep.subr.bf16.mxu0 0
    %5514 = vmatpush2.bf16.msra.mxu0 0
    %5515 = vmatprep.subr.bf16.mxu0 0
    %5516 = vmatpush2.bf16.msra.mxu0 0
    %5517 = vmatprep.subr.bf16.mxu0 0
    %5518 = vmatpush2.bf16.msra.mxu0 0
    %5519 = vmatprep.subr.bf16.mxu0 0
    %5520 = vmatpush2.bf16.msra.mxu0 0
    %5521 = vmatprep.subr.bf16.mxu0 0
    %5522 = vmatpush2.bf16.msra.mxu0 0
    %5523 = vmatprep.mubr.bf16.mxu0 0
    %5524 = vmatmul.mubr.bf16.gmra.mxu0 %v5486
    %v5525 = vpop.f32.mrf.mxu0
    %v5526 = vadd.f32 0.0, %v5525
    %v5527 = vpop.f32.mrf.mxu0
    %v5528 = vpop.f32.mrf.mxu0
    %v5529 = vpop.f32.mrf.mxu0
    %5530 = vdwg.mxu0
    %5531 = vrot.lane.b32.xlu0 %v4847, 64
    %v5532 = vpop.permute.xlu0 %5531
    %v5534 = vsel %vm365, %v5335, 0
    %v5537 = vsel %vm1172, %v5532, 0
    %5539 = vmatprep.subr.bf16.mxu0 0
    %5540 = vmatpush1.bf16.msra.mxu0 0
    %5541 = vmatprep.subr.bf16.mxu0 0
    %5542 = vmatpush1.bf16.msra.mxu0 0
    %5543 = vmatprep.subr.bf16.mxu0 0
    %5544 = vmatpush1.bf16.msra.mxu0 0
    %5545 = vmatprep.subr.bf16.mxu0 0
    %5546 = vmatpush1.bf16.msra.mxu0 0
    %5547 = vmatprep.subr.bf16.mxu0 0
    %5548 = vmatpush1.bf16.msra.mxu0 0
    %5549 = vmatprep.subr.bf16.mxu0 0
    %5550 = vmatpush1.bf16.msra.mxu0 0
    %5551 = vmatprep.subr.bf16.mxu0 0
    %5552 = vmatpush1.bf16.msra.mxu0 0
    %5553 = vmatprep.subr.bf16.mxu0 0
    %5554 = vmatpush1.bf16.msra.mxu0 %v5537
    %5555 = vmatprep.subr.bf16.mxu0 0
    %5556 = vmatpush2.bf16.msra.mxu0 0
    %5557 = vmatprep.subr.bf16.mxu0 0
    %5558 = vmatpush2.bf16.msra.mxu0 0
    %5559 = vmatprep.subr.bf16.mxu0 0
    %5560 = vmatpush2.bf16.msra.mxu0 0
    %5561 = vmatprep.subr.bf16.mxu0 0
    %5562 = vmatpush2.bf16.msra.mxu0 0
    %5563 = vmatprep.subr.bf16.mxu0 0
    %5564 = vmatpush2.bf16.msra.mxu0 0
    %5565 = vmatprep.subr.bf16.mxu0 0
    %5566 = vmatpush2.bf16.msra.mxu0 0
    %5567 = vmatprep.subr.bf16.mxu0 0
    %5568 = vmatpush2.bf16.msra.mxu0 0
    %5569 = vmatprep.subr.bf16.mxu0 0
    %5570 = vmatpush2.bf16.msra.mxu0 0
    %5571 = vmatprep.mubr.bf16.mxu0 0
    %5572 = vmatmul.mubr.bf16.gmra.mxu0 %v5534
    %v5573 = vpop.f32.mrf.mxu0
    %v5574 = vadd.f32 0.0, %v5573
    %v5575 = vpop.f32.mrf.mxu0
    %v5576 = vpop.f32.mrf.mxu0
    %v5577 = vpop.f32.mrf.mxu0
    %5578 = vdwg.mxu0
    %5579 = vrot.lane.b32.xlu0 %v4848, 64
    %v5580 = vpop.permute.xlu0 %5579
    %v5582 = vsel %vm365, %v5336, 0
    %v5585 = vsel %vm1172, %v5580, 0
    %5587 = vmatprep.subr.bf16.mxu0 0
    %5588 = vmatpush1.bf16.msra.mxu0 0
    %5589 = vmatprep.subr.bf16.mxu0 0
    %5590 = vmatpush1.bf16.msra.mxu0 0
    %5591 = vmatprep.subr.bf16.mxu0 0
    %5592 = vmatpush1.bf16.msra.mxu0 0
    %5593 = vmatprep.subr.bf16.mxu0 0
    %5594 = vmatpush1.bf16.msra.mxu0 0
    %5595 = vmatprep.subr.bf16.mxu0 0
    %5596 = vmatpush1.bf16.msra.mxu0 0
    %5597 = vmatprep.subr.bf16.mxu0 0
    %5598 = vmatpush1.bf16.msra.mxu0 0
    %5599 = vmatprep.subr.bf16.mxu0 0
    %5600 = vmatpush1.bf16.msra.mxu0 0
    %5601 = vmatprep.subr.bf16.mxu0 0
    %5602 = vmatpush1.bf16.msra.mxu0 %v5585
    %5603 = vmatprep.subr.bf16.mxu0 0
    %5604 = vmatpush2.bf16.msra.mxu0 0
    %5605 = vmatprep.subr.bf16.mxu0 0
    %5606 = vmatpush2.bf16.msra.mxu0 0
    %5607 = vmatprep.subr.bf16.mxu0 0
    %5608 = vmatpush2.bf16.msra.mxu0 0
    %5609 = vmatprep.subr.bf16.mxu0 0
    %5610 = vmatpush2.bf16.msra.mxu0 0
    %5611 = vmatprep.subr.bf16.mxu0 0
    %5612 = vmatpush2.bf16.msra.mxu0 0
    %5613 = vmatprep.subr.bf16.mxu0 0
    %5614 = vmatpush2.bf16.msra.mxu0 0
    %5615 = vmatprep.subr.bf16.mxu0 0
    %5616 = vmatpush2.bf16.msra.mxu0 0
    %5617 = vmatprep.subr.bf16.mxu0 0
    %5618 = vmatpush2.bf16.msra.mxu0 0
    %5619 = vmatprep.mubr.bf16.mxu0 0
    %5620 = vmatmul.mubr.bf16.gmra.mxu0 %v5582
    %v5621 = vpop.f32.mrf.mxu0
    %v5622 = vadd.f32 0.0, %v5621
    %v5623 = vpop.f32.mrf.mxu0
    %v5624 = vpop.f32.mrf.mxu0
    %v5625 = vpop.f32.mrf.mxu0
    %5626 = vdwg.mxu0
    %5627 = vrot.lane.b32.xlu0 %v4849, 64
    %v5628 = vpop.permute.xlu0 %5627
    %v5630 = vsel %vm365, %v5337, 0
    %v5633 = vsel %vm1172, %v5628, 0
    %5635 = vmatprep.subr.bf16.mxu0 0
    %5636 = vmatpush1.bf16.msra.mxu0 0
    %5637 = vmatprep.subr.bf16.mxu0 0
    %5638 = vmatpush1.bf16.msra.mxu0 0
    %5639 = vmatprep.subr.bf16.mxu0 0
    %5640 = vmatpush1.bf16.msra.mxu0 0
    %5641 = vmatprep.subr.bf16.mxu0 0
    %5642 = vmatpush1.bf16.msra.mxu0 0
    %5643 = vmatprep.subr.bf16.mxu0 0
    %5644 = vmatpush1.bf16.msra.mxu0 0
    %5645 = vmatprep.subr.bf16.mxu0 0
    %5646 = vmatpush1.bf16.msra.mxu0 0
    %5647 = vmatprep.subr.bf16.mxu0 0
    %5648 = vmatpush1.bf16.msra.mxu0 0
    %5649 = vmatprep.subr.bf16.mxu0 0
    %5650 = vmatpush1.bf16.msra.mxu0 %v5633
    %5651 = vmatprep.subr.bf16.mxu0 0
    %5652 = vmatpush2.bf16.msra.mxu0 0
    %5653 = vmatprep.subr.bf16.mxu0 0
    %5654 = vmatpush2.bf16.msra.mxu0 0
    %5655 = vmatprep.subr.bf16.mxu0 0
    %5656 = vmatpush2.bf16.msra.mxu0 0
    %5657 = vmatprep.subr.bf16.mxu0 0
    %5658 = vmatpush2.bf16.msra.mxu0 0
    %5659 = vmatprep.subr.bf16.mxu0 0
    %5660 = vmatpush2.bf16.msra.mxu0 0
    %5661 = vmatprep.subr.bf16.mxu0 0
    %5662 = vmatpush2.bf16.msra.mxu0 0
    %5663 = vmatprep.subr.bf16.mxu0 0
    %5664 = vmatpush2.bf16.msra.mxu0 0
    %5665 = vmatprep.subr.bf16.mxu0 0
    %5666 = vmatpush2.bf16.msra.mxu0 0
    %5667 = vmatprep.mubr.bf16.mxu0 0
    %5668 = vmatmul.mubr.bf16.gmra.mxu0 %v5630
    %v5669 = vpop.f32.mrf.mxu0
    %v5670 = vadd.f32 0.0, %v5669
    %v5671 = vpop.f32.mrf.mxu0
    %v5672 = vpop.f32.mrf.mxu0
    %v5673 = vpop.f32.mrf.mxu0
    %5674 = vdwg.mxu0
    %5675 = vrot.lane.b32.xlu0 %v4850, 64
    %v5676 = vpop.permute.xlu0 %5675
    %v5678 = vsel %vm365, %v5338, 0
    %v5681 = vsel %vm1172, %v5676, 0
    %5683 = vmatprep.subr.bf16.mxu0 0
    %5684 = vmatpush1.bf16.msra.mxu0 0
    %5685 = vmatprep.subr.bf16.mxu0 0
    %5686 = vmatpush1.bf16.msra.mxu0 0
    %5687 = vmatprep.subr.bf16.mxu0 0
    %5688 = vmatpush1.bf16.msra.mxu0 0
    %5689 = vmatprep.subr.bf16.mxu0 0
    %5690 = vmatpush1.bf16.msra.mxu0 0
    %5691 = vmatprep.subr.bf16.mxu0 0
    %5692 = vmatpush1.bf16.msra.mxu0 0
    %5693 = vmatprep.subr.bf16.mxu0 0
    %5694 = vmatpush1.bf16.msra.mxu0 0
    %5695 = vmatprep.subr.bf16.mxu0 0
    %5696 = vmatpush1.bf16.msra.mxu0 0
    %5697 = vmatprep.subr.bf16.mxu0 0
    %5698 = vmatpush1.bf16.msra.mxu0 %v5681
    %5699 = vmatprep.subr.bf16.mxu0 0
    %5700 = vmatpush2.bf16.msra.mxu0 0
    %5701 = vmatprep.subr.bf16.mxu0 0
    %5702 = vmatpush2.bf16.msra.mxu0 0
    %5703 = vmatprep.subr.bf16.mxu0 0
    %5704 = vmatpush2.bf16.msra.mxu0 0
    %5705 = vmatprep.subr.bf16.mxu0 0
    %5706 = vmatpush2.bf16.msra.mxu0 0
    %5707 = vmatprep.subr.bf16.mxu0 0
    %5708 = vmatpush2.bf16.msra.mxu0 0
    %5709 = vmatprep.subr.bf16.mxu0 0
    %5710 = vmatpush2.bf16.msra.mxu0 0
    %5711 = vmatprep.subr.bf16.mxu0 0
    %5712 = vmatpush2.bf16.msra.mxu0 0
    %5713 = vmatprep.subr.bf16.mxu0 0
    %5714 = vmatpush2.bf16.msra.mxu0 0
    %5715 = vmatprep.mubr.bf16.mxu0 0
    %5716 = vmatmul.mubr.bf16.gmra.mxu0 %v5678
    %v5717 = vpop.f32.mrf.mxu0
    %v5718 = vadd.f32 0.0, %v5717
    %v5719 = vpop.f32.mrf.mxu0
    %v5720 = vpop.f32.mrf.mxu0
    %v5721 = vpop.f32.mrf.mxu0
    %5722 = vdwg.mxu0
    %5723 = vst.msk [vmem:[#allocation3] sm:$0xf] %vm1552, %v5382
    %5724 = vst.msk [vmem:[#allocation3 + $0x4] sm:$0xf] %vm1552, %v5430
    %5725 = vst.msk [vmem:[#allocation3 + $0x8] sm:$0xf] %vm1552, %v5478
    %5726 = vst.msk [vmem:[#allocation3 + $0xc] sm:$0xf] %vm1552, %v5526
    %5727 = vst.msk [vmem:[#allocation3 + $0x10] sm:$0xf] %vm1552, %v5574
    %5728 = vst.msk [vmem:[#allocation3 + $0x14] sm:$0xf] %vm1552, %v5622
    %5729 = vst.msk [vmem:[#allocation3 + $0x18] sm:$0xf] %vm1552, %v5670
    %5730 = vst.msk [vmem:[#allocation3 + $0x1c] sm:$0xf] %vm1552, %v5718
    %5731 = vrot.lane.b32.xlu0 %v4843, 120
    %v5732 = vpop.permute.xlu0 %5731
    %5733 = vrot.lane.b32.xlu0 %v4843, 88
    %v5734 = vpop.permute.xlu0 %5733
    %v5736 = vsel %vm127, %v5732, 0
    %v5739 = vsel %vm127, %v5734, 0
    %5741 = vmatprep.subr.bf16.mxu0 0
    %5742 = vmatpush1.bf16.xpose.msra.mxu0 0
    %5743 = vmatprep.subr.bf16.mxu0 0
    %5744 = vmatpush1.bf16.xpose.msra.mxu0 0
    %5745 = vmatprep.subr.bf16.mxu0 0
    %5746 = vmatpush1.bf16.xpose.msra.mxu0 0
    %5747 = vmatprep.subr.bf16.mxu0 0
    %5748 = vmatpush1.bf16.xpose.msra.mxu0 0
    %5749 = vmatprep.subr.bf16.mxu0 0
    %5750 = vmatpush1.bf16.xpose.msra.mxu0 0
    %5751 = vmatprep.subr.bf16.mxu0 0
    %5752 = vmatpush1.bf16.xpose.msra.mxu0 0
    %5753 = vmatprep.subr.bf16.mxu0 0
    %5754 = vmatpush1.bf16.xpose.msra.mxu0 0
    %5755 = vmatprep.subr.bf16.mxu0 0
    %5756 = vmatpush1.bf16.xpose.msra.mxu0 %v5739
    %5757 = vmatprep.subr.bf16.mxu0 0
    %5758 = vmatpush2.bf16.xpose.msra.mxu0 0
    %5759 = vmatprep.subr.bf16.mxu0 0
    %5760 = vmatpush2.bf16.xpose.msra.mxu0 0
    %5761 = vmatprep.subr.bf16.mxu0 0
    %5762 = vmatpush2.bf16.xpose.msra.mxu0 0
    %5763 = vmatprep.subr.bf16.mxu0 0
    %5764 = vmatpush2.bf16.xpose.msra.mxu0 0
    %5765 = vmatprep.subr.bf16.mxu0 0
    %5766 = vmatpush2.bf16.xpose.msra.mxu0 0
    %5767 = vmatprep.subr.bf16.mxu0 0
    %5768 = vmatpush2.bf16.xpose.msra.mxu0 0
    %5769 = vmatprep.subr.bf16.mxu0 0
    %5770 = vmatpush2.bf16.xpose.msra.mxu0 0
    %5771 = vmatprep.subr.bf16.mxu0 0
    %5772 = vmatpush2.bf16.xpose.msra.mxu0 0
    %5773 = vmatprep.mubr.bf16.mxu0 0
    %5774 = vmatmul.mubr.bf16.gmra.mxu0 %v5736
    %v5775 = vpop.f32.mrf.mxu0
    %v5776 = vadd.f32 0.0, %v5775
    %v5777 = vpop.f32.mrf.mxu0
    %v5778 = vpop.f32.mrf.mxu0
    %v5779 = vpop.f32.mrf.mxu0
    %5780 = vdwg.mxu0
    %5781 = vrot.lane.b32.xlu0 %v4844, 120
    %v5782 = vpop.permute.xlu0 %5781
    %5783 = vrot.lane.b32.xlu0 %v4844, 88
    %v5784 = vpop.permute.xlu0 %5783
    %v5786 = vsel %vm127, %v5782, 0
    %v5789 = vsel %vm127, %v5784, 0
    %5791 = vmatprep.subr.bf16.mxu0 0
    %5792 = vmatpush1.bf16.xpose.msra.mxu0 0
    %5793 = vmatprep.subr.bf16.mxu0 0
    %5794 = vmatpush1.bf16.xpose.msra.mxu0 0
    %5795 = vmatprep.subr.bf16.mxu0 0
    %5796 = vmatpush1.bf16.xpose.msra.mxu0 0
    %5797 = vmatprep.subr.bf16.mxu0 0
    %5798 = vmatpush1.bf16.xpose.msra.mxu0 0
    %5799 = vmatprep.subr.bf16.mxu0 0
    %5800 = vmatpush1.bf16.xpose.msra.mxu0 0
    %5801 = vmatprep.subr.bf16.mxu0 0
    %5802 = vmatpush1.bf16.xpose.msra.mxu0 0
    %5803 = vmatprep.subr.bf16.mxu0 0
    %5804 = vmatpush1.bf16.xpose.msra.mxu0 0
    %5805 = vmatprep.subr.bf16.mxu0 0
    %5806 = vmatpush1.bf16.xpose.msra.mxu0 %v5789
    %5807 = vmatprep.subr.bf16.mxu0 0
    %5808 = vmatpush2.bf16.xpose.msra.mxu0 0
    %5809 = vmatprep.subr.bf16.mxu0 0
    %5810 = vmatpush2.bf16.xpose.msra.mxu0 0
    %5811 = vmatprep.subr.bf16.mxu0 0
    %5812 = vmatpush2.bf16.xpose.msra.mxu0 0
    %5813 = vmatprep.subr.bf16.mxu0 0
    %5814 = vmatpush2.bf16.xpose.msra.mxu0 0
    %5815 = vmatprep.subr.bf16.mxu0 0
    %5816 = vmatpush2.bf16.xpose.msra.mxu0 0
    %5817 = vmatprep.subr.bf16.mxu0 0
    %5818 = vmatpush2.bf16.xpose.msra.mxu0 0
    %5819 = vmatprep.subr.bf16.mxu0 0
    %5820 = vmatpush2.bf16.xpose.msra.mxu0 0
    %5821 = vmatprep.subr.bf16.mxu0 0
    %5822 = vmatpush2.bf16.xpose.msra.mxu0 0
    %5823 = vmatprep.mubr.bf16.mxu0 0
    %5824 = vmatmul.mubr.bf16.gmra.mxu0 %v5786
    %v5825 = vpop.f32.mrf.mxu0
    %v5826 = vadd.f32 0.0, %v5825
    %v5827 = vpop.f32.mrf.mxu0
    %v5828 = vpop.f32.mrf.mxu0
    %v5829 = vpop.f32.mrf.mxu0
    %5830 = vdwg.mxu0
    %5831 = vrot.lane.b32.xlu0 %v4845, 120
    %v5832 = vpop.permute.xlu0 %5831
    %5833 = vrot.lane.b32.xlu0 %v4845, 88
    %v5834 = vpop.permute.xlu0 %5833
    %v5836 = vsel %vm127, %v5832, 0
    %v5839 = vsel %vm127, %v5834, 0
    %5841 = vmatprep.subr.bf16.mxu0 0
    %5842 = vmatpush1.bf16.xpose.msra.mxu0 0
    %5843 = vmatprep.subr.bf16.mxu0 0
    %5844 = vmatpush1.bf16.xpose.msra.mxu0 0
    %5845 = vmatprep.subr.bf16.mxu0 0
    %5846 = vmatpush1.bf16.xpose.msra.mxu0 0
    %5847 = vmatprep.subr.bf16.mxu0 0
    %5848 = vmatpush1.bf16.xpose.msra.mxu0 0
    %5849 = vmatprep.subr.bf16.mxu0 0
    %5850 = vmatpush1.bf16.xpose.msra.mxu0 0
    %5851 = vmatprep.subr.bf16.mxu0 0
    %5852 = vmatpush1.bf16.xpose.msra.mxu0 0
    %5853 = vmatprep.subr.bf16.mxu0 0
    %5854 = vmatpush1.bf16.xpose.msra.mxu0 0
    %5855 = vmatprep.subr.bf16.mxu0 0
    %5856 = vmatpush1.bf16.xpose.msra.mxu0 %v5839
    %5857 = vmatprep.subr.bf16.mxu0 0
    %5858 = vmatpush2.bf16.xpose.msra.mxu0 0
    %5859 = vmatprep.subr.bf16.mxu0 0
    %5860 = vmatpush2.bf16.xpose.msra.mxu0 0
    %5861 = vmatprep.subr.bf16.mxu0 0
    %5862 = vmatpush2.bf16.xpose.msra.mxu0 0
    %5863 = vmatprep.subr.bf16.mxu0 0
    %5864 = vmatpush2.bf16.xpose.msra.mxu0 0
    %5865 = vmatprep.subr.bf16.mxu0 0
    %5866 = vmatpush2.bf16.xpose.msra.mxu0 0
    %5867 = vmatprep.subr.bf16.mxu0 0
    %5868 = vmatpush2.bf16.xpose.msra.mxu0 0
    %5869 = vmatprep.subr.bf16.mxu0 0
    %5870 = vmatpush2.bf16.xpose.msra.mxu0 0
    %5871 = vmatprep.subr.bf16.mxu0 0
    %5872 = vmatpush2.bf16.xpose.msra.mxu0 0
    %5873 = vmatprep.mubr.bf16.mxu0 0
    %5874 = vmatmul.mubr.bf16.gmra.mxu0 %v5836
    %v5875 = vpop.f32.mrf.mxu0
    %v5876 = vadd.f32 0.0, %v5875
    %v5877 = vpop.f32.mrf.mxu0
    %v5878 = vpop.f32.mrf.mxu0
    %v5879 = vpop.f32.mrf.mxu0
    %5880 = vdwg.mxu0
    %5881 = vrot.lane.b32.xlu0 %v4846, 120
    %v5882 = vpop.permute.xlu0 %5881
    %5883 = vrot.lane.b32.xlu0 %v4846, 88
    %v5884 = vpop.permute.xlu0 %5883
    %v5886 = vsel %vm127, %v5882, 0
    %v5889 = vsel %vm127, %v5884, 0
    %5891 = vmatprep.subr.bf16.mxu0 0
    %5892 = vmatpush1.bf16.xpose.msra.mxu0 0
    %5893 = vmatprep.subr.bf16.mxu0 0
    %5894 = vmatpush1.bf16.xpose.msra.mxu0 0
    %5895 = vmatprep.subr.bf16.mxu0 0
    %5896 = vmatpush1.bf16.xpose.msra.mxu0 0
    %5897 = vmatprep.subr.bf16.mxu0 0
    %5898 = vmatpush1.bf16.xpose.msra.mxu0 0
    %5899 = vmatprep.subr.bf16.mxu0 0
    %5900 = vmatpush1.bf16.xpose.msra.mxu0 0
    %5901 = vmatprep.subr.bf16.mxu0 0
    %5902 = vmatpush1.bf16.xpose.msra.mxu0 0
    %5903 = vmatprep.subr.bf16.mxu0 0
    %5904 = vmatpush1.bf16.xpose.msra.mxu0 0
    %5905 = vmatprep.subr.bf16.mxu0 0
    %5906 = vmatpush1.bf16.xpose.msra.mxu0 %v5889
    %5907 = vmatprep.subr.bf16.mxu0 0
    %5908 = vmatpush2.bf16.xpose.msra.mxu0 0
    %5909 = vmatprep.subr.bf16.mxu0 0
    %5910 = vmatpush2.bf16.xpose.msra.mxu0 0
    %5911 = vmatprep.subr.bf16.mxu0 0
    %5912 = vmatpush2.bf16.xpose.msra.mxu0 0
    %5913 = vmatprep.subr.bf16.mxu0 0
    %5914 = vmatpush2.bf16.xpose.msra.mxu0 0
    %5915 = vmatprep.subr.bf16.mxu0 0
    %5916 = vmatpush2.bf16.xpose.msra.mxu0 0
    %5917 = vmatprep.subr.bf16.mxu0 0
    %5918 = vmatpush2.bf16.xpose.msra.mxu0 0
    %5919 = vmatprep.subr.bf16.mxu0 0
    %5920 = vmatpush2.bf16.xpose.msra.mxu0 0
    %5921 = vmatprep.subr.bf16.mxu0 0
    %5922 = vmatpush2.bf16.xpose.msra.mxu0 0
    %5923 = vmatprep.mubr.bf16.mxu0 0
    %5924 = vmatmul.mubr.bf16.gmra.mxu0 %v5886
    %v5925 = vpop.f32.mrf.mxu0
    %v5926 = vadd.f32 0.0, %v5925
    %v5927 = vpop.f32.mrf.mxu0
    %v5928 = vpop.f32.mrf.mxu0
    %v5929 = vpop.f32.mrf.mxu0
    %5930 = vdwg.mxu0
    %5931 = vrot.lane.b32.xlu0 %v4847, 120
    %v5932 = vpop.permute.xlu0 %5931
    %5933 = vrot.lane.b32.xlu0 %v4847, 88
    %v5934 = vpop.permute.xlu0 %5933
    %v5936 = vsel %vm127, %v5932, 0
    %v5939 = vsel %vm127, %v5934, 0
    %5941 = vmatprep.subr.bf16.mxu0 0
    %5942 = vmatpush1.bf16.xpose.msra.mxu0 0
    %5943 = vmatprep.subr.bf16.mxu0 0
    %5944 = vmatpush1.bf16.xpose.msra.mxu0 0
    %5945 = vmatprep.subr.bf16.mxu0 0
    %5946 = vmatpush1.bf16.xpose.msra.mxu0 0
    %5947 = vmatprep.subr.bf16.mxu0 0
    %5948 = vmatpush1.bf16.xpose.msra.mxu0 0
    %5949 = vmatprep.subr.bf16.mxu0 0
    %5950 = vmatpush1.bf16.xpose.msra.mxu0 0
    %5951 = vmatprep.subr.bf16.mxu0 0
    %5952 = vmatpush1.bf16.xpose.msra.mxu0 0
    %5953 = vmatprep.subr.bf16.mxu0 0
    %5954 = vmatpush1.bf16.xpose.msra.mxu0 0
    %5955 = vmatprep.subr.bf16.mxu0 0
    %5956 = vmatpush1.bf16.xpose.msra.mxu0 %v5939
    %5957 = vmatprep.subr.bf16.mxu0 0
    %5958 = vmatpush2.bf16.xpose.msra.mxu0 0
    %5959 = vmatprep.subr.bf16.mxu0 0
    %5960 = vmatpush2.bf16.xpose.msra.mxu0 0
    %5961 = vmatprep.subr.bf16.mxu0 0
    %5962 = vmatpush2.bf16.xpose.msra.mxu0 0
    %5963 = vmatprep.subr.bf16.mxu0 0
    %5964 = vmatpush2.bf16.xpose.msra.mxu0 0
    %5965 = vmatprep.subr.bf16.mxu0 0
    %5966 = vmatpush2.bf16.xpose.msra.mxu0 0
    %5967 = vmatprep.subr.bf16.mxu0 0
    %5968 = vmatpush2.bf16.xpose.msra.mxu0 0
    %5969 = vmatprep.subr.bf16.mxu0 0
    %5970 = vmatpush2.bf16.xpose.msra.mxu0 0
    %5971 = vmatprep.subr.bf16.mxu0 0
    %5972 = vmatpush2.bf16.xpose.msra.mxu0 0
    %5973 = vmatprep.mubr.bf16.mxu0 0
    %5974 = vmatmul.mubr.bf16.gmra.mxu0 %v5936
    %v5975 = vpop.f32.mrf.mxu0
    %v5976 = vadd.f32 0.0, %v5975
    %v5977 = vpop.f32.mrf.mxu0
    %v5978 = vpop.f32.mrf.mxu0
    %v5979 = vpop.f32.mrf.mxu0
    %5980 = vdwg.mxu0
    %5981 = vrot.lane.b32.xlu0 %v4848, 120
    %v5982 = vpop.permute.xlu0 %5981
    %5983 = vrot.lane.b32.xlu0 %v4848, 88
    %v5984 = vpop.permute.xlu0 %5983
    %v5986 = vsel %vm127, %v5982, 0
    %v5989 = vsel %vm127, %v5984, 0
    %5991 = vmatprep.subr.bf16.mxu0 0
    %5992 = vmatpush1.bf16.xpose.msra.mxu0 0
    %5993 = vmatprep.subr.bf16.mxu0 0
    %5994 = vmatpush1.bf16.xpose.msra.mxu0 0
    %5995 = vmatprep.subr.bf16.mxu0 0
    %5996 = vmatpush1.bf16.xpose.msra.mxu0 0
    %5997 = vmatprep.subr.bf16.mxu0 0
    %5998 = vmatpush1.bf16.xpose.msra.mxu0 0
    %5999 = vmatprep.subr.bf16.mxu0 0
    %6000 = vmatpush1.bf16.xpose.msra.mxu0 0
    %6001 = vmatprep.subr.bf16.mxu0 0
    %6002 = vmatpush1.bf16.xpose.msra.mxu0 0
    %6003 = vmatprep.subr.bf16.mxu0 0
    %6004 = vmatpush1.bf16.xpose.msra.mxu0 0
    %6005 = vmatprep.subr.bf16.mxu0 0
    %6006 = vmatpush1.bf16.xpose.msra.mxu0 %v5989
    %6007 = vmatprep.subr.bf16.mxu0 0
    %6008 = vmatpush2.bf16.xpose.msra.mxu0 0
    %6009 = vmatprep.subr.bf16.mxu0 0
    %6010 = vmatpush2.bf16.xpose.msra.mxu0 0
    %6011 = vmatprep.subr.bf16.mxu0 0
    %6012 = vmatpush2.bf16.xpose.msra.mxu0 0
    %6013 = vmatprep.subr.bf16.mxu0 0
    %6014 = vmatpush2.bf16.xpose.msra.mxu0 0
    %6015 = vmatprep.subr.bf16.mxu0 0
    %6016 = vmatpush2.bf16.xpose.msra.mxu0 0
    %6017 = vmatprep.subr.bf16.mxu0 0
    %6018 = vmatpush2.bf16.xpose.msra.mxu0 0
    %6019 = vmatprep.subr.bf16.mxu0 0
    %6020 = vmatpush2.bf16.xpose.msra.mxu0 0
    %6021 = vmatprep.subr.bf16.mxu0 0
    %6022 = vmatpush2.bf16.xpose.msra.mxu0 0
    %6023 = vmatprep.mubr.bf16.mxu0 0
    %6024 = vmatmul.mubr.bf16.gmra.mxu0 %v5986
    %v6025 = vpop.f32.mrf.mxu0
    %v6026 = vadd.f32 0.0, %v6025
    %v6027 = vpop.f32.mrf.mxu0
    %v6028 = vpop.f32.mrf.mxu0
    %v6029 = vpop.f32.mrf.mxu0
    %6030 = vdwg.mxu0
    %6031 = vrot.lane.b32.xlu0 %v4849, 120
    %v6032 = vpop.permute.xlu0 %6031
    %6033 = vrot.lane.b32.xlu0 %v4849, 88
    %v6034 = vpop.permute.xlu0 %6033
    %v6036 = vsel %vm127, %v6032, 0
    %v6039 = vsel %vm127, %v6034, 0
    %6041 = vmatprep.subr.bf16.mxu0 0
    %6042 = vmatpush1.bf16.xpose.msra.mxu0 0
    %6043 = vmatprep.subr.bf16.mxu0 0
    %6044 = vmatpush1.bf16.xpose.msra.mxu0 0
    %6045 = vmatprep.subr.bf16.mxu0 0
    %6046 = vmatpush1.bf16.xpose.msra.mxu0 0
    %6047 = vmatprep.subr.bf16.mxu0 0
    %6048 = vmatpush1.bf16.xpose.msra.mxu0 0
    %6049 = vmatprep.subr.bf16.mxu0 0
    %6050 = vmatpush1.bf16.xpose.msra.mxu0 0
    %6051 = vmatprep.subr.bf16.mxu0 0
    %6052 = vmatpush1.bf16.xpose.msra.mxu0 0
    %6053 = vmatprep.subr.bf16.mxu0 0
    %6054 = vmatpush1.bf16.xpose.msra.mxu0 0
    %6055 = vmatprep.subr.bf16.mxu0 0
    %6056 = vmatpush1.bf16.xpose.msra.mxu0 %v6039
    %6057 = vmatprep.subr.bf16.mxu0 0
    %6058 = vmatpush2.bf16.xpose.msra.mxu0 0
    %6059 = vmatprep.subr.bf16.mxu0 0
    %6060 = vmatpush2.bf16.xpose.msra.mxu0 0
    %6061 = vmatprep.subr.bf16.mxu0 0
    %6062 = vmatpush2.bf16.xpose.msra.mxu0 0
    %6063 = vmatprep.subr.bf16.mxu0 0
    %6064 = vmatpush2.bf16.xpose.msra.mxu0 0
    %6065 = vmatprep.subr.bf16.mxu0 0
    %6066 = vmatpush2.bf16.xpose.msra.mxu0 0
    %6067 = vmatprep.subr.bf16.mxu0 0
    %6068 = vmatpush2.bf16.xpose.msra.mxu0 0
    %6069 = vmatprep.subr.bf16.mxu0 0
    %6070 = vmatpush2.bf16.xpose.msra.mxu0 0
    %6071 = vmatprep.subr.bf16.mxu0 0
    %6072 = vmatpush2.bf16.xpose.msra.mxu0 0
    %6073 = vmatprep.mubr.bf16.mxu0 0
    %6074 = vmatmul.mubr.bf16.gmra.mxu0 %v6036
    %v6075 = vpop.f32.mrf.mxu0
    %v6076 = vadd.f32 0.0, %v6075
    %v6077 = vpop.f32.mrf.mxu0
    %v6078 = vpop.f32.mrf.mxu0
    %v6079 = vpop.f32.mrf.mxu0
    %6080 = vdwg.mxu0
    %6081 = vrot.lane.b32.xlu0 %v4850, 120
    %v6082 = vpop.permute.xlu0 %6081
    %6083 = vrot.lane.b32.xlu0 %v4850, 88
    %v6084 = vpop.permute.xlu0 %6083
    %v6086 = vsel %vm127, %v6082, 0
    %v6089 = vsel %vm127, %v6084, 0
    %6091 = vmatprep.subr.bf16.mxu0 0
    %6092 = vmatpush1.bf16.xpose.msra.mxu0 0
    %6093 = vmatprep.subr.bf16.mxu0 0
    %6094 = vmatpush1.bf16.xpose.msra.mxu0 0
    %6095 = vmatprep.subr.bf16.mxu0 0
    %6096 = vmatpush1.bf16.xpose.msra.mxu0 0
    %6097 = vmatprep.subr.bf16.mxu0 0
    %6098 = vmatpush1.bf16.xpose.msra.mxu0 0
    %6099 = vmatprep.subr.bf16.mxu0 0
    %6100 = vmatpush1.bf16.xpose.msra.mxu0 0
    %6101 = vmatprep.subr.bf16.mxu0 0
    %6102 = vmatpush1.bf16.xpose.msra.mxu0 0
    %6103 = vmatprep.subr.bf16.mxu0 0
    %6104 = vmatpush1.bf16.xpose.msra.mxu0 0
    %6105 = vmatprep.subr.bf16.mxu0 0
    %6106 = vmatpush1.bf16.xpose.msra.mxu0 %v6089
    %6107 = vmatprep.subr.bf16.mxu0 0
    %6108 = vmatpush2.bf16.xpose.msra.mxu0 0
    %6109 = vmatprep.subr.bf16.mxu0 0
    %6110 = vmatpush2.bf16.xpose.msra.mxu0 0
    %6111 = vmatprep.subr.bf16.mxu0 0
    %6112 = vmatpush2.bf16.xpose.msra.mxu0 0
    %6113 = vmatprep.subr.bf16.mxu0 0
    %6114 = vmatpush2.bf16.xpose.msra.mxu0 0
    %6115 = vmatprep.subr.bf16.mxu0 0
    %6116 = vmatpush2.bf16.xpose.msra.mxu0 0
    %6117 = vmatprep.subr.bf16.mxu0 0
    %6118 = vmatpush2.bf16.xpose.msra.mxu0 0
    %6119 = vmatprep.subr.bf16.mxu0 0
    %6120 = vmatpush2.bf16.xpose.msra.mxu0 0
    %6121 = vmatprep.subr.bf16.mxu0 0
    %6122 = vmatpush2.bf16.xpose.msra.mxu0 0
    %6123 = vmatprep.mubr.bf16.mxu0 0
    %6124 = vmatmul.mubr.bf16.gmra.mxu0 %v6086
    %v6125 = vpop.f32.mrf.mxu0
    %v6126 = vadd.f32 0.0, %v6125
    %v6127 = vpop.f32.mrf.mxu0
    %v6128 = vpop.f32.mrf.mxu0
    %v6129 = vpop.f32.mrf.mxu0
    %6130 = vdwg.mxu0
    %v6131 = vsel %vm1070, %v5776, -inf
    %6132 = vmax.xlane.f32.xlu0 %v6131
    %v6133 = vpop.xlane.xlu0 %6132
    %v6134 = vsel %vm1070, %v5826, -inf
    %6135 = vmax.xlane.f32.xlu0 %v6134
    %v6136 = vpop.xlane.xlu0 %6135
    %v6137 = vsel %vm1070, %v5876, -inf
    %6138 = vmax.xlane.f32.xlu0 %v6137
    %v6139 = vpop.xlane.xlu0 %6138
    %v6140 = vsel %vm1070, %v5926, -inf
    %6141 = vmax.xlane.f32.xlu0 %v6140
    %v6142 = vpop.xlane.xlu0 %6141
    %v6143 = vsel %vm1070, %v5976, -inf
    %6144 = vmax.xlane.f32.xlu0 %v6143
    %v6145 = vpop.xlane.xlu0 %6144
    %v6146 = vsel %vm1070, %v6026, -inf
    %6147 = vmax.xlane.f32.xlu0 %v6146
    %v6148 = vpop.xlane.xlu0 %6147
    %v6149 = vsel %vm1070, %v6076, -inf
    %6150 = vmax.xlane.f32.xlu0 %v6149
    %v6151 = vpop.xlane.xlu0 %6150
    %v6152 = vsel %vm1070, %v6126, -inf
    %6153 = vmax.xlane.f32.xlu0 %v6152
    %v6154 = vpop.xlane.xlu0 %6153
    %v6155 = vsub.f32 %v5776, %v6133
    %v6156 = vsub.f32 %v5826, %v6136
    %v6157 = vsub.f32 %v5876, %v6139
    %v6158 = vsub.f32 %v5926, %v6142
    %v6159 = vsub.f32 %v5976, %v6145
    %v6160 = vsub.f32 %v6026, %v6148
    %v6161 = vsub.f32 %v6076, %v6151
    %v6162 = vsub.f32 %v6126, %v6154
    %v6163 = vmul.f32 %v6155, 1.442695
    %v6164 = vpow.pop %v6163
    %v6165 = vmul.f32 %v6156, 1.442695
    %v6166 = vpow.pop %v6165
    %v6167 = vmul.f32 %v6157, 1.442695
    %v6168 = vpow.pop %v6167
    %v6169 = vmul.f32 %v6158, 1.442695
    %v6170 = vpow.pop %v6169
    %v6171 = vmul.f32 %v6159, 1.442695
    %v6172 = vpow.pop %v6171
    %v6173 = vmul.f32 %v6160, 1.442695
    %v6174 = vpow.pop %v6173
    %v6175 = vmul.f32 %v6161, 1.442695
    %v6176 = vpow.pop %v6175
    %v6177 = vmul.f32 %v6162, 1.442695
    %v6178 = vpow.pop %v6177
    %v6179 = vsel %vm1070, %v6164, 0.0
    %6180 = vadd.xlane.f32.xlu0 %v6179
    %v6181 = vpop.xlane.xlu0 %6180
    %v6182 = vsel %vm1070, %v6166, 0.0
    %6183 = vadd.xlane.f32.xlu0 %v6182
    %v6184 = vpop.xlane.xlu0 %6183
    %v6185 = vsel %vm1070, %v6168, 0.0
    %6186 = vadd.xlane.f32.xlu0 %v6185
    %v6187 = vpop.xlane.xlu0 %6186
    %v6188 = vsel %vm1070, %v6170, 0.0
    %6189 = vadd.xlane.f32.xlu0 %v6188
    %v6190 = vpop.xlane.xlu0 %6189
    %v6191 = vsel %vm1070, %v6172, 0.0
    %6192 = vadd.xlane.f32.xlu0 %v6191
    %v6193 = vpop.xlane.xlu0 %6192
    %v6194 = vsel %vm1070, %v6174, 0.0
    %6195 = vadd.xlane.f32.xlu0 %v6194
    %v6196 = vpop.xlane.xlu0 %6195
    %v6197 = vsel %vm1070, %v6176, 0.0
    %6198 = vadd.xlane.f32.xlu0 %v6197
    %v6199 = vpop.xlane.xlu0 %6198
    %v6200 = vsel %vm1070, %v6178, 0.0
    %6201 = vadd.xlane.f32.xlu0 %v6200
    %v6202 = vpop.xlane.xlu0 %6201
    %v6203 = vrcp.pop %v6181
    %v6204 = vrcp.pop %v6184
    %v6205 = vrcp.pop %v6187
    %v6206 = vrcp.pop %v6190
    %v6207 = vrcp.pop %v6193
    %v6208 = vrcp.pop %v6196
    %v6209 = vrcp.pop %v6199
    %v6210 = vrcp.pop %v6202
    %v6211 = vmul.f32 %v6164, %v6203
    %v6212 = vmul.f32 %v6166, %v6204
    %v6213 = vmul.f32 %v6168, %v6205
    %v6214 = vmul.f32 %v6170, %v6206
    %v6215 = vmul.f32 %v6172, %v6207
    %v6216 = vmul.f32 %v6174, %v6208
    %v6217 = vmul.f32 %v6176, %v6209
    %v6218 = vmul.f32 %v6178, %v6210
    %v6219 = vpack.c.bf16 %v6211, %v6211
    %v6220 = vpack.c.bf16 %v6212, %v6212
    %v6221 = vpack.c.bf16 %v6213, %v6213
    %v6222 = vpack.c.bf16 %v6214, %v6214
    %v6223 = vpack.c.bf16 %v6215, %v6215
    %v6224 = vpack.c.bf16 %v6216, %v6216
    %v6225 = vpack.c.bf16 %v6217, %v6217
    %v6226 = vpack.c.bf16 %v6218, %v6218
    %6227 = vrot.lane.b32.xlu0 %v4843, 56
    %v6228 = vpop.permute.xlu0 %6227
    %v6230 = vsel %vm365, %v6219, 0
    %v6233 = vsel %vm1172, %v6228, 0
    %6235 = vmatprep.subr.bf16.mxu0 0
    %6236 = vmatpush1.bf16.msra.mxu0 0
    %6237 = vmatprep.subr.bf16.mxu0 0
    %6238 = vmatpush1.bf16.msra.mxu0 0
    %6239 = vmatprep.subr.bf16.mxu0 0
    %6240 = vmatpush1.bf16.msra.mxu0 0
    %6241 = vmatprep.subr.bf16.mxu0 0
    %6242 = vmatpush1.bf16.msra.mxu0 0
    %6243 = vmatprep.subr.bf16.mxu0 0
    %6244 = vmatpush1.bf16.msra.mxu0 0
    %6245 = vmatprep.subr.bf16.mxu0 0
    %6246 = vmatpush1.bf16.msra.mxu0 0
    %6247 = vmatprep.subr.bf16.mxu0 0
    %6248 = vmatpush1.bf16.msra.mxu0 0
    %6249 = vmatprep.subr.bf16.mxu0 0
    %6250 = vmatpush1.bf16.msra.mxu0 %v6233
    %6251 = vmatprep.subr.bf16.mxu0 0
    %6252 = vmatpush2.bf16.msra.mxu0 0
    %6253 = vmatprep.subr.bf16.mxu0 0
    %6254 = vmatpush2.bf16.msra.mxu0 0
    %6255 = vmatprep.subr.bf16.mxu0 0
    %6256 = vmatpush2.bf16.msra.mxu0 0
    %6257 = vmatprep.subr.bf16.mxu0 0
    %6258 = vmatpush2.bf16.msra.mxu0 0
    %6259 = vmatprep.subr.bf16.mxu0 0
    %6260 = vmatpush2.bf16.msra.mxu0 0
    %6261 = vmatprep.subr.bf16.mxu0 0
    %6262 = vmatpush2.bf16.msra.mxu0 0
    %6263 = vmatprep.subr.bf16.mxu0 0
    %6264 = vmatpush2.bf16.msra.mxu0 0
    %6265 = vmatprep.subr.bf16.mxu0 0
    %6266 = vmatpush2.bf16.msra.mxu0 0
    %6267 = vmatprep.mubr.bf16.mxu0 0
    %6268 = vmatmul.mubr.bf16.gmra.mxu0 %v6230
    %v6269 = vpop.f32.mrf.mxu0
    %v6270 = vadd.f32 0.0, %v6269
    %v6271 = vpop.f32.mrf.mxu0
    %v6272 = vpop.f32.mrf.mxu0
    %v6273 = vpop.f32.mrf.mxu0
    %6274 = vdwg.mxu0
    %6275 = vrot.lane.b32.xlu0 %v4844, 56
    %v6276 = vpop.permute.xlu0 %6275
    %v6278 = vsel %vm365, %v6220, 0
    %v6281 = vsel %vm1172, %v6276, 0
    %6283 = vmatprep.subr.bf16.mxu0 0
    %6284 = vmatpush1.bf16.msra.mxu0 0
    %6285 = vmatprep.subr.bf16.mxu0 0
    %6286 = vmatpush1.bf16.msra.mxu0 0
    %6287 = vmatprep.subr.bf16.mxu0 0
    %6288 = vmatpush1.bf16.msra.mxu0 0
    %6289 = vmatprep.subr.bf16.mxu0 0
    %6290 = vmatpush1.bf16.msra.mxu0 0
    %6291 = vmatprep.subr.bf16.mxu0 0
    %6292 = vmatpush1.bf16.msra.mxu0 0
    %6293 = vmatprep.subr.bf16.mxu0 0
    %6294 = vmatpush1.bf16.msra.mxu0 0
    %6295 = vmatprep.subr.bf16.mxu0 0
    %6296 = vmatpush1.bf16.msra.mxu0 0
    %6297 = vmatprep.subr.bf16.mxu0 0
    %6298 = vmatpush1.bf16.msra.mxu0 %v6281
    %6299 = vmatprep.subr.bf16.mxu0 0
    %6300 = vmatpush2.bf16.msra.mxu0 0
    %6301 = vmatprep.subr.bf16.mxu0 0
    %6302 = vmatpush2.bf16.msra.mxu0 0
    %6303 = vmatprep.subr.bf16.mxu0 0
    %6304 = vmatpush2.bf16.msra.mxu0 0
    %6305 = vmatprep.subr.bf16.mxu0 0
    %6306 = vmatpush2.bf16.msra.mxu0 0
    %6307 = vmatprep.subr.bf16.mxu0 0
    %6308 = vmatpush2.bf16.msra.mxu0 0
    %6309 = vmatprep.subr.bf16.mxu0 0
    %6310 = vmatpush2.bf16.msra.mxu0 0
    %6311 = vmatprep.subr.bf16.mxu0 0
    %6312 = vmatpush2.bf16.msra.mxu0 0
    %6313 = vmatprep.subr.bf16.mxu0 0
    %6314 = vmatpush2.bf16.msra.mxu0 0
    %6315 = vmatprep.mubr.bf16.mxu0 0
    %6316 = vmatmul.mubr.bf16.gmra.mxu0 %v6278
    %v6317 = vpop.f32.mrf.mxu0
    %v6318 = vadd.f32 0.0, %v6317
    %v6319 = vpop.f32.mrf.mxu0
    %v6320 = vpop.f32.mrf.mxu0
    %v6321 = vpop.f32.mrf.mxu0
    %6322 = vdwg.mxu0
    %6323 = vrot.lane.b32.xlu0 %v4845, 56
    %v6324 = vpop.permute.xlu0 %6323
    %v6326 = vsel %vm365, %v6221, 0
    %v6329 = vsel %vm1172, %v6324, 0
    %6331 = vmatprep.subr.bf16.mxu0 0
    %6332 = vmatpush1.bf16.msra.mxu0 0
    %6333 = vmatprep.subr.bf16.mxu0 0
    %6334 = vmatpush1.bf16.msra.mxu0 0
    %6335 = vmatprep.subr.bf16.mxu0 0
    %6336 = vmatpush1.bf16.msra.mxu0 0
    %6337 = vmatprep.subr.bf16.mxu0 0
    %6338 = vmatpush1.bf16.msra.mxu0 0
    %6339 = vmatprep.subr.bf16.mxu0 0
    %6340 = vmatpush1.bf16.msra.mxu0 0
    %6341 = vmatprep.subr.bf16.mxu0 0
    %6342 = vmatpush1.bf16.msra.mxu0 0
    %6343 = vmatprep.subr.bf16.mxu0 0
    %6344 = vmatpush1.bf16.msra.mxu0 0
    %6345 = vmatprep.subr.bf16.mxu0 0
    %6346 = vmatpush1.bf16.msra.mxu0 %v6329
    %6347 = vmatprep.subr.bf16.mxu0 0
    %6348 = vmatpush2.bf16.msra.mxu0 0
    %6349 = vmatprep.subr.bf16.mxu0 0
    %6350 = vmatpush2.bf16.msra.mxu0 0
    %6351 = vmatprep.subr.bf16.mxu0 0
    %6352 = vmatpush2.bf16.msra.mxu0 0
    %6353 = vmatprep.subr.bf16.mxu0 0
    %6354 = vmatpush2.bf16.msra.mxu0 0
    %6355 = vmatprep.subr.bf16.mxu0 0
    %6356 = vmatpush2.bf16.msra.mxu0 0
    %6357 = vmatprep.subr.bf16.mxu0 0
    %6358 = vmatpush2.bf16.msra.mxu0 0
    %6359 = vmatprep.subr.bf16.mxu0 0
    %6360 = vmatpush2.bf16.msra.mxu0 0
    %6361 = vmatprep.subr.bf16.mxu0 0
    %6362 = vmatpush2.bf16.msra.mxu0 0
    %6363 = vmatprep.mubr.bf16.mxu0 0
    %6364 = vmatmul.mubr.bf16.gmra.mxu0 %v6326
    %v6365 = vpop.f32.mrf.mxu0
    %v6366 = vadd.f32 0.0, %v6365
    %v6367 = vpop.f32.mrf.mxu0
    %v6368 = vpop.f32.mrf.mxu0
    %v6369 = vpop.f32.mrf.mxu0
    %6370 = vdwg.mxu0
    %6371 = vrot.lane.b32.xlu0 %v4846, 56
    %v6372 = vpop.permute.xlu0 %6371
    %v6374 = vsel %vm365, %v6222, 0
    %v6377 = vsel %vm1172, %v6372, 0
    %6379 = vmatprep.subr.bf16.mxu0 0
    %6380 = vmatpush1.bf16.msra.mxu0 0
    %6381 = vmatprep.subr.bf16.mxu0 0
    %6382 = vmatpush1.bf16.msra.mxu0 0
    %6383 = vmatprep.subr.bf16.mxu0 0
    %6384 = vmatpush1.bf16.msra.mxu0 0
    %6385 = vmatprep.subr.bf16.mxu0 0
    %6386 = vmatpush1.bf16.msra.mxu0 0
    %6387 = vmatprep.subr.bf16.mxu0 0
    %6388 = vmatpush1.bf16.msra.mxu0 0
    %6389 = vmatprep.subr.bf16.mxu0 0
    %6390 = vmatpush1.bf16.msra.mxu0 0
    %6391 = vmatprep.subr.bf16.mxu0 0
    %6392 = vmatpush1.bf16.msra.mxu0 0
    %6393 = vmatprep.subr.bf16.mxu0 0
    %6394 = vmatpush1.bf16.msra.mxu0 %v6377
    %6395 = vmatprep.subr.bf16.mxu0 0
    %6396 = vmatpush2.bf16.msra.mxu0 0
    %6397 = vmatprep.subr.bf16.mxu0 0
    %6398 = vmatpush2.bf16.msra.mxu0 0
    %6399 = vmatprep.subr.bf16.mxu0 0
    %6400 = vmatpush2.bf16.msra.mxu0 0
    %6401 = vmatprep.subr.bf16.mxu0 0
    %6402 = vmatpush2.bf16.msra.mxu0 0
    %6403 = vmatprep.subr.bf16.mxu0 0
    %6404 = vmatpush2.bf16.msra.mxu0 0
    %6405 = vmatprep.subr.bf16.mxu0 0
    %6406 = vmatpush2.bf16.msra.mxu0 0
    %6407 = vmatprep.subr.bf16.mxu0 0
    %6408 = vmatpush2.bf16.msra.mxu0 0
    %6409 = vmatprep.subr.bf16.mxu0 0
    %6410 = vmatpush2.bf16.msra.mxu0 0
    %6411 = vmatprep.mubr.bf16.mxu0 0
    %6412 = vmatmul.mubr.bf16.gmra.mxu0 %v6374
    %v6413 = vpop.f32.mrf.mxu0
    %v6414 = vadd.f32 0.0, %v6413
    %v6415 = vpop.f32.mrf.mxu0
    %v6416 = vpop.f32.mrf.mxu0
    %v6417 = vpop.f32.mrf.mxu0
    %6418 = vdwg.mxu0
    %6419 = vrot.lane.b32.xlu0 %v4847, 56
    %v6420 = vpop.permute.xlu0 %6419
    %v6422 = vsel %vm365, %v6223, 0
    %v6425 = vsel %vm1172, %v6420, 0
    %6427 = vmatprep.subr.bf16.mxu0 0
    %6428 = vmatpush1.bf16.msra.mxu0 0
    %6429 = vmatprep.subr.bf16.mxu0 0
    %6430 = vmatpush1.bf16.msra.mxu0 0
    %6431 = vmatprep.subr.bf16.mxu0 0
    %6432 = vmatpush1.bf16.msra.mxu0 0
    %6433 = vmatprep.subr.bf16.mxu0 0
    %6434 = vmatpush1.bf16.msra.mxu0 0
    %6435 = vmatprep.subr.bf16.mxu0 0
    %6436 = vmatpush1.bf16.msra.mxu0 0
    %6437 = vmatprep.subr.bf16.mxu0 0
    %6438 = vmatpush1.bf16.msra.mxu0 0
    %6439 = vmatprep.subr.bf16.mxu0 0
    %6440 = vmatpush1.bf16.msra.mxu0 0
    %6441 = vmatprep.subr.bf16.mxu0 0
    %6442 = vmatpush1.bf16.msra.mxu0 %v6425
    %6443 = vmatprep.subr.bf16.mxu0 0
    %6444 = vmatpush2.bf16.msra.mxu0 0
    %6445 = vmatprep.subr.bf16.mxu0 0
    %6446 = vmatpush2.bf16.msra.mxu0 0
    %6447 = vmatprep.subr.bf16.mxu0 0
    %6448 = vmatpush2.bf16.msra.mxu0 0
    %6449 = vmatprep.subr.bf16.mxu0 0
    %6450 = vmatpush2.bf16.msra.mxu0 0
    %6451 = vmatprep.subr.bf16.mxu0 0
    %6452 = vmatpush2.bf16.msra.mxu0 0
    %6453 = vmatprep.subr.bf16.mxu0 0
    %6454 = vmatpush2.bf16.msra.mxu0 0
    %6455 = vmatprep.subr.bf16.mxu0 0
    %6456 = vmatpush2.bf16.msra.mxu0 0
    %6457 = vmatprep.subr.bf16.mxu0 0
    %6458 = vmatpush2.bf16.msra.mxu0 0
    %6459 = vmatprep.mubr.bf16.mxu0 0
    %6460 = vmatmul.mubr.bf16.gmra.mxu0 %v6422
    %v6461 = vpop.f32.mrf.mxu0
    %v6462 = vadd.f32 0.0, %v6461
    %v6463 = vpop.f32.mrf.mxu0
    %v6464 = vpop.f32.mrf.mxu0
    %v6465 = vpop.f32.mrf.mxu0
    %6466 = vdwg.mxu0
    %6467 = vrot.lane.b32.xlu0 %v4848, 56
    %v6468 = vpop.permute.xlu0 %6467
    %v6470 = vsel %vm365, %v6224, 0
    %v6473 = vsel %vm1172, %v6468, 0
    %6475 = vmatprep.subr.bf16.mxu0 0
    %6476 = vmatpush1.bf16.msra.mxu0 0
    %6477 = vmatprep.subr.bf16.mxu0 0
    %6478 = vmatpush1.bf16.msra.mxu0 0
    %6479 = vmatprep.subr.bf16.mxu0 0
    %6480 = vmatpush1.bf16.msra.mxu0 0
    %6481 = vmatprep.subr.bf16.mxu0 0
    %6482 = vmatpush1.bf16.msra.mxu0 0
    %6483 = vmatprep.subr.bf16.mxu0 0
    %6484 = vmatpush1.bf16.msra.mxu0 0
    %6485 = vmatprep.subr.bf16.mxu0 0
    %6486 = vmatpush1.bf16.msra.mxu0 0
    %6487 = vmatprep.subr.bf16.mxu0 0
    %6488 = vmatpush1.bf16.msra.mxu0 0
    %6489 = vmatprep.subr.bf16.mxu0 0
    %6490 = vmatpush1.bf16.msra.mxu0 %v6473
    %6491 = vmatprep.subr.bf16.mxu0 0
    %6492 = vmatpush2.bf16.msra.mxu0 0
    %6493 = vmatprep.subr.bf16.mxu0 0
    %6494 = vmatpush2.bf16.msra.mxu0 0
    %6495 = vmatprep.subr.bf16.mxu0 0
    %6496 = vmatpush2.bf16.msra.mxu0 0
    %6497 = vmatprep.subr.bf16.mxu0 0
    %6498 = vmatpush2.bf16.msra.mxu0 0
    %6499 = vmatprep.subr.bf16.mxu0 0
    %6500 = vmatpush2.bf16.msra.mxu0 0
    %6501 = vmatprep.subr.bf16.mxu0 0
    %6502 = vmatpush2.bf16.msra.mxu0 0
    %6503 = vmatprep.subr.bf16.mxu0 0
    %6504 = vmatpush2.bf16.msra.mxu0 0
    %6505 = vmatprep.subr.bf16.mxu0 0
    %6506 = vmatpush2.bf16.msra.mxu0 0
    %6507 = vmatprep.mubr.bf16.mxu0 0
    %6508 = vmatmul.mubr.bf16.gmra.mxu0 %v6470
    %v6509 = vpop.f32.mrf.mxu0
    %v6510 = vadd.f32 0.0, %v6509
    %v6511 = vpop.f32.mrf.mxu0
    %v6512 = vpop.f32.mrf.mxu0
    %v6513 = vpop.f32.mrf.mxu0
    %6514 = vdwg.mxu0
    %6515 = vrot.lane.b32.xlu0 %v4849, 56
    %v6516 = vpop.permute.xlu0 %6515
    %v6518 = vsel %vm365, %v6225, 0
    %v6521 = vsel %vm1172, %v6516, 0
    %6523 = vmatprep.subr.bf16.mxu0 0
    %6524 = vmatpush1.bf16.msra.mxu0 0
    %6525 = vmatprep.subr.bf16.mxu0 0
    %6526 = vmatpush1.bf16.msra.mxu0 0
    %6527 = vmatprep.subr.bf16.mxu0 0
    %6528 = vmatpush1.bf16.msra.mxu0 0
    %6529 = vmatprep.subr.bf16.mxu0 0
    %6530 = vmatpush1.bf16.msra.mxu0 0
    %6531 = vmatprep.subr.bf16.mxu0 0
    %6532 = vmatpush1.bf16.msra.mxu0 0
    %6533 = vmatprep.subr.bf16.mxu0 0
    %6534 = vmatpush1.bf16.msra.mxu0 0
    %6535 = vmatprep.subr.bf16.mxu0 0
    %6536 = vmatpush1.bf16.msra.mxu0 0
    %6537 = vmatprep.subr.bf16.mxu0 0
    %6538 = vmatpush1.bf16.msra.mxu0 %v6521
    %6539 = vmatprep.subr.bf16.mxu0 0
    %6540 = vmatpush2.bf16.msra.mxu0 0
    %6541 = vmatprep.subr.bf16.mxu0 0
    %6542 = vmatpush2.bf16.msra.mxu0 0
    %6543 = vmatprep.subr.bf16.mxu0 0
    %6544 = vmatpush2.bf16.msra.mxu0 0
    %6545 = vmatprep.subr.bf16.mxu0 0
    %6546 = vmatpush2.bf16.msra.mxu0 0
    %6547 = vmatprep.subr.bf16.mxu0 0
    %6548 = vmatpush2.bf16.msra.mxu0 0
    %6549 = vmatprep.subr.bf16.mxu0 0
    %6550 = vmatpush2.bf16.msra.mxu0 0
    %6551 = vmatprep.subr.bf16.mxu0 0
    %6552 = vmatpush2.bf16.msra.mxu0 0
    %6553 = vmatprep.subr.bf16.mxu0 0
    %6554 = vmatpush2.bf16.msra.mxu0 0
    %6555 = vmatprep.mubr.bf16.mxu0 0
    %6556 = vmatmul.mubr.bf16.gmra.mxu0 %v6518
    %v6557 = vpop.f32.mrf.mxu0
    %v6558 = vadd.f32 0.0, %v6557
    %v6559 = vpop.f32.mrf.mxu0
    %v6560 = vpop.f32.mrf.mxu0
    %v6561 = vpop.f32.mrf.mxu0
    %6562 = vdwg.mxu0
    %6563 = vrot.lane.b32.xlu0 %v4850, 56
    %v6564 = vpop.permute.xlu0 %6563
    %v6566 = vsel %vm365, %v6226, 0
    %v6569 = vsel %vm1172, %v6564, 0
    %6571 = vmatprep.subr.bf16.mxu0 0
    %6572 = vmatpush1.bf16.msra.mxu0 0
    %6573 = vmatprep.subr.bf16.mxu0 0
    %6574 = vmatpush1.bf16.msra.mxu0 0
    %6575 = vmatprep.subr.bf16.mxu0 0
    %6576 = vmatpush1.bf16.msra.mxu0 0
    %6577 = vmatprep.subr.bf16.mxu0 0
    %6578 = vmatpush1.bf16.msra.mxu0 0
    %6579 = vmatprep.subr.bf16.mxu0 0
    %6580 = vmatpush1.bf16.msra.mxu0 0
    %6581 = vmatprep.subr.bf16.mxu0 0
    %6582 = vmatpush1.bf16.msra.mxu0 0
    %6583 = vmatprep.subr.bf16.mxu0 0
    %6584 = vmatpush1.bf16.msra.mxu0 0
    %6585 = vmatprep.subr.bf16.mxu0 0
    %6586 = vmatpush1.bf16.msra.mxu0 %v6569
    %6587 = vmatprep.subr.bf16.mxu0 0
    %6588 = vmatpush2.bf16.msra.mxu0 0
    %6589 = vmatprep.subr.bf16.mxu0 0
    %6590 = vmatpush2.bf16.msra.mxu0 0
    %6591 = vmatprep.subr.bf16.mxu0 0
    %6592 = vmatpush2.bf16.msra.mxu0 0
    %6593 = vmatprep.subr.bf16.mxu0 0
    %6594 = vmatpush2.bf16.msra.mxu0 0
    %6595 = vmatprep.subr.bf16.mxu0 0
    %6596 = vmatpush2.bf16.msra.mxu0 0
    %6597 = vmatprep.subr.bf16.mxu0 0
    %6598 = vmatpush2.bf16.msra.mxu0 0
    %6599 = vmatprep.subr.bf16.mxu0 0
    %6600 = vmatpush2.bf16.msra.mxu0 0
    %6601 = vmatprep.subr.bf16.mxu0 0
    %6602 = vmatpush2.bf16.msra.mxu0 0
    %6603 = vmatprep.mubr.bf16.mxu0 0
    %6604 = vmatmul.mubr.bf16.gmra.mxu0 %v6566
    %v6605 = vpop.f32.mrf.mxu0
    %v6606 = vadd.f32 0.0, %v6605
    %v6607 = vpop.f32.mrf.mxu0
    %v6608 = vpop.f32.mrf.mxu0
    %v6609 = vpop.f32.mrf.mxu0
    %6610 = vdwg.mxu0
    %6612 = vrot.lane.b32.xlu0 %v6270, 8
    %v6613 = vpop.permute.xlu0 %6612
    %6615 = vst.msk [vmem:[#allocation3] sm:$0xf] %vm2445, %v6613
    %6617 = vrot.lane.b32.xlu0 %v6318, 8
    %v6618 = vpop.permute.xlu0 %6617
    %6620 = vst.msk [vmem:[#allocation3 + $0x4] sm:$0xf] %vm2445, %v6618
    %6622 = vrot.lane.b32.xlu0 %v6366, 8
    %v6623 = vpop.permute.xlu0 %6622
    %6625 = vst.msk [vmem:[#allocation3 + $0x8] sm:$0xf] %vm2445, %v6623
    %6627 = vrot.lane.b32.xlu0 %v6414, 8
    %v6628 = vpop.permute.xlu0 %6627
    %6630 = vst.msk [vmem:[#allocation3 + $0xc] sm:$0xf] %vm2445, %v6628
    %6632 = vrot.lane.b32.xlu0 %v6462, 8
    %v6633 = vpop.permute.xlu0 %6632
    %6635 = vst.msk [vmem:[#allocation3 + $0x10] sm:$0xf] %vm2445, %v6633
    %6637 = vrot.lane.b32.xlu0 %v6510, 8
    %v6638 = vpop.permute.xlu0 %6637
    %6640 = vst.msk [vmem:[#allocation3 + $0x14] sm:$0xf] %vm2445, %v6638
    %6642 = vrot.lane.b32.xlu0 %v6558, 8
    %v6643 = vpop.permute.xlu0 %6642
    %6645 = vst.msk [vmem:[#allocation3 + $0x18] sm:$0xf] %vm2445, %v6643
    %6647 = vrot.lane.b32.xlu0 %v6606, 8
    %v6648 = vpop.permute.xlu0 %6647
    %6650 = vst.msk [vmem:[#allocation3 + $0x1c] sm:$0xf] %vm2445, %v6648
    %6651 = vrot.lane.b32.xlu0 %v4843, 112
    %v6652 = vpop.permute.xlu0 %6651
    %6653 = vrot.lane.b32.xlu0 %v4843, 80
    %v6654 = vpop.permute.xlu0 %6653
    %v6656 = vsel %vm127, %v6652, 0
    %v6659 = vsel %vm127, %v6654, 0
    %6661 = vmatprep.subr.bf16.mxu0 0
    %6662 = vmatpush1.bf16.xpose.msra.mxu0 0
    %6663 = vmatprep.subr.bf16.mxu0 0
    %6664 = vmatpush1.bf16.xpose.msra.mxu0 0
    %6665 = vmatprep.subr.bf16.mxu0 0
    %6666 = vmatpush1.bf16.xpose.msra.mxu0 0
    %6667 = vmatprep.subr.bf16.mxu0 0
    %6668 = vmatpush1.bf16.xpose.msra.mxu0 0
    %6669 = vmatprep.subr.bf16.mxu0 0
    %6670 = vmatpush1.bf16.xpose.msra.mxu0 0
    %6671 = vmatprep.subr.bf16.mxu0 0
    %6672 = vmatpush1.bf16.xpose.msra.mxu0 0
    %6673 = vmatprep.subr.bf16.mxu0 0
    %6674 = vmatpush1.bf16.xpose.msra.mxu0 0
    %6675 = vmatprep.subr.bf16.mxu0 0
    %6676 = vmatpush1.bf16.xpose.msra.mxu0 %v6659
    %6677 = vmatprep.subr.bf16.mxu0 0
    %6678 = vmatpush2.bf16.xpose.msra.mxu0 0
    %6679 = vmatprep.subr.bf16.mxu0 0
    %6680 = vmatpush2.bf16.xpose.msra.mxu0 0
    %6681 = vmatprep.subr.bf16.mxu0 0
    %6682 = vmatpush2.bf16.xpose.msra.mxu0 0
    %6683 = vmatprep.subr.bf16.mxu0 0
    %6684 = vmatpush2.bf16.xpose.msra.mxu0 0
    %6685 = vmatprep.subr.bf16.mxu0 0
    %6686 = vmatpush2.bf16.xpose.msra.mxu0 0
    %6687 = vmatprep.subr.bf16.mxu0 0
    %6688 = vmatpush2.bf16.xpose.msra.mxu0 0
    %6689 = vmatprep.subr.bf16.mxu0 0
    %6690 = vmatpush2.bf16.xpose.msra.mxu0 0
    %6691 = vmatprep.subr.bf16.mxu0 0
    %6692 = vmatpush2.bf16.xpose.msra.mxu0 0
    %6693 = vmatprep.mubr.bf16.mxu0 0
    %6694 = vmatmul.mubr.bf16.gmra.mxu0 %v6656
    %v6695 = vpop.f32.mrf.mxu0
    %v6696 = vadd.f32 0.0, %v6695
    %v6697 = vpop.f32.mrf.mxu0
    %v6698 = vpop.f32.mrf.mxu0
    %v6699 = vpop.f32.mrf.mxu0
    %6700 = vdwg.mxu0
    %6701 = vrot.lane.b32.xlu0 %v4844, 112
    %v6702 = vpop.permute.xlu0 %6701
    %6703 = vrot.lane.b32.xlu0 %v4844, 80
    %v6704 = vpop.permute.xlu0 %6703
    %v6706 = vsel %vm127, %v6702, 0
    %v6709 = vsel %vm127, %v6704, 0
    %6711 = vmatprep.subr.bf16.mxu0 0
    %6712 = vmatpush1.bf16.xpose.msra.mxu0 0
    %6713 = vmatprep.subr.bf16.mxu0 0
    %6714 = vmatpush1.bf16.xpose.msra.mxu0 0
    %6715 = vmatprep.subr.bf16.mxu0 0
    %6716 = vmatpush1.bf16.xpose.msra.mxu0 0
    %6717 = vmatprep.subr.bf16.mxu0 0
    %6718 = vmatpush1.bf16.xpose.msra.mxu0 0
    %6719 = vmatprep.subr.bf16.mxu0 0
    %6720 = vmatpush1.bf16.xpose.msra.mxu0 0
    %6721 = vmatprep.subr.bf16.mxu0 0
    %6722 = vmatpush1.bf16.xpose.msra.mxu0 0
    %6723 = vmatprep.subr.bf16.mxu0 0
    %6724 = vmatpush1.bf16.xpose.msra.mxu0 0
    %6725 = vmatprep.subr.bf16.mxu0 0
    %6726 = vmatpush1.bf16.xpose.msra.mxu0 %v6709
    %6727 = vmatprep.subr.bf16.mxu0 0
    %6728 = vmatpush2.bf16.xpose.msra.mxu0 0
    %6729 = vmatprep.subr.bf16.mxu0 0
    %6730 = vmatpush2.bf16.xpose.msra.mxu0 0
    %6731 = vmatprep.subr.bf16.mxu0 0
    %6732 = vmatpush2.bf16.xpose.msra.mxu0 0
    %6733 = vmatprep.subr.bf16.mxu0 0
    %6734 = vmatpush2.bf16.xpose.msra.mxu0 0
    %6735 = vmatprep.subr.bf16.mxu0 0
    %6736 = vmatpush2.bf16.xpose.msra.mxu0 0
    %6737 = vmatprep.subr.bf16.mxu0 0
    %6738 = vmatpush2.bf16.xpose.msra.mxu0 0
    %6739 = vmatprep.subr.bf16.mxu0 0
    %6740 = vmatpush2.bf16.xpose.msra.mxu0 0
    %6741 = vmatprep.subr.bf16.mxu0 0
    %6742 = vmatpush2.bf16.xpose.msra.mxu0 0
    %6743 = vmatprep.mubr.bf16.mxu0 0
    %6744 = vmatmul.mubr.bf16.gmra.mxu0 %v6706
    %v6745 = vpop.f32.mrf.mxu0
    %v6746 = vadd.f32 0.0, %v6745
    %v6747 = vpop.f32.mrf.mxu0
    %v6748 = vpop.f32.mrf.mxu0
    %v6749 = vpop.f32.mrf.mxu0
    %6750 = vdwg.mxu0
    %6751 = vrot.lane.b32.xlu0 %v4845, 112
    %v6752 = vpop.permute.xlu0 %6751
    %6753 = vrot.lane.b32.xlu0 %v4845, 80
    %v6754 = vpop.permute.xlu0 %6753
    %v6756 = vsel %vm127, %v6752, 0
    %v6759 = vsel %vm127, %v6754, 0
    %6761 = vmatprep.subr.bf16.mxu0 0
    %6762 = vmatpush1.bf16.xpose.msra.mxu0 0
    %6763 = vmatprep.subr.bf16.mxu0 0
    %6764 = vmatpush1.bf16.xpose.msra.mxu0 0
    %6765 = vmatprep.subr.bf16.mxu0 0
    %6766 = vmatpush1.bf16.xpose.msra.mxu0 0
    %6767 = vmatprep.subr.bf16.mxu0 0
    %6768 = vmatpush1.bf16.xpose.msra.mxu0 0
    %6769 = vmatprep.subr.bf16.mxu0 0
    %6770 = vmatpush1.bf16.xpose.msra.mxu0 0
    %6771 = vmatprep.subr.bf16.mxu0 0
    %6772 = vmatpush1.bf16.xpose.msra.mxu0 0
    %6773 = vmatprep.subr.bf16.mxu0 0
    %6774 = vmatpush1.bf16.xpose.msra.mxu0 0
    %6775 = vmatprep.subr.bf16.mxu0 0
    %6776 = vmatpush1.bf16.xpose.msra.mxu0 %v6759
    %6777 = vmatprep.subr.bf16.mxu0 0
    %6778 = vmatpush2.bf16.xpose.msra.mxu0 0
    %6779 = vmatprep.subr.bf16.mxu0 0
    %6780 = vmatpush2.bf16.xpose.msra.mxu0 0
    %6781 = vmatprep.subr.bf16.mxu0 0
    %6782 = vmatpush2.bf16.xpose.msra.mxu0 0
    %6783 = vmatprep.subr.bf16.mxu0 0
    %6784 = vmatpush2.bf16.xpose.msra.mxu0 0
    %6785 = vmatprep.subr.bf16.mxu0 0
    %6786 = vmatpush2.bf16.xpose.msra.mxu0 0
    %6787 = vmatprep.subr.bf16.mxu0 0
    %6788 = vmatpush2.bf16.xpose.msra.mxu0 0
    %6789 = vmatprep.subr.bf16.mxu0 0
    %6790 = vmatpush2.bf16.xpose.msra.mxu0 0
    %6791 = vmatprep.subr.bf16.mxu0 0
    %6792 = vmatpush2.bf16.xpose.msra.mxu0 0
    %6793 = vmatprep.mubr.bf16.mxu0 0
    %6794 = vmatmul.mubr.bf16.gmra.mxu0 %v6756
    %v6795 = vpop.f32.mrf.mxu0
    %v6796 = vadd.f32 0.0, %v6795
    %v6797 = vpop.f32.mrf.mxu0
    %v6798 = vpop.f32.mrf.mxu0
    %v6799 = vpop.f32.mrf.mxu0
    %6800 = vdwg.mxu0
    %6801 = vrot.lane.b32.xlu0 %v4846, 112
    %v6802 = vpop.permute.xlu0 %6801
    %6803 = vrot.lane.b32.xlu0 %v4846, 80
    %v6804 = vpop.permute.xlu0 %6803
    %v6806 = vsel %vm127, %v6802, 0
    %v6809 = vsel %vm127, %v6804, 0
    %6811 = vmatprep.subr.bf16.mxu0 0
    %6812 = vmatpush1.bf16.xpose.msra.mxu0 0
    %6813 = vmatprep.subr.bf16.mxu0 0
    %6814 = vmatpush1.bf16.xpose.msra.mxu0 0
    %6815 = vmatprep.subr.bf16.mxu0 0
    %6816 = vmatpush1.bf16.xpose.msra.mxu0 0
    %6817 = vmatprep.subr.bf16.mxu0 0
    %6818 = vmatpush1.bf16.xpose.msra.mxu0 0
    %6819 = vmatprep.subr.bf16.mxu0 0
    %6820 = vmatpush1.bf16.xpose.msra.mxu0 0
    %6821 = vmatprep.subr.bf16.mxu0 0
    %6822 = vmatpush1.bf16.xpose.msra.mxu0 0
    %6823 = vmatprep.subr.bf16.mxu0 0
    %6824 = vmatpush1.bf16.xpose.msra.mxu0 0
    %6825 = vmatprep.subr.bf16.mxu0 0
    %6826 = vmatpush1.bf16.xpose.msra.mxu0 %v6809
    %6827 = vmatprep.subr.bf16.mxu0 0
    %6828 = vmatpush2.bf16.xpose.msra.mxu0 0
    %6829 = vmatprep.subr.bf16.mxu0 0
    %6830 = vmatpush2.bf16.xpose.msra.mxu0 0
    %6831 = vmatprep.subr.bf16.mxu0 0
    %6832 = vmatpush2.bf16.xpose.msra.mxu0 0
    %6833 = vmatprep.subr.bf16.mxu0 0
    %6834 = vmatpush2.bf16.xpose.msra.mxu0 0
    %6835 = vmatprep.subr.bf16.mxu0 0
    %6836 = vmatpush2.bf16.xpose.msra.mxu0 0
    %6837 = vmatprep.subr.bf16.mxu0 0
    %6838 = vmatpush2.bf16.xpose.msra.mxu0 0
    %6839 = vmatprep.subr.bf16.mxu0 0
    %6840 = vmatpush2.bf16.xpose.msra.mxu0 0
    %6841 = vmatprep.subr.bf16.mxu0 0
    %6842 = vmatpush2.bf16.xpose.msra.mxu0 0
    %6843 = vmatprep.mubr.bf16.mxu0 0
    %6844 = vmatmul.mubr.bf16.gmra.mxu0 %v6806
    %v6845 = vpop.f32.mrf.mxu0
    %v6846 = vadd.f32 0.0, %v6845
    %v6847 = vpop.f32.mrf.mxu0
    %v6848 = vpop.f32.mrf.mxu0
    %v6849 = vpop.f32.mrf.mxu0
    %6850 = vdwg.mxu0
    %6851 = vrot.lane.b32.xlu0 %v4847, 112
    %v6852 = vpop.permute.xlu0 %6851
    %6853 = vrot.lane.b32.xlu0 %v4847, 80
    %v6854 = vpop.permute.xlu0 %6853
    %v6856 = vsel %vm127, %v6852, 0
    %v6859 = vsel %vm127, %v6854, 0
    %6861 = vmatprep.subr.bf16.mxu0 0
    %6862 = vmatpush1.bf16.xpose.msra.mxu0 0
    %6863 = vmatprep.subr.bf16.mxu0 0
    %6864 = vmatpush1.bf16.xpose.msra.mxu0 0
    %6865 = vmatprep.subr.bf16.mxu0 0
    %6866 = vmatpush1.bf16.xpose.msra.mxu0 0
    %6867 = vmatprep.subr.bf16.mxu0 0
    %6868 = vmatpush1.bf16.xpose.msra.mxu0 0
    %6869 = vmatprep.subr.bf16.mxu0 0
    %6870 = vmatpush1.bf16.xpose.msra.mxu0 0
    %6871 = vmatprep.subr.bf16.mxu0 0
    %6872 = vmatpush1.bf16.xpose.msra.mxu0 0
    %6873 = vmatprep.subr.bf16.mxu0 0
    %6874 = vmatpush1.bf16.xpose.msra.mxu0 0
    %6875 = vmatprep.subr.bf16.mxu0 0
    %6876 = vmatpush1.bf16.xpose.msra.mxu0 %v6859
    %6877 = vmatprep.subr.bf16.mxu0 0
    %6878 = vmatpush2.bf16.xpose.msra.mxu0 0
    %6879 = vmatprep.subr.bf16.mxu0 0
    %6880 = vmatpush2.bf16.xpose.msra.mxu0 0
    %6881 = vmatprep.subr.bf16.mxu0 0
    %6882 = vmatpush2.bf16.xpose.msra.mxu0 0
    %6883 = vmatprep.subr.bf16.mxu0 0
    %6884 = vmatpush2.bf16.xpose.msra.mxu0 0
    %6885 = vmatprep.subr.bf16.mxu0 0
    %6886 = vmatpush2.bf16.xpose.msra.mxu0 0
    %6887 = vmatprep.subr.bf16.mxu0 0
    %6888 = vmatpush2.bf16.xpose.msra.mxu0 0
    %6889 = vmatprep.subr.bf16.mxu0 0
    %6890 = vmatpush2.bf16.xpose.msra.mxu0 0
    %6891 = vmatprep.subr.bf16.mxu0 0
    %6892 = vmatpush2.bf16.xpose.msra.mxu0 0
    %6893 = vmatprep.mubr.bf16.mxu0 0
    %6894 = vmatmul.mubr.bf16.gmra.mxu0 %v6856
    %v6895 = vpop.f32.mrf.mxu0
    %v6896 = vadd.f32 0.0, %v6895
    %v6897 = vpop.f32.mrf.mxu0
    %v6898 = vpop.f32.mrf.mxu0
    %v6899 = vpop.f32.mrf.mxu0
    %6900 = vdwg.mxu0
    %6901 = vrot.lane.b32.xlu0 %v4848, 112
    %v6902 = vpop.permute.xlu0 %6901
    %6903 = vrot.lane.b32.xlu0 %v4848, 80
    %v6904 = vpop.permute.xlu0 %6903
    %v6906 = vsel %vm127, %v6902, 0
    %v6909 = vsel %vm127, %v6904, 0
    %6911 = vmatprep.subr.bf16.mxu0 0
    %6912 = vmatpush1.bf16.xpose.msra.mxu0 0
    %6913 = vmatprep.subr.bf16.mxu0 0
    %6914 = vmatpush1.bf16.xpose.msra.mxu0 0
    %6915 = vmatprep.subr.bf16.mxu0 0
    %6916 = vmatpush1.bf16.xpose.msra.mxu0 0
    %6917 = vmatprep.subr.bf16.mxu0 0
    %6918 = vmatpush1.bf16.xpose.msra.mxu0 0
    %6919 = vmatprep.subr.bf16.mxu0 0
    %6920 = vmatpush1.bf16.xpose.msra.mxu0 0
    %6921 = vmatprep.subr.bf16.mxu0 0
    %6922 = vmatpush1.bf16.xpose.msra.mxu0 0
    %6923 = vmatprep.subr.bf16.mxu0 0
    %6924 = vmatpush1.bf16.xpose.msra.mxu0 0
    %6925 = vmatprep.subr.bf16.mxu0 0
    %6926 = vmatpush1.bf16.xpose.msra.mxu0 %v6909
    %6927 = vmatprep.subr.bf16.mxu0 0
    %6928 = vmatpush2.bf16.xpose.msra.mxu0 0
    %6929 = vmatprep.subr.bf16.mxu0 0
    %6930 = vmatpush2.bf16.xpose.msra.mxu0 0
    %6931 = vmatprep.subr.bf16.mxu0 0
    %6932 = vmatpush2.bf16.xpose.msra.mxu0 0
    %6933 = vmatprep.subr.bf16.mxu0 0
    %6934 = vmatpush2.bf16.xpose.msra.mxu0 0
    %6935 = vmatprep.subr.bf16.mxu0 0
    %6936 = vmatpush2.bf16.xpose.msra.mxu0 0
    %6937 = vmatprep.subr.bf16.mxu0 0
    %6938 = vmatpush2.bf16.xpose.msra.mxu0 0
    %6939 = vmatprep.subr.bf16.mxu0 0
    %6940 = vmatpush2.bf16.xpose.msra.mxu0 0
    %6941 = vmatprep.subr.bf16.mxu0 0
    %6942 = vmatpush2.bf16.xpose.msra.mxu0 0
    %6943 = vmatprep.mubr.bf16.mxu0 0
    %6944 = vmatmul.mubr.bf16.gmra.mxu0 %v6906
    %v6945 = vpop.f32.mrf.mxu0
    %v6946 = vadd.f32 0.0, %v6945
    %v6947 = vpop.f32.mrf.mxu0
    %v6948 = vpop.f32.mrf.mxu0
    %v6949 = vpop.f32.mrf.mxu0
    %6950 = vdwg.mxu0
    %6951 = vrot.lane.b32.xlu0 %v4849, 112
    %v6952 = vpop.permute.xlu0 %6951
    %6953 = vrot.lane.b32.xlu0 %v4849, 80
    %v6954 = vpop.permute.xlu0 %6953
    %v6956 = vsel %vm127, %v6952, 0
    %v6959 = vsel %vm127, %v6954, 0
    %6961 = vmatprep.subr.bf16.mxu0 0
    %6962 = vmatpush1.bf16.xpose.msra.mxu0 0
    %6963 = vmatprep.subr.bf16.mxu0 0
    %6964 = vmatpush1.bf16.xpose.msra.mxu0 0
    %6965 = vmatprep.subr.bf16.mxu0 0
    %6966 = vmatpush1.bf16.xpose.msra.mxu0 0
    %6967 = vmatprep.subr.bf16.mxu0 0
    %6968 = vmatpush1.bf16.xpose.msra.mxu0 0
    %6969 = vmatprep.subr.bf16.mxu0 0
    %6970 = vmatpush1.bf16.xpose.msra.mxu0 0
    %6971 = vmatprep.subr.bf16.mxu0 0
    %6972 = vmatpush1.bf16.xpose.msra.mxu0 0
    %6973 = vmatprep.subr.bf16.mxu0 0
    %6974 = vmatpush1.bf16.xpose.msra.mxu0 0
    %6975 = vmatprep.subr.bf16.mxu0 0
    %6976 = vmatpush1.bf16.xpose.msra.mxu0 %v6959
    %6977 = vmatprep.subr.bf16.mxu0 0
    %6978 = vmatpush2.bf16.xpose.msra.mxu0 0
    %6979 = vmatprep.subr.bf16.mxu0 0
    %6980 = vmatpush2.bf16.xpose.msra.mxu0 0
    %6981 = vmatprep.subr.bf16.mxu0 0
    %6982 = vmatpush2.bf16.xpose.msra.mxu0 0
    %6983 = vmatprep.subr.bf16.mxu0 0
    %6984 = vmatpush2.bf16.xpose.msra.mxu0 0
    %6985 = vmatprep.subr.bf16.mxu0 0
    %6986 = vmatpush2.bf16.xpose.msra.mxu0 0
    %6987 = vmatprep.subr.bf16.mxu0 0
    %6988 = vmatpush2.bf16.xpose.msra.mxu0 0
    %6989 = vmatprep.subr.bf16.mxu0 0
    %6990 = vmatpush2.bf16.xpose.msra.mxu0 0
    %6991 = vmatprep.subr.bf16.mxu0 0
    %6992 = vmatpush2.bf16.xpose.msra.mxu0 0
    %6993 = vmatprep.mubr.bf16.mxu0 0
    %6994 = vmatmul.mubr.bf16.gmra.mxu0 %v6956
    %v6995 = vpop.f32.mrf.mxu0
    %v6996 = vadd.f32 0.0, %v6995
    %v6997 = vpop.f32.mrf.mxu0
    %v6998 = vpop.f32.mrf.mxu0
    %v6999 = vpop.f32.mrf.mxu0
    %7000 = vdwg.mxu0
    %7001 = vrot.lane.b32.xlu0 %v4850, 112
    %v7002 = vpop.permute.xlu0 %7001
    %7003 = vrot.lane.b32.xlu0 %v4850, 80
    %v7004 = vpop.permute.xlu0 %7003
    %v7006 = vsel %vm127, %v7002, 0
    %v7009 = vsel %vm127, %v7004, 0
    %7011 = vmatprep.subr.bf16.mxu0 0
    %7012 = vmatpush1.bf16.xpose.msra.mxu0 0
    %7013 = vmatprep.subr.bf16.mxu0 0
    %7014 = vmatpush1.bf16.xpose.msra.mxu0 0
    %7015 = vmatprep.subr.bf16.mxu0 0
    %7016 = vmatpush1.bf16.xpose.msra.mxu0 0
    %7017 = vmatprep.subr.bf16.mxu0 0
    %7018 = vmatpush1.bf16.xpose.msra.mxu0 0
    %7019 = vmatprep.subr.bf16.mxu0 0
    %7020 = vmatpush1.bf16.xpose.msra.mxu0 0
    %7021 = vmatprep.subr.bf16.mxu0 0
    %7022 = vmatpush1.bf16.xpose.msra.mxu0 0
    %7023 = vmatprep.subr.bf16.mxu0 0
    %7024 = vmatpush1.bf16.xpose.msra.mxu0 0
    %7025 = vmatprep.subr.bf16.mxu0 0
    %7026 = vmatpush1.bf16.xpose.msra.mxu0 %v7009
    %7027 = vmatprep.subr.bf16.mxu0 0
    %7028 = vmatpush2.bf16.xpose.msra.mxu0 0
    %7029 = vmatprep.subr.bf16.mxu0 0
    %7030 = vmatpush2.bf16.xpose.msra.mxu0 0
    %7031 = vmatprep.subr.bf16.mxu0 0
    %7032 = vmatpush2.bf16.xpose.msra.mxu0 0
    %7033 = vmatprep.subr.bf16.mxu0 0
    %7034 = vmatpush2.bf16.xpose.msra.mxu0 0
    %7035 = vmatprep.subr.bf16.mxu0 0
    %7036 = vmatpush2.bf16.xpose.msra.mxu0 0
    %7037 = vmatprep.subr.bf16.mxu0 0
    %7038 = vmatpush2.bf16.xpose.msra.mxu0 0
    %7039 = vmatprep.subr.bf16.mxu0 0
    %7040 = vmatpush2.bf16.xpose.msra.mxu0 0
    %7041 = vmatprep.subr.bf16.mxu0 0
    %7042 = vmatpush2.bf16.xpose.msra.mxu0 0
    %7043 = vmatprep.mubr.bf16.mxu0 0
    %7044 = vmatmul.mubr.bf16.gmra.mxu0 %v7006
    %v7045 = vpop.f32.mrf.mxu0
    %v7046 = vadd.f32 0.0, %v7045
    %v7047 = vpop.f32.mrf.mxu0
    %v7048 = vpop.f32.mrf.mxu0
    %v7049 = vpop.f32.mrf.mxu0
    %7050 = vdwg.mxu0
    %v7051 = vsel %vm1070, %v6696, -inf
    %7052 = vmax.xlane.f32.xlu0 %v7051
    %v7053 = vpop.xlane.xlu0 %7052
    %v7054 = vsel %vm1070, %v6746, -inf
    %7055 = vmax.xlane.f32.xlu0 %v7054
    %v7056 = vpop.xlane.xlu0 %7055
    %v7057 = vsel %vm1070, %v6796, -inf
    %7058 = vmax.xlane.f32.xlu0 %v7057
    %v7059 = vpop.xlane.xlu0 %7058
    %v7060 = vsel %vm1070, %v6846, -inf
    %7061 = vmax.xlane.f32.xlu0 %v7060
    %v7062 = vpop.xlane.xlu0 %7061
    %v7063 = vsel %vm1070, %v6896, -inf
    %7064 = vmax.xlane.f32.xlu0 %v7063
    %v7065 = vpop.xlane.xlu0 %7064
    %v7066 = vsel %vm1070, %v6946, -inf
    %7067 = vmax.xlane.f32.xlu0 %v7066
    %v7068 = vpop.xlane.xlu0 %7067
    %v7069 = vsel %vm1070, %v6996, -inf
    %7070 = vmax.xlane.f32.xlu0 %v7069
    %v7071 = vpop.xlane.xlu0 %7070
    %v7072 = vsel %vm1070, %v7046, -inf
    %7073 = vmax.xlane.f32.xlu0 %v7072
    %v7074 = vpop.xlane.xlu0 %7073
    %v7075 = vsub.f32 %v6696, %v7053
    %v7076 = vsub.f32 %v6746, %v7056
    %v7077 = vsub.f32 %v6796, %v7059
    %v7078 = vsub.f32 %v6846, %v7062
    %v7079 = vsub.f32 %v6896, %v7065
    %v7080 = vsub.f32 %v6946, %v7068
    %v7081 = vsub.f32 %v6996, %v7071
    %v7082 = vsub.f32 %v7046, %v7074
    %v7083 = vmul.f32 %v7075, 1.442695
    %v7084 = vpow.pop %v7083
    %v7085 = vmul.f32 %v7076, 1.442695
    %v7086 = vpow.pop %v7085
    %v7087 = vmul.f32 %v7077, 1.442695
    %v7088 = vpow.pop %v7087
    %v7089 = vmul.f32 %v7078, 1.442695
    %v7090 = vpow.pop %v7089
    %v7091 = vmul.f32 %v7079, 1.442695
    %v7092 = vpow.pop %v7091
    %v7093 = vmul.f32 %v7080, 1.442695
    %v7094 = vpow.pop %v7093
    %v7095 = vmul.f32 %v7081, 1.442695
    %v7096 = vpow.pop %v7095
    %v7097 = vmul.f32 %v7082, 1.442695
    %v7098 = vpow.pop %v7097
    %v7099 = vsel %vm1070, %v7084, 0.0
    %7100 = vadd.xlane.f32.xlu0 %v7099
    %v7101 = vpop.xlane.xlu0 %7100
    %v7102 = vsel %vm1070, %v7086, 0.0
    %7103 = vadd.xlane.f32.xlu0 %v7102
    %v7104 = vpop.xlane.xlu0 %7103
    %v7105 = vsel %vm1070, %v7088, 0.0
    %7106 = vadd.xlane.f32.xlu0 %v7105
    %v7107 = vpop.xlane.xlu0 %7106
    %v7108 = vsel %vm1070, %v7090, 0.0
    %7109 = vadd.xlane.f32.xlu0 %v7108
    %v7110 = vpop.xlane.xlu0 %7109
    %v7111 = vsel %vm1070, %v7092, 0.0
    %7112 = vadd.xlane.f32.xlu0 %v7111
    %v7113 = vpop.xlane.xlu0 %7112
    %v7114 = vsel %vm1070, %v7094, 0.0
    %7115 = vadd.xlane.f32.xlu0 %v7114
    %v7116 = vpop.xlane.xlu0 %7115
    %v7117 = vsel %vm1070, %v7096, 0.0
    %7118 = vadd.xlane.f32.xlu0 %v7117
    %v7119 = vpop.xlane.xlu0 %7118
    %v7120 = vsel %vm1070, %v7098, 0.0
    %7121 = vadd.xlane.f32.xlu0 %v7120
    %v7122 = vpop.xlane.xlu0 %7121
    %v7123 = vrcp.pop %v7101
    %v7124 = vrcp.pop %v7104
    %v7125 = vrcp.pop %v7107
    %v7126 = vrcp.pop %v7110
    %v7127 = vrcp.pop %v7113
    %v7128 = vrcp.pop %v7116
    %v7129 = vrcp.pop %v7119
    %v7130 = vrcp.pop %v7122
    %v7131 = vmul.f32 %v7084, %v7123
    %v7132 = vmul.f32 %v7086, %v7124
    %v7133 = vmul.f32 %v7088, %v7125
    %v7134 = vmul.f32 %v7090, %v7126
    %v7135 = vmul.f32 %v7092, %v7127
    %v7136 = vmul.f32 %v7094, %v7128
    %v7137 = vmul.f32 %v7096, %v7129
    %v7138 = vmul.f32 %v7098, %v7130
    %v7139 = vpack.c.bf16 %v7131, %v7131
    %v7140 = vpack.c.bf16 %v7132, %v7132
    %v7141 = vpack.c.bf16 %v7133, %v7133
    %v7142 = vpack.c.bf16 %v7134, %v7134
    %v7143 = vpack.c.bf16 %v7135, %v7135
    %v7144 = vpack.c.bf16 %v7136, %v7136
    %v7145 = vpack.c.bf16 %v7137, %v7137
    %v7146 = vpack.c.bf16 %v7138, %v7138
    %7147 = vrot.lane.b32.xlu0 %v4843, 48
    %v7148 = vpop.permute.xlu0 %7147
    %v7150 = vsel %vm365, %v7139, 0
    %v7153 = vsel %vm1172, %v7148, 0
    %7155 = vmatprep.subr.bf16.mxu0 0
    %7156 = vmatpush1.bf16.msra.mxu0 0
    %7157 = vmatprep.subr.bf16.mxu0 0
    %7158 = vmatpush1.bf16.msra.mxu0 0
    %7159 = vmatprep.subr.bf16.mxu0 0
    %7160 = vmatpush1.bf16.msra.mxu0 0
    %7161 = vmatprep.subr.bf16.mxu0 0
    %7162 = vmatpush1.bf16.msra.mxu0 0
    %7163 = vmatprep.subr.bf16.mxu0 0
    %7164 = vmatpush1.bf16.msra.mxu0 0
    %7165 = vmatprep.subr.bf16.mxu0 0
    %7166 = vmatpush1.bf16.msra.mxu0 0
    %7167 = vmatprep.subr.bf16.mxu0 0
    %7168 = vmatpush1.bf16.msra.mxu0 0
    %7169 = vmatprep.subr.bf16.mxu0 0
    %7170 = vmatpush1.bf16.msra.mxu0 %v7153
    %7171 = vmatprep.subr.bf16.mxu0 0
    %7172 = vmatpush2.bf16.msra.mxu0 0
    %7173 = vmatprep.subr.bf16.mxu0 0
    %7174 = vmatpush2.bf16.msra.mxu0 0
    %7175 = vmatprep.subr.bf16.mxu0 0
    %7176 = vmatpush2.bf16.msra.mxu0 0
    %7177 = vmatprep.subr.bf16.mxu0 0
    %7178 = vmatpush2.bf16.msra.mxu0 0
    %7179 = vmatprep.subr.bf16.mxu0 0
    %7180 = vmatpush2.bf16.msra.mxu0 0
    %7181 = vmatprep.subr.bf16.mxu0 0
    %7182 = vmatpush2.bf16.msra.mxu0 0
    %7183 = vmatprep.subr.bf16.mxu0 0
    %7184 = vmatpush2.bf16.msra.mxu0 0
    %7185 = vmatprep.subr.bf16.mxu0 0
    %7186 = vmatpush2.bf16.msra.mxu0 0
    %7187 = vmatprep.mubr.bf16.mxu0 0
    %7188 = vmatmul.mubr.bf16.gmra.mxu0 %v7150
    %v7189 = vpop.f32.mrf.mxu0
    %v7190 = vadd.f32 0.0, %v7189
    %v7191 = vpop.f32.mrf.mxu0
    %v7192 = vpop.f32.mrf.mxu0
    %v7193 = vpop.f32.mrf.mxu0
    %7194 = vdwg.mxu0
    %7195 = vrot.lane.b32.xlu0 %v4844, 48
    %v7196 = vpop.permute.xlu0 %7195
    %v7198 = vsel %vm365, %v7140, 0
    %v7201 = vsel %vm1172, %v7196, 0
    %7203 = vmatprep.subr.bf16.mxu0 0
    %7204 = vmatpush1.bf16.msra.mxu0 0
    %7205 = vmatprep.subr.bf16.mxu0 0
    %7206 = vmatpush1.bf16.msra.mxu0 0
    %7207 = vmatprep.subr.bf16.mxu0 0
    %7208 = vmatpush1.bf16.msra.mxu0 0
    %7209 = vmatprep.subr.bf16.mxu0 0
    %7210 = vmatpush1.bf16.msra.mxu0 0
    %7211 = vmatprep.subr.bf16.mxu0 0
    %7212 = vmatpush1.bf16.msra.mxu0 0
    %7213 = vmatprep.subr.bf16.mxu0 0
    %7214 = vmatpush1.bf16.msra.mxu0 0
    %7215 = vmatprep.subr.bf16.mxu0 0
    %7216 = vmatpush1.bf16.msra.mxu0 0
    %7217 = vmatprep.subr.bf16.mxu0 0
    %7218 = vmatpush1.bf16.msra.mxu0 %v7201
    %7219 = vmatprep.subr.bf16.mxu0 0
    %7220 = vmatpush2.bf16.msra.mxu0 0
    %7221 = vmatprep.subr.bf16.mxu0 0
    %7222 = vmatpush2.bf16.msra.mxu0 0
    %7223 = vmatprep.subr.bf16.mxu0 0
    %7224 = vmatpush2.bf16.msra.mxu0 0
    %7225 = vmatprep.subr.bf16.mxu0 0
    %7226 = vmatpush2.bf16.msra.mxu0 0
    %7227 = vmatprep.subr.bf16.mxu0 0
    %7228 = vmatpush2.bf16.msra.mxu0 0
    %7229 = vmatprep.subr.bf16.mxu0 0
    %7230 = vmatpush2.bf16.msra.mxu0 0
    %7231 = vmatprep.subr.bf16.mxu0 0
    %7232 = vmatpush2.bf16.msra.mxu0 0
    %7233 = vmatprep.subr.bf16.mxu0 0
    %7234 = vmatpush2.bf16.msra.mxu0 0
    %7235 = vmatprep.mubr.bf16.mxu0 0
    %7236 = vmatmul.mubr.bf16.gmra.mxu0 %v7198
    %v7237 = vpop.f32.mrf.mxu0
    %v7238 = vadd.f32 0.0, %v7237
    %v7239 = vpop.f32.mrf.mxu0
    %v7240 = vpop.f32.mrf.mxu0
    %v7241 = vpop.f32.mrf.mxu0
    %7242 = vdwg.mxu0
    %7243 = vrot.lane.b32.xlu0 %v4845, 48
    %v7244 = vpop.permute.xlu0 %7243
    %v7246 = vsel %vm365, %v7141, 0
    %v7249 = vsel %vm1172, %v7244, 0
    %7251 = vmatprep.subr.bf16.mxu0 0
    %7252 = vmatpush1.bf16.msra.mxu0 0
    %7253 = vmatprep.subr.bf16.mxu0 0
    %7254 = vmatpush1.bf16.msra.mxu0 0
    %7255 = vmatprep.subr.bf16.mxu0 0
    %7256 = vmatpush1.bf16.msra.mxu0 0
    %7257 = vmatprep.subr.bf16.mxu0 0
    %7258 = vmatpush1.bf16.msra.mxu0 0
    %7259 = vmatprep.subr.bf16.mxu0 0
    %7260 = vmatpush1.bf16.msra.mxu0 0
    %7261 = vmatprep.subr.bf16.mxu0 0
    %7262 = vmatpush1.bf16.msra.mxu0 0
    %7263 = vmatprep.subr.bf16.mxu0 0
    %7264 = vmatpush1.bf16.msra.mxu0 0
    %7265 = vmatprep.subr.bf16.mxu0 0
    %7266 = vmatpush1.bf16.msra.mxu0 %v7249
    %7267 = vmatprep.subr.bf16.mxu0 0
    %7268 = vmatpush2.bf16.msra.mxu0 0
    %7269 = vmatprep.subr.bf16.mxu0 0
    %7270 = vmatpush2.bf16.msra.mxu0 0
    %7271 = vmatprep.subr.bf16.mxu0 0
    %7272 = vmatpush2.bf16.msra.mxu0 0
    %7273 = vmatprep.subr.bf16.mxu0 0
    %7274 = vmatpush2.bf16.msra.mxu0 0
    %7275 = vmatprep.subr.bf16.mxu0 0
    %7276 = vmatpush2.bf16.msra.mxu0 0
    %7277 = vmatprep.subr.bf16.mxu0 0
    %7278 = vmatpush2.bf16.msra.mxu0 0
    %7279 = vmatprep.subr.bf16.mxu0 0
    %7280 = vmatpush2.bf16.msra.mxu0 0
    %7281 = vmatprep.subr.bf16.mxu0 0
    %7282 = vmatpush2.bf16.msra.mxu0 0
    %7283 = vmatprep.mubr.bf16.mxu0 0
    %7284 = vmatmul.mubr.bf16.gmra.mxu0 %v7246
    %v7285 = vpop.f32.mrf.mxu0
    %v7286 = vadd.f32 0.0, %v7285
    %v7287 = vpop.f32.mrf.mxu0
    %v7288 = vpop.f32.mrf.mxu0
    %v7289 = vpop.f32.mrf.mxu0
    %7290 = vdwg.mxu0
    %7291 = vrot.lane.b32.xlu0 %v4846, 48
    %v7292 = vpop.permute.xlu0 %7291
    %v7294 = vsel %vm365, %v7142, 0
    %v7297 = vsel %vm1172, %v7292, 0
    %7299 = vmatprep.subr.bf16.mxu0 0
    %7300 = vmatpush1.bf16.msra.mxu0 0
    %7301 = vmatprep.subr.bf16.mxu0 0
    %7302 = vmatpush1.bf16.msra.mxu0 0
    %7303 = vmatprep.subr.bf16.mxu0 0
    %7304 = vmatpush1.bf16.msra.mxu0 0
    %7305 = vmatprep.subr.bf16.mxu0 0
    %7306 = vmatpush1.bf16.msra.mxu0 0
    %7307 = vmatprep.subr.bf16.mxu0 0
    %7308 = vmatpush1.bf16.msra.mxu0 0
    %7309 = vmatprep.subr.bf16.mxu0 0
    %7310 = vmatpush1.bf16.msra.mxu0 0
    %7311 = vmatprep.subr.bf16.mxu0 0
    %7312 = vmatpush1.bf16.msra.mxu0 0
    %7313 = vmatprep.subr.bf16.mxu0 0
    %7314 = vmatpush1.bf16.msra.mxu0 %v7297
    %7315 = vmatprep.subr.bf16.mxu0 0
    %7316 = vmatpush2.bf16.msra.mxu0 0
    %7317 = vmatprep.subr.bf16.mxu0 0
    %7318 = vmatpush2.bf16.msra.mxu0 0
    %7319 = vmatprep.subr.bf16.mxu0 0
    %7320 = vmatpush2.bf16.msra.mxu0 0
    %7321 = vmatprep.subr.bf16.mxu0 0
    %7322 = vmatpush2.bf16.msra.mxu0 0
    %7323 = vmatprep.subr.bf16.mxu0 0
    %7324 = vmatpush2.bf16.msra.mxu0 0
    %7325 = vmatprep.subr.bf16.mxu0 0
    %7326 = vmatpush2.bf16.msra.mxu0 0
    %7327 = vmatprep.subr.bf16.mxu0 0
    %7328 = vmatpush2.bf16.msra.mxu0 0
    %7329 = vmatprep.subr.bf16.mxu0 0
    %7330 = vmatpush2.bf16.msra.mxu0 0
    %7331 = vmatprep.mubr.bf16.mxu0 0
    %7332 = vmatmul.mubr.bf16.gmra.mxu0 %v7294
    %v7333 = vpop.f32.mrf.mxu0
    %v7334 = vadd.f32 0.0, %v7333
    %v7335 = vpop.f32.mrf.mxu0
    %v7336 = vpop.f32.mrf.mxu0
    %v7337 = vpop.f32.mrf.mxu0
    %7338 = vdwg.mxu0
    %7339 = vrot.lane.b32.xlu0 %v4847, 48
    %v7340 = vpop.permute.xlu0 %7339
    %v7342 = vsel %vm365, %v7143, 0
    %v7345 = vsel %vm1172, %v7340, 0
    %7347 = vmatprep.subr.bf16.mxu0 0
    %7348 = vmatpush1.bf16.msra.mxu0 0
    %7349 = vmatprep.subr.bf16.mxu0 0
    %7350 = vmatpush1.bf16.msra.mxu0 0
    %7351 = vmatprep.subr.bf16.mxu0 0
    %7352 = vmatpush1.bf16.msra.mxu0 0
    %7353 = vmatprep.subr.bf16.mxu0 0
    %7354 = vmatpush1.bf16.msra.mxu0 0
    %7355 = vmatprep.subr.bf16.mxu0 0
    %7356 = vmatpush1.bf16.msra.mxu0 0
    %7357 = vmatprep.subr.bf16.mxu0 0
    %7358 = vmatpush1.bf16.msra.mxu0 0
    %7359 = vmatprep.subr.bf16.mxu0 0
    %7360 = vmatpush1.bf16.msra.mxu0 0
    %7361 = vmatprep.subr.bf16.mxu0 0
    %7362 = vmatpush1.bf16.msra.mxu0 %v7345
    %7363 = vmatprep.subr.bf16.mxu0 0
    %7364 = vmatpush2.bf16.msra.mxu0 0
    %7365 = vmatprep.subr.bf16.mxu0 0
    %7366 = vmatpush2.bf16.msra.mxu0 0
    %7367 = vmatprep.subr.bf16.mxu0 0
    %7368 = vmatpush2.bf16.msra.mxu0 0
    %7369 = vmatprep.subr.bf16.mxu0 0
    %7370 = vmatpush2.bf16.msra.mxu0 0
    %7371 = vmatprep.subr.bf16.mxu0 0
    %7372 = vmatpush2.bf16.msra.mxu0 0
    %7373 = vmatprep.subr.bf16.mxu0 0
    %7374 = vmatpush2.bf16.msra.mxu0 0
    %7375 = vmatprep.subr.bf16.mxu0 0
    %7376 = vmatpush2.bf16.msra.mxu0 0
    %7377 = vmatprep.subr.bf16.mxu0 0
    %7378 = vmatpush2.bf16.msra.mxu0 0
    %7379 = vmatprep.mubr.bf16.mxu0 0
    %7380 = vmatmul.mubr.bf16.gmra.mxu0 %v7342
    %v7381 = vpop.f32.mrf.mxu0
    %v7382 = vadd.f32 0.0, %v7381
    %v7383 = vpop.f32.mrf.mxu0
    %v7384 = vpop.f32.mrf.mxu0
    %v7385 = vpop.f32.mrf.mxu0
    %7386 = vdwg.mxu0
    %7387 = vrot.lane.b32.xlu0 %v4848, 48
    %v7388 = vpop.permute.xlu0 %7387
    %v7390 = vsel %vm365, %v7144, 0
    %v7393 = vsel %vm1172, %v7388, 0
    %7395 = vmatprep.subr.bf16.mxu0 0
    %7396 = vmatpush1.bf16.msra.mxu0 0
    %7397 = vmatprep.subr.bf16.mxu0 0
    %7398 = vmatpush1.bf16.msra.mxu0 0
    %7399 = vmatprep.subr.bf16.mxu0 0
    %7400 = vmatpush1.bf16.msra.mxu0 0
    %7401 = vmatprep.subr.bf16.mxu0 0
    %7402 = vmatpush1.bf16.msra.mxu0 0
    %7403 = vmatprep.subr.bf16.mxu0 0
    %7404 = vmatpush1.bf16.msra.mxu0 0
    %7405 = vmatprep.subr.bf16.mxu0 0
    %7406 = vmatpush1.bf16.msra.mxu0 0
    %7407 = vmatprep.subr.bf16.mxu0 0
    %7408 = vmatpush1.bf16.msra.mxu0 0
    %7409 = vmatprep.subr.bf16.mxu0 0
    %7410 = vmatpush1.bf16.msra.mxu0 %v7393
    %7411 = vmatprep.subr.bf16.mxu0 0
    %7412 = vmatpush2.bf16.msra.mxu0 0
    %7413 = vmatprep.subr.bf16.mxu0 0
    %7414 = vmatpush2.bf16.msra.mxu0 0
    %7415 = vmatprep.subr.bf16.mxu0 0
    %7416 = vmatpush2.bf16.msra.mxu0 0
    %7417 = vmatprep.subr.bf16.mxu0 0
    %7418 = vmatpush2.bf16.msra.mxu0 0
    %7419 = vmatprep.subr.bf16.mxu0 0
    %7420 = vmatpush2.bf16.msra.mxu0 0
    %7421 = vmatprep.subr.bf16.mxu0 0
    %7422 = vmatpush2.bf16.msra.mxu0 0
    %7423 = vmatprep.subr.bf16.mxu0 0
    %7424 = vmatpush2.bf16.msra.mxu0 0
    %7425 = vmatprep.subr.bf16.mxu0 0
    %7426 = vmatpush2.bf16.msra.mxu0 0
    %7427 = vmatprep.mubr.bf16.mxu0 0
    %7428 = vmatmul.mubr.bf16.gmra.mxu0 %v7390
    %v7429 = vpop.f32.mrf.mxu0
    %v7430 = vadd.f32 0.0, %v7429
    %v7431 = vpop.f32.mrf.mxu0
    %v7432 = vpop.f32.mrf.mxu0
    %v7433 = vpop.f32.mrf.mxu0
    %7434 = vdwg.mxu0
    %7435 = vrot.lane.b32.xlu0 %v4849, 48
    %v7436 = vpop.permute.xlu0 %7435
    %v7438 = vsel %vm365, %v7145, 0
    %v7441 = vsel %vm1172, %v7436, 0
    %7443 = vmatprep.subr.bf16.mxu0 0
    %7444 = vmatpush1.bf16.msra.mxu0 0
    %7445 = vmatprep.subr.bf16.mxu0 0
    %7446 = vmatpush1.bf16.msra.mxu0 0
    %7447 = vmatprep.subr.bf16.mxu0 0
    %7448 = vmatpush1.bf16.msra.mxu0 0
    %7449 = vmatprep.subr.bf16.mxu0 0
    %7450 = vmatpush1.bf16.msra.mxu0 0
    %7451 = vmatprep.subr.bf16.mxu0 0
    %7452 = vmatpush1.bf16.msra.mxu0 0
    %7453 = vmatprep.subr.bf16.mxu0 0
    %7454 = vmatpush1.bf16.msra.mxu0 0
    %7455 = vmatprep.subr.bf16.mxu0 0
    %7456 = vmatpush1.bf16.msra.mxu0 0
    %7457 = vmatprep.subr.bf16.mxu0 0
    %7458 = vmatpush1.bf16.msra.mxu0 %v7441
    %7459 = vmatprep.subr.bf16.mxu0 0
    %7460 = vmatpush2.bf16.msra.mxu0 0
    %7461 = vmatprep.subr.bf16.mxu0 0
    %7462 = vmatpush2.bf16.msra.mxu0 0
    %7463 = vmatprep.subr.bf16.mxu0 0
    %7464 = vmatpush2.bf16.msra.mxu0 0
    %7465 = vmatprep.subr.bf16.mxu0 0
    %7466 = vmatpush2.bf16.msra.mxu0 0
    %7467 = vmatprep.subr.bf16.mxu0 0
    %7468 = vmatpush2.bf16.msra.mxu0 0
    %7469 = vmatprep.subr.bf16.mxu0 0
    %7470 = vmatpush2.bf16.msra.mxu0 0
    %7471 = vmatprep.subr.bf16.mxu0 0
    %7472 = vmatpush2.bf16.msra.mxu0 0
    %7473 = vmatprep.subr.bf16.mxu0 0
    %7474 = vmatpush2.bf16.msra.mxu0 0
    %7475 = vmatprep.mubr.bf16.mxu0 0
    %7476 = vmatmul.mubr.bf16.gmra.mxu0 %v7438
    %v7477 = vpop.f32.mrf.mxu0
    %v7478 = vadd.f32 0.0, %v7477
    %v7479 = vpop.f32.mrf.mxu0
    %v7480 = vpop.f32.mrf.mxu0
    %v7481 = vpop.f32.mrf.mxu0
    %7482 = vdwg.mxu0
    %7483 = vrot.lane.b32.xlu0 %v4850, 48
    %v7484 = vpop.permute.xlu0 %7483
    %v7486 = vsel %vm365, %v7146, 0
    %v7489 = vsel %vm1172, %v7484, 0
    %7491 = vmatprep.subr.bf16.mxu0 0
    %7492 = vmatpush1.bf16.msra.mxu0 0
    %7493 = vmatprep.subr.bf16.mxu0 0
    %7494 = vmatpush1.bf16.msra.mxu0 0
    %7495 = vmatprep.subr.bf16.mxu0 0
    %7496 = vmatpush1.bf16.msra.mxu0 0
    %7497 = vmatprep.subr.bf16.mxu0 0
    %7498 = vmatpush1.bf16.msra.mxu0 0
    %7499 = vmatprep.subr.bf16.mxu0 0
    %7500 = vmatpush1.bf16.msra.mxu0 0
    %7501 = vmatprep.subr.bf16.mxu0 0
    %7502 = vmatpush1.bf16.msra.mxu0 0
    %7503 = vmatprep.subr.bf16.mxu0 0
    %7504 = vmatpush1.bf16.msra.mxu0 0
    %7505 = vmatprep.subr.bf16.mxu0 0
    %7506 = vmatpush1.bf16.msra.mxu0 %v7489
    %7507 = vmatprep.subr.bf16.mxu0 0
    %7508 = vmatpush2.bf16.msra.mxu0 0
    %7509 = vmatprep.subr.bf16.mxu0 0
    %7510 = vmatpush2.bf16.msra.mxu0 0
    %7511 = vmatprep.subr.bf16.mxu0 0
    %7512 = vmatpush2.bf16.msra.mxu0 0
    %7513 = vmatprep.subr.bf16.mxu0 0
    %7514 = vmatpush2.bf16.msra.mxu0 0
    %7515 = vmatprep.subr.bf16.mxu0 0
    %7516 = vmatpush2.bf16.msra.mxu0 0
    %7517 = vmatprep.subr.bf16.mxu0 0
    %7518 = vmatpush2.bf16.msra.mxu0 0
    %7519 = vmatprep.subr.bf16.mxu0 0
    %7520 = vmatpush2.bf16.msra.mxu0 0
    %7521 = vmatprep.subr.bf16.mxu0 0
    %7522 = vmatpush2.bf16.msra.mxu0 0
    %7523 = vmatprep.mubr.bf16.mxu0 0
    %7524 = vmatmul.mubr.bf16.gmra.mxu0 %v7486
    %v7525 = vpop.f32.mrf.mxu0
    %v7526 = vadd.f32 0.0, %v7525
    %v7527 = vpop.f32.mrf.mxu0
    %v7528 = vpop.f32.mrf.mxu0
    %v7529 = vpop.f32.mrf.mxu0
    %7530 = vdwg.mxu0
    %7532 = vrot.lane.b32.xlu0 %v7190, 16
    %v7533 = vpop.permute.xlu0 %7532
    %7535 = vst.msk [vmem:[#allocation3] sm:$0xf] %vm3366, %v7533
    %7537 = vrot.lane.b32.xlu0 %v7238, 16
    %v7538 = vpop.permute.xlu0 %7537
    %7540 = vst.msk [vmem:[#allocation3 + $0x4] sm:$0xf] %vm3366, %v7538
    %7542 = vrot.lane.b32.xlu0 %v7286, 16
    %v7543 = vpop.permute.xlu0 %7542
    %7545 = vst.msk [vmem:[#allocation3 + $0x8] sm:$0xf] %vm3366, %v7543
    %7547 = vrot.lane.b32.xlu0 %v7334, 16
    %v7548 = vpop.permute.xlu0 %7547
    %7550 = vst.msk [vmem:[#allocation3 + $0xc] sm:$0xf] %vm3366, %v7548
    %7552 = vrot.lane.b32.xlu0 %v7382, 16
    %v7553 = vpop.permute.xlu0 %7552
    %7555 = vst.msk [vmem:[#allocation3 + $0x10] sm:$0xf] %vm3366, %v7553
    %7557 = vrot.lane.b32.xlu0 %v7430, 16
    %v7558 = vpop.permute.xlu0 %7557
    %7560 = vst.msk [vmem:[#allocation3 + $0x14] sm:$0xf] %vm3366, %v7558
    %7562 = vrot.lane.b32.xlu0 %v7478, 16
    %v7563 = vpop.permute.xlu0 %7562
    %7565 = vst.msk [vmem:[#allocation3 + $0x18] sm:$0xf] %vm3366, %v7563
    %7567 = vrot.lane.b32.xlu0 %v7526, 16
    %v7568 = vpop.permute.xlu0 %7567
    %7570 = vst.msk [vmem:[#allocation3 + $0x1c] sm:$0xf] %vm3366, %v7568
    %7571 = vrot.lane.b32.xlu0 %v4843, 104
    %v7572 = vpop.permute.xlu0 %7571
    %7573 = vrot.lane.b32.xlu0 %v4843, 72
    %v7574 = vpop.permute.xlu0 %7573
    %v7576 = vsel %vm127, %v7572, 0
    %v7579 = vsel %vm127, %v7574, 0
    %7581 = vmatprep.subr.bf16.mxu0 0
    %7582 = vmatpush1.bf16.xpose.msra.mxu0 0
    %7583 = vmatprep.subr.bf16.mxu0 0
    %7584 = vmatpush1.bf16.xpose.msra.mxu0 0
    %7585 = vmatprep.subr.bf16.mxu0 0
    %7586 = vmatpush1.bf16.xpose.msra.mxu0 0
    %7587 = vmatprep.subr.bf16.mxu0 0
    %7588 = vmatpush1.bf16.xpose.msra.mxu0 0
    %7589 = vmatprep.subr.bf16.mxu0 0
    %7590 = vmatpush1.bf16.xpose.msra.mxu0 0
    %7591 = vmatprep.subr.bf16.mxu0 0
    %7592 = vmatpush1.bf16.xpose.msra.mxu0 0
    %7593 = vmatprep.subr.bf16.mxu0 0
    %7594 = vmatpush1.bf16.xpose.msra.mxu0 0
    %7595 = vmatprep.subr.bf16.mxu0 0
    %7596 = vmatpush1.bf16.xpose.msra.mxu0 %v7579
    %7597 = vmatprep.subr.bf16.mxu0 0
    %7598 = vmatpush2.bf16.xpose.msra.mxu0 0
    %7599 = vmatprep.subr.bf16.mxu0 0
    %7600 = vmatpush2.bf16.xpose.msra.mxu0 0
    %7601 = vmatprep.subr.bf16.mxu0 0
    %7602 = vmatpush2.bf16.xpose.msra.mxu0 0
    %7603 = vmatprep.subr.bf16.mxu0 0
    %7604 = vmatpush2.bf16.xpose.msra.mxu0 0
    %7605 = vmatprep.subr.bf16.mxu0 0
    %7606 = vmatpush2.bf16.xpose.msra.mxu0 0
    %7607 = vmatprep.subr.bf16.mxu0 0
    %7608 = vmatpush2.bf16.xpose.msra.mxu0 0
    %7609 = vmatprep.subr.bf16.mxu0 0
    %7610 = vmatpush2.bf16.xpose.msra.mxu0 0
    %7611 = vmatprep.subr.bf16.mxu0 0
    %7612 = vmatpush2.bf16.xpose.msra.mxu0 0
    %7613 = vmatprep.mubr.bf16.mxu0 0
    %7614 = vmatmul.mubr.bf16.gmra.mxu0 %v7576
    %v7615 = vpop.f32.mrf.mxu0
    %v7616 = vadd.f32 0.0, %v7615
    %v7617 = vpop.f32.mrf.mxu0
    %v7618 = vpop.f32.mrf.mxu0
    %v7619 = vpop.f32.mrf.mxu0
    %7620 = vdwg.mxu0
    %7621 = vrot.lane.b32.xlu0 %v4844, 104
    %v7622 = vpop.permute.xlu0 %7621
    %7623 = vrot.lane.b32.xlu0 %v4844, 72
    %v7624 = vpop.permute.xlu0 %7623
    %v7626 = vsel %vm127, %v7622, 0
    %v7629 = vsel %vm127, %v7624, 0
    %7631 = vmatprep.subr.bf16.mxu0 0
    %7632 = vmatpush1.bf16.xpose.msra.mxu0 0
    %7633 = vmatprep.subr.bf16.mxu0 0
    %7634 = vmatpush1.bf16.xpose.msra.mxu0 0
    %7635 = vmatprep.subr.bf16.mxu0 0
    %7636 = vmatpush1.bf16.xpose.msra.mxu0 0
    %7637 = vmatprep.subr.bf16.mxu0 0
    %7638 = vmatpush1.bf16.xpose.msra.mxu0 0
    %7639 = vmatprep.subr.bf16.mxu0 0
    %7640 = vmatpush1.bf16.xpose.msra.mxu0 0
    %7641 = vmatprep.subr.bf16.mxu0 0
    %7642 = vmatpush1.bf16.xpose.msra.mxu0 0
    %7643 = vmatprep.subr.bf16.mxu0 0
    %7644 = vmatpush1.bf16.xpose.msra.mxu0 0
    %7645 = vmatprep.subr.bf16.mxu0 0
    %7646 = vmatpush1.bf16.xpose.msra.mxu0 %v7629
    %7647 = vmatprep.subr.bf16.mxu0 0
    %7648 = vmatpush2.bf16.xpose.msra.mxu0 0
    %7649 = vmatprep.subr.bf16.mxu0 0
    %7650 = vmatpush2.bf16.xpose.msra.mxu0 0
    %7651 = vmatprep.subr.bf16.mxu0 0
    %7652 = vmatpush2.bf16.xpose.msra.mxu0 0
    %7653 = vmatprep.subr.bf16.mxu0 0
    %7654 = vmatpush2.bf16.xpose.msra.mxu0 0
    %7655 = vmatprep.subr.bf16.mxu0 0
    %7656 = vmatpush2.bf16.xpose.msra.mxu0 0
    %7657 = vmatprep.subr.bf16.mxu0 0
    %7658 = vmatpush2.bf16.xpose.msra.mxu0 0
    %7659 = vmatprep.subr.bf16.mxu0 0
    %7660 = vmatpush2.bf16.xpose.msra.mxu0 0
    %7661 = vmatprep.subr.bf16.mxu0 0
    %7662 = vmatpush2.bf16.xpose.msra.mxu0 0
    %7663 = vmatprep.mubr.bf16.mxu0 0
    %7664 = vmatmul.mubr.bf16.gmra.mxu0 %v7626
    %v7665 = vpop.f32.mrf.mxu0
    %v7666 = vadd.f32 0.0, %v7665
    %v7667 = vpop.f32.mrf.mxu0
    %v7668 = vpop.f32.mrf.mxu0
    %v7669 = vpop.f32.mrf.mxu0
    %7670 = vdwg.mxu0
    %7671 = vrot.lane.b32.xlu0 %v4845, 104
    %v7672 = vpop.permute.xlu0 %7671
    %7673 = vrot.lane.b32.xlu0 %v4845, 72
    %v7674 = vpop.permute.xlu0 %7673
    %v7676 = vsel %vm127, %v7672, 0
    %v7679 = vsel %vm127, %v7674, 0
    %7681 = vmatprep.subr.bf16.mxu0 0
    %7682 = vmatpush1.bf16.xpose.msra.mxu0 0
    %7683 = vmatprep.subr.bf16.mxu0 0
    %7684 = vmatpush1.bf16.xpose.msra.mxu0 0
    %7685 = vmatprep.subr.bf16.mxu0 0
    %7686 = vmatpush1.bf16.xpose.msra.mxu0 0
    %7687 = vmatprep.subr.bf16.mxu0 0
    %7688 = vmatpush1.bf16.xpose.msra.mxu0 0
    %7689 = vmatprep.subr.bf16.mxu0 0
    %7690 = vmatpush1.bf16.xpose.msra.mxu0 0
    %7691 = vmatprep.subr.bf16.mxu0 0
    %7692 = vmatpush1.bf16.xpose.msra.mxu0 0
    %7693 = vmatprep.subr.bf16.mxu0 0
    %7694 = vmatpush1.bf16.xpose.msra.mxu0 0
    %7695 = vmatprep.subr.bf16.mxu0 0
    %7696 = vmatpush1.bf16.xpose.msra.mxu0 %v7679
    %7697 = vmatprep.subr.bf16.mxu0 0
    %7698 = vmatpush2.bf16.xpose.msra.mxu0 0
    %7699 = vmatprep.subr.bf16.mxu0 0
    %7700 = vmatpush2.bf16.xpose.msra.mxu0 0
    %7701 = vmatprep.subr.bf16.mxu0 0
    %7702 = vmatpush2.bf16.xpose.msra.mxu0 0
    %7703 = vmatprep.subr.bf16.mxu0 0
    %7704 = vmatpush2.bf16.xpose.msra.mxu0 0
    %7705 = vmatprep.subr.bf16.mxu0 0
    %7706 = vmatpush2.bf16.xpose.msra.mxu0 0
    %7707 = vmatprep.subr.bf16.mxu0 0
    %7708 = vmatpush2.bf16.xpose.msra.mxu0 0
    %7709 = vmatprep.subr.bf16.mxu0 0
    %7710 = vmatpush2.bf16.xpose.msra.mxu0 0
    %7711 = vmatprep.subr.bf16.mxu0 0
    %7712 = vmatpush2.bf16.xpose.msra.mxu0 0
    %7713 = vmatprep.mubr.bf16.mxu0 0
    %7714 = vmatmul.mubr.bf16.gmra.mxu0 %v7676
    %v7715 = vpop.f32.mrf.mxu0
    %v7716 = vadd.f32 0.0, %v7715
    %v7717 = vpop.f32.mrf.mxu0
    %v7718 = vpop.f32.mrf.mxu0
    %v7719 = vpop.f32.mrf.mxu0
    %7720 = vdwg.mxu0
    %7721 = vrot.lane.b32.xlu0 %v4846, 104
    %v7722 = vpop.permute.xlu0 %7721
    %7723 = vrot.lane.b32.xlu0 %v4846, 72
    %v7724 = vpop.permute.xlu0 %7723
    %v7726 = vsel %vm127, %v7722, 0
    %v7729 = vsel %vm127, %v7724, 0
    %7731 = vmatprep.subr.bf16.mxu0 0
    %7732 = vmatpush1.bf16.xpose.msra.mxu0 0
    %7733 = vmatprep.subr.bf16.mxu0 0
    %7734 = vmatpush1.bf16.xpose.msra.mxu0 0
    %7735 = vmatprep.subr.bf16.mxu0 0
    %7736 = vmatpush1.bf16.xpose.msra.mxu0 0
    %7737 = vmatprep.subr.bf16.mxu0 0
    %7738 = vmatpush1.bf16.xpose.msra.mxu0 0
    %7739 = vmatprep.subr.bf16.mxu0 0
    %7740 = vmatpush1.bf16.xpose.msra.mxu0 0
    %7741 = vmatprep.subr.bf16.mxu0 0
    %7742 = vmatpush1.bf16.xpose.msra.mxu0 0
    %7743 = vmatprep.subr.bf16.mxu0 0
    %7744 = vmatpush1.bf16.xpose.msra.mxu0 0
    %7745 = vmatprep.subr.bf16.mxu0 0
    %7746 = vmatpush1.bf16.xpose.msra.mxu0 %v7729
    %7747 = vmatprep.subr.bf16.mxu0 0
    %7748 = vmatpush2.bf16.xpose.msra.mxu0 0
    %7749 = vmatprep.subr.bf16.mxu0 0
    %7750 = vmatpush2.bf16.xpose.msra.mxu0 0
    %7751 = vmatprep.subr.bf16.mxu0 0
    %7752 = vmatpush2.bf16.xpose.msra.mxu0 0
    %7753 = vmatprep.subr.bf16.mxu0 0
    %7754 = vmatpush2.bf16.xpose.msra.mxu0 0
    %7755 = vmatprep.subr.bf16.mxu0 0
    %7756 = vmatpush2.bf16.xpose.msra.mxu0 0
    %7757 = vmatprep.subr.bf16.mxu0 0
    %7758 = vmatpush2.bf16.xpose.msra.mxu0 0
    %7759 = vmatprep.subr.bf16.mxu0 0
    %7760 = vmatpush2.bf16.xpose.msra.mxu0 0
    %7761 = vmatprep.subr.bf16.mxu0 0
    %7762 = vmatpush2.bf16.xpose.msra.mxu0 0
    %7763 = vmatprep.mubr.bf16.mxu0 0
    %7764 = vmatmul.mubr.bf16.gmra.mxu0 %v7726
    %v7765 = vpop.f32.mrf.mxu0
    %v7766 = vadd.f32 0.0, %v7765
    %v7767 = vpop.f32.mrf.mxu0
    %v7768 = vpop.f32.mrf.mxu0
    %v7769 = vpop.f32.mrf.mxu0
    %7770 = vdwg.mxu0
    %7771 = vrot.lane.b32.xlu0 %v4847, 104
    %v7772 = vpop.permute.xlu0 %7771
    %7773 = vrot.lane.b32.xlu0 %v4847, 72
    %v7774 = vpop.permute.xlu0 %7773
    %v7776 = vsel %vm127, %v7772, 0
    %v7779 = vsel %vm127, %v7774, 0
    %7781 = vmatprep.subr.bf16.mxu0 0
    %7782 = vmatpush1.bf16.xpose.msra.mxu0 0
    %7783 = vmatprep.subr.bf16.mxu0 0
    %7784 = vmatpush1.bf16.xpose.msra.mxu0 0
    %7785 = vmatprep.subr.bf16.mxu0 0
    %7786 = vmatpush1.bf16.xpose.msra.mxu0 0
    %7787 = vmatprep.subr.bf16.mxu0 0
    %7788 = vmatpush1.bf16.xpose.msra.mxu0 0
    %7789 = vmatprep.subr.bf16.mxu0 0
    %7790 = vmatpush1.bf16.xpose.msra.mxu0 0
    %7791 = vmatprep.subr.bf16.mxu0 0
    %7792 = vmatpush1.bf16.xpose.msra.mxu0 0
    %7793 = vmatprep.subr.bf16.mxu0 0
    %7794 = vmatpush1.bf16.xpose.msra.mxu0 0
    %7795 = vmatprep.subr.bf16.mxu0 0
    %7796 = vmatpush1.bf16.xpose.msra.mxu0 %v7779
    %7797 = vmatprep.subr.bf16.mxu0 0
    %7798 = vmatpush2.bf16.xpose.msra.mxu0 0
    %7799 = vmatprep.subr.bf16.mxu0 0
    %7800 = vmatpush2.bf16.xpose.msra.mxu0 0
    %7801 = vmatprep.subr.bf16.mxu0 0
    %7802 = vmatpush2.bf16.xpose.msra.mxu0 0
    %7803 = vmatprep.subr.bf16.mxu0 0
    %7804 = vmatpush2.bf16.xpose.msra.mxu0 0
    %7805 = vmatprep.subr.bf16.mxu0 0
    %7806 = vmatpush2.bf16.xpose.msra.mxu0 0
    %7807 = vmatprep.subr.bf16.mxu0 0
    %7808 = vmatpush2.bf16.xpose.msra.mxu0 0
    %7809 = vmatprep.subr.bf16.mxu0 0
    %7810 = vmatpush2.bf16.xpose.msra.mxu0 0
    %7811 = vmatprep.subr.bf16.mxu0 0
    %7812 = vmatpush2.bf16.xpose.msra.mxu0 0
    %7813 = vmatprep.mubr.bf16.mxu0 0
    %7814 = vmatmul.mubr.bf16.gmra.mxu0 %v7776
    %v7815 = vpop.f32.mrf.mxu0
    %v7816 = vadd.f32 0.0, %v7815
    %v7817 = vpop.f32.mrf.mxu0
    %v7818 = vpop.f32.mrf.mxu0
    %v7819 = vpop.f32.mrf.mxu0
    %7820 = vdwg.mxu0
    %7821 = vrot.lane.b32.xlu0 %v4848, 104
    %v7822 = vpop.permute.xlu0 %7821
    %7823 = vrot.lane.b32.xlu0 %v4848, 72
    %v7824 = vpop.permute.xlu0 %7823
    %v7826 = vsel %vm127, %v7822, 0
    %v7829 = vsel %vm127, %v7824, 0
    %7831 = vmatprep.subr.bf16.mxu0 0
    %7832 = vmatpush1.bf16.xpose.msra.mxu0 0
    %7833 = vmatprep.subr.bf16.mxu0 0
    %7834 = vmatpush1.bf16.xpose.msra.mxu0 0
    %7835 = vmatprep.subr.bf16.mxu0 0
    %7836 = vmatpush1.bf16.xpose.msra.mxu0 0
    %7837 = vmatprep.subr.bf16.mxu0 0
    %7838 = vmatpush1.bf16.xpose.msra.mxu0 0
    %7839 = vmatprep.subr.bf16.mxu0 0
    %7840 = vmatpush1.bf16.xpose.msra.mxu0 0
    %7841 = vmatprep.subr.bf16.mxu0 0
    %7842 = vmatpush1.bf16.xpose.msra.mxu0 0
    %7843 = vmatprep.subr.bf16.mxu0 0
    %7844 = vmatpush1.bf16.xpose.msra.mxu0 0
    %7845 = vmatprep.subr.bf16.mxu0 0
    %7846 = vmatpush1.bf16.xpose.msra.mxu0 %v7829
    %7847 = vmatprep.subr.bf16.mxu0 0
    %7848 = vmatpush2.bf16.xpose.msra.mxu0 0
    %7849 = vmatprep.subr.bf16.mxu0 0
    %7850 = vmatpush2.bf16.xpose.msra.mxu0 0
    %7851 = vmatprep.subr.bf16.mxu0 0
    %7852 = vmatpush2.bf16.xpose.msra.mxu0 0
    %7853 = vmatprep.subr.bf16.mxu0 0
    %7854 = vmatpush2.bf16.xpose.msra.mxu0 0
    %7855 = vmatprep.subr.bf16.mxu0 0
    %7856 = vmatpush2.bf16.xpose.msra.mxu0 0
    %7857 = vmatprep.subr.bf16.mxu0 0
    %7858 = vmatpush2.bf16.xpose.msra.mxu0 0
    %7859 = vmatprep.subr.bf16.mxu0 0
    %7860 = vmatpush2.bf16.xpose.msra.mxu0 0
    %7861 = vmatprep.subr.bf16.mxu0 0
    %7862 = vmatpush2.bf16.xpose.msra.mxu0 0
    %7863 = vmatprep.mubr.bf16.mxu0 0
    %7864 = vmatmul.mubr.bf16.gmra.mxu0 %v7826
    %v7865 = vpop.f32.mrf.mxu0
    %v7866 = vadd.f32 0.0, %v7865
    %v7867 = vpop.f32.mrf.mxu0
    %v7868 = vpop.f32.mrf.mxu0
    %v7869 = vpop.f32.mrf.mxu0
    %7870 = vdwg.mxu0
    %7871 = vrot.lane.b32.xlu0 %v4849, 104
    %v7872 = vpop.permute.xlu0 %7871
    %7873 = vrot.lane.b32.xlu0 %v4849, 72
    %v7874 = vpop.permute.xlu0 %7873
    %v7876 = vsel %vm127, %v7872, 0
    %v7879 = vsel %vm127, %v7874, 0
    %7881 = vmatprep.subr.bf16.mxu0 0
    %7882 = vmatpush1.bf16.xpose.msra.mxu0 0
    %7883 = vmatprep.subr.bf16.mxu0 0
    %7884 = vmatpush1.bf16.xpose.msra.mxu0 0
    %7885 = vmatprep.subr.bf16.mxu0 0
    %7886 = vmatpush1.bf16.xpose.msra.mxu0 0
    %7887 = vmatprep.subr.bf16.mxu0 0
    %7888 = vmatpush1.bf16.xpose.msra.mxu0 0
    %7889 = vmatprep.subr.bf16.mxu0 0
    %7890 = vmatpush1.bf16.xpose.msra.mxu0 0
    %7891 = vmatprep.subr.bf16.mxu0 0
    %7892 = vmatpush1.bf16.xpose.msra.mxu0 0
    %7893 = vmatprep.subr.bf16.mxu0 0
    %7894 = vmatpush1.bf16.xpose.msra.mxu0 0
    %7895 = vmatprep.subr.bf16.mxu0 0
    %7896 = vmatpush1.bf16.xpose.msra.mxu0 %v7879
    %7897 = vmatprep.subr.bf16.mxu0 0
    %7898 = vmatpush2.bf16.xpose.msra.mxu0 0
    %7899 = vmatprep.subr.bf16.mxu0 0
    %7900 = vmatpush2.bf16.xpose.msra.mxu0 0
    %7901 = vmatprep.subr.bf16.mxu0 0
    %7902 = vmatpush2.bf16.xpose.msra.mxu0 0
    %7903 = vmatprep.subr.bf16.mxu0 0
    %7904 = vmatpush2.bf16.xpose.msra.mxu0 0
    %7905 = vmatprep.subr.bf16.mxu0 0
    %7906 = vmatpush2.bf16.xpose.msra.mxu0 0
    %7907 = vmatprep.subr.bf16.mxu0 0
    %7908 = vmatpush2.bf16.xpose.msra.mxu0 0
    %7909 = vmatprep.subr.bf16.mxu0 0
    %7910 = vmatpush2.bf16.xpose.msra.mxu0 0
    %7911 = vmatprep.subr.bf16.mxu0 0
    %7912 = vmatpush2.bf16.xpose.msra.mxu0 0
    %7913 = vmatprep.mubr.bf16.mxu0 0
    %7914 = vmatmul.mubr.bf16.gmra.mxu0 %v7876
    %v7915 = vpop.f32.mrf.mxu0
    %v7916 = vadd.f32 0.0, %v7915
    %v7917 = vpop.f32.mrf.mxu0
    %v7918 = vpop.f32.mrf.mxu0
    %v7919 = vpop.f32.mrf.mxu0
    %7920 = vdwg.mxu0
    %7921 = vrot.lane.b32.xlu0 %v4850, 104
    %v7922 = vpop.permute.xlu0 %7921
    %7923 = vrot.lane.b32.xlu0 %v4850, 72
    %v7924 = vpop.permute.xlu0 %7923
    %v7926 = vsel %vm127, %v7922, 0
    %v7929 = vsel %vm127, %v7924, 0
    %7931 = vmatprep.subr.bf16.mxu0 0
    %7932 = vmatpush1.bf16.xpose.msra.mxu0 0
    %7933 = vmatprep.subr.bf16.mxu0 0
    %7934 = vmatpush1.bf16.xpose.msra.mxu0 0
    %7935 = vmatprep.subr.bf16.mxu0 0
    %7936 = vmatpush1.bf16.xpose.msra.mxu0 0
    %7937 = vmatprep.subr.bf16.mxu0 0
    %7938 = vmatpush1.bf16.xpose.msra.mxu0 0
    %7939 = vmatprep.subr.bf16.mxu0 0
    %7940 = vmatpush1.bf16.xpose.msra.mxu0 0
    %7941 = vmatprep.subr.bf16.mxu0 0
    %7942 = vmatpush1.bf16.xpose.msra.mxu0 0
    %7943 = vmatprep.subr.bf16.mxu0 0
    %7944 = vmatpush1.bf16.xpose.msra.mxu0 0
    %7945 = vmatprep.subr.bf16.mxu0 0
    %7946 = vmatpush1.bf16.xpose.msra.mxu0 %v7929
    %7947 = vmatprep.subr.bf16.mxu0 0
    %7948 = vmatpush2.bf16.xpose.msra.mxu0 0
    %7949 = vmatprep.subr.bf16.mxu0 0
    %7950 = vmatpush2.bf16.xpose.msra.mxu0 0
    %7951 = vmatprep.subr.bf16.mxu0 0
    %7952 = vmatpush2.bf16.xpose.msra.mxu0 0
    %7953 = vmatprep.subr.bf16.mxu0 0
    %7954 = vmatpush2.bf16.xpose.msra.mxu0 0
    %7955 = vmatprep.subr.bf16.mxu0 0
    %7956 = vmatpush2.bf16.xpose.msra.mxu0 0
    %7957 = vmatprep.subr.bf16.mxu0 0
    %7958 = vmatpush2.bf16.xpose.msra.mxu0 0
    %7959 = vmatprep.subr.bf16.mxu0 0
    %7960 = vmatpush2.bf16.xpose.msra.mxu0 0
    %7961 = vmatprep.subr.bf16.mxu0 0
    %7962 = vmatpush2.bf16.xpose.msra.mxu0 0
    %7963 = vmatprep.mubr.bf16.mxu0 0
    %7964 = vmatmul.mubr.bf16.gmra.mxu0 %v7926
    %v7965 = vpop.f32.mrf.mxu0
    %v7966 = vadd.f32 0.0, %v7965
    %v7967 = vpop.f32.mrf.mxu0
    %v7968 = vpop.f32.mrf.mxu0
    %v7969 = vpop.f32.mrf.mxu0
    %7970 = vdwg.mxu0
    %v7971 = vsel %vm1070, %v7616, -inf
    %7972 = vmax.xlane.f32.xlu0 %v7971
    %v7973 = vpop.xlane.xlu0 %7972
    %v7974 = vsel %vm1070, %v7666, -inf
    %7975 = vmax.xlane.f32.xlu0 %v7974
    %v7976 = vpop.xlane.xlu0 %7975
    %v7977 = vsel %vm1070, %v7716, -inf
    %7978 = vmax.xlane.f32.xlu0 %v7977
    %v7979 = vpop.xlane.xlu0 %7978
    %v7980 = vsel %vm1070, %v7766, -inf
    %7981 = vmax.xlane.f32.xlu0 %v7980
    %v7982 = vpop.xlane.xlu0 %7981
    %v7983 = vsel %vm1070, %v7816, -inf
    %7984 = vmax.xlane.f32.xlu0 %v7983
    %v7985 = vpop.xlane.xlu0 %7984
    %v7986 = vsel %vm1070, %v7866, -inf
    %7987 = vmax.xlane.f32.xlu0 %v7986
    %v7988 = vpop.xlane.xlu0 %7987
    %v7989 = vsel %vm1070, %v7916, -inf
    %7990 = vmax.xlane.f32.xlu0 %v7989
    %v7991 = vpop.xlane.xlu0 %7990
    %v7992 = vsel %vm1070, %v7966, -inf
    %7993 = vmax.xlane.f32.xlu0 %v7992
    %v7994 = vpop.xlane.xlu0 %7993
    %v7995 = vsub.f32 %v7616, %v7973
    %v7996 = vsub.f32 %v7666, %v7976
    %v7997 = vsub.f32 %v7716, %v7979
    %v7998 = vsub.f32 %v7766, %v7982
    %v7999 = vsub.f32 %v7816, %v7985
    %v8000 = vsub.f32 %v7866, %v7988
    %v8001 = vsub.f32 %v7916, %v7991
    %v8002 = vsub.f32 %v7966, %v7994
    %v8003 = vmul.f32 %v7995, 1.442695
    %v8004 = vpow.pop %v8003
    %v8005 = vmul.f32 %v7996, 1.442695
    %v8006 = vpow.pop %v8005
    %v8007 = vmul.f32 %v7997, 1.442695
    %v8008 = vpow.pop %v8007
    %v8009 = vmul.f32 %v7998, 1.442695
    %v8010 = vpow.pop %v8009
    %v8011 = vmul.f32 %v7999, 1.442695
    %v8012 = vpow.pop %v8011
    %v8013 = vmul.f32 %v8000, 1.442695
    %v8014 = vpow.pop %v8013
    %v8015 = vmul.f32 %v8001, 1.442695
    %v8016 = vpow.pop %v8015
    %v8017 = vmul.f32 %v8002, 1.442695
    %v8018 = vpow.pop %v8017
    %v8019 = vsel %vm1070, %v8004, 0.0
    %8020 = vadd.xlane.f32.xlu0 %v8019
    %v8021 = vpop.xlane.xlu0 %8020
    %v8022 = vsel %vm1070, %v8006, 0.0
    %8023 = vadd.xlane.f32.xlu0 %v8022
    %v8024 = vpop.xlane.xlu0 %8023
    %v8025 = vsel %vm1070, %v8008, 0.0
    %8026 = vadd.xlane.f32.xlu0 %v8025
    %v8027 = vpop.xlane.xlu0 %8026
    %v8028 = vsel %vm1070, %v8010, 0.0
    %8029 = vadd.xlane.f32.xlu0 %v8028
    %v8030 = vpop.xlane.xlu0 %8029
    %v8031 = vsel %vm1070, %v8012, 0.0
    %8032 = vadd.xlane.f32.xlu0 %v8031
    %v8033 = vpop.xlane.xlu0 %8032
    %v8034 = vsel %vm1070, %v8014, 0.0
    %8035 = vadd.xlane.f32.xlu0 %v8034
    %v8036 = vpop.xlane.xlu0 %8035
    %v8037 = vsel %vm1070, %v8016, 0.0
    %8038 = vadd.xlane.f32.xlu0 %v8037
    %v8039 = vpop.xlane.xlu0 %8038
    %v8040 = vsel %vm1070, %v8018, 0.0
    %8041 = vadd.xlane.f32.xlu0 %v8040
    %v8042 = vpop.xlane.xlu0 %8041
    %v8043 = vrcp.pop %v8021
    %v8044 = vrcp.pop %v8024
    %v8045 = vrcp.pop %v8027
    %v8046 = vrcp.pop %v8030
    %v8047 = vrcp.pop %v8033
    %v8048 = vrcp.pop %v8036
    %v8049 = vrcp.pop %v8039
    %v8050 = vrcp.pop %v8042
    %v8051 = vmul.f32 %v8004, %v8043
    %v8052 = vmul.f32 %v8006, %v8044
    %v8053 = vmul.f32 %v8008, %v8045
    %v8054 = vmul.f32 %v8010, %v8046
    %v8055 = vmul.f32 %v8012, %v8047
    %v8056 = vmul.f32 %v8014, %v8048
    %v8057 = vmul.f32 %v8016, %v8049
    %v8058 = vmul.f32 %v8018, %v8050
    %v8059 = vpack.c.bf16 %v8051, %v8051
    %v8060 = vpack.c.bf16 %v8052, %v8052
    %v8061 = vpack.c.bf16 %v8053, %v8053
    %v8062 = vpack.c.bf16 %v8054, %v8054
    %v8063 = vpack.c.bf16 %v8055, %v8055
    %v8064 = vpack.c.bf16 %v8056, %v8056
    %v8065 = vpack.c.bf16 %v8057, %v8057
    %v8066 = vpack.c.bf16 %v8058, %v8058
    %8067 = vrot.lane.b32.xlu0 %v4843, 40
    %v8068 = vpop.permute.xlu0 %8067
    %v8070 = vsel %vm365, %v8059, 0
    %v8073 = vsel %vm1172, %v8068, 0
    %8075 = vmatprep.subr.bf16.mxu0 0
    %8076 = vmatpush1.bf16.msra.mxu0 0
    %8077 = vmatprep.subr.bf16.mxu0 0
    %8078 = vmatpush1.bf16.msra.mxu0 0
    %8079 = vmatprep.subr.bf16.mxu0 0
    %8080 = vmatpush1.bf16.msra.mxu0 0
    %8081 = vmatprep.subr.bf16.mxu0 0
    %8082 = vmatpush1.bf16.msra.mxu0 0
    %8083 = vmatprep.subr.bf16.mxu0 0
    %8084 = vmatpush1.bf16.msra.mxu0 0
    %8085 = vmatprep.subr.bf16.mxu0 0
    %8086 = vmatpush1.bf16.msra.mxu0 0
    %8087 = vmatprep.subr.bf16.mxu0 0
    %8088 = vmatpush1.bf16.msra.mxu0 0
    %8089 = vmatprep.subr.bf16.mxu0 0
    %8090 = vmatpush1.bf16.msra.mxu0 %v8073
    %8091 = vmatprep.subr.bf16.mxu0 0
    %8092 = vmatpush2.bf16.msra.mxu0 0
    %8093 = vmatprep.subr.bf16.mxu0 0
    %8094 = vmatpush2.bf16.msra.mxu0 0
    %8095 = vmatprep.subr.bf16.mxu0 0
    %8096 = vmatpush2.bf16.msra.mxu0 0
    %8097 = vmatprep.subr.bf16.mxu0 0
    %8098 = vmatpush2.bf16.msra.mxu0 0
    %8099 = vmatprep.subr.bf16.mxu0 0
    %8100 = vmatpush2.bf16.msra.mxu0 0
    %8101 = vmatprep.subr.bf16.mxu0 0
    %8102 = vmatpush2.bf16.msra.mxu0 0
    %8103 = vmatprep.subr.bf16.mxu0 0
    %8104 = vmatpush2.bf16.msra.mxu0 0
    %8105 = vmatprep.subr.bf16.mxu0 0
    %8106 = vmatpush2.bf16.msra.mxu0 0
    %8107 = vmatprep.mubr.bf16.mxu0 0
    %8108 = vmatmul.mubr.bf16.gmra.mxu0 %v8070
    %v8109 = vpop.f32.mrf.mxu0
    %v8110 = vadd.f32 0.0, %v8109
    %v8111 = vpop.f32.mrf.mxu0
    %v8112 = vpop.f32.mrf.mxu0
    %v8113 = vpop.f32.mrf.mxu0
    %8114 = vdwg.mxu0
    %8115 = vrot.lane.b32.xlu0 %v4844, 40
    %v8116 = vpop.permute.xlu0 %8115
    %v8118 = vsel %vm365, %v8060, 0
    %v8121 = vsel %vm1172, %v8116, 0
    %8123 = vmatprep.subr.bf16.mxu0 0
    %8124 = vmatpush1.bf16.msra.mxu0 0
    %8125 = vmatprep.subr.bf16.mxu0 0
    %8126 = vmatpush1.bf16.msra.mxu0 0
    %8127 = vmatprep.subr.bf16.mxu0 0
    %8128 = vmatpush1.bf16.msra.mxu0 0
    %8129 = vmatprep.subr.bf16.mxu0 0
    %8130 = vmatpush1.bf16.msra.mxu0 0
    %8131 = vmatprep.subr.bf16.mxu0 0
    %8132 = vmatpush1.bf16.msra.mxu0 0
    %8133 = vmatprep.subr.bf16.mxu0 0
    %8134 = vmatpush1.bf16.msra.mxu0 0
    %8135 = vmatprep.subr.bf16.mxu0 0
    %8136 = vmatpush1.bf16.msra.mxu0 0
    %8137 = vmatprep.subr.bf16.mxu0 0
    %8138 = vmatpush1.bf16.msra.mxu0 %v8121
    %8139 = vmatprep.subr.bf16.mxu0 0
    %8140 = vmatpush2.bf16.msra.mxu0 0
    %8141 = vmatprep.subr.bf16.mxu0 0
    %8142 = vmatpush2.bf16.msra.mxu0 0
    %8143 = vmatprep.subr.bf16.mxu0 0
    %8144 = vmatpush2.bf16.msra.mxu0 0
    %8145 = vmatprep.subr.bf16.mxu0 0
    %8146 = vmatpush2.bf16.msra.mxu0 0
    %8147 = vmatprep.subr.bf16.mxu0 0
    %8148 = vmatpush2.bf16.msra.mxu0 0
    %8149 = vmatprep.subr.bf16.mxu0 0
    %8150 = vmatpush2.bf16.msra.mxu0 0
    %8151 = vmatprep.subr.bf16.mxu0 0
    %8152 = vmatpush2.bf16.msra.mxu0 0
    %8153 = vmatprep.subr.bf16.mxu0 0
    %8154 = vmatpush2.bf16.msra.mxu0 0
    %8155 = vmatprep.mubr.bf16.mxu0 0
    %8156 = vmatmul.mubr.bf16.gmra.mxu0 %v8118
    %v8157 = vpop.f32.mrf.mxu0
    %v8158 = vadd.f32 0.0, %v8157
    %v8159 = vpop.f32.mrf.mxu0
    %v8160 = vpop.f32.mrf.mxu0
    %v8161 = vpop.f32.mrf.mxu0
    %8162 = vdwg.mxu0
    %8163 = vrot.lane.b32.xlu0 %v4845, 40
    %v8164 = vpop.permute.xlu0 %8163
    %v8166 = vsel %vm365, %v8061, 0
    %v8169 = vsel %vm1172, %v8164, 0
    %8171 = vmatprep.subr.bf16.mxu0 0
    %8172 = vmatpush1.bf16.msra.mxu0 0
    %8173 = vmatprep.subr.bf16.mxu0 0
    %8174 = vmatpush1.bf16.msra.mxu0 0
    %8175 = vmatprep.subr.bf16.mxu0 0
    %8176 = vmatpush1.bf16.msra.mxu0 0
    %8177 = vmatprep.subr.bf16.mxu0 0
    %8178 = vmatpush1.bf16.msra.mxu0 0
    %8179 = vmatprep.subr.bf16.mxu0 0
    %8180 = vmatpush1.bf16.msra.mxu0 0
    %8181 = vmatprep.subr.bf16.mxu0 0
    %8182 = vmatpush1.bf16.msra.mxu0 0
    %8183 = vmatprep.subr.bf16.mxu0 0
    %8184 = vmatpush1.bf16.msra.mxu0 0
    %8185 = vmatprep.subr.bf16.mxu0 0
    %8186 = vmatpush1.bf16.msra.mxu0 %v8169
    %8187 = vmatprep.subr.bf16.mxu0 0
    %8188 = vmatpush2.bf16.msra.mxu0 0
    %8189 = vmatprep.subr.bf16.mxu0 0
    %8190 = vmatpush2.bf16.msra.mxu0 0
    %8191 = vmatprep.subr.bf16.mxu0 0
    %8192 = vmatpush2.bf16.msra.mxu0 0
    %8193 = vmatprep.subr.bf16.mxu0 0
    %8194 = vmatpush2.bf16.msra.mxu0 0
    %8195 = vmatprep.subr.bf16.mxu0 0
    %8196 = vmatpush2.bf16.msra.mxu0 0
    %8197 = vmatprep.subr.bf16.mxu0 0
    %8198 = vmatpush2.bf16.msra.mxu0 0
    %8199 = vmatprep.subr.bf16.mxu0 0
    %8200 = vmatpush2.bf16.msra.mxu0 0
    %8201 = vmatprep.subr.bf16.mxu0 0
    %8202 = vmatpush2.bf16.msra.mxu0 0
    %8203 = vmatprep.mubr.bf16.mxu0 0
    %8204 = vmatmul.mubr.bf16.gmra.mxu0 %v8166
    %v8205 = vpop.f32.mrf.mxu0
    %v8206 = vadd.f32 0.0, %v8205
    %v8207 = vpop.f32.mrf.mxu0
    %v8208 = vpop.f32.mrf.mxu0
    %v8209 = vpop.f32.mrf.mxu0
    %8210 = vdwg.mxu0
    %8211 = vrot.lane.b32.xlu0 %v4846, 40
    %v8212 = vpop.permute.xlu0 %8211
    %v8214 = vsel %vm365, %v8062, 0
    %v8217 = vsel %vm1172, %v8212, 0
    %8219 = vmatprep.subr.bf16.mxu0 0
    %8220 = vmatpush1.bf16.msra.mxu0 0
    %8221 = vmatprep.subr.bf16.mxu0 0
    %8222 = vmatpush1.bf16.msra.mxu0 0
    %8223 = vmatprep.subr.bf16.mxu0 0
    %8224 = vmatpush1.bf16.msra.mxu0 0
    %8225 = vmatprep.subr.bf16.mxu0 0
    %8226 = vmatpush1.bf16.msra.mxu0 0
    %8227 = vmatprep.subr.bf16.mxu0 0
    %8228 = vmatpush1.bf16.msra.mxu0 0
    %8229 = vmatprep.subr.bf16.mxu0 0
    %8230 = vmatpush1.bf16.msra.mxu0 0
    %8231 = vmatprep.subr.bf16.mxu0 0
    %8232 = vmatpush1.bf16.msra.mxu0 0
    %8233 = vmatprep.subr.bf16.mxu0 0
    %8234 = vmatpush1.bf16.msra.mxu0 %v8217
    %8235 = vmatprep.subr.bf16.mxu0 0
    %8236 = vmatpush2.bf16.msra.mxu0 0
    %8237 = vmatprep.subr.bf16.mxu0 0
    %8238 = vmatpush2.bf16.msra.mxu0 0
    %8239 = vmatprep.subr.bf16.mxu0 0
    %8240 = vmatpush2.bf16.msra.mxu0 0
    %8241 = vmatprep.subr.bf16.mxu0 0
    %8242 = vmatpush2.bf16.msra.mxu0 0
    %8243 = vmatprep.subr.bf16.mxu0 0
    %8244 = vmatpush2.bf16.msra.mxu0 0
    %8245 = vmatprep.subr.bf16.mxu0 0
    %8246 = vmatpush2.bf16.msra.mxu0 0
    %8247 = vmatprep.subr.bf16.mxu0 0
    %8248 = vmatpush2.bf16.msra.mxu0 0
    %8249 = vmatprep.subr.bf16.mxu0 0
    %8250 = vmatpush2.bf16.msra.mxu0 0
    %8251 = vmatprep.mubr.bf16.mxu0 0
    %8252 = vmatmul.mubr.bf16.gmra.mxu0 %v8214
    %v8253 = vpop.f32.mrf.mxu0
    %v8254 = vadd.f32 0.0, %v8253
    %v8255 = vpop.f32.mrf.mxu0
    %v8256 = vpop.f32.mrf.mxu0
    %v8257 = vpop.f32.mrf.mxu0
    %8258 = vdwg.mxu0
    %8259 = vrot.lane.b32.xlu0 %v4847, 40
    %v8260 = vpop.permute.xlu0 %8259
    %v8262 = vsel %vm365, %v8063, 0
    %v8265 = vsel %vm1172, %v8260, 0
    %8267 = vmatprep.subr.bf16.mxu0 0
    %8268 = vmatpush1.bf16.msra.mxu0 0
    %8269 = vmatprep.subr.bf16.mxu0 0
    %8270 = vmatpush1.bf16.msra.mxu0 0
    %8271 = vmatprep.subr.bf16.mxu0 0
    %8272 = vmatpush1.bf16.msra.mxu0 0
    %8273 = vmatprep.subr.bf16.mxu0 0
    %8274 = vmatpush1.bf16.msra.mxu0 0
    %8275 = vmatprep.subr.bf16.mxu0 0
    %8276 = vmatpush1.bf16.msra.mxu0 0
    %8277 = vmatprep.subr.bf16.mxu0 0
    %8278 = vmatpush1.bf16.msra.mxu0 0
    %8279 = vmatprep.subr.bf16.mxu0 0
    %8280 = vmatpush1.bf16.msra.mxu0 0
    %8281 = vmatprep.subr.bf16.mxu0 0
    %8282 = vmatpush1.bf16.msra.mxu0 %v8265
    %8283 = vmatprep.subr.bf16.mxu0 0
    %8284 = vmatpush2.bf16.msra.mxu0 0
    %8285 = vmatprep.subr.bf16.mxu0 0
    %8286 = vmatpush2.bf16.msra.mxu0 0
    %8287 = vmatprep.subr.bf16.mxu0 0
    %8288 = vmatpush2.bf16.msra.mxu0 0
    %8289 = vmatprep.subr.bf16.mxu0 0
    %8290 = vmatpush2.bf16.msra.mxu0 0
    %8291 = vmatprep.subr.bf16.mxu0 0
    %8292 = vmatpush2.bf16.msra.mxu0 0
    %8293 = vmatprep.subr.bf16.mxu0 0
    %8294 = vmatpush2.bf16.msra.mxu0 0
    %8295 = vmatprep.subr.bf16.mxu0 0
    %8296 = vmatpush2.bf16.msra.mxu0 0
    %8297 = vmatprep.subr.bf16.mxu0 0
    %8298 = vmatpush2.bf16.msra.mxu0 0
    %8299 = vmatprep.mubr.bf16.mxu0 0
    %8300 = vmatmul.mubr.bf16.gmra.mxu0 %v8262
    %v8301 = vpop.f32.mrf.mxu0
    %v8302 = vadd.f32 0.0, %v8301
    %v8303 = vpop.f32.mrf.mxu0
    %v8304 = vpop.f32.mrf.mxu0
    %v8305 = vpop.f32.mrf.mxu0
    %8306 = vdwg.mxu0
    %8307 = vrot.lane.b32.xlu0 %v4848, 40
    %v8308 = vpop.permute.xlu0 %8307
    %v8310 = vsel %vm365, %v8064, 0
    %v8313 = vsel %vm1172, %v8308, 0
    %8315 = vmatprep.subr.bf16.mxu0 0
    %8316 = vmatpush1.bf16.msra.mxu0 0
    %8317 = vmatprep.subr.bf16.mxu0 0
    %8318 = vmatpush1.bf16.msra.mxu0 0
    %8319 = vmatprep.subr.bf16.mxu0 0
    %8320 = vmatpush1.bf16.msra.mxu0 0
    %8321 = vmatprep.subr.bf16.mxu0 0
    %8322 = vmatpush1.bf16.msra.mxu0 0
    %8323 = vmatprep.subr.bf16.mxu0 0
    %8324 = vmatpush1.bf16.msra.mxu0 0
    %8325 = vmatprep.subr.bf16.mxu0 0
    %8326 = vmatpush1.bf16.msra.mxu0 0
    %8327 = vmatprep.subr.bf16.mxu0 0
    %8328 = vmatpush1.bf16.msra.mxu0 0
    %8329 = vmatprep.subr.bf16.mxu0 0
    %8330 = vmatpush1.bf16.msra.mxu0 %v8313
    %8331 = vmatprep.subr.bf16.mxu0 0
    %8332 = vmatpush2.bf16.msra.mxu0 0
    %8333 = vmatprep.subr.bf16.mxu0 0
    %8334 = vmatpush2.bf16.msra.mxu0 0
    %8335 = vmatprep.subr.bf16.mxu0 0
    %8336 = vmatpush2.bf16.msra.mxu0 0
    %8337 = vmatprep.subr.bf16.mxu0 0
    %8338 = vmatpush2.bf16.msra.mxu0 0
    %8339 = vmatprep.subr.bf16.mxu0 0
    %8340 = vmatpush2.bf16.msra.mxu0 0
    %8341 = vmatprep.subr.bf16.mxu0 0
    %8342 = vmatpush2.bf16.msra.mxu0 0
    %8343 = vmatprep.subr.bf16.mxu0 0
    %8344 = vmatpush2.bf16.msra.mxu0 0
    %8345 = vmatprep.subr.bf16.mxu0 0
    %8346 = vmatpush2.bf16.msra.mxu0 0
    %8347 = vmatprep.mubr.bf16.mxu0 0
    %8348 = vmatmul.mubr.bf16.gmra.mxu0 %v8310
    %v8349 = vpop.f32.mrf.mxu0
    %v8350 = vadd.f32 0.0, %v8349
    %v8351 = vpop.f32.mrf.mxu0
    %v8352 = vpop.f32.mrf.mxu0
    %v8353 = vpop.f32.mrf.mxu0
    %8354 = vdwg.mxu0
    %8355 = vrot.lane.b32.xlu0 %v4849, 40
    %v8356 = vpop.permute.xlu0 %8355
    %v8358 = vsel %vm365, %v8065, 0
    %v8361 = vsel %vm1172, %v8356, 0
    %8363 = vmatprep.subr.bf16.mxu0 0
    %8364 = vmatpush1.bf16.msra.mxu0 0
    %8365 = vmatprep.subr.bf16.mxu0 0
    %8366 = vmatpush1.bf16.msra.mxu0 0
    %8367 = vmatprep.subr.bf16.mxu0 0
    %8368 = vmatpush1.bf16.msra.mxu0 0
    %8369 = vmatprep.subr.bf16.mxu0 0
    %8370 = vmatpush1.bf16.msra.mxu0 0
    %8371 = vmatprep.subr.bf16.mxu0 0
    %8372 = vmatpush1.bf16.msra.mxu0 0
    %8373 = vmatprep.subr.bf16.mxu0 0
    %8374 = vmatpush1.bf16.msra.mxu0 0
    %8375 = vmatprep.subr.bf16.mxu0 0
    %8376 = vmatpush1.bf16.msra.mxu0 0
    %8377 = vmatprep.subr.bf16.mxu0 0
    %8378 = vmatpush1.bf16.msra.mxu0 %v8361
    %8379 = vmatprep.subr.bf16.mxu0 0
    %8380 = vmatpush2.bf16.msra.mxu0 0
    %8381 = vmatprep.subr.bf16.mxu0 0
    %8382 = vmatpush2.bf16.msra.mxu0 0
    %8383 = vmatprep.subr.bf16.mxu0 0
    %8384 = vmatpush2.bf16.msra.mxu0 0
    %8385 = vmatprep.subr.bf16.mxu0 0
    %8386 = vmatpush2.bf16.msra.mxu0 0
    %8387 = vmatprep.subr.bf16.mxu0 0
    %8388 = vmatpush2.bf16.msra.mxu0 0
    %8389 = vmatprep.subr.bf16.mxu0 0
    %8390 = vmatpush2.bf16.msra.mxu0 0
    %8391 = vmatprep.subr.bf16.mxu0 0
    %8392 = vmatpush2.bf16.msra.mxu0 0
    %8393 = vmatprep.subr.bf16.mxu0 0
    %8394 = vmatpush2.bf16.msra.mxu0 0
    %8395 = vmatprep.mubr.bf16.mxu0 0
    %8396 = vmatmul.mubr.bf16.gmra.mxu0 %v8358
    %v8397 = vpop.f32.mrf.mxu0
    %v8398 = vadd.f32 0.0, %v8397
    %v8399 = vpop.f32.mrf.mxu0
    %v8400 = vpop.f32.mrf.mxu0
    %v8401 = vpop.f32.mrf.mxu0
    %8402 = vdwg.mxu0
    %8403 = vrot.lane.b32.xlu0 %v4850, 40
    %v8404 = vpop.permute.xlu0 %8403
    %v8406 = vsel %vm365, %v8066, 0
    %v8409 = vsel %vm1172, %v8404, 0
    %8411 = vmatprep.subr.bf16.mxu0 0
    %8412 = vmatpush1.bf16.msra.mxu0 0
    %8413 = vmatprep.subr.bf16.mxu0 0
    %8414 = vmatpush1.bf16.msra.mxu0 0
    %8415 = vmatprep.subr.bf16.mxu0 0
    %8416 = vmatpush1.bf16.msra.mxu0 0
    %8417 = vmatprep.subr.bf16.mxu0 0
    %8418 = vmatpush1.bf16.msra.mxu0 0
    %8419 = vmatprep.subr.bf16.mxu0 0
    %8420 = vmatpush1.bf16.msra.mxu0 0
    %8421 = vmatprep.subr.bf16.mxu0 0
    %8422 = vmatpush1.bf16.msra.mxu0 0
    %8423 = vmatprep.subr.bf16.mxu0 0
    %8424 = vmatpush1.bf16.msra.mxu0 0
    %8425 = vmatprep.subr.bf16.mxu0 0
    %8426 = vmatpush1.bf16.msra.mxu0 %v8409
    %8427 = vmatprep.subr.bf16.mxu0 0
    %8428 = vmatpush2.bf16.msra.mxu0 0
    %8429 = vmatprep.subr.bf16.mxu0 0
    %8430 = vmatpush2.bf16.msra.mxu0 0
    %8431 = vmatprep.subr.bf16.mxu0 0
    %8432 = vmatpush2.bf16.msra.mxu0 0
    %8433 = vmatprep.subr.bf16.mxu0 0
    %8434 = vmatpush2.bf16.msra.mxu0 0
    %8435 = vmatprep.subr.bf16.mxu0 0
    %8436 = vmatpush2.bf16.msra.mxu0 0
    %8437 = vmatprep.subr.bf16.mxu0 0
    %8438 = vmatpush2.bf16.msra.mxu0 0
    %8439 = vmatprep.subr.bf16.mxu0 0
    %8440 = vmatpush2.bf16.msra.mxu0 0
    %8441 = vmatprep.subr.bf16.mxu0 0
    %8442 = vmatpush2.bf16.msra.mxu0 0
    %8443 = vmatprep.mubr.bf16.mxu0 0
    %8444 = vmatmul.mubr.bf16.gmra.mxu0 %v8406
    %v8445 = vpop.f32.mrf.mxu0
    %v8446 = vadd.f32 0.0, %v8445
    %v8447 = vpop.f32.mrf.mxu0
    %v8448 = vpop.f32.mrf.mxu0
    %v8449 = vpop.f32.mrf.mxu0
    %8450 = vdwg.mxu0
    %8452 = vrot.lane.b32.xlu0 %v8110, 24
    %v8453 = vpop.permute.xlu0 %8452
    %8455 = vst.msk [vmem:[#allocation3] sm:$0xf] %vm4287, %v8453
    %8457 = vrot.lane.b32.xlu0 %v8158, 24
    %v8458 = vpop.permute.xlu0 %8457
    %8460 = vst.msk [vmem:[#allocation3 + $0x4] sm:$0xf] %vm4287, %v8458
    %8462 = vrot.lane.b32.xlu0 %v8206, 24
    %v8463 = vpop.permute.xlu0 %8462
    %8465 = vst.msk [vmem:[#allocation3 + $0x8] sm:$0xf] %vm4287, %v8463
    %8467 = vrot.lane.b32.xlu0 %v8254, 24
    %v8468 = vpop.permute.xlu0 %8467
    %8470 = vst.msk [vmem:[#allocation3 + $0xc] sm:$0xf] %vm4287, %v8468
    %8472 = vrot.lane.b32.xlu0 %v8302, 24
    %v8473 = vpop.permute.xlu0 %8472
    %8475 = vst.msk [vmem:[#allocation3 + $0x10] sm:$0xf] %vm4287, %v8473
    %8477 = vrot.lane.b32.xlu0 %v8350, 24
    %v8478 = vpop.permute.xlu0 %8477
    %8480 = vst.msk [vmem:[#allocation3 + $0x14] sm:$0xf] %vm4287, %v8478
    %8482 = vrot.lane.b32.xlu0 %v8398, 24
    %v8483 = vpop.permute.xlu0 %8482
    %8485 = vst.msk [vmem:[#allocation3 + $0x18] sm:$0xf] %vm4287, %v8483
    %8487 = vrot.lane.b32.xlu0 %v8446, 24
    %v8488 = vpop.permute.xlu0 %8487
    %8490 = vst.msk [vmem:[#allocation3 + $0x1c] sm:$0xf] %vm4287, %v8488
    %v8491 = vld [vmem:[#allocation3] sm:$0xff]
    %v8492 = vld [vmem:[#allocation3 + $0x8] sm:$0xff]
    %v8493 = vld [vmem:[#allocation3 + $0x10] sm:$0xff]
    %v8494 = vld [vmem:[#allocation3 + $0x18] sm:$0xff]
    %s8495 = scalar_lea.vmem %s6, 16
    %v8496 = vld [vmem:[%s8495] sm:$0xf]
    %v8497 = vld [vmem:[%s8495 + $0x4] sm:$0xf]
    %v8498 = vld [vmem:[%s8495 + $0x8] sm:$0xf]
    %v8499 = vld [vmem:[%s8495 + $0xc] sm:$0xf]
    %v8500 = vpack.c.bf16 %v8492, %v8491
    %v8501 = vpack.c.bf16 %v8494, %v8493
    %s8502 = scalar_lea.vmem %s7, 1
    %v8503 = vld [vmem:[%s8502] sm:$0x1]
    %v8505 = vlaneseq
    %v8506 = vshrl.u32 %v8505, 7
    %v8507 = vsub.s32 0, %v8506
    %v8508 = vrot.slane %v8503, %v8507
    %v8514 = vunpack.c.l.b16 %v8496
    %v8515 = vunpack.c.l.b16 %v8497
    %v8516 = vunpack.c.l.b16 %v8498
    %v8517 = vunpack.c.l.b16 %v8499
    %v8518 = vpack.c.b16 %v8515, %v8514
    %v8519 = vpack.c.b16 %v8517, %v8516
    %v8523 = vsel %vm68, %v8500, 0
    %v8526 = vsel %vm68, %v8501, 0
    %8528 = vmatprep.subr.bf16.mxu0 0
    %8529 = vmatpush1.bf16.msra.mxu0 0
    %8530 = vmatprep.subr.bf16.mxu0 0
    %8531 = vmatpush1.bf16.msra.mxu0 0
    %8532 = vmatprep.subr.bf16.mxu0 0
    %8533 = vmatpush1.bf16.msra.mxu0 0
    %8534 = vmatprep.subr.bf16.mxu0 0
    %8535 = vmatpush1.bf16.msra.mxu0 0
    %8536 = vmatprep.subr.bf16.mxu0 0
    %8537 = vmatpush1.bf16.msra.mxu0 0
    %8538 = vmatprep.subr.bf16.mxu0 0
    %8539 = vmatpush1.bf16.msra.mxu0 0
    %8540 = vmatprep.subr.bf16.mxu0 0
    %8541 = vmatpush1.bf16.msra.mxu0 %v8519
    %8542 = vmatprep.subr.bf16.mxu0 0
    %8543 = vmatpush1.bf16.msra.mxu0 %v8518
    %8544 = vmatprep.subr.bf16.mxu0 0
    %8545 = vmatpush2.bf16.msra.mxu0 0
    %8546 = vmatprep.subr.bf16.mxu0 0
    %8547 = vmatpush2.bf16.msra.mxu0 0
    %8548 = vmatprep.subr.bf16.mxu0 0
    %8549 = vmatpush2.bf16.msra.mxu0 0
    %8550 = vmatprep.subr.bf16.mxu0 0
    %8551 = vmatpush2.bf16.msra.mxu0 0
    %8552 = vmatprep.subr.bf16.mxu0 0
    %8553 = vmatpush2.bf16.msra.mxu0 0
    %8554 = vmatprep.subr.bf16.mxu0 0
    %8555 = vmatpush2.bf16.msra.mxu0 0
    %8556 = vmatprep.subr.bf16.mxu0 0
    %8557 = vmatpush2.bf16.msra.mxu0 0
    %8558 = vmatprep.subr.bf16.mxu0 0
    %8559 = vmatpush2.bf16.msra.mxu0 0
    %8560 = vmatprep.mubr.bf16.mxu0 0
    %8561 = vmatmul.mubr.bf16.gmra.mxu0 %v8523
    %v8562 = vpop.f32.mrf.mxu0
    %v8563 = vadd.f32 %v8508, %v8562
    %v8564 = vpop.f32.mrf.mxu0
    %v8565 = vpop.f32.mrf.mxu0
    %v8566 = vadd.f32 %v8508, %v8565
    %v8567 = vpop.f32.mrf.mxu0
    %8568 = vmatprep.mubr.bf16.mxu0 0
    %8569 = vmatmul.mubr.bf16.gmra.mxu0 %v8526
    %v8570 = vpop.f32.mrf.mxu0
    %v8571 = vadd.f32 %v8508, %v8570
    %v8572 = vpop.f32.mrf.mxu0
    %v8573 = vpop.f32.mrf.mxu0
    %v8574 = vadd.f32 %v8508, %v8573
    %v8575 = vpop.f32.mrf.mxu0
    %8576 = vdwg.mxu0
    %v8577 = vadd.f32 %v4741, %v8563
    %v8578 = vadd.f32 %v4742, %v8566
    %v8579 = vadd.f32 %v4743, %v8571
    %v8580 = vadd.f32 %v4744, %v8574
    %s8581 = scalar_lea.vmem %s8, 1
    %v8582 = vld [vmem:[%s8581] sm:$0x1]
    %s8583 = scalar_lea.vmem %s9, 1
    %v8584 = vld [vmem:[%s8583] sm:$0x1]
    %v8585 = vsel %vm68, %v8577, 0.0
    %8586 = vadd.xlane.f32.xlu0 %v8585
    %v8587 = vpop.xlane.xlu0 %8586
    %v8588 = vsel %vm68, %v8578, 0.0
    %8589 = vadd.xlane.f32.xlu0 %v8588
    %v8590 = vpop.xlane.xlu0 %8589
    %v8591 = vsel %vm68, %v8579, 0.0
    %8592 = vadd.xlane.f32.xlu0 %v8591
    %v8593 = vpop.xlane.xlu0 %8592
    %v8594 = vsel %vm68, %v8580, 0.0
    %8595 = vadd.xlane.f32.xlu0 %v8594
    %v8596 = vpop.xlane.xlu0 %8595
    %v8597 = vmul.f32 %v8587, %v72
    %v8598 = vmul.f32 %v8590, %v72
    %v8599 = vmul.f32 %v8593, %v72
    %v8600 = vmul.f32 %v8596, %v72
    %v8601 = vsub.f32 %v8577, %v8597
    %v8602 = vsub.f32 %v8578, %v8598
    %v8603 = vsub.f32 %v8579, %v8599
    %v8604 = vsub.f32 %v8580, %v8600
    %v8605 = vmul.f32 %v8601, %v8601
    %v8606 = vmul.f32 %v8602, %v8602
    %v8607 = vmul.f32 %v8603, %v8603
    %v8608 = vmul.f32 %v8604, %v8604
    %v8609 = vsel %vm68, %v8605, 0.0
    %8610 = vadd.xlane.f32.xlu0 %v8609
    %v8611 = vpop.xlane.xlu0 %8610
    %v8612 = vsel %vm68, %v8606, 0.0
    %8613 = vadd.xlane.f32.xlu0 %v8612
    %v8614 = vpop.xlane.xlu0 %8613
    %v8615 = vsel %vm68, %v8607, 0.0
    %8616 = vadd.xlane.f32.xlu0 %v8615
    %v8617 = vpop.xlane.xlu0 %8616
    %v8618 = vsel %vm68, %v8608, 0.0
    %8619 = vadd.xlane.f32.xlu0 %v8618
    %v8620 = vpop.xlane.xlu0 %8619
    %v8621 = vmul.f32 %v8611, %v72
    %v8622 = vmul.f32 %v8614, %v72
    %v8623 = vmul.f32 %v8617, %v72
    %v8624 = vmul.f32 %v8620, %v72
    %v8625 = vadd.f32 %v8621, 1e-05
    %v8626 = vadd.f32 %v8622, 1e-05
    %v8627 = vadd.f32 %v8623, 1e-05
    %v8628 = vadd.f32 %v8624, 1e-05
    %v8629 = vrsqrt.pop %v8625
    %v8630 = vrsqrt.pop %v8626
    %v8631 = vrsqrt.pop %v8627
    %v8632 = vrsqrt.pop %v8628
    %v8633 = vmul.f32 %v8601, %v8629
    %v8634 = vmul.f32 %v8602, %v8630
    %v8635 = vmul.f32 %v8603, %v8631
    %v8636 = vmul.f32 %v8604, %v8632
    %v8638 = vlaneseq
    %v8639 = vshrl.u32 %v8638, 7
    %v8640 = vsub.s32 0, %v8639
    %v8641 = vrot.slane %v8582, %v8640
    %v8643 = vmul.f32 %v8633, %v8641
    %v8644 = vmul.f32 %v8634, %v8641
    %v8645 = vmul.f32 %v8635, %v8641
    %v8646 = vmul.f32 %v8636, %v8641
    %v8648 = vlaneseq
    %v8649 = vshrl.u32 %v8648, 7
    %v8650 = vsub.s32 0, %v8649
    %v8651 = vrot.slane %v8584, %v8650
    %v8653 = vadd.f32 %v8643, %v8651
    %v8654 = vadd.f32 %v8644, %v8651
    %v8655 = vadd.f32 %v8645, %v8651
    %v8656 = vadd.f32 %v8646, %v8651
    %s8657 = scalar_lea.vmem %s10, 16
    %v8658 = vld [vmem:[%s8657] sm:$0xf]
    %v8659 = vld [vmem:[%s8657 + $0x4] sm:$0xf]
    %v8660 = vld [vmem:[%s8657 + $0x8] sm:$0xf]
    %v8661 = vld [vmem:[%s8657 + $0xc] sm:$0xf]
    %v8662 = vpack.c.bf16 %v8654, %v8653
    %v8663 = vpack.c.bf16 %v8656, %v8655
    %s8664 = scalar_lea.vmem %s11, 1
    %v8665 = vld [vmem:[%s8664] sm:$0x1]
    %v8667 = vlaneseq
    %v8668 = vshrl.u32 %v8667, 7
    %v8669 = vsub.s32 0, %v8668
    %v8670 = vrot.slane %v8665, %v8669
    %v8676 = vunpack.c.l.b16 %v8658
    %v8677 = vunpack.c.l.b16 %v8659
    %v8678 = vunpack.c.l.b16 %v8660
    %v8679 = vunpack.c.l.b16 %v8661
    %v8680 = vpack.c.b16 %v8677, %v8676
    %v8681 = vpack.c.b16 %v8679, %v8678
    %v8685 = vsel %vm68, %v8662, 0
    %v8688 = vsel %vm68, %v8663, 0
    %8690 = vmatprep.subr.bf16.mxu0 0
    %8691 = vmatpush1.bf16.msra.mxu0 0
    %8692 = vmatprep.subr.bf16.mxu0 0
    %8693 = vmatpush1.bf16.msra.mxu0 0
    %8694 = vmatprep.subr.bf16.mxu0 0
    %8695 = vmatpush1.bf16.msra.mxu0 0
    %8696 = vmatprep.subr.bf16.mxu0 0
    %8697 = vmatpush1.bf16.msra.mxu0 0
    %8698 = vmatprep.subr.bf16.mxu0 0
    %8699 = vmatpush1.bf16.msra.mxu0 0
    %8700 = vmatprep.subr.bf16.mxu0 0
    %8701 = vmatpush1.bf16.msra.mxu0 0
    %8702 = vmatprep.subr.bf16.mxu0 0
    %8703 = vmatpush1.bf16.msra.mxu0 %v8681
    %8704 = vmatprep.subr.bf16.mxu0 0
    %8705 = vmatpush1.bf16.msra.mxu0 %v8680
    %8706 = vmatprep.subr.bf16.mxu0 0
    %8707 = vmatpush2.bf16.msra.mxu0 0
    %8708 = vmatprep.subr.bf16.mxu0 0
    %8709 = vmatpush2.bf16.msra.mxu0 0
    %8710 = vmatprep.subr.bf16.mxu0 0
    %8711 = vmatpush2.bf16.msra.mxu0 0
    %8712 = vmatprep.subr.bf16.mxu0 0
    %8713 = vmatpush2.bf16.msra.mxu0 0
    %8714 = vmatprep.subr.bf16.mxu0 0
    %8715 = vmatpush2.bf16.msra.mxu0 0
    %8716 = vmatprep.subr.bf16.mxu0 0
    %8717 = vmatpush2.bf16.msra.mxu0 0
    %8718 = vmatprep.subr.bf16.mxu0 0
    %8719 = vmatpush2.bf16.msra.mxu0 0
    %8720 = vmatprep.subr.bf16.mxu0 0
    %8721 = vmatpush2.bf16.msra.mxu0 0
    %8722 = vmatprep.mubr.bf16.mxu0 0
    %8723 = vmatmul.mubr.bf16.gmra.mxu0 %v8685
    %v8724 = vpop.f32.mrf.mxu0
    %v8725 = vadd.f32 %v8670, %v8724
    %v8726 = vpop.f32.mrf.mxu0
    %v8727 = vpop.f32.mrf.mxu0
    %v8728 = vadd.f32 %v8670, %v8727
    %v8729 = vpop.f32.mrf.mxu0
    %8730 = vmatprep.mubr.bf16.mxu0 0
    %8731 = vmatmul.mubr.bf16.gmra.mxu0 %v8688
    %v8732 = vpop.f32.mrf.mxu0
    %v8733 = vadd.f32 %v8670, %v8732
    %v8734 = vpop.f32.mrf.mxu0
    %v8735 = vpop.f32.mrf.mxu0
    %v8736 = vadd.f32 %v8670, %v8735
    %v8737 = vpop.f32.mrf.mxu0
    %8738 = vdwg.mxu0
    %v8739 = vmax.f32 %v8725, 0.0
    %v8740 = vmax.f32 %v8728, 0.0
    %v8741 = vmax.f32 %v8733, 0.0
    %v8742 = vmax.f32 %v8736, 0.0
    %s8743 = scalar_lea.vmem %s12, 32
    %v8744 = vld [vmem:[%s8743] sm:$0xf]
    %v8745 = vld [vmem:[%s8743 + $0x4] sm:$0xf]
    %v8746 = vld [vmem:[%s8743 + $0x8] sm:$0xf]
    %v8747 = vld [vmem:[%s8743 + $0xc] sm:$0xf]
    %v8748 = vld [vmem:[%s8743 + $0x10] sm:$0xf]
    %v8749 = vld [vmem:[%s8743 + $0x14] sm:$0xf]
    %v8750 = vld [vmem:[%s8743 + $0x18] sm:$0xf]
    %v8751 = vld [vmem:[%s8743 + $0x1c] sm:$0xf]
    %v8752 = vpack.c.bf16 %v8740, %v8739
    %v8753 = vpack.c.bf16 %v8742, %v8741
    %s8754 = scalar_lea.vmem %s13, 1
    %v8755 = vld [vmem:[%s8754] sm:$0x1]
    %v8757 = vlaneseq
    %v8758 = vshrl.u32 %v8757, 7
    %v8759 = vsub.s32 0, %v8758
    %v8760 = vrot.slane %v8755, %v8759
    %v8770 = vunpack.c.l.b16 %v8744
    %v8771 = vunpack.c.l.b16 %v8745
    %v8772 = vunpack.c.l.b16 %v8746
    %v8773 = vunpack.c.l.b16 %v8747
    %v8774 = vunpack.c.l.b16 %v8748
    %v8775 = vunpack.c.l.b16 %v8749
    %v8776 = vunpack.c.l.b16 %v8750
    %v8777 = vunpack.c.l.b16 %v8751
    %v8778 = vpack.c.b16 %v8771, %v8770
    %v8779 = vpack.c.b16 %v8773, %v8772
    %v8780 = vpack.c.b16 %v8775, %v8774
    %v8781 = vpack.c.b16 %v8777, %v8776
    %v8787 = vsel %vm4611, %v8752, 0
    %v8790 = vsel %vm4611, %v8753, 0
    %8792 = vmatprep.subr.bf16.mxu0 0
    %8793 = vmatpush1.bf16.msra.mxu0 0
    %8794 = vmatprep.subr.bf16.mxu0 0
    %8795 = vmatpush1.bf16.msra.mxu0 0
    %8796 = vmatprep.subr.bf16.mxu0 0
    %8797 = vmatpush1.bf16.msra.mxu0 0
    %8798 = vmatprep.subr.bf16.mxu0 0
    %8799 = vmatpush1.bf16.msra.mxu0 0
    %8800 = vmatprep.subr.bf16.mxu0 0
    %8801 = vmatpush1.bf16.msra.mxu0 %v8781
    %8802 = vmatprep.subr.bf16.mxu0 0
    %8803 = vmatpush1.bf16.msra.mxu0 %v8780
    %8804 = vmatprep.subr.bf16.mxu0 0
    %8805 = vmatpush1.bf16.msra.mxu0 %v8779
    %8806 = vmatprep.subr.bf16.mxu0 0
    %8807 = vmatpush1.bf16.msra.mxu0 %v8778
    %8808 = vmatprep.subr.bf16.mxu0 0
    %8809 = vmatpush2.bf16.msra.mxu0 0
    %8810 = vmatprep.subr.bf16.mxu0 0
    %8811 = vmatpush2.bf16.msra.mxu0 0
    %8812 = vmatprep.subr.bf16.mxu0 0
    %8813 = vmatpush2.bf16.msra.mxu0 0
    %8814 = vmatprep.subr.bf16.mxu0 0
    %8815 = vmatpush2.bf16.msra.mxu0 0
    %8816 = vmatprep.subr.bf16.mxu0 0
    %8817 = vmatpush2.bf16.msra.mxu0 0
    %8818 = vmatprep.subr.bf16.mxu0 0
    %8819 = vmatpush2.bf16.msra.mxu0 0
    %8820 = vmatprep.subr.bf16.mxu0 0
    %8821 = vmatpush2.bf16.msra.mxu0 0
    %8822 = vmatprep.subr.bf16.mxu0 0
    %8823 = vmatpush2.bf16.msra.mxu0 0
    %8824 = vmatprep.mubr.bf16.mxu0 0
    %8825 = vmatmul.mubr.bf16.gmra.mxu0 %v8787
    %v8826 = vpop.f32.mrf.mxu0
    %v8827 = vadd.f32 %v8760, %v8826
    %v8828 = vpop.f32.mrf.mxu0
    %v8829 = vpop.f32.mrf.mxu0
    %v8830 = vadd.f32 %v8760, %v8829
    %v8831 = vpop.f32.mrf.mxu0
    %8832 = vmatprep.mubr.bf16.mxu0 0
    %8833 = vmatmul.mubr.bf16.gmra.mxu0 %v8790
    %v8834 = vpop.f32.mrf.mxu0
    %v8835 = vadd.f32 %v8760, %v8834
    %v8836 = vpop.f32.mrf.mxu0
    %v8837 = vpop.f32.mrf.mxu0
    %v8838 = vadd.f32 %v8760, %v8837
    %v8839 = vpop.f32.mrf.mxu0
    %8840 = vdwg.mxu0
    %v8841 = vadd.f32 %v8653, %v8827
    %v8842 = vadd.f32 %v8654, %v8830
    %v8843 = vadd.f32 %v8655, %v8835
    %v8844 = vadd.f32 %v8656, %v8838
    %s8845 = scalar_lea.vmem %s14, 1
    %v8846 = vld [vmem:[%s8845] sm:$0x1]
    %s8847 = scalar_lea.vmem %s15, 1
    %v8848 = vld [vmem:[%s8847] sm:$0x1]
    %v8849 = vsel %vm68, %v8841, 0.0
    %8850 = vadd.xlane.f32.xlu0 %v8849
    %v8851 = vpop.xlane.xlu0 %8850
    %v8852 = vsel %vm68, %v8842, 0.0
    %8853 = vadd.xlane.f32.xlu0 %v8852
    %v8854 = vpop.xlane.xlu0 %8853
    %v8855 = vsel %vm68, %v8843, 0.0
    %8856 = vadd.xlane.f32.xlu0 %v8855
    %v8857 = vpop.xlane.xlu0 %8856
    %v8858 = vsel %vm68, %v8844, 0.0
    %8859 = vadd.xlane.f32.xlu0 %v8858
    %v8860 = vpop.xlane.xlu0 %8859
    %v8861 = vmul.f32 %v8851, %v72
    %v8862 = vmul.f32 %v8854, %v72
    %v8863 = vmul.f32 %v8857, %v72
    %v8864 = vmul.f32 %v8860, %v72
    %v8865 = vsub.f32 %v8841, %v8861
    %v8866 = vsub.f32 %v8842, %v8862
    %v8867 = vsub.f32 %v8843, %v8863
    %v8868 = vsub.f32 %v8844, %v8864
    %v8869 = vmul.f32 %v8865, %v8865
    %v8870 = vmul.f32 %v8866, %v8866
    %v8871 = vmul.f32 %v8867, %v8867
    %v8872 = vmul.f32 %v8868, %v8868
    %v8873 = vsel %vm68, %v8869, 0.0
    %8874 = vadd.xlane.f32.xlu0 %v8873
    %v8875 = vpop.xlane.xlu0 %8874
    %v8876 = vsel %vm68, %v8870, 0.0
    %8877 = vadd.xlane.f32.xlu0 %v8876
    %v8878 = vpop.xlane.xlu0 %8877
    %v8879 = vsel %vm68, %v8871, 0.0
    %8880 = vadd.xlane.f32.xlu0 %v8879
    %v8881 = vpop.xlane.xlu0 %8880
    %v8882 = vsel %vm68, %v8872, 0.0
    %8883 = vadd.xlane.f32.xlu0 %v8882
    %v8884 = vpop.xlane.xlu0 %8883
    %v8885 = vmul.f32 %v8875, %v72
    %v8886 = vmul.f32 %v8878, %v72
    %v8887 = vmul.f32 %v8881, %v72
    %v8888 = vmul.f32 %v8884, %v72
    %v8889 = vadd.f32 %v8885, 1e-05
    %v8890 = vadd.f32 %v8886, 1e-05
    %v8891 = vadd.f32 %v8887, 1e-05
    %v8892 = vadd.f32 %v8888, 1e-05
    %v8893 = vrsqrt.pop %v8889
    %v8894 = vrsqrt.pop %v8890
    %v8895 = vrsqrt.pop %v8891
    %v8896 = vrsqrt.pop %v8892
    %v8897 = vmul.f32 %v8865, %v8893
    %v8898 = vmul.f32 %v8866, %v8894
    %v8899 = vmul.f32 %v8867, %v8895
    %v8900 = vmul.f32 %v8868, %v8896
    %v8902 = vlaneseq
    %v8903 = vshrl.u32 %v8902, 7
    %v8904 = vsub.s32 0, %v8903
    %v8905 = vrot.slane %v8846, %v8904
    %v8907 = vmul.f32 %v8897, %v8905
    %v8908 = vmul.f32 %v8898, %v8905
    %v8909 = vmul.f32 %v8899, %v8905
    %v8910 = vmul.f32 %v8900, %v8905
    %v8912 = vlaneseq
    %v8913 = vshrl.u32 %v8912, 7
    %v8914 = vsub.s32 0, %v8913
    %v8915 = vrot.slane %v8848, %v8914
    %v8917 = vadd.f32 %v8907, %v8915
    %v8918 = vadd.f32 %v8908, %v8915
    %v8919 = vadd.f32 %v8909, %v8915
    %v8920 = vadd.f32 %v8910, %v8915
    %v8921 = vld [vmem:[%s16] sm:$0x1]
    %v8922 = vld [vmem:[%s17] sm:$0x1]
    %v8923 = vsel %vm68, %v8917, 0.0
    %8924 = vadd.xlane.f32.xlu0 %v8923
    %v8925 = vpop.xlane.xlu0 %8924
    %v8926 = vsel %vm68, %v8918, 0.0
    %8927 = vadd.xlane.f32.xlu0 %v8926
    %v8928 = vpop.xlane.xlu0 %8927
    %v8929 = vsel %vm68, %v8919, 0.0
    %8930 = vadd.xlane.f32.xlu0 %v8929
    %v8931 = vpop.xlane.xlu0 %8930
    %v8932 = vsel %vm68, %v8920, 0.0
    %8933 = vadd.xlane.f32.xlu0 %v8932
    %v8934 = vpop.xlane.xlu0 %8933
    %v8935 = vmul.f32 %v8925, %v72
    %v8936 = vmul.f32 %v8928, %v72
    %v8937 = vmul.f32 %v8931, %v72
    %v8938 = vmul.f32 %v8934, %v72
    %v8939 = vsub.f32 %v8917, %v8935
    %v8940 = vsub.f32 %v8918, %v8936
    %v8941 = vsub.f32 %v8919, %v8937
    %v8942 = vsub.f32 %v8920, %v8938
    %v8943 = vmul.f32 %v8939, %v8939
    %v8944 = vmul.f32 %v8940, %v8940
    %v8945 = vmul.f32 %v8941, %v8941
    %v8946 = vmul.f32 %v8942, %v8942
    %v8947 = vsel %vm68, %v8943, 0.0
    %8948 = vadd.xlane.f32.xlu0 %v8947
    %v8949 = vpop.xlane.xlu0 %8948
    %v8950 = vsel %vm68, %v8944, 0.0
    %8951 = vadd.xlane.f32.xlu0 %v8950
    %v8952 = vpop.xlane.xlu0 %8951
    %v8953 = vsel %vm68, %v8945, 0.0
    %8954 = vadd.xlane.f32.xlu0 %v8953
    %v8955 = vpop.xlane.xlu0 %8954
    %v8956 = vsel %vm68, %v8946, 0.0
    %8957 = vadd.xlane.f32.xlu0 %v8956
    %v8958 = vpop.xlane.xlu0 %8957
    %v8959 = vmul.f32 %v8949, %v72
    %v8960 = vmul.f32 %v8952, %v72
    %v8961 = vmul.f32 %v8955, %v72
    %v8962 = vmul.f32 %v8958, %v72
    %v8963 = vadd.f32 %v8959, 1e-05
    %v8964 = vadd.f32 %v8960, 1e-05
    %v8965 = vadd.f32 %v8961, 1e-05
    %v8966 = vadd.f32 %v8962, 1e-05
    %v8967 = vrsqrt.pop %v8963
    %v8968 = vrsqrt.pop %v8964
    %v8969 = vrsqrt.pop %v8965
    %v8970 = vrsqrt.pop %v8966
    %v8971 = vmul.f32 %v8939, %v8967
    %v8972 = vmul.f32 %v8940, %v8968
    %v8973 = vmul.f32 %v8941, %v8969
    %v8974 = vmul.f32 %v8942, %v8970
    %v8976 = vlaneseq
    %v8977 = vshrl.u32 %v8976, 7
    %v8978 = vsub.s32 0, %v8977
    %v8979 = vrot.slane %v8921, %v8978
    %v8981 = vmul.f32 %v8971, %v8979
    %v8982 = vmul.f32 %v8972, %v8979
    %v8983 = vmul.f32 %v8973, %v8979
    %v8984 = vmul.f32 %v8974, %v8979
    %v8986 = vlaneseq
    %v8987 = vshrl.u32 %v8986, 7
    %v8988 = vsub.s32 0, %v8987
    %v8989 = vrot.slane %v8922, %v8988
    %v8991 = vadd.f32 %v8981, %v8989
    %v8992 = vadd.f32 %v8982, %v8989
    %v8993 = vadd.f32 %v8983, %v8989
    %v8994 = vadd.f32 %v8984, %v8989
    %vm8995 = vcmask 253952
    %8996 = vst.msk [vmem:[#allocation4] sm:$0x1] %vm8995, %v8991
    %v8999 = vunpack.c.l.s4 1983009808
    %v9000 = vunpack.c.0.s8 %v8999
    %v9001 = vlaneseq
    %v9002 = vshrl.u32 %v9001, 7
    %v9003 = vsub.s32 %v9000, %v9002
    %v9004 = vrot.slane %v8991, %v9003
    %v9005 = vrot.slane %v9004, 7
    %v9006 = vrot.slane %v9005, 2
    %9007 = vrot.lane.b32.xlu0 %v9006, 32
    %v9008 = vpop.permute.xlu0 %9007
    %vm9010 = vcmask 516352
    %9011 = vst.msk [vmem:[#allocation4] sm:$0x1] %vm9010, %v9008
    %v9012 = vcombine.high %v9004, %v9004
    %9013 = vrot.lane.b32.xlu0 %v9012, 64
    %v9014 = vpop.permute.xlu0 %9013
    %vm9016 = vcmask 778752
    %9017 = vst.msk [vmem:[#allocation4] sm:$0x1] %vm9016, %v9014
    %v9018 = vrot.slane %v9012, 7
    %v9019 = vrot.slane %v9018, 2
    %9020 = vrot.lane.b32.xlu0 %v9019, 96
    %v9021 = vpop.permute.xlu0 %9020
    %vm9023 = vcmask 1041152
    %9024 = vst.msk [vmem:[#allocation4] sm:$0x1] %vm9023, %v9021
    %v9025 = vcombine.high %v8991, %v8991
    %v9027 = vunpack.c.l.s4 1983009808
    %v9028 = vunpack.c.0.s8 %v9027
    %v9029 = vlaneseq
    %v9030 = vshrl.u32 %v9029, 7
    %v9031 = vsub.s32 %v9028, %v9030
    %v9032 = vrot.slane %v9025, %v9031
    %9034 = vst.msk [vmem:[#allocation4 + $0x2] sm:$0x1] %vm8995, %v9032
    %v9035 = vrot.slane %v9032, 7
    %v9036 = vrot.slane %v9035, 2
    %9037 = vrot.lane.b32.xlu0 %v9036, 32
    %v9038 = vpop.permute.xlu0 %9037
    %9040 = vst.msk [vmem:[#allocation4 + $0x2] sm:$0x1] %vm9010, %v9038
    %v9041 = vcombine.high %v9032, %v9032
    %9042 = vrot.lane.b32.xlu0 %v9041, 64
    %v9043 = vpop.permute.xlu0 %9042
    %9045 = vst.msk [vmem:[#allocation4 + $0x2] sm:$0x1] %vm9016, %v9043
    %v9046 = vrot.slane %v9041, 7
    %v9047 = vrot.slane %v9046, 2
    %9048 = vrot.lane.b32.xlu0 %v9047, 96
    %v9049 = vpop.permute.xlu0 %9048
    %9051 = vst.msk [vmem:[#allocation4 + $0x2] sm:$0x1] %vm9023, %v9049
    %9052 = vst.msk [vmem:[#allocation4 + $0x4] sm:$0x1] %vm8995, %v8992
    %v9055 = vunpack.c.l.s4 1983009808
    %v9056 = vunpack.c.0.s8 %v9055
    %v9057 = vlaneseq
    %v9058 = vshrl.u32 %v9057, 7
    %v9059 = vsub.s32 %v9056, %v9058
    %v9060 = vrot.slane %v8992, %v9059
    %v9061 = vrot.slane %v9060, 7
    %v9062 = vrot.slane %v9061, 2
    %9063 = vrot.lane.b32.xlu0 %v9062, 32
    %v9064 = vpop.permute.xlu0 %9063
    %9066 = vst.msk [vmem:[#allocation4 + $0x4] sm:$0x1] %vm9010, %v9064
    %v9067 = vcombine.high %v9060, %v9060
    %9068 = vrot.lane.b32.xlu0 %v9067, 64
    %v9069 = vpop.permute.xlu0 %9068
    %9071 = vst.msk [vmem:[#allocation4 + $0x4] sm:$0x1] %vm9016, %v9069
    %v9072 = vrot.slane %v9067, 7
    %v9073 = vrot.slane %v9072, 2
    %9074 = vrot.lane.b32.xlu0 %v9073, 96
    %v9075 = vpop.permute.xlu0 %9074
    %9077 = vst.msk [vmem:[#allocation4 + $0x4] sm:$0x1] %vm9023, %v9075
    %v9078 = vcombine.high %v8992, %v8992
    %v9080 = vunpack.c.l.s4 1983009808
    %v9081 = vunpack.c.0.s8 %v9080
    %v9082 = vlaneseq
    %v9083 = vshrl.u32 %v9082, 7
    %v9084 = vsub.s32 %v9081, %v9083
    %v9085 = vrot.slane %v9078, %v9084
    %9087 = vst.msk [vmem:[#allocation4 + $0x6] sm:$0x1] %vm8995, %v9085
    %v9088 = vrot.slane %v9085, 7
    %v9089 = vrot.slane %v9088, 2
    %9090 = vrot.lane.b32.xlu0 %v9089, 32
    %v9091 = vpop.permute.xlu0 %9090
    %9093 = vst.msk [vmem:[#allocation4 + $0x6] sm:$0x1] %vm9010, %v9091
    %v9094 = vcombine.high %v9085, %v9085
    %9095 = vrot.lane.b32.xlu0 %v9094, 64
    %v9096 = vpop.permute.xlu0 %9095
    %9098 = vst.msk [vmem:[#allocation4 + $0x6] sm:$0x1] %vm9016, %v9096
    %v9099 = vrot.slane %v9094, 7
    %v9100 = vrot.slane %v9099, 2
    %9101 = vrot.lane.b32.xlu0 %v9100, 96
    %v9102 = vpop.permute.xlu0 %9101
    %9104 = vst.msk [vmem:[#allocation4 + $0x6] sm:$0x1] %vm9023, %v9102
    %9105 = vst.msk [vmem:[#allocation4 + $0x1] sm:$0x1] %vm8995, %v8993
    %v9108 = vunpack.c.l.s4 1983009808
    %v9109 = vunpack.c.0.s8 %v9108
    %v9110 = vlaneseq
    %v9111 = vshrl.u32 %v9110, 7
    %v9112 = vsub.s32 %v9109, %v9111
    %v9113 = vrot.slane %v8993, %v9112
    %v9114 = vrot.slane %v9113, 7
    %v9115 = vrot.slane %v9114, 2
    %9116 = vrot.lane.b32.xlu0 %v9115, 32
    %v9117 = vpop.permute.xlu0 %9116
    %9119 = vst.msk [vmem:[#allocation4 + $0x1] sm:$0x1] %vm9010, %v9117
    %v9120 = vcombine.high %v9113, %v9113
    %9121 = vrot.lane.b32.xlu0 %v9120, 64
    %v9122 = vpop.permute.xlu0 %9121
    %9124 = vst.msk [vmem:[#allocation4 + $0x1] sm:$0x1] %vm9016, %v9122
    %v9125 = vrot.slane %v9120, 7
    %v9126 = vrot.slane %v9125, 2
    %9127 = vrot.lane.b32.xlu0 %v9126, 96
    %v9128 = vpop.permute.xlu0 %9127
    %9130 = vst.msk [vmem:[#allocation4 + $0x1] sm:$0x1] %vm9023, %v9128
    %v9131 = vcombine.high %v8993, %v8993
    %v9133 = vunpack.c.l.s4 1983009808
    %v9134 = vunpack.c.0.s8 %v9133
    %v9135 = vlaneseq
    %v9136 = vshrl.u32 %v9135, 7
    %v9137 = vsub.s32 %v9134, %v9136
    %v9138 = vrot.slane %v9131, %v9137
    %9140 = vst.msk [vmem:[#allocation4 + $0x3] sm:$0x1] %vm8995, %v9138
    %v9141 = vrot.slane %v9138, 7
    %v9142 = vrot.slane %v9141, 2
    %9143 = vrot.lane.b32.xlu0 %v9142, 32
    %v9144 = vpop.permute.xlu0 %9143
    %9146 = vst.msk [vmem:[#allocation4 + $0x3] sm:$0x1] %vm9010, %v9144
    %v9147 = vcombine.high %v9138, %v9138
    %9148 = vrot.lane.b32.xlu0 %v9147, 64
    %v9149 = vpop.permute.xlu0 %9148
    %9151 = vst.msk [vmem:[#allocation4 + $0x3] sm:$0x1] %vm9016, %v9149
    %v9152 = vrot.slane %v9147, 7
    %v9153 = vrot.slane %v9152, 2
    %9154 = vrot.lane.b32.xlu0 %v9153, 96
    %v9155 = vpop.permute.xlu0 %9154
    %9157 = vst.msk [vmem:[#allocation4 + $0x3] sm:$0x1] %vm9023, %v9155
    %9158 = vst.msk [vmem:[#allocation4 + $0x5] sm:$0x1] %vm8995, %v8994
    %v9161 = vunpack.c.l.s4 1983009808
    %v9162 = vunpack.c.0.s8 %v9161
    %v9163 = vlaneseq
    %v9164 = vshrl.u32 %v9163, 7
    %v9165 = vsub.s32 %v9162, %v9164
    %v9166 = vrot.slane %v8994, %v9165
    %v9167 = vrot.slane %v9166, 7
    %v9168 = vrot.slane %v9167, 2
    %9169 = vrot.lane.b32.xlu0 %v9168, 32
    %v9170 = vpop.permute.xlu0 %9169
    %9172 = vst.msk [vmem:[#allocation4 + $0x5] sm:$0x1] %vm9010, %v9170
    %v9173 = vcombine.high %v9166, %v9166
    %9174 = vrot.lane.b32.xlu0 %v9173, 64
    %v9175 = vpop.permute.xlu0 %9174
    %9177 = vst.msk [vmem:[#allocation4 + $0x5] sm:$0x1] %vm9016, %v9175
    %v9178 = vrot.slane %v9173, 7
    %v9179 = vrot.slane %v9178, 2
    %9180 = vrot.lane.b32.xlu0 %v9179, 96
    %v9181 = vpop.permute.xlu0 %9180
    %9183 = vst.msk [vmem:[#allocation4 + $0x5] sm:$0x1] %vm9023, %v9181
    %v9184 = vcombine.high %v8994, %v8994
    %v9186 = vunpack.c.l.s4 1983009808
    %v9187 = vunpack.c.0.s8 %v9186
    %v9188 = vlaneseq
    %v9189 = vshrl.u32 %v9188, 7
    %v9190 = vsub.s32 %v9187, %v9189
    %v9191 = vrot.slane %v9184, %v9190
    %9193 = vst.msk [vmem:[#allocation4 + $0x7] sm:$0x1] %vm8995, %v9191
    %v9194 = vrot.slane %v9191, 7
    %v9195 = vrot.slane %v9194, 2
    %9196 = vrot.lane.b32.xlu0 %v9195, 32
    %v9197 = vpop.permute.xlu0 %9196
    %9199 = vst.msk [vmem:[#allocation4 + $0x7] sm:$0x1] %vm9010, %v9197
    %v9200 = vcombine.high %v9191, %v9191
    %9201 = vrot.lane.b32.xlu0 %v9200, 64
    %v9202 = vpop.permute.xlu0 %9201
    %9204 = vst.msk [vmem:[#allocation4 + $0x7] sm:$0x1] %vm9016, %v9202
    %v9205 = vrot.slane %v9200, 7
    %v9206 = vrot.slane %v9205, 2
    %9207 = vrot.lane.b32.xlu0 %v9206, 96
    %v9208 = vpop.permute.xlu0 %9207
    %9210 = vst.msk [vmem:[#allocation4 + $0x7] sm:$0x1] %vm9023, %v9208
    %v9211 = vld [vmem:[#allocation4] sm:$0xff]
    %v9212 = vld [vmem:[%s18] sm:$0xff]
    %v9213 = vld [vmem:[%s18 + $0x8] sm:$0xff]
    %v9214 = vld [vmem:[%s18 + $0x10] sm:$0xff]
    %v9215 = vld [vmem:[%s18 + $0x18] sm:$0xff]
    %v9216 = vld [vmem:[%s18 + $0x20] sm:$0xff]
    %v9217 = vld [vmem:[%s18 + $0x28] sm:$0xff]
    %v9218 = vld [vmem:[%s18 + $0x30] sm:$0xff]
    %v9219 = vld [vmem:[%s18 + $0x38] sm:$0xff]
    %v9220 = vld [vmem:[%s18 + $0x40] sm:$0xff]
    %v9221 = vld [vmem:[%s18 + $0x48] sm:$0xff]
    %v9222 = vld [vmem:[%s18 + $0x50] sm:$0xff]
    %v9223 = vld [vmem:[%s18 + $0x58] sm:$0xff]
    %v9224 = vld [vmem:[%s18 + $0x60] sm:$0xff]
    %v9225 = vld [vmem:[%s18 + $0x68] sm:$0xff]
    %v9226 = vld [vmem:[%s18 + $0x70] sm:$0xff]
    %v9227 = vld [vmem:[%s18 + $0x78] sm:$0xff]
    %v9228 = vld [vmem:[%s18 + $0x80] sm:$0xff]
    %v9229 = vld [vmem:[%s18 + $0x88] sm:$0xff]
    %v9230 = vld [vmem:[%s18 + $0x90] sm:$0xff]
    %v9231 = vld [vmem:[%s18 + $0x98] sm:$0xff]
    %v9232 = vld [vmem:[%s18 + $0xa0] sm:$0xff]
    %v9233 = vld [vmem:[%s18 + $0xa8] sm:$0xff]
    %v9234 = vld [vmem:[%s18 + $0xb0] sm:$0xff]
    %v9235 = vld [vmem:[%s18 + $0xb8] sm:$0xff]
    %v9236 = vld [vmem:[%s18 + $0xc0] sm:$0xff]
    %v9237 = vld [vmem:[%s18 + $0xc8] sm:$0xff]
    %v9238 = vld [vmem:[%s18 + $0xd0] sm:$0xff]
    %v9239 = vld [vmem:[%s18 + $0xd8] sm:$0xff]
    %v9240 = vld [vmem:[%s18 + $0xe0] sm:$0xff]
    %v9241 = vld [vmem:[%s18 + $0xe8] sm:$0xff]
    %v9242 = vld [vmem:[%s18 + $0xf0] sm:$0xff]
    %v9243 = vld [vmem:[%s18 + $0xf8] sm:$0xff]
    %v9244 = vld [vmem:[%s18 + $0x100] sm:$0xff]
    %v9245 = vld [vmem:[%s18 + $0x108] sm:$0xff]
    %v9246 = vld [vmem:[%s18 + $0x110] sm:$0xff]
    %v9247 = vld [vmem:[%s18 + $0x118] sm:$0xff]
    %v9248 = vld [vmem:[%s18 + $0x120] sm:$0xff]
    %v9249 = vld [vmem:[%s18 + $0x128] sm:$0xff]
    %v9250 = vld [vmem:[%s18 + $0x130] sm:$0xff]
    %v9251 = vld [vmem:[%s18 + $0x138] sm:$0xff]
    %v9252 = vld [vmem:[%s18 + $0x140] sm:$0xff]
    %v9253 = vld [vmem:[%s18 + $0x148] sm:$0xff]
    %v9254 = vld [vmem:[%s18 + $0x150] sm:$0xff]
    %v9255 = vld [vmem:[%s18 + $0x158] sm:$0xff]
    %v9256 = vld [vmem:[%s18 + $0x160] sm:$0xff]
    %v9257 = vld [vmem:[%s18 + $0x168] sm:$0xff]
    %v9258 = vld [vmem:[%s18 + $0x170] sm:$0xff]
    %v9259 = vld [vmem:[%s18 + $0x178] sm:$0xff]
    %v9260 = vld [vmem:[%s18 + $0x180] sm:$0xff]
    %v9261 = vld [vmem:[%s18 + $0x188] sm:$0xff]
    %v9262 = vld [vmem:[%s18 + $0x190] sm:$0xff]
    %v9263 = vld [vmem:[%s18 + $0x198] sm:$0xff]
    %v9264 = vld [vmem:[%s18 + $0x1a0] sm:$0xff]
    %v9265 = vld [vmem:[%s18 + $0x1a8] sm:$0xff]
    %v9266 = vld [vmem:[%s18 + $0x1b0] sm:$0xff]
    %v9267 = vld [vmem:[%s18 + $0x1b8] sm:$0xff]
    %v9268 = vld [vmem:[%s18 + $0x1c0] sm:$0xff]
    %v9269 = vld [vmem:[%s18 + $0x1c8] sm:$0xff]
    %v9270 = vld [vmem:[%s18 + $0x1d0] sm:$0xff]
    %v9271 = vld [vmem:[%s18 + $0x1d8] sm:$0xff]
    %v9272 = vld [vmem:[%s18 + $0x1e0] sm:$0xff]
    %v9273 = vld [vmem:[%s18 + $0x1e8] sm:$0xff]
    %v9274 = vld [vmem:[%s18 + $0x1f0] sm:$0xff]
    %v9275 = vld [vmem:[%s18 + $0x1f8] sm:$0xff]
    %v9276 = vld [vmem:[%s19] sm:$0x1]
    %v9278 = vlaneseq
    %v9279 = vshrl.u32 %v9278, 7
    %v9280 = vsub.s32 0, %v9279
    %v9281 = vrot.slane %v9276, %v9280
    %v9284 = vcombine.high %v9211, %v9211
    %v9286 = vunpack.c.l.s4 1983009808
    %v9287 = vunpack.c.0.s8 %v9286
    %v9288 = vlaneseq
    %v9289 = vshrl.u32 %v9288, 7
    %v9290 = vsub.s32 %v9287, %v9289
    %v9291 = vrot.slane %v9211, %v9290
    %v9293 = vunpack.c.l.s4 1983009808
    %v9294 = vunpack.c.0.s8 %v9293
    %v9295 = vlaneseq
    %v9296 = vshrl.u32 %v9295, 7
    %v9297 = vsub.s32 %v9294, %v9296
    %v9298 = vrot.slane %v9284, %v9297
    %v9299 = vcombine.high %v9291, %v9291
    %v9300 = vcombine.high %v9298, %v9298
    %9305 = vmatprep.subr.mxu0 0.0
    %9306 = vmatpush1.msra.mxu0 %v9227
    %9307 = vmatprep.subr.mxu0 0.0
    %9308 = vmatpush1.msra.mxu0 %v9226
    %9309 = vmatprep.subr.mxu0 0.0
    %9310 = vmatpush1.msra.mxu0 %v9225
    %9311 = vmatprep.subr.mxu0 0.0
    %9312 = vmatpush1.msra.mxu0 %v9224
    %9313 = vmatprep.subr.mxu0 0.0
    %9314 = vmatpush1.msra.mxu0 %v9223
    %9315 = vmatprep.subr.mxu0 0.0
    %9316 = vmatpush1.msra.mxu0 %v9222
    %9317 = vmatprep.subr.mxu0 0.0
    %9318 = vmatpush1.msra.mxu0 %v9221
    %9319 = vmatprep.subr.mxu0 0.0
    %9320 = vmatpush1.msra.mxu0 %v9220
    %9321 = vmatprep.subr.mxu0 0.0
    %9322 = vmatpush1.msra.mxu0 %v9219
    %9323 = vmatprep.subr.mxu0 0.0
    %9324 = vmatpush1.msra.mxu0 %v9218
    %9325 = vmatprep.subr.mxu0 0.0
    %9326 = vmatpush1.msra.mxu0 %v9217
    %9327 = vmatprep.subr.mxu0 0.0
    %9328 = vmatpush1.msra.mxu0 %v9216
    %9329 = vmatprep.subr.mxu0 0.0
    %9330 = vmatpush1.msra.mxu0 %v9215
    %9331 = vmatprep.subr.mxu0 0.0
    %9332 = vmatpush1.msra.mxu0 %v9214
    %9333 = vmatprep.subr.mxu0 0.0
    %9334 = vmatpush1.msra.mxu0 %v9213
    %9335 = vmatprep.subr.mxu0 0.0
    %9336 = vmatpush1.msra.mxu0 %v9212
    %9337 = vmatprep.subr.mxu0 0.0
    %9338 = vmatpush2.msra.mxu0 %v9243
    %9339 = vmatprep.subr.mxu0 0.0
    %9340 = vmatpush2.msra.mxu0 %v9242
    %9341 = vmatprep.subr.mxu0 0.0
    %9342 = vmatpush2.msra.mxu0 %v9241
    %9343 = vmatprep.subr.mxu0 0.0
    %9344 = vmatpush2.msra.mxu0 %v9240
    %9345 = vmatprep.subr.mxu0 0.0
    %9346 = vmatpush2.msra.mxu0 %v9239
    %9347 = vmatprep.subr.mxu0 0.0
    %9348 = vmatpush2.msra.mxu0 %v9238
    %9349 = vmatprep.subr.mxu0 0.0
    %9350 = vmatpush2.msra.mxu0 %v9237
    %9351 = vmatprep.subr.mxu0 0.0
    %9352 = vmatpush2.msra.mxu0 %v9236
    %9353 = vmatprep.subr.mxu0 0.0
    %9354 = vmatpush2.msra.mxu0 %v9235
    %9355 = vmatprep.subr.mxu0 0.0
    %9356 = vmatpush2.msra.mxu0 %v9234
    %9357 = vmatprep.subr.mxu0 0.0
    %9358 = vmatpush2.msra.mxu0 %v9233
    %9359 = vmatprep.subr.mxu0 0.0
    %9360 = vmatpush2.msra.mxu0 %v9232
    %9361 = vmatprep.subr.mxu0 0.0
    %9362 = vmatpush2.msra.mxu0 %v9231
    %9363 = vmatprep.subr.mxu0 0.0
    %9364 = vmatpush2.msra.mxu0 %v9230
    %9365 = vmatprep.subr.mxu0 0.0
    %9366 = vmatpush2.msra.mxu0 %v9229
    %9367 = vmatprep.subr.mxu0 0.0
    %9368 = vmatpush2.msra.mxu0 %v9228
    %9369 = vmatprep.mubr.f32.mxu0 %v9299
    %9370 = vmatmul.mubr.f32.gmra.mxu0 %v9291
    %v9371 = vpop.f32.mrf.mxu0
    %v9372 = vadd.f32 %v9281, %v9371
    %v9373 = vpop.f32.mrf.mxu0
    %9374 = vdwg.mxu0
    %9375 = vmatprep.subr.mxu0 0.0
    %9376 = vmatpush1.msra.mxu0 %v9259
    %9377 = vmatprep.subr.mxu0 0.0
    %9378 = vmatpush1.msra.mxu0 %v9258
    %9379 = vmatprep.subr.mxu0 0.0
    %9380 = vmatpush1.msra.mxu0 %v9257
    %9381 = vmatprep.subr.mxu0 0.0
    %9382 = vmatpush1.msra.mxu0 %v9256
    %9383 = vmatprep.subr.mxu0 0.0
    %9384 = vmatpush1.msra.mxu0 %v9255
    %9385 = vmatprep.subr.mxu0 0.0
    %9386 = vmatpush1.msra.mxu0 %v9254
    %9387 = vmatprep.subr.mxu0 0.0
    %9388 = vmatpush1.msra.mxu0 %v9253
    %9389 = vmatprep.subr.mxu0 0.0
    %9390 = vmatpush1.msra.mxu0 %v9252
    %9391 = vmatprep.subr.mxu0 0.0
    %9392 = vmatpush1.msra.mxu0 %v9251
    %9393 = vmatprep.subr.mxu0 0.0
    %9394 = vmatpush1.msra.mxu0 %v9250
    %9395 = vmatprep.subr.mxu0 0.0
    %9396 = vmatpush1.msra.mxu0 %v9249
    %9397 = vmatprep.subr.mxu0 0.0
    %9398 = vmatpush1.msra.mxu0 %v9248
    %9399 = vmatprep.subr.mxu0 0.0
    %9400 = vmatpush1.msra.mxu0 %v9247
    %9401 = vmatprep.subr.mxu0 0.0
    %9402 = vmatpush1.msra.mxu0 %v9246
    %9403 = vmatprep.subr.mxu0 0.0
    %9404 = vmatpush1.msra.mxu0 %v9245
    %9405 = vmatprep.subr.mxu0 0.0
    %9406 = vmatpush1.msra.mxu0 %v9244
    %9407 = vmatprep.subr.mxu0 0.0
    %9408 = vmatpush2.msra.mxu0 %v9275
    %9409 = vmatprep.subr.mxu0 0.0
    %9410 = vmatpush2.msra.mxu0 %v9274
    %9411 = vmatprep.subr.mxu0 0.0
    %9412 = vmatpush2.msra.mxu0 %v9273
    %9413 = vmatprep.subr.mxu0 0.0
    %9414 = vmatpush2.msra.mxu0 %v9272
    %9415 = vmatprep.subr.mxu0 0.0
    %9416 = vmatpush2.msra.mxu0 %v9271
    %9417 = vmatprep.subr.mxu0 0.0
    %9418 = vmatpush2.msra.mxu0 %v9270
    %9419 = vmatprep.subr.mxu0 0.0
    %9420 = vmatpush2.msra.mxu0 %v9269
    %9421 = vmatprep.subr.mxu0 0.0
    %9422 = vmatpush2.msra.mxu0 %v9268
    %9423 = vmatprep.subr.mxu0 0.0
    %9424 = vmatpush2.msra.mxu0 %v9267
    %9425 = vmatprep.subr.mxu0 0.0
    %9426 = vmatpush2.msra.mxu0 %v9266
    %9427 = vmatprep.subr.mxu0 0.0
    %9428 = vmatpush2.msra.mxu0 %v9265
    %9429 = vmatprep.subr.mxu0 0.0
    %9430 = vmatpush2.msra.mxu0 %v9264
    %9431 = vmatprep.subr.mxu0 0.0
    %9432 = vmatpush2.msra.mxu0 %v9263
    %9433 = vmatprep.subr.mxu0 0.0
    %9434 = vmatpush2.msra.mxu0 %v9262
    %9435 = vmatprep.subr.mxu0 0.0
    %9436 = vmatpush2.msra.mxu0 %v9261
    %9437 = vmatprep.subr.mxu0 0.0
    %9438 = vmatpush2.msra.mxu0 %v9260
    %9439 = vmatprep.mubr.f32.mxu0 %v9300
    %9440 = vmatmul.mubr.f32.gmra.mxu0 %v9298
    %v9441 = vpop.f32.mrf.mxu0
    %v9442 = vadd.f32 %v9372, %v9441
    %v9443 = vpop.f32.mrf.mxu0
    %9444 = vdwg.mxu0
    %9445 = vst [vmem:[#allocation5] sm:$0x3] %v9442
    // Predicated region
    $region82: #{_lambda_.1} parent=1 // pred_check
      _
    $region83: #{_lambda_.1} parent=1 // pred_check_branch
      %9447 = sbr.rel (0) target = $region85
    $region84: #{_lambda_.1} parent=1 // pred_region
      %s9449 = ssub.s32 32, 32
      %9450 = vsyncadd [#allocation6], %s9449
      %s9452 = sshll.u32 [#allocation5], 4
      %s9453 = int_to_ptr.vmem [resolvable:$true] %s9452
      %9455 = dma.vmem_to_hbm [thread:$0]  %s9453, 32, %s20, [#allocation6]
    $region85: #{_lambda_.1} parent=1 // pred_fallthru
      _
    // Predicated region
    $region86: #{_lambda_.1} parent=1 // pred_check
      _
    $region87: #{_lambda_.1} parent=1 // pred_check_branch
      %9457 = sbr.rel (0) target = $region89
    $region88: #{_lambda_.1} parent=1 // pred_region
      %9458 = dma.done [#allocation6], 32
    $region89: #{_lambda_.1} parent=1 // pred_fallthru
      _
    %9459 = vsyncpa [#allocation6], 1

</llo_original>
